<compile_context>
chip_gen: v6e
topology: v6e:2x2x1
jax: 0.10.0
libtpu: 0.0.40
codegen_flags: <defaults>
</compile_context>

<pallas_src>
import jax
import jax.numpy as jnp
from jax.experimental import pallas as pl
from jax.experimental.pallas import tpu as pltpu


def _round_up(x, m):
    return (x + m - 1) // m * m


def _fold_bn(gamma, beta, mean, var, eps=1e-5):
    scale = gamma / jnp.sqrt(var + eps)
    shift = beta - mean * scale
    return scale, shift


def _prep_weight(w_oihw, scale, in_ch_pad, out_ch_pad):
    """(Cout, Cin, 3, 3) -> (9, in_ch_pad, out_ch_pad) bf16 with BN scale folded in.

    Tap index t = ky*3 + kx; w_taps[t, cin, cout] = w_oihw[cout, cin, ky, kx] * scale[cout].
    """
    cout, cin, kh, kw = w_oihw.shape
    w = jnp.transpose(w_oihw, (2, 3, 1, 0)).reshape(kh * kw, cin, cout)
    w = w * scale[None, None, :]
    w = jnp.pad(w, ((0, 0), (0, in_ch_pad - cin), (0, out_ch_pad - cout)))
    return w.astype(jnp.bfloat16)


def _make_block_kernel(H, W, pad, dil, cin, npad):
    HW = H * W

    def kernel(xp_ref, w1_ref, b1_ref, w2_ref, b2_ref, res_ref, o_ref, y1_scr):
        # ---- conv1 (3x3 taps) + folded-BN scale (in weights) + shift + ReLU ----
        acc = jnp.zeros((HW, npad), jnp.float32)
        for ky in range(3):
            for kx in range(3):
                tap = xp_ref[0, ky * dil:ky * dil + H, kx * dil:kx * dil + W, :]
                acc = acc + jnp.dot(tap.reshape(HW, cin), w1_ref[ky * 3 + kx],
                                    preferred_element_type=jnp.float32)
        y1 = jnp.maximum(acc + b1_ref[...], 0.0)

        # Stash y1 (spatially zero-padded) in VMEM scratch so conv2 never touches HBM.
        # Zero every step: the grid axis is "parallel", so no cross-step carry allowed.
        y1_scr[...] = jnp.zeros_like(y1_scr)
        y1_scr[pad:pad + H, pad:pad + W, :] = (
            y1.reshape(H, W, npad).astype(y1_scr.dtype))

        # ---- conv2 (3x3 taps) + shift + identity residual (no ReLU here) ----
        acc2 = jnp.zeros((HW, npad), jnp.float32)
        for ky in range(3):
            for kx in range(3):
                tap = y1_scr[ky * dil:ky * dil + H, kx * dil:kx * dil + W, :]
                acc2 = acc2 + jnp.dot(tap.reshape(HW, npad), w2_ref[ky * 3 + kx],
                                      preferred_element_type=jnp.float32)
        out = acc2 + b2_ref[...] + res_ref[0]
        o_ref[0] = out.astype(o_ref.dtype)

    return kernel


def basic_block_forward(x_nchw, params, stride=1, pad=1, dilation=1, eps=1e-5):
    """Fused BasicBlock forward for the downsample=None path (stride=1, Cin==Cout)."""
    if stride != 1:
        # TODO(synk): strided / downsample path (needs a projection shortcut kernel).
        raise NotImplementedError("fused BasicBlock kernel supports stride=1 only")
    if pad != dilation:
        raise NotImplementedError("3x3 'same' conv requires pad == dilation")

    B, Cin, H, W = x_nchw.shape
    Cout = params["w1"].shape[0]
    assert params["w2"].shape[:2] == (Cout, Cout)
    assert Cin == Cout, "identity shortcut requires Cin == Cout (downsample=None)"

    Np = _round_up(Cout, 128)          # lane-dense output stores
    Hp, Wp = H + 2 * pad, W + 2 * pad
    HW = H * W

    x_nhwc = jnp.transpose(x_nchw, (0, 2, 3, 1)).astype(jnp.float32)
    # bf16 activations for the MXU; spatial zero-padding done once here (cheap).
    xp = jnp.pad(x_nhwc, ((0, 0), (pad, pad), (pad, pad), (0, 0))).astype(jnp.bfloat16)

    s1, sh1 = _fold_bn(params["g1"], params["be1"], params["m1"], params["v1"], eps)
    s2, sh2 = _fold_bn(params["g2"], params["be2"], params["m2"], params["v2"], eps)
    w1t = _prep_weight(params["w1"], s1, Cin, Np)   # (9, Cin, Np) bf16
    w2t = _prep_weight(params["w2"], s2, Np, Np)    # (9, Np,  Np) bf16
    b1p = jnp.pad(sh1, (0, Np - Cout)).reshape(1, Np).astype(jnp.float32)
    b2p = jnp.pad(sh2, (0, Np - Cout)).reshape(1, Np).astype(jnp.float32)

    # Identity shortcut kept in f32, channel-padded so the in-kernel add is lane-dense.
    res = jnp.pad(x_nhwc.reshape(B, HW, Cin), ((0, 0), (0, 0), (0, Np - Cin)))

    kernel = _make_block_kernel(H, W, pad, dilation, Cin, Np)

    out = pl.pallas_call(
        kernel,
        out_shape=jax.ShapeDtypeStruct((B, HW, Np), jnp.float32),
        grid=(B,),
        in_specs=[
            pl.BlockSpec((1, Hp, Wp, Cin), lambda b: (b, 0, 0, 0)),
            # Weight / shift blocks are grid-invariant (constant index_map), so the
            # pipeline fetches them only once.
            # TODO(synk): pipeline_mode=pl.Buffered(1) to drop their second buffer
            # once verified on the target jax version.
            pl.BlockSpec((9, Cin, Np), lambda b: (0, 0, 0)),
            pl.BlockSpec((1, Np), lambda b: (0, 0)),
            pl.BlockSpec((9, Np, Np), lambda b: (0, 0, 0)),
            pl.BlockSpec((1, Np), lambda b: (0, 0)),
            pl.BlockSpec((1, HW, Np), lambda b: (b, 0, 0)),
        ],
        out_specs=pl.BlockSpec((1, HW, Np), lambda b: (b, 0, 0)),
        scratch_shapes=[pltpu.VMEM((Hp, Wp, Np), jnp.bfloat16)],
        compiler_params=pltpu.CompilerParams(
            dimension_semantics=("parallel",),
            vmem_limit_bytes=48 * 1024 * 1024,
        ),
    )(xp, w1t, b1p, w2t, b2p, res)

    out = out.reshape(B, H, W, Np)[:, :, :, :Cout]
    return jnp.transpose(out, (0, 3, 1, 2))  # back to NCHW


# ---------------------------------------------------------------------------
# Pure-JAX reference (eval-mode BN).  With match_kernel_precision=True it applies
# the same bf16 rounding of activations / folded weights / y1 that the kernel
# uses (bf16 x bf16 products are exact in f32), so the comparison isolates kernel
# correctness from the intentional bf16 mixed-precision choice.
# ---------------------------------------------------------------------------
def reference_forward(x_nchw, params, stride=1, pad=1, dilation=1, eps=1e-5,
                      match_kernel_precision=True):
    f32 = jnp.float32

    def q(a):
        return a.astype(jnp.bfloat16).astype(f32) if match_kernel_precision else a

    def fold(g, b, m, v):
        s = g / jnp.sqrt(v + eps)
        return s, b - m * s

    def conv(x, w, st):
        return jax.lax.conv_general_dilated(
            x, w, window_strides=(st, st), padding=[(pad, pad), (pad, pad)],
            rhs_dilation=(dilation, dilation),
            dimension_numbers=("NCHW", "OIHW", "NCHW"))

    s1, sh1 = fold(params["g1"], params["be1"], params["m1"], params["v1"])
    s2, sh2 = fold(params["g2"], params["be2"], params["m2"], params["v2"])
    w1 = q(params["w1"] * s1[:, None, None, None])
    w2 = q(params["w2"] * s2[:, None, None, None])
    xq = q(x_nchw.astype(f32))

    y1 = jnp.maximum(conv(xq, w1, stride) + sh1[None, :, None, None], 0.0)
    out = conv(q(y1), w2, 1) + sh2[None, :, None, None]
    # NOTE: this module's forward has no ReLU after the residual add.
    return out + x_nchw.astype(f32)


if __name__ == "__main__":
    B, Cin, Cout, H, W = 2, 4, 4, 16, 16   # downsample=None => Cin == Cout, stride=1
    stride, pad, dilation = 1, 1, 1

    key = jax.random.PRNGKey(0)
    ks = jax.random.split(key, 10)
    params = {
        "w1": jax.random.normal(ks[0], (Cout, Cin, 3, 3), jnp.float32) * 0.1,
        "g1": 0.5 + jax.random.uniform(ks[1], (Cout,), jnp.float32),
        "be1": jax.random.normal(ks[2], (Cout,), jnp.float32) * 0.1,
        "m1": jax.random.normal(ks[3], (Cout,), jnp.float32) * 0.1,
        "v1": 0.5 + jax.random.uniform(ks[4], (Cout,), jnp.float32),
        "w2": jax.random.normal(ks[5], (Cout, Cout, 3, 3), jnp.float32) * 0.1,
        "g2": 0.5 + jax.random.uniform(ks[6], (Cout,), jnp.float32),
        "be2": jax.random.normal(ks[7], (Cout,), jnp.float32) * 0.1,
        "m2": jax.random.normal(ks[8], (Cout,), jnp.float32) * 0.1,
        "v2": 0.5 + jax.random.uniform(ks[9], (Cout,), jnp.float32),
    }
    x = jax.random.normal(jax.random.fold_in(key, 7), (B, Cin, H, W), jnp.float32)

    out = basic_block_forward(x, params, stride, pad, dilation)
    out = jax.block_until_ready(out)

    ref = reference_forward(x, params, stride, pad, dilation)
    assert out.shape == (B, Cout, H, W), out.shape
    max_err = jnp.max(jnp.abs(out - ref))
    assert jnp.allclose(out, ref, atol=2e-3, rtol=2e-3), f"max abs err {max_err}"

    print("KERNEL_OK")
</pallas_src>

<mosaic_0001>
module attributes {stable_mosaic.version = 11 : i64} {
  func.func @kernel(%arg0: i32, %arg1: memref<1x18x18x4xbf16, #tpu.memory_space<vmem>>, %arg2: memref<9x4x128xbf16, #tpu.memory_space<vmem>>, %arg3: memref<1x128xf32, #tpu.memory_space<vmem>>, %arg4: memref<9x128x128xbf16, #tpu.memory_space<vmem>>, %arg5: memref<1x128xf32, #tpu.memory_space<vmem>>, %arg6: memref<1x256x128xf32, #tpu.memory_space<vmem>>, %arg7: memref<1x256x128xf32, #tpu.memory_space<vmem>>, %arg8: memref<18x18x128xbf16, #tpu.memory_space<vmem>>) attributes {dimension_semantics = [#tpu.dimension_semantics<parallel>], iteration_bounds = array<i64: 2>, scalar_prefetch = 0 : i64, scratch_operands = 1 : i64, tpu.core_type = #tpu.core_type<tc>, window_params = [{transform_indices = @transform_0, window_bounds = array<i64: 1, 18, 18, 4>}, {pipeline_mode = #tpu.pipeline_mode<synchronous>, transform_indices = @transform_1, window_bounds = array<i64: 9, 4, 128>}, {pipeline_mode = #tpu.pipeline_mode<synchronous>, transform_indices = @transform_2, window_bounds = array<i64: 1, 128>}, {pipeline_mode = #tpu.pipeline_mode<synchronous>, transform_indices = @transform_3, window_bounds = array<i64: 9, 128, 128>}, {pipeline_mode = #tpu.pipeline_mode<synchronous>, transform_indices = @transform_4, window_bounds = array<i64: 1, 128>}, {transform_indices = @transform_5, window_bounds = array<i64: 1, 256, 128>}, {transform_indices = @transform_6, window_bounds = array<i64: 1, 256, 128>}]} {
    %cst = arith.constant 0.000000e+00 : f32
    %0 = vector.broadcast %cst : f32 to vector<256x128xf32>
    %c0 = arith.constant 0 : index
    %c0_0 = arith.constant 0 : index
    %c0_1 = arith.constant 0 : index
    %c0_2 = arith.constant 0 : index
    %1 = vector.load %arg1[%c0, %c0_0, %c0_1, %c0_2] : memref<1x18x18x4xbf16, #tpu.memory_space<vmem>>, vector<1x16x16x4xbf16>
    %2 = vector.shape_cast %1 : vector<1x16x16x4xbf16> to vector<16x16x4xbf16>
    %3 = vector.shape_cast %2 : vector<16x16x4xbf16> to vector<256x4xbf16>
    %c0_3 = arith.constant 0 : index
    %c0_4 = arith.constant 0 : index
    %c0_5 = arith.constant 0 : index
    %4 = vector.load %arg2[%c0_3, %c0_4, %c0_5] : memref<9x4x128xbf16, #tpu.memory_space<vmem>>, vector<1x4x128xbf16>
    %5 = vector.shape_cast %4 : vector<1x4x128xbf16> to vector<4x128xbf16>
    %cst_6 = arith.constant dense<0.000000e+00> : vector<256x128xf32>
    %6 = tpu.matmul %3, %5, %cst_6 {dimension_numbers = #tpu.dot_dimension_numbers<[1], [0], [0], [1], [0, 0, 1, 1], [], []>} : vector<256x4xbf16>, vector<4x128xbf16>, vector<256x128xf32> -> vector<256x128xf32>
    %7 = arith.addf %0, %6 : vector<256x128xf32>
    %c0_7 = arith.constant 0 : index
    %c0_8 = arith.constant 0 : index
    %c1 = arith.constant 1 : index
    %c0_9 = arith.constant 0 : index
    %8 = vector.load %arg1[%c0_7, %c0_8, %c1, %c0_9] : memref<1x18x18x4xbf16, #tpu.memory_space<vmem>>, vector<1x16x16x4xbf16>
    %9 = vector.shape_cast %8 : vector<1x16x16x4xbf16> to vector<16x16x4xbf16>
    %10 = vector.shape_cast %9 : vector<16x16x4xbf16> to vector<256x4xbf16>
    %c1_10 = arith.constant 1 : index
    %c0_11 = arith.constant 0 : index
    %c0_12 = arith.constant 0 : index
    %11 = vector.load %arg2[%c1_10, %c0_11, %c0_12] : memref<9x4x128xbf16, #tpu.memory_space<vmem>>, vector<1x4x128xbf16>
    %12 = vector.shape_cast %11 : vector<1x4x128xbf16> to vector<4x128xbf16>
    %cst_13 = arith.constant dense<0.000000e+00> : vector<256x128xf32>
    %13 = tpu.matmul %10, %12, %cst_13 {dimension_numbers = #tpu.dot_dimension_numbers<[1], [0], [0], [1], [0, 0, 1, 1], [], []>} : vector<256x4xbf16>, vector<4x128xbf16>, vector<256x128xf32> -> vector<256x128xf32>
    %14 = arith.addf %7, %13 : vector<256x128xf32>
    %c0_14 = arith.constant 0 : index
    %c0_15 = arith.constant 0 : index
    %c2 = arith.constant 2 : index
    %c0_16 = arith.constant 0 : index
    %15 = vector.load %arg1[%c0_14, %c0_15, %c2, %c0_16] : memref<1x18x18x4xbf16, #tpu.memory_space<vmem>>, vector<1x16x16x4xbf16>
    %16 = vector.shape_cast %15 : vector<1x16x16x4xbf16> to vector<16x16x4xbf16>
    %17 = vector.shape_cast %16 : vector<16x16x4xbf16> to vector<256x4xbf16>
    %c2_17 = arith.constant 2 : index
    %c0_18 = arith.constant 0 : index
    %c0_19 = arith.constant 0 : index
    %18 = vector.load %arg2[%c2_17, %c0_18, %c0_19] : memref<9x4x128xbf16, #tpu.memory_space<vmem>>, vector<1x4x128xbf16>
    %19 = vector.shape_cast %18 : vector<1x4x128xbf16> to vector<4x128xbf16>
    %cst_20 = arith.constant dense<0.000000e+00> : vector<256x128xf32>
    %20 = tpu.matmul %17, %19, %cst_20 {dimension_numbers = #tpu.dot_dimension_numbers<[1], [0], [0], [1], [0, 0, 1, 1], [], []>} : vector<256x4xbf16>, vector<4x128xbf16>, vector<256x128xf32> -> vector<256x128xf32>
    %21 = arith.addf %14, %20 : vector<256x128xf32>
    %c0_21 = arith.constant 0 : index
    %c1_22 = arith.constant 1 : index
    %c0_23 = arith.constant 0 : index
    %c0_24 = arith.constant 0 : index
    %22 = vector.load %arg1[%c0_21, %c1_22, %c0_23, %c0_24] : memref<1x18x18x4xbf16, #tpu.memory_space<vmem>>, vector<1x16x16x4xbf16>
    %23 = vector.shape_cast %22 : vector<1x16x16x4xbf16> to vector<16x16x4xbf16>
    %24 = vector.shape_cast %23 : vector<16x16x4xbf16> to vector<256x4xbf16>
    %c3 = arith.constant 3 : index
    %c0_25 = arith.constant 0 : index
    %c0_26 = arith.constant 0 : index
    %25 = vector.load %arg2[%c3, %c0_25, %c0_26] : memref<9x4x128xbf16, #tpu.memory_space<vmem>>, vector<1x4x128xbf16>
    %26 = vector.shape_cast %25 : vector<1x4x128xbf16> to vector<4x128xbf16>
    %cst_27 = arith.constant dense<0.000000e+00> : vector<256x128xf32>
    %27 = tpu.matmul %24, %26, %cst_27 {dimension_numbers = #tpu.dot_dimension_numbers<[1], [0], [0], [1], [0, 0, 1, 1], [], []>} : vector<256x4xbf16>, vector<4x128xbf16>, vector<256x128xf32> -> vector<256x128xf32>
    %28 = arith.addf %21, %27 : vector<256x128xf32>
    %c0_28 = arith.constant 0 : index
    %c1_29 = arith.constant 1 : index
    %c1_30 = arith.constant 1 : index
    %c0_31 = arith.constant 0 : index
    %29 = vector.load %arg1[%c0_28, %c1_29, %c1_30, %c0_31] : memref<1x18x18x4xbf16, #tpu.memory_space<vmem>>, vector<1x16x16x4xbf16>
    %30 = vector.shape_cast %29 : vector<1x16x16x4xbf16> to vector<16x16x4xbf16>
    %31 = vector.shape_cast %30 : vector<16x16x4xbf16> to vector<256x4xbf16>
    %c4 = arith.constant 4 : index
    %c0_32 = arith.constant 0 : index
    %c0_33 = arith.constant 0 : index
    %32 = vector.load %arg2[%c4, %c0_32, %c0_33] : memref<9x4x128xbf16, #tpu.memory_space<vmem>>, vector<1x4x128xbf16>
    %33 = vector.shape_cast %32 : vector<1x4x128xbf16> to vector<4x128xbf16>
    %cst_34 = arith.constant dense<0.000000e+00> : vector<256x128xf32>
    %34 = tpu.matmul %31, %33, %cst_34 {dimension_numbers = #tpu.dot_dimension_numbers<[1], [0], [0], [1], [0, 0, 1, 1], [], []>} : vector<256x4xbf16>, vector<4x128xbf16>, vector<256x128xf32> -> vector<256x128xf32>
    %35 = arith.addf %28, %34 : vector<256x128xf32>
    %c0_35 = arith.constant 0 : index
    %c1_36 = arith.constant 1 : index
    %c2_37 = arith.constant 2 : index
    %c0_38 = arith.constant 0 : index
    %36 = vector.load %arg1[%c0_35, %c1_36, %c2_37, %c0_38] : memref<1x18x18x4xbf16, #tpu.memory_space<vmem>>, vector<1x16x16x4xbf16>
    %37 = vector.shape_cast %36 : vector<1x16x16x4xbf16> to vector<16x16x4xbf16>
    %38 = vector.shape_cast %37 : vector<16x16x4xbf16> to vector<256x4xbf16>
    %c5 = arith.constant 5 : index
    %c0_39 = arith.constant 0 : index
    %c0_40 = arith.constant 0 : index
    %39 = vector.load %arg2[%c5, %c0_39, %c0_40] : memref<9x4x128xbf16, #tpu.memory_space<vmem>>, vector<1x4x128xbf16>
    %40 = vector.shape_cast %39 : vector<1x4x128xbf16> to vector<4x128xbf16>
    %cst_41 = arith.constant dense<0.000000e+00> : vector<256x128xf32>
    %41 = tpu.matmul %38, %40, %cst_41 {dimension_numbers = #tpu.dot_dimension_numbers<[1], [0], [0], [1], [0, 0, 1, 1], [], []>} : vector<256x4xbf16>, vector<4x128xbf16>, vector<256x128xf32> -> vector<256x128xf32>
    %42 = arith.addf %35, %41 : vector<256x128xf32>
    %c0_42 = arith.constant 0 : index
    %c2_43 = arith.constant 2 : index
    %c0_44 = arith.constant 0 : index
    %c0_45 = arith.constant 0 : index
    %43 = vector.load %arg1[%c0_42, %c2_43, %c0_44, %c0_45] : memref<1x18x18x4xbf16, #tpu.memory_space<vmem>>, vector<1x16x16x4xbf16>
    %44 = vector.shape_cast %43 : vector<1x16x16x4xbf16> to vector<16x16x4xbf16>
    %45 = vector.shape_cast %44 : vector<16x16x4xbf16> to vector<256x4xbf16>
    %c6 = arith.constant 6 : index
    %c0_46 = arith.constant 0 : index
    %c0_47 = arith.constant 0 : index
    %46 = vector.load %arg2[%c6, %c0_46, %c0_47] : memref<9x4x128xbf16, #tpu.memory_space<vmem>>, vector<1x4x128xbf16>
    %47 = vector.shape_cast %46 : vector<1x4x128xbf16> to vector<4x128xbf16>
    %cst_48 = arith.constant dense<0.000000e+00> : vector<256x128xf32>
    %48 = tpu.matmul %45, %47, %cst_48 {dimension_numbers = #tpu.dot_dimension_numbers<[1], [0], [0], [1], [0, 0, 1, 1], [], []>} : vector<256x4xbf16>, vector<4x128xbf16>, vector<256x128xf32> -> vector<256x128xf32>
    %49 = arith.addf %42, %48 : vector<256x128xf32>
    %c0_49 = arith.constant 0 : index
    %c2_50 = arith.constant 2 : index
    %c1_51 = arith.constant 1 : index
    %c0_52 = arith.constant 0 : index
    %50 = vector.load %arg1[%c0_49, %c2_50, %c1_51, %c0_52] : memref<1x18x18x4xbf16, #tpu.memory_space<vmem>>, vector<1x16x16x4xbf16>
    %51 = vector.shape_cast %50 : vector<1x16x16x4xbf16> to vector<16x16x4xbf16>
    %52 = vector.shape_cast %51 : vector<16x16x4xbf16> to vector<256x4xbf16>
    %c7 = arith.constant 7 : index
    %c0_53 = arith.constant 0 : index
    %c0_54 = arith.constant 0 : index
    %53 = vector.load %arg2[%c7, %c0_53, %c0_54] : memref<9x4x128xbf16, #tpu.memory_space<vmem>>, vector<1x4x128xbf16>
    %54 = vector.shape_cast %53 : vector<1x4x128xbf16> to vector<4x128xbf16>
    %cst_55 = arith.constant dense<0.000000e+00> : vector<256x128xf32>
    %55 = tpu.matmul %52, %54, %cst_55 {dimension_numbers = #tpu.dot_dimension_numbers<[1], [0], [0], [1], [0, 0, 1, 1], [], []>} : vector<256x4xbf16>, vector<4x128xbf16>, vector<256x128xf32> -> vector<256x128xf32>
    %56 = arith.addf %49, %55 : vector<256x128xf32>
    %c0_56 = arith.constant 0 : index
    %c2_57 = arith.constant 2 : index
    %c2_58 = arith.constant 2 : index
    %c0_59 = arith.constant 0 : index
    %57 = vector.load %arg1[%c0_56, %c2_57, %c2_58, %c0_59] : memref<1x18x18x4xbf16, #tpu.memory_space<vmem>>, vector<1x16x16x4xbf16>
    %58 = vector.shape_cast %57 : vector<1x16x16x4xbf16> to vector<16x16x4xbf16>
    %59 = vector.shape_cast %58 : vector<16x16x4xbf16> to vector<256x4xbf16>
    %c8 = arith.constant 8 : index
    %c0_60 = arith.constant 0 : index
    %c0_61 = arith.constant 0 : index
    %60 = vector.load %arg2[%c8, %c0_60, %c0_61] : memref<9x4x128xbf16, #tpu.memory_space<vmem>>, vector<1x4x128xbf16>
    %61 = vector.shape_cast %60 : vector<1x4x128xbf16> to vector<4x128xbf16>
    %cst_62 = arith.constant dense<0.000000e+00> : vector<256x128xf32>
    %62 = tpu.matmul %59, %61, %cst_62 {dimension_numbers = #tpu.dot_dimension_numbers<[1], [0], [0], [1], [0, 0, 1, 1], [], []>} : vector<256x4xbf16>, vector<4x128xbf16>, vector<256x128xf32> -> vector<256x128xf32>
    %63 = arith.addf %56, %62 : vector<256x128xf32>
    %c0_63 = arith.constant 0 : index
    %c0_64 = arith.constant 0 : index
    %64 = vector.load %arg3[%c0_63, %c0_64] : memref<1x128xf32, #tpu.memory_space<vmem>>, vector<1x128xf32>
    %65 = vector.broadcast %64 : vector<1x128xf32> to vector<256x128xf32>
    %66 = arith.addf %63, %65 : vector<256x128xf32>
    %cst_65 = arith.constant 0.000000e+00 : f32
    %67 = vector.broadcast %cst_65 : f32 to vector<256x128xf32>
    %68 = arith.maximumf %66, %67 : vector<256x128xf32>
    %cst_66 = arith.constant 0.000000e+00 : bf16
    %69 = vector.broadcast %cst_66 : bf16 to vector<18x18x128xbf16>
    %c0_67 = arith.constant 0 : index
    %c0_68 = arith.constant 0 : index
    %c0_69 = arith.constant 0 : index
    %70 = vector.load %arg8[%c0_67, %c0_68, %c0_69] : memref<18x18x128xbf16, #tpu.memory_space<vmem>>, vector<18x18x128xbf16>
    tpu.vector_store %arg8[%c0_67, %c0_68, %c0_69], %69 {strides = array<i32>} : memref<18x18x128xbf16, #tpu.memory_space<vmem>>, vector<18x18x128xbf16>,
    %71 = vector.shape_cast %68 : vector<256x128xf32> to vector<16x16x128xf32>
    %72 = arith.truncf %71 : vector<16x16x128xf32> to vector<16x16x128xbf16>
    %c1_70 = arith.constant 1 : index
    %c1_71 = arith.constant 1 : index
    %c0_72 = arith.constant 0 : index
    %73 = vector.load %arg8[%c1_70, %c1_71, %c0_72] : memref<18x18x128xbf16, #tpu.memory_space<vmem>>, vector<16x16x128xbf16>
    tpu.vector_store %arg8[%c1_70, %c1_71, %c0_72], %72 {strides = array<i32>} : memref<18x18x128xbf16, #tpu.memory_space<vmem>>, vector<16x16x128xbf16>,
    %cst_73 = arith.constant 0.000000e+00 : f32
    %74 = vector.broadcast %cst_73 : f32 to vector<256x128xf32>
    %c0_74 = arith.constant 0 : index
    %c0_75 = arith.constant 0 : index
    %c0_76 = arith.constant 0 : index
    %75 = vector.load %arg8[%c0_74, %c0_75, %c0_76] : memref<18x18x128xbf16, #tpu.memory_space<vmem>>, vector<16x16x128xbf16>
    %76 = vector.shape_cast %75 : vector<16x16x128xbf16> to vector<256x128xbf16>
    %c0_77 = arith.constant 0 : index
    %c0_78 = arith.constant 0 : index
    %c0_79 = arith.constant 0 : index
    %77 = vector.load %arg4[%c0_77, %c0_78, %c0_79] : memref<9x128x128xbf16, #tpu.memory_space<vmem>>, vector<1x128x128xbf16>
    %78 = vector.shape_cast %77 : vector<1x128x128xbf16> to vector<128x128xbf16>
    %cst_80 = arith.constant dense<0.000000e+00> : vector<256x128xf32>
    %79 = tpu.matmul %76, %78, %cst_80 {dimension_numbers = #tpu.dot_dimension_numbers<[1], [0], [0], [1], [0, 0, 1, 1], [], []>} : vector<256x128xbf16>, vector<128x128xbf16>, vector<256x128xf32> -> vector<256x128xf32>
    %80 = arith.addf %74, %79 : vector<256x128xf32>
    %c0_81 = arith.constant 0 : index
    %c1_82 = arith.constant 1 : index
    %c0_83 = arith.constant 0 : index
    %81 = vector.load %arg8[%c0_81, %c1_82, %c0_83] : memref<18x18x128xbf16, #tpu.memory_space<vmem>>, vector<16x16x128xbf16>
    %82 = vector.shape_cast %81 : vector<16x16x128xbf16> to vector<256x128xbf16>
    %c1_84 = arith.constant 1 : index
    %c0_85 = arith.constant 0 : index
    %c0_86 = arith.constant 0 : index
    %83 = vector.load %arg4[%c1_84, %c0_85, %c0_86] : memref<9x128x128xbf16, #tpu.memory_space<vmem>>, vector<1x128x128xbf16>
    %84 = vector.shape_cast %83 : vector<1x128x128xbf16> to vector<128x128xbf16>
    %cst_87 = arith.constant dense<0.000000e+00> : vector<256x128xf32>
    %85 = tpu.matmul %82, %84, %cst_87 {dimension_numbers = #tpu.dot_dimension_numbers<[1], [0], [0], [1], [0, 0, 1, 1], [], []>} : vector<256x128xbf16>, vector<128x128xbf16>, vector<256x128xf32> -> vector<256x128xf32>
    %86 = arith.addf %80, %85 : vector<256x128xf32>
    %c0_88 = arith.constant 0 : index
    %c2_89 = arith.constant 2 : index
    %c0_90 = arith.constant 0 : index
    %87 = vector.load %arg8[%c0_88, %c2_89, %c0_90] : memref<18x18x128xbf16, #tpu.memory_space<vmem>>, vector<16x16x128xbf16>
    %88 = vector.shape_cast %87 : vector<16x16x128xbf16> to vector<256x128xbf16>
    %c2_91 = arith.constant 2 : index
    %c0_92 = arith.constant 0 : index
    %c0_93 = arith.constant 0 : index
    %89 = vector.load %arg4[%c2_91, %c0_92, %c0_93] : memref<9x128x128xbf16, #tpu.memory_space<vmem>>, vector<1x128x128xbf16>
    %90 = vector.shape_cast %89 : vector<1x128x128xbf16> to vector<128x128xbf16>
    %cst_94 = arith.constant dense<0.000000e+00> : vector<256x128xf32>
    %91 = tpu.matmul %88, %90, %cst_94 {dimension_numbers = #tpu.dot_dimension_numbers<[1], [0], [0], [1], [0, 0, 1, 1], [], []>} : vector<256x128xbf16>, vector<128x128xbf16>, vector<256x128xf32> -> vector<256x128xf32>
    %92 = arith.addf %86, %91 : vector<256x128xf32>
    %c1_95 = arith.constant 1 : index
    %c0_96 = arith.constant 0 : index
    %c0_97 = arith.constant 0 : index
    %93 = vector.load %arg8[%c1_95, %c0_96, %c0_97] : memref<18x18x128xbf16, #tpu.memory_space<vmem>>, vector<16x16x128xbf16>
    %94 = vector.shape_cast %93 : vector<16x16x128xbf16> to vector<256x128xbf16>
    %c3_98 = arith.constant 3 : index
    %c0_99 = arith.constant 0 : index
    %c0_100 = arith.constant 0 : index
    %95 = vector.load %arg4[%c3_98, %c0_99, %c0_100] : memref<9x128x128xbf16, #tpu.memory_space<vmem>>, vector<1x128x128xbf16>
    %96 = vector.shape_cast %95 : vector<1x128x128xbf16> to vector<128x128xbf16>
    %cst_101 = arith.constant dense<0.000000e+00> : vector<256x128xf32>
    %97 = tpu.matmul %94, %96, %cst_101 {dimension_numbers = #tpu.dot_dimension_numbers<[1], [0], [0], [1], [0, 0, 1, 1], [], []>} : vector<256x128xbf16>, vector<128x128xbf16>, vector<256x128xf32> -> vector<256x128xf32>
    %98 = arith.addf %92, %97 : vector<256x128xf32>
    %c1_102 = arith.constant 1 : index
    %c1_103 = arith.constant 1 : index
    %c0_104 = arith.constant 0 : index
    %99 = vector.load %arg8[%c1_102, %c1_103, %c0_104] : memref<18x18x128xbf16, #tpu.memory_space<vmem>>, vector<16x16x128xbf16>
    %100 = vector.shape_cast %99 : vector<16x16x128xbf16> to vector<256x128xbf16>
    %c4_105 = arith.constant 4 : index
    %c0_106 = arith.constant 0 : index
    %c0_107 = arith.constant 0 : index
    %101 = vector.load %arg4[%c4_105, %c0_106, %c0_107] : memref<9x128x128xbf16, #tpu.memory_space<vmem>>, vector<1x128x128xbf16>
    %102 = vector.shape_cast %101 : vector<1x128x128xbf16> to vector<128x128xbf16>
    %cst_108 = arith.constant dense<0.000000e+00> : vector<256x128xf32>
    %103 = tpu.matmul %100, %102, %cst_108 {dimension_numbers = #tpu.dot_dimension_numbers<[1], [0], [0], [1], [0, 0, 1, 1], [], []>} : vector<256x128xbf16>, vector<128x128xbf16>, vector<256x128xf32> -> vector<256x128xf32>
    %104 = arith.addf %98, %103 : vector<256x128xf32>
    %c1_109 = arith.constant 1 : index
    %c2_110 = arith.constant 2 : index
    %c0_111 = arith.constant 0 : index
    %105 = vector.load %arg8[%c1_109, %c2_110, %c0_111] : memref<18x18x128xbf16, #tpu.memory_space<vmem>>, vector<16x16x128xbf16>
    %106 = vector.shape_cast %105 : vector<16x16x128xbf16> to vector<256x128xbf16>
    %c5_112 = arith.constant 5 : index
    %c0_113 = arith.constant 0 : index
    %c0_114 = arith.constant 0 : index
    %107 = vector.load %arg4[%c5_112, %c0_113, %c0_114] : memref<9x128x128xbf16, #tpu.memory_space<vmem>>, vector<1x128x128xbf16>
    %108 = vector.shape_cast %107 : vector<1x128x128xbf16> to vector<128x128xbf16>
    %cst_115 = arith.constant dense<0.000000e+00> : vector<256x128xf32>
    %109 = tpu.matmul %106, %108, %cst_115 {dimension_numbers = #tpu.dot_dimension_numbers<[1], [0], [0], [1], [0, 0, 1, 1], [], []>} : vector<256x128xbf16>, vector<128x128xbf16>, vector<256x128xf32> -> vector<256x128xf32>
    %110 = arith.addf %104, %109 : vector<256x128xf32>
    %c2_116 = arith.constant 2 : index
    %c0_117 = arith.constant 0 : index
    %c0_118 = arith.constant 0 : index
    %111 = vector.load %arg8[%c2_116, %c0_117, %c0_118] : memref<18x18x128xbf16, #tpu.memory_space<vmem>>, vector<16x16x128xbf16>
    %112 = vector.shape_cast %111 : vector<16x16x128xbf16> to vector<256x128xbf16>
    %c6_119 = arith.constant 6 : index
    %c0_120 = arith.constant 0 : index
    %c0_121 = arith.constant 0 : index
    %113 = vector.load %arg4[%c6_119, %c0_120, %c0_121] : memref<9x128x128xbf16, #tpu.memory_space<vmem>>, vector<1x128x128xbf16>
    %114 = vector.shape_cast %113 : vector<1x128x128xbf16> to vector<128x128xbf16>
    %cst_122 = arith.constant dense<0.000000e+00> : vector<256x128xf32>
    %115 = tpu.matmul %112, %114, %cst_122 {dimension_numbers = #tpu.dot_dimension_numbers<[1], [0], [0], [1], [0, 0, 1, 1], [], []>} : vector<256x128xbf16>, vector<128x128xbf16>, vector<256x128xf32> -> vector<256x128xf32>
    %116 = arith.addf %110, %115 : vector<256x128xf32>
    %c2_123 = arith.constant 2 : index
    %c1_124 = arith.constant 1 : index
    %c0_125 = arith.constant 0 : index
    %117 = vector.load %arg8[%c2_123, %c1_124, %c0_125] : memref<18x18x128xbf16, #tpu.memory_space<vmem>>, vector<16x16x128xbf16>
    %118 = vector.shape_cast %117 : vector<16x16x128xbf16> to vector<256x128xbf16>
    %c7_126 = arith.constant 7 : index
    %c0_127 = arith.constant 0 : index
    %c0_128 = arith.constant 0 : index
    %119 = vector.load %arg4[%c7_126, %c0_127, %c0_128] : memref<9x128x128xbf16, #tpu.memory_space<vmem>>, vector<1x128x128xbf16>
    %120 = vector.shape_cast %119 : vector<1x128x128xbf16> to vector<128x128xbf16>
    %cst_129 = arith.constant dense<0.000000e+00> : vector<256x128xf32>
    %121 = tpu.matmul %118, %120, %cst_129 {dimension_numbers = #tpu.dot_dimension_numbers<[1], [0], [0], [1], [0, 0, 1, 1], [], []>} : vector<256x128xbf16>, vector<128x128xbf16>, vector<256x128xf32> -> vector<256x128xf32>
    %122 = arith.addf %116, %121 : vector<256x128xf32>
    %c2_130 = arith.constant 2 : index
    %c2_131 = arith.constant 2 : index
    %c0_132 = arith.constant 0 : index
    %123 = vector.load %arg8[%c2_130, %c2_131, %c0_132] : memref<18x18x128xbf16, #tpu.memory_space<vmem>>, vector<16x16x128xbf16>
    %124 = vector.shape_cast %123 : vector<16x16x128xbf16> to vector<256x128xbf16>
    %c8_133 = arith.constant 8 : index
    %c0_134 = arith.constant 0 : index
    %c0_135 = arith.constant 0 : index
    %125 = vector.load %arg4[%c8_133, %c0_134, %c0_135] : memref<9x128x128xbf16, #tpu.memory_space<vmem>>, vector<1x128x128xbf16>
    %126 = vector.shape_cast %125 : vector<1x128x128xbf16> to vector<128x128xbf16>
    %cst_136 = arith.constant dense<0.000000e+00> : vector<256x128xf32>
    %127 = tpu.matmul %124, %126, %cst_136 {dimension_numbers = #tpu.dot_dimension_numbers<[1], [0], [0], [1], [0, 0, 1, 1], [], []>} : vector<256x128xbf16>, vector<128x128xbf16>, vector<256x128xf32> -> vector<256x128xf32>
    %128 = arith.addf %122, %127 : vector<256x128xf32>
    %c0_137 = arith.constant 0 : index
    %c0_138 = arith.constant 0 : index
    %129 = vector.load %arg5[%c0_137, %c0_138] : memref<1x128xf32, #tpu.memory_space<vmem>>, vector<1x128xf32>
    %130 = vector.broadcast %129 : vector<1x128xf32> to vector<256x128xf32>
    %131 = arith.addf %128, %130 : vector<256x128xf32>
    %c0_139 = arith.constant 0 : index
    %c0_140 = arith.constant 0 : index
    %c0_141 = arith.constant 0 : index
    %132 = vector.load %arg6[%c0_139, %c0_140, %c0_141] : memref<1x256x128xf32, #tpu.memory_space<vmem>>, vector<1x256x128xf32>
    %133 = vector.shape_cast %132 : vector<1x256x128xf32> to vector<256x128xf32>
    %134 = arith.addf %131, %133 : vector<256x128xf32>
    %c0_142 = arith.constant 0 : index
    %c0_143 = arith.constant 0 : index
    %c0_144 = arith.constant 0 : index
    %135 = vector.load %arg7[%c0_142, %c0_143, %c0_144] : memref<1x256x128xf32, #tpu.memory_space<vmem>>, vector<1x256x128xf32>
    %136 = vector.shape_cast %135 : vector<1x256x128xf32> to vector<256x128xf32>
    %137 = vector.shape_cast %134 : vector<256x128xf32> to vector<1x256x128xf32>
    tpu.vector_store %arg7[%c0_142, %c0_143, %c0_144], %137 {strides = array<i32>} : memref<1x256x128xf32, #tpu.memory_space<vmem>>, vector<1x256x128xf32>,
    return
  }
  func.func @transform_0(%arg0: i32) -> (i32, i32, i32, i32) {
    %c0_i32 = arith.constant 0 : i32
    %c0_i32_0 = arith.constant 0 : i32
    %c0_i32_1 = arith.constant 0 : i32
    %c0_i32_2 = arith.constant 0 : i32
    return %arg0, %c0_i32, %c0_i32_0, %c0_i32_1 : i32, i32, i32, i32
  }
  func.func @transform_1(%arg0: i32) -> (i32, i32, i32) {
    %c0_i32 = arith.constant 0 : i32
    %c0_i32_0 = arith.constant 0 : i32
    %c0_i32_1 = arith.constant 0 : i32
    %c0_i32_2 = arith.constant 0 : i32
    return %c0_i32, %c0_i32_0, %c0_i32_1 : i32, i32, i32
  }
  func.func @transform_2(%arg0: i32) -> (i32, i32) {
    %c0_i32 = arith.constant 0 : i32
    %c0_i32_0 = arith.constant 0 : i32
    %c0_i32_1 = arith.constant 0 : i32
    return %c0_i32, %c0_i32_0 : i32, i32
  }
  func.func @transform_3(%arg0: i32) -> (i32, i32, i32) {
    %c0_i32 = arith.constant 0 : i32
    %c0_i32_0 = arith.constant 0 : i32
    %c0_i32_1 = arith.constant 0 : i32
    %c0_i32_2 = arith.constant 0 : i32
    return %c0_i32, %c0_i32_0, %c0_i32_1 : i32, i32, i32
  }
  func.func @transform_4(%arg0: i32) -> (i32, i32) {
    %c0_i32 = arith.constant 0 : i32
    %c0_i32_0 = arith.constant 0 : i32
    %c0_i32_1 = arith.constant 0 : i32
    return %c0_i32, %c0_i32_0 : i32, i32
  }
  func.func @transform_5(%arg0: i32) -> (i32, i32, i32) {
    %c0_i32 = arith.constant 0 : i32
    %c0_i32_0 = arith.constant 0 : i32
    %c0_i32_1 = arith.constant 0 : i32
    return %arg0, %c0_i32, %c0_i32_0 : i32, i32, i32
  }
  func.func @transform_6(%arg0: i32) -> (i32, i32, i32) {
    %c0_i32 = arith.constant 0 : i32
    %c0_i32_0 = arith.constant 0 : i32
    %c0_i32_1 = arith.constant 0 : i32
    return %arg0, %c0_i32, %c0_i32_0 : i32, i32, i32
  }
}

</mosaic_0001>

<llo_original>
// kernel: tpu_custom_call.1
$region0: #{tpu_custom_call.1}
  #allocation0 [shape = 'u32[]', space=smem, size = 0x4, offset = 0x4, fixed_abs, tag = 'smem constant byte address 0x4 - core index']
  #allocation1 [shape = 'u32[144,128]{1,0:T(1,128)}', space=vmem, size = 0x12000, scoped, tag = 'internal scratch']
  #allocation2 [shape = 'bf16[18,18,128]{2,1,0:T(8,128)(2,1)}', space=vmem, size = 0x1b000, scoped, tag = 'scratch operand']
  %s0 = inlined_call_operand.vmem [shape: bf16[2,18,18,4], index: 0, kind: input, shape index: {}]
  %s1 = inlined_call_operand.hbm [shape: bf16[9,4,128], index: 1, kind: input, shape index: {}]
  %s2 = inlined_call_operand.vmem [shape: f32[1,128], index: 2, kind: input, shape index: {}]
  %s3 = inlined_call_operand.hbm [shape: bf16[9,128,128], index: 3, kind: input, shape index: {}]
  %s4 = inlined_call_operand.hbm [shape: f32[1,128], index: 4, kind: input, shape index: {}]
  %s5 = inlined_call_operand.vmem [shape: f32[2,256,128], index: 5, kind: input, shape index: {}]
  %s6 = inlined_call_operand.hbm [shape: f32[2,256,128], index: 6, kind: output, shape index: {}]
  %s7 = sld [smem:[#allocation0]]
  $region69: #{tpu_custom_call.1} parent=0
    _
  %s9 = ssub.s32 1, %s7
  %s10 = scalar_select 0, %s9, %s7
  $region1: #{tpu_custom_call.1} parent=0
    #allocation3 [shape = 'u8[9216]{0}', space=vmem, size = 0x2400, scoped, tag = 'input window, operand 1, single buffered']
    #allocation4 [shape = 's32[2]{0}', space=sflag, size = 0x8, scoped, tag = 'scoped memory for tpu_custom_call.1']
    #allocation5 [shape = 's32[2]{0}', space=sflag, size = 0x8, scoped, tag = 'scoped memory for tpu_custom_call.1']
    #allocation6 [shape = 'u8[294912]{0}', space=vmem, size = 0x48000, scoped, tag = 'input window, operand 3, single buffered']
    #allocation7 [shape = 's32[1]{0}', space=sflag, size = 0x4, scoped, tag = 'scoped memory for tpu_custom_call.1']
    #allocation8 [shape = 'u8[512]{0}', space=vmem, size = 0x400, scoped, tag = 'input window, operand 4, single buffered']
    #allocation9 [shape = 'u8[262144]{0}', space=vmem, size = 0x40000, scoped, tag = 'output window, operand 0']
    %11 = vsyncpa [#allocation4], 0
    %12 = vsyncpa [#allocation7], 0
    %13 = vsyncpa [#allocation5], 0
    %s14 = scalar_lea.sflag [#allocation5], 1
    %15 = vsyncpa %s14, 0
    loop: start=0, step=1, limit=4
    $region2: #{tpu_custom_call.1} parent=1 // loop_pre_header
      _
    $region3: #{tpu_custom_call.1} parent=1 // loop_header
      %s17 = sphi 0, %s21
      %p18 = scmp.ge.s32.totalorder %s17, 4
      %s27 = sphi 0, %s29
      %s30 = sphi 0, %s27
      %s31 = sphi 0, %s30
      %s47 = sphi 0, %s31
      %s51 = sphi 0, %s51
      %s53 = sphi 0, %s51
      %s54 = sphi 0, %s53
      %s68 = sphi 0, %s54
      %s72 = sphi 0, %s72
      %s74 = sphi 0, %s72
      %s75 = sphi 0, %s74
      %s89 = sphi 0, %s75
      %s93 = sphi 0, %s93
      %s95 = sphi 0, %s93
      %s96 = sphi 0, %s95
      %s110 = sphi 0, %s96
      %s114 = sphi 0, %s114
      %s116 = sphi 0, %s114
      %s117 = sphi 0, %s116
      %s131 = sphi 0, %s117
      %s137 = sphi 0, %s139
      %s140 = sphi 0, %s137
      %s141 = sphi 0, %s140
      %s157 = sphi 0, %s141
      %s163 = sphi 0, %s165
      %s166 = sphi 0, %s163
      %s167 = sphi 0, %s166
      %s183 = sphi 0, %s167
    $region4: #{tpu_custom_call.1} parent=1 // loop_header_branch
      %20 = sbr.rel (%p18) target = $region8
    $region5: #{tpu_custom_call.1} parent=1 // loop_body
      %s22 = ssub.s32 %s17, 1
      %s23 = ssub.s32 %s17, 2
      %s24 = sadd.s32 %s17, 1
      %s25 = ssub.s32 %s17, %s24
      %p26 = scmp.eq.s32.totalorder %s25, 0
      %s28 = sadd.s32 %s27, 1
      %s29 = scalar_select %p26, %s27, %s28
      %p32 = pneg %p26
      %p33 = scmp.eq.s32.totalorder %s17, 1
      %p34 = por %p32, %p33
      %p35 = scmp.ne.s32.totalorder %s27, %s30
      %p36 = scmp.eq.s32.totalorder %s17, 0
      %p37 = por %p35, %p36
      %p38 = scmp.ne.s32.totalorder %s27, %s30
      %p39 = scmp.eq.s32.totalorder %s22, 1
      %p40 = por %p38, %p39
      %p41 = scmp.ne.s32.totalorder %s30, %s31
      %p42 = scmp.eq.s32.totalorder %s22, 0
      %p43 = por %p41, %p42
      %p44 = scmp.ne.s32.totalorder %s30, %s31
      %p45 = scmp.eq.s32.totalorder %s23, 1
      %p46 = por %p44, %p45
      %p48 = scmp.ne.s32.totalorder %s31, %s47
      %p49 = scmp.eq.s32.totalorder %s23, 0
      %p50 = por %p48, %p49
      %s52 = sadd.s32 %s51, 1
      %p55 = scmp.eq.s32.totalorder %s17, 1
      %p56 = scmp.ne.s32.totalorder %s51, %s53
      %p57 = scmp.eq.s32.totalorder %s17, 0
      %p58 = por %p56, %p57
      %p59 = scmp.ne.s32.totalorder %s51, %s53
      %p60 = scmp.eq.s32.totalorder %s22, 1
      %p61 = por %p59, %p60
      %p62 = scmp.ne.s32.totalorder %s53, %s54
      %p63 = scmp.eq.s32.totalorder %s22, 0
      %p64 = por %p62, %p63
      %p65 = scmp.ne.s32.totalorder %s53, %s54
      %p66 = scmp.eq.s32.totalorder %s23, 1
      %p67 = por %p65, %p66
      %p69 = scmp.ne.s32.totalorder %s54, %s68
      %p70 = scmp.eq.s32.totalorder %s23, 0
      %p71 = por %p69, %p70
      %s73 = sadd.s32 %s72, 1
      %p76 = scmp.eq.s32.totalorder %s17, 1
      %p77 = scmp.ne.s32.totalorder %s72, %s74
      %p78 = scmp.eq.s32.totalorder %s17, 0
      %p79 = por %p77, %p78
      %p80 = scmp.ne.s32.totalorder %s72, %s74
      %p81 = scmp.eq.s32.totalorder %s22, 1
      %p82 = por %p80, %p81
      %p83 = scmp.ne.s32.totalorder %s74, %s75
      %p84 = scmp.eq.s32.totalorder %s22, 0
      %p85 = por %p83, %p84
      %p86 = scmp.ne.s32.totalorder %s74, %s75
      %p87 = scmp.eq.s32.totalorder %s23, 1
      %p88 = por %p86, %p87
      %p90 = scmp.ne.s32.totalorder %s75, %s89
      %p91 = scmp.eq.s32.totalorder %s23, 0
      %p92 = por %p90, %p91
      %s94 = sadd.s32 %s93, 1
      %p97 = scmp.eq.s32.totalorder %s17, 1
      %p98 = scmp.ne.s32.totalorder %s93, %s95
      %p99 = scmp.eq.s32.totalorder %s17, 0
      %p100 = por %p98, %p99
      %p101 = scmp.ne.s32.totalorder %s93, %s95
      %p102 = scmp.eq.s32.totalorder %s22, 1
      %p103 = por %p101, %p102
      %p104 = scmp.ne.s32.totalorder %s95, %s96
      %p105 = scmp.eq.s32.totalorder %s22, 0
      %p106 = por %p104, %p105
      %p107 = scmp.ne.s32.totalorder %s95, %s96
      %p108 = scmp.eq.s32.totalorder %s23, 1
      %p109 = por %p107, %p108
      %p111 = scmp.ne.s32.totalorder %s96, %s110
      %p112 = scmp.eq.s32.totalorder %s23, 0
      %p113 = por %p111, %p112
      %s115 = sadd.s32 %s114, 1
      %p118 = scmp.eq.s32.totalorder %s17, 1
      %p119 = scmp.ne.s32.totalorder %s114, %s116
      %p120 = scmp.eq.s32.totalorder %s17, 0
      %p121 = por %p119, %p120
      %p122 = scmp.ne.s32.totalorder %s114, %s116
      %p123 = scmp.eq.s32.totalorder %s22, 1
      %p124 = por %p122, %p123
      %p125 = scmp.ne.s32.totalorder %s116, %s117
      %p126 = scmp.eq.s32.totalorder %s22, 0
      %p127 = por %p125, %p126
      %p128 = scmp.ne.s32.totalorder %s116, %s117
      %p129 = scmp.eq.s32.totalorder %s23, 1
      %p130 = por %p128, %p129
      %p132 = scmp.ne.s32.totalorder %s117, %s131
      %p133 = scmp.eq.s32.totalorder %s23, 0
      %p134 = por %p132, %p133
      %s135 = ssub.s32 %s17, %s24
      %p136 = scmp.eq.s32.totalorder %s135, 0
      %s138 = sadd.s32 %s137, 1
      %s139 = scalar_select %p136, %s137, %s138
      %p142 = pneg %p136
      %p143 = scmp.eq.s32.totalorder %s17, 1
      %p144 = por %p142, %p143
      %p145 = scmp.ne.s32.totalorder %s137, %s140
      %p146 = scmp.eq.s32.totalorder %s17, 0
      %p147 = por %p145, %p146
      %p148 = scmp.ne.s32.totalorder %s137, %s140
      %p149 = scmp.eq.s32.totalorder %s22, 1
      %p150 = por %p148, %p149
      %p151 = scmp.ne.s32.totalorder %s140, %s141
      %p152 = scmp.eq.s32.totalorder %s22, 0
      %p153 = por %p151, %p152
      %p154 = scmp.ne.s32.totalorder %s140, %s141
      %p155 = scmp.eq.s32.totalorder %s23, 1
      %p156 = por %p154, %p155
      %p158 = scmp.ne.s32.totalorder %s141, %s157
      %p159 = scmp.eq.s32.totalorder %s23, 0
      %p160 = por %p158, %p159
      %s161 = ssub.s32 %s17, %s24
      %p162 = scmp.eq.s32.totalorder %s161, 0
      %s164 = sadd.s32 %s163, 1
      %s165 = scalar_select %p162, %s163, %s164
      %p168 = pneg %p162
      %p169 = scmp.eq.s32.totalorder %s17, 1
      %p170 = por %p168, %p169
      %p171 = scmp.ne.s32.totalorder %s163, %s166
      %p172 = scmp.eq.s32.totalorder %s17, 0
      %p173 = por %p171, %p172
      %p174 = scmp.ne.s32.totalorder %s163, %s166
      %p175 = scmp.eq.s32.totalorder %s22, 1
      %p176 = por %p174, %p175
      %p177 = scmp.ne.s32.totalorder %s166, %s167
      %p178 = scmp.eq.s32.totalorder %s22, 0
      %p179 = por %p177, %p178
      %p180 = scmp.ne.s32.totalorder %s166, %s167
      %p181 = scmp.eq.s32.totalorder %s23, 1
      %p182 = por %p180, %p181
      %p184 = scmp.ne.s32.totalorder %s167, %s183
      %p185 = scmp.eq.s32.totalorder %s23, 0
      %p186 = por %p184, %p185
      %p187 = scmp.le.s32.totalorder 1, %s17
      %p188 = scmp.lt.s32.totalorder %s17, 3
      %p189 = pnand %p187, %p188
      %p190 = pneg %p189
      // Predicated region
      $region9: #{tpu_custom_call.1} parent=5 // pred_check
        _
      $region10: #{tpu_custom_call.1} parent=5 // pred_check_branch
        %192 = sbr.rel (%p189) target = $region12
      $region11: #{tpu_custom_call.1} parent=5 // pred_region
        %s193 = ssub.s32 %s17, 1
        // Predicated region
        $region13: #{tpu_custom_call.1} parent=11 // pred_check
          %p194 = pneg %p64
        $region14: #{tpu_custom_call.1} parent=11 // pred_check_branch
          %196 = sbr.rel (%p194) target = $region16
        $region15: #{tpu_custom_call.1} parent=11 // pred_region
          %s198 = ssub.s32 288, 288
          %199 = vsyncadd [#allocation4], %s198
          %s200 = sshll.u32 [#allocation3], 4
          %s201 = int_to_ptr.vmem [resolvable:$true] %s200
          %206 = dma.hbm_to_vmem [thread:$0]  %s1, 288, %s201, [#allocation4], 32, 32, 2
        $region16: #{tpu_custom_call.1} parent=11 // pred_fallthru
          _
        // Predicated region
        $region17: #{tpu_custom_call.1} parent=11 // pred_check
          %p207 = pneg %p85
        $region18: #{tpu_custom_call.1} parent=11 // pred_check_branch
          %209 = sbr.rel (%p207) target = $region20
        $region19: #{tpu_custom_call.1} parent=11 // pred_region
          _
        $region20: #{tpu_custom_call.1} parent=11 // pred_fallthru
          _
        // Predicated region
        $region21: #{tpu_custom_call.1} parent=11 // pred_check
          %p210 = pneg %p106
        $region22: #{tpu_custom_call.1} parent=11 // pred_check_branch
          %212 = sbr.rel (%p210) target = $region24
        $region23: #{tpu_custom_call.1} parent=11 // pred_region
          %s214 = ssub.s32 9216, 9216
          %215 = vsyncadd [#allocation7], %s214
          %s216 = sshll.u32 [#allocation6], 4
          %s217 = int_to_ptr.vmem [resolvable:$true] %s216
          %222 = dma.hbm_to_vmem [thread:$0]  %s3, 9216, %s217, [#allocation7], 64, 64, 4
        $region24: #{tpu_custom_call.1} parent=11 // pred_fallthru
          _
        // Predicated region
        $region25: #{tpu_custom_call.1} parent=11 // pred_check
          %p223 = pneg %p127
        $region26: #{tpu_custom_call.1} parent=11 // pred_check_branch
          %225 = sbr.rel (%p223) target = $region28
        $region27: #{tpu_custom_call.1} parent=11 // pred_region
          %s227 = ssub.s32 16, 16
          %228 = vsyncadd [#allocation7], %s227
          %s230 = sshll.u32 [#allocation8], 4
          %s231 = int_to_ptr.vmem [resolvable:$true] %s230
          %233 = dma.hbm_to_vmem [thread:$0]  %s4, 16, %s231, [#allocation7]
        $region28: #{tpu_custom_call.1} parent=11 // pred_fallthru
          _
      $region12: #{tpu_custom_call.1} parent=5 // pred_fallthru
        _
      %p234 = scmp.lt.s32.totalorder %s17, 2
      // Predicated region
      $region29: #{tpu_custom_call.1} parent=5 // pred_check
        %p235 = pneg %p234
      $region30: #{tpu_custom_call.1} parent=5 // pred_check_branch
        %237 = sbr.rel (%p235) target = $region32
      $region31: #{tpu_custom_call.1} parent=5 // pred_region
        // Predicated region
        $region33: #{tpu_custom_call.1} parent=31 // pred_check
          %p238 = pneg %p37
        $region34: #{tpu_custom_call.1} parent=31 // pred_check_branch
          %240 = sbr.rel (%p238) target = $region36
        $region35: #{tpu_custom_call.1} parent=31 // pred_region
          %p241 = scmp.lt.s32.totalorder %s17, 1
          %s242 = scalar_select %p241, %s17, 1
          %s243 = smul.addr %s242, 54
          %s244 = smul.addr %s243, 4
          %s245 = scalar_lea.vmem %s0, %s244
        $region36: #{tpu_custom_call.1} parent=31 // pred_fallthru
          _
        // Predicated region
        $region37: #{tpu_custom_call.1} parent=31 // pred_check
          %p246 = pneg %p147
        $region38: #{tpu_custom_call.1} parent=31 // pred_check_branch
          %248 = sbr.rel (%p246) target = $region40
        $region39: #{tpu_custom_call.1} parent=31 // pred_region
          %p249 = scmp.lt.s32.totalorder %s17, 1
          %s250 = scalar_select %p249, %s17, 1
          %s251 = smul.addr %s250, 32
          %s252 = smul.addr %s251, 8
          %s253 = scalar_lea.vmem %s5, %s252
        $region40: #{tpu_custom_call.1} parent=31 // pred_fallthru
          _
      $region32: #{tpu_custom_call.1} parent=5 // pred_fallthru
        _
      %p254 = scmp.le.s32.totalorder 1, %s17
      %p255 = scmp.lt.s32.totalorder %s17, 3
      %p256 = pnand %p254, %p255
      %p257 = pneg %p256
      // Predicated region
      $region41: #{tpu_custom_call.1} parent=5 // pred_check
        _
      $region42: #{tpu_custom_call.1} parent=5 // pred_check_branch
        %259 = sbr.rel (%p256) target = $region44
      $region43: #{tpu_custom_call.1} parent=5 // pred_region
        %s260 = ssub.s32 %s17, 1
        // Predicated region
        $region45: #{tpu_custom_call.1} parent=43 // pred_check
          %p261 = pneg %p64
        $region46: #{tpu_custom_call.1} parent=43 // pred_check_branch
          %263 = sbr.rel (%p261) target = $region48
        $region47: #{tpu_custom_call.1} parent=43 // pred_region
          %264 = dma.done [#allocation4], 288
        $region48: #{tpu_custom_call.1} parent=43 // pred_fallthru
          _
        // Predicated region
        $region49: #{tpu_custom_call.1} parent=43 // pred_check
          %p265 = pneg %p106
        $region50: #{tpu_custom_call.1} parent=43 // pred_check_branch
          %267 = sbr.rel (%p265) target = $region52
        $region51: #{tpu_custom_call.1} parent=43 // pred_region
          %268 = dma.done [#allocation7], 9216
        $region52: #{tpu_custom_call.1} parent=43 // pred_fallthru
          _
        // Predicated region
        $region53: #{tpu_custom_call.1} parent=43 // pred_check
          %p269 = pneg %p127
        $region54: #{tpu_custom_call.1} parent=43 // pred_check_branch
          %271 = sbr.rel (%p269) target = $region56
        $region55: #{tpu_custom_call.1} parent=43 // pred_region
          %272 = dma.done [#allocation7], 16
        $region56: #{tpu_custom_call.1} parent=43 // pred_fallthru
          _
        %p273 = scmp.lt.s32.totalorder %s22, 1
        %s274 = scalar_select %p273, %s22, 1
        %s275 = smul.addr %s274, 54
        %s276 = smul.addr %s275, 4
        %s277 = scalar_lea.vmem %s0, %s276
        %p278 = pneg %p43
        %p279 = pneg %p40
        %p280 = pneg %p64
        %p281 = pneg %p61
        %p282 = pneg %p85
        %p283 = pneg %p82
        %p284 = pneg %p106
        %p285 = pneg %p103
        %p286 = pneg %p127
        %p287 = pneg %p124
        %p288 = scmp.lt.s32.totalorder %s22, 1
        %s289 = scalar_select %p288, %s22, 1
        %s290 = smul.addr %s289, 32
        %s291 = smul.addr %s290, 8
        %s292 = scalar_lea.vmem %s5, %s291
        %p293 = pneg %p153
        %p294 = pneg %p150
        %p295 = pneg %p179
        %p296 = pneg %p176
        %s297 = sand.u32 %s166, 1
        %s298 = scalar_lea.sflag [#allocation5], %s297
        %s299 = sand.u32 %s166, 1
        %s300 = smul.addr %s299, 256
        %s301 = scalar_lea.vmem [#allocation9], %s300
        %p302 = scmp.lt.s32.totalorder %s22, 1
        %s303 = scalar_select %p302, %s22, 1
        %s304 = smul.addr %s303, 54
        %s305 = smul.addr %s304, 4
        %s306 = scalar_lea.vmem %s0, %s305
        %p307 = scmp.lt.s32.totalorder %s22, 1
        %s308 = scalar_select %p307, %s22, 1
        %s309 = smul.addr %s308, 32
        %s310 = smul.addr %s309, 8
        %s311 = scalar_lea.vmem %s5, %s310
        %v313 = vld [vmem:[%s306] sm:$0xf]
        %v314 = vld [vmem:[%s306 + $0x4] sm:$0xf]
        %v315 = vld [vmem:[%s306 + $0xc] sm:$0xf]
        %v316 = vld [vmem:[%s306 + $0x10] sm:$0xf]
        %v317 = vld [vmem:[%s306 + $0x18] sm:$0xf]
        %v318 = vld [vmem:[%s306 + $0x1c] sm:$0xf]
        %v319 = vld [vmem:[%s306 + $0x24] sm:$0xf]
        %v320 = vld [vmem:[%s306 + $0x28] sm:$0xf]
        %v321 = vld [vmem:[%s306 + $0x30] sm:$0xf]
        %v322 = vld [vmem:[%s306 + $0x34] sm:$0xf]
        %v323 = vld [vmem:[%s306 + $0x3c] sm:$0xf]
        %v324 = vld [vmem:[%s306 + $0x40] sm:$0xf]
        %v325 = vld [vmem:[%s306 + $0x48] sm:$0xf]
        %v326 = vld [vmem:[%s306 + $0x4c] sm:$0xf]
        %v327 = vld [vmem:[%s306 + $0x54] sm:$0xf]
        %v328 = vld [vmem:[%s306 + $0x58] sm:$0xf]
        %v329 = vld [vmem:[%s306 + $0x60] sm:$0xf]
        %v330 = vld [vmem:[%s306 + $0x64] sm:$0xf]
        %v331 = vld [vmem:[%s306 + $0x6c] sm:$0xf]
        %v332 = vld [vmem:[%s306 + $0x70] sm:$0xf]
        %v333 = vld [vmem:[%s306 + $0x78] sm:$0xf]
        %v334 = vld [vmem:[%s306 + $0x7c] sm:$0xf]
        %v335 = vld [vmem:[%s306 + $0x84] sm:$0xf]
        %v336 = vld [vmem:[%s306 + $0x88] sm:$0xf]
        %v337 = vld [vmem:[%s306 + $0x90] sm:$0xf]
        %v338 = vld [vmem:[%s306 + $0x94] sm:$0xf]
        %v339 = vld [vmem:[%s306 + $0x9c] sm:$0xf]
        %v340 = vld [vmem:[%s306 + $0xa0] sm:$0xf]
        %v341 = vld [vmem:[%s306 + $0xa8] sm:$0xf]
        %v342 = vld [vmem:[%s306 + $0xac] sm:$0xf]
        %v343 = vld [vmem:[%s306 + $0xb4] sm:$0xf]
        %v344 = vld [vmem:[%s306 + $0xb8] sm:$0xf]
        %v345 = vld [vmem:[#allocation3] sm:$0x3]
        %v346 = vld [vmem:[%s306 + $0x8] sm:$0x1]
        %v347 = vld [vmem:[%s306 + $0x14] sm:$0x1]
        %v348 = vld [vmem:[%s306 + $0x20] sm:$0x1]
        %v349 = vld [vmem:[%s306 + $0x2c] sm:$0x1]
        %v350 = vld [vmem:[%s306 + $0x38] sm:$0x1]
        %v351 = vld [vmem:[%s306 + $0x44] sm:$0x1]
        %v352 = vld [vmem:[%s306 + $0x50] sm:$0x1]
        %v353 = vld [vmem:[%s306 + $0x5c] sm:$0x1]
        %v354 = vld [vmem:[%s306 + $0x68] sm:$0x1]
        %v355 = vld [vmem:[%s306 + $0x74] sm:$0x1]
        %v356 = vld [vmem:[%s306 + $0x80] sm:$0x1]
        %v357 = vld [vmem:[%s306 + $0x8c] sm:$0x1]
        %v358 = vld [vmem:[%s306 + $0x98] sm:$0x1]
        %v359 = vld [vmem:[%s306 + $0xa4] sm:$0x1]
        %v360 = vld [vmem:[%s306 + $0xb0] sm:$0x1]
        %v361 = vld [vmem:[%s306 + $0xbc] sm:$0x1]
        %vm362 = vsmask.f32 3328
        %vm363 = vsmask.f32 7440
        %vm364 = vmor %vm362, %vm363
        %v366 = vshrl.u32 %v313, 16
        %v368 = vrot.slane %v366, 4
        %v369 = vshll.u32 %v313, 16
        %v371 = vrot.slane %v369, 5
        %v372 = vor.u32 %v368, %v371
        %v373 = vrot.slane %v372, 4
        %v375 = vshll.u32 %v314, 16
        %v377 = vrot.slane %v375, 5
        %v378 = vsel %vm364, %v373, %v377
        %v379 = vshrl.u32 %v314, 16
        %v381 = vrot.slane %v379, 4
        %v382 = vor.u32 %v381, %v377
        %v383 = vrot.slane %v382, 4
        %v385 = vshll.u32 %v346, 16
        %v387 = vrot.slane %v385, 5
        %v388 = vsel %vm364, %v383, %v387
        %v390 = vshrl.u32 %v315, 16
        %v392 = vrot.slane %v390, 4
        %v393 = vshll.u32 %v315, 16
        %v395 = vrot.slane %v393, 5
        %v396 = vor.u32 %v392, %v395
        %v397 = vrot.slane %v396, 4
        %v399 = vshll.u32 %v316, 16
        %v401 = vrot.slane %v399, 5
        %v402 = vsel %vm364, %v397, %v401
        %v403 = vshrl.u32 %v316, 16
        %v405 = vrot.slane %v403, 4
        %v406 = vor.u32 %v405, %v401
        %v407 = vrot.slane %v406, 4
        %v409 = vshll.u32 %v347, 16
        %v411 = vrot.slane %v409, 5
        %v412 = vsel %vm364, %v407, %v411
        %v414 = vshrl.u32 %v317, 16
        %v416 = vrot.slane %v414, 4
        %v417 = vshll.u32 %v317, 16
        %v419 = vrot.slane %v417, 5
        %v420 = vor.u32 %v416, %v419
        %v421 = vrot.slane %v420, 4
        %v423 = vshll.u32 %v318, 16
        %v425 = vrot.slane %v423, 5
        %v426 = vsel %vm364, %v421, %v425
        %v427 = vshrl.u32 %v318, 16
        %v429 = vrot.slane %v427, 4
        %v430 = vor.u32 %v429, %v425
        %v431 = vrot.slane %v430, 4
        %v433 = vshll.u32 %v348, 16
        %v435 = vrot.slane %v433, 5
        %v436 = vsel %vm364, %v431, %v435
        %v438 = vshrl.u32 %v319, 16
        %v440 = vrot.slane %v438, 4
        %v441 = vshll.u32 %v319, 16
        %v443 = vrot.slane %v441, 5
        %v444 = vor.u32 %v440, %v443
        %v445 = vrot.slane %v444, 4
        %v447 = vshll.u32 %v320, 16
        %v449 = vrot.slane %v447, 5
        %v450 = vsel %vm364, %v445, %v449
        %v451 = vshrl.u32 %v320, 16
        %v453 = vrot.slane %v451, 4
        %v454 = vor.u32 %v453, %v449
        %v455 = vrot.slane %v454, 4
        %v457 = vshll.u32 %v349, 16
        %v459 = vrot.slane %v457, 5
        %v460 = vsel %vm364, %v455, %v459
        %v462 = vshrl.u32 %v321, 16
        %v464 = vrot.slane %v462, 4
        %v465 = vshll.u32 %v321, 16
        %v467 = vrot.slane %v465, 5
        %v468 = vor.u32 %v464, %v467
        %v469 = vrot.slane %v468, 4
        %v471 = vshll.u32 %v322, 16
        %v473 = vrot.slane %v471, 5
        %v474 = vsel %vm364, %v469, %v473
        %v475 = vshrl.u32 %v322, 16
        %v477 = vrot.slane %v475, 4
        %v478 = vor.u32 %v477, %v473
        %v479 = vrot.slane %v478, 4
        %v481 = vshll.u32 %v350, 16
        %v483 = vrot.slane %v481, 5
        %v484 = vsel %vm364, %v479, %v483
        %v486 = vshrl.u32 %v323, 16
        %v488 = vrot.slane %v486, 4
        %v489 = vshll.u32 %v323, 16
        %v491 = vrot.slane %v489, 5
        %v492 = vor.u32 %v488, %v491
        %v493 = vrot.slane %v492, 4
        %v495 = vshll.u32 %v324, 16
        %v497 = vrot.slane %v495, 5
        %v498 = vsel %vm364, %v493, %v497
        %v499 = vshrl.u32 %v324, 16
        %v501 = vrot.slane %v499, 4
        %v502 = vor.u32 %v501, %v497
        %v503 = vrot.slane %v502, 4
        %v505 = vshll.u32 %v351, 16
        %v507 = vrot.slane %v505, 5
        %v508 = vsel %vm364, %v503, %v507
        %v510 = vshrl.u32 %v325, 16
        %v512 = vrot.slane %v510, 4
        %v513 = vshll.u32 %v325, 16
        %v515 = vrot.slane %v513, 5
        %v516 = vor.u32 %v512, %v515
        %v517 = vrot.slane %v516, 4
        %v519 = vshll.u32 %v326, 16
        %v521 = vrot.slane %v519, 5
        %v522 = vsel %vm364, %v517, %v521
        %v523 = vshrl.u32 %v326, 16
        %v525 = vrot.slane %v523, 4
        %v526 = vor.u32 %v525, %v521
        %v527 = vrot.slane %v526, 4
        %v529 = vshll.u32 %v352, 16
        %v531 = vrot.slane %v529, 5
        %v532 = vsel %vm364, %v527, %v531
        %v534 = vshrl.u32 %v327, 16
        %v536 = vrot.slane %v534, 4
        %v537 = vshll.u32 %v327, 16
        %v539 = vrot.slane %v537, 5
        %v540 = vor.u32 %v536, %v539
        %v541 = vrot.slane %v540, 4
        %v543 = vshll.u32 %v328, 16
        %v545 = vrot.slane %v543, 5
        %v546 = vsel %vm364, %v541, %v545
        %v547 = vshrl.u32 %v328, 16
        %v549 = vrot.slane %v547, 4
        %v550 = vor.u32 %v549, %v545
        %v551 = vrot.slane %v550, 4
        %v553 = vshll.u32 %v353, 16
        %v555 = vrot.slane %v553, 5
        %v556 = vsel %vm364, %v551, %v555
        %v558 = vshrl.u32 %v329, 16
        %v560 = vrot.slane %v558, 4
        %v561 = vshll.u32 %v329, 16
        %v563 = vrot.slane %v561, 5
        %v564 = vor.u32 %v560, %v563
        %v565 = vrot.slane %v564, 4
        %v567 = vshll.u32 %v330, 16
        %v569 = vrot.slane %v567, 5
        %v570 = vsel %vm364, %v565, %v569
        %v571 = vshrl.u32 %v330, 16
        %v573 = vrot.slane %v571, 4
        %v574 = vor.u32 %v573, %v569
        %v575 = vrot.slane %v574, 4
        %v577 = vshll.u32 %v354, 16
        %v579 = vrot.slane %v577, 5
        %v580 = vsel %vm364, %v575, %v579
        %v582 = vshrl.u32 %v331, 16
        %v584 = vrot.slane %v582, 4
        %v585 = vshll.u32 %v331, 16
        %v587 = vrot.slane %v585, 5
        %v588 = vor.u32 %v584, %v587
        %v589 = vrot.slane %v588, 4
        %v591 = vshll.u32 %v332, 16
        %v593 = vrot.slane %v591, 5
        %v594 = vsel %vm364, %v589, %v593
        %v595 = vshrl.u32 %v332, 16
        %v597 = vrot.slane %v595, 4
        %v598 = vor.u32 %v597, %v593
        %v599 = vrot.slane %v598, 4
        %v601 = vshll.u32 %v355, 16
        %v603 = vrot.slane %v601, 5
        %v604 = vsel %vm364, %v599, %v603
        %v606 = vshrl.u32 %v333, 16
        %v608 = vrot.slane %v606, 4
        %v609 = vshll.u32 %v333, 16
        %v611 = vrot.slane %v609, 5
        %v612 = vor.u32 %v608, %v611
        %v613 = vrot.slane %v612, 4
        %v615 = vshll.u32 %v334, 16
        %v617 = vrot.slane %v615, 5
        %v618 = vsel %vm364, %v613, %v617
        %v619 = vshrl.u32 %v334, 16
        %v621 = vrot.slane %v619, 4
        %v622 = vor.u32 %v621, %v617
        %v623 = vrot.slane %v622, 4
        %v625 = vshll.u32 %v356, 16
        %v627 = vrot.slane %v625, 5
        %v628 = vsel %vm364, %v623, %v627
        %v630 = vshrl.u32 %v335, 16
        %v632 = vrot.slane %v630, 4
        %v633 = vshll.u32 %v335, 16
        %v635 = vrot.slane %v633, 5
        %v636 = vor.u32 %v632, %v635
        %v637 = vrot.slane %v636, 4
        %v639 = vshll.u32 %v336, 16
        %v641 = vrot.slane %v639, 5
        %v642 = vsel %vm364, %v637, %v641
        %v643 = vshrl.u32 %v336, 16
        %v645 = vrot.slane %v643, 4
        %v646 = vor.u32 %v645, %v641
        %v647 = vrot.slane %v646, 4
        %v649 = vshll.u32 %v357, 16
        %v651 = vrot.slane %v649, 5
        %v652 = vsel %vm364, %v647, %v651
        %v654 = vshrl.u32 %v337, 16
        %v656 = vrot.slane %v654, 4
        %v657 = vshll.u32 %v337, 16
        %v659 = vrot.slane %v657, 5
        %v660 = vor.u32 %v656, %v659
        %v661 = vrot.slane %v660, 4
        %v663 = vshll.u32 %v338, 16
        %v665 = vrot.slane %v663, 5
        %v666 = vsel %vm364, %v661, %v665
        %v667 = vshrl.u32 %v338, 16
        %v669 = vrot.slane %v667, 4
        %v670 = vor.u32 %v669, %v665
        %v671 = vrot.slane %v670, 4
        %v673 = vshll.u32 %v358, 16
        %v675 = vrot.slane %v673, 5
        %v676 = vsel %vm364, %v671, %v675
        %v678 = vshrl.u32 %v339, 16
        %v680 = vrot.slane %v678, 4
        %v681 = vshll.u32 %v339, 16
        %v683 = vrot.slane %v681, 5
        %v684 = vor.u32 %v680, %v683
        %v685 = vrot.slane %v684, 4
        %v687 = vshll.u32 %v340, 16
        %v689 = vrot.slane %v687, 5
        %v690 = vsel %vm364, %v685, %v689
        %v691 = vshrl.u32 %v340, 16
        %v693 = vrot.slane %v691, 4
        %v694 = vor.u32 %v693, %v689
        %v695 = vrot.slane %v694, 4
        %v697 = vshll.u32 %v359, 16
        %v699 = vrot.slane %v697, 5
        %v700 = vsel %vm364, %v695, %v699
        %v702 = vshrl.u32 %v341, 16
        %v704 = vrot.slane %v702, 4
        %v705 = vshll.u32 %v341, 16
        %v707 = vrot.slane %v705, 5
        %v708 = vor.u32 %v704, %v707
        %v709 = vrot.slane %v708, 4
        %v711 = vshll.u32 %v342, 16
        %v713 = vrot.slane %v711, 5
        %v714 = vsel %vm364, %v709, %v713
        %v715 = vshrl.u32 %v342, 16
        %v717 = vrot.slane %v715, 4
        %v718 = vor.u32 %v717, %v713
        %v719 = vrot.slane %v718, 4
        %v721 = vshll.u32 %v360, 16
        %v723 = vrot.slane %v721, 5
        %v724 = vsel %vm364, %v719, %v723
        %v726 = vshrl.u32 %v343, 16
        %v728 = vrot.slane %v726, 4
        %v729 = vshll.u32 %v343, 16
        %v731 = vrot.slane %v729, 5
        %v732 = vor.u32 %v728, %v731
        %v733 = vrot.slane %v732, 4
        %v735 = vshll.u32 %v344, 16
        %v737 = vrot.slane %v735, 5
        %v738 = vsel %vm364, %v733, %v737
        %v739 = vshrl.u32 %v344, 16
        %v741 = vrot.slane %v739, 4
        %v742 = vor.u32 %v741, %v737
        %v743 = vrot.slane %v742, 4
        %v745 = vshll.u32 %v361, 16
        %v747 = vrot.slane %v745, 5
        %v748 = vsel %vm364, %v743, %v747
        %s749 = scalar_lea.vmem [#allocation3], 2
        %v750 = vld [vmem:[%s749] sm:$0x3]
        %v751 = vunpack.c.l.b16 %v378
        %v752 = vunpack.c.l.b16 %v388
        %v753 = vunpack.c.l.b16 %v402
        %v754 = vunpack.c.l.b16 %v412
        %v755 = vunpack.c.l.b16 %v426
        %v756 = vunpack.c.l.b16 %v436
        %v757 = vunpack.c.l.b16 %v450
        %v758 = vunpack.c.l.b16 %v460
        %v759 = vunpack.c.l.b16 %v474
        %v760 = vunpack.c.l.b16 %v484
        %v761 = vunpack.c.l.b16 %v498
        %v762 = vunpack.c.l.b16 %v508
        %v763 = vunpack.c.l.b16 %v522
        %v764 = vunpack.c.l.b16 %v532
        %v765 = vunpack.c.l.b16 %v546
        %v766 = vunpack.c.l.b16 %v556
        %v767 = vunpack.c.l.b16 %v570
        %v768 = vunpack.c.l.b16 %v580
        %v769 = vunpack.c.l.b16 %v594
        %v770 = vunpack.c.l.b16 %v604
        %v771 = vunpack.c.l.b16 %v618
        %v772 = vunpack.c.l.b16 %v628
        %v773 = vunpack.c.l.b16 %v642
        %v774 = vunpack.c.l.b16 %v652
        %v775 = vunpack.c.l.b16 %v666
        %v776 = vunpack.c.l.b16 %v676
        %v777 = vunpack.c.l.b16 %v690
        %v778 = vunpack.c.l.b16 %v700
        %v779 = vunpack.c.l.b16 %v714
        %v780 = vunpack.c.l.b16 %v724
        %v781 = vunpack.c.l.b16 %v738
        %v782 = vunpack.c.l.b16 %v748
        %v783 = vpack.c.b16 %v752, %v751
        %v784 = vpack.c.b16 %v754, %v753
        %v785 = vpack.c.b16 %v756, %v755
        %v786 = vpack.c.b16 %v758, %v757
        %v787 = vpack.c.b16 %v760, %v759
        %v788 = vpack.c.b16 %v762, %v761
        %v789 = vpack.c.b16 %v764, %v763
        %v790 = vpack.c.b16 %v766, %v765
        %v791 = vpack.c.b16 %v768, %v767
        %v792 = vpack.c.b16 %v770, %v769
        %v793 = vpack.c.b16 %v772, %v771
        %v794 = vpack.c.b16 %v774, %v773
        %v795 = vpack.c.b16 %v776, %v775
        %v796 = vpack.c.b16 %v778, %v777
        %v797 = vpack.c.b16 %v780, %v779
        %v798 = vpack.c.b16 %v782, %v781
        %vm799 = vcmask 31744
        %v801 = vsel %vm799, %v783, 0
        %v804 = vsel %vm799, %v784, 0
        %v807 = vsel %vm799, %v785, 0
        %v810 = vsel %vm799, %v786, 0
        %v813 = vsel %vm799, %v787, 0
        %v816 = vsel %vm799, %v788, 0
        %v819 = vsel %vm799, %v789, 0
        %v822 = vsel %vm799, %v790, 0
        %v825 = vsel %vm799, %v791, 0
        %v828 = vsel %vm799, %v792, 0
        %v831 = vsel %vm799, %v793, 0
        %v834 = vsel %vm799, %v794, 0
        %v837 = vsel %vm799, %v795, 0
        %v840 = vsel %vm799, %v796, 0
        %v843 = vsel %vm799, %v797, 0
        %v846 = vsel %vm799, %v798, 0
        %vm848 = vcmask 1041408
        %v850 = vsel %vm848, %v750, 0
        %852 = vmatprep.subr.bf16.mxu0 0
        %853 = vmatpush1.bf16.msra.mxu0 0
        %854 = vmatprep.subr.bf16.mxu0 0
        %855 = vmatpush1.bf16.msra.mxu0 0
        %856 = vmatprep.subr.bf16.mxu0 0
        %857 = vmatpush1.bf16.msra.mxu0 0
        %858 = vmatprep.subr.bf16.mxu0 0
        %859 = vmatpush1.bf16.msra.mxu0 0
        %860 = vmatprep.subr.bf16.mxu0 0
        %861 = vmatpush1.bf16.msra.mxu0 0
        %862 = vmatprep.subr.bf16.mxu0 0
        %863 = vmatpush1.bf16.msra.mxu0 0
        %864 = vmatprep.subr.bf16.mxu0 0
        %865 = vmatpush1.bf16.msra.mxu0 0
        %866 = vmatprep.subr.bf16.mxu0 0
        %867 = vmatpush1.bf16.msra.mxu0 %v850
        %868 = vmatprep.subr.bf16.mxu0 0
        %869 = vmatpush2.bf16.msra.mxu0 0
        %870 = vmatprep.subr.bf16.mxu0 0
        %871 = vmatpush2.bf16.msra.mxu0 0
        %872 = vmatprep.subr.bf16.mxu0 0
        %873 = vmatpush2.bf16.msra.mxu0 0
        %874 = vmatprep.subr.bf16.mxu0 0
        %875 = vmatpush2.bf16.msra.mxu0 0
        %876 = vmatprep.subr.bf16.mxu0 0
        %877 = vmatpush2.bf16.msra.mxu0 0
        %878 = vmatprep.subr.bf16.mxu0 0
        %879 = vmatpush2.bf16.msra.mxu0 0
        %880 = vmatprep.subr.bf16.mxu0 0
        %881 = vmatpush2.bf16.msra.mxu0 0
        %882 = vmatprep.subr.bf16.mxu0 0
        %883 = vmatpush2.bf16.msra.mxu0 0
        %884 = vmatprep.mubr.bf16.mxu0 0
        %885 = vmatmul.mubr.bf16.gmra.mxu0 %v801
        %v886 = vpop.f32.mrf.mxu0
        %v887 = vadd.f32 0.0, %v886
        %v888 = vpop.f32.mrf.mxu0
        %v889 = vpop.f32.mrf.mxu0
        %v890 = vadd.f32 0.0, %v889
        %v891 = vpop.f32.mrf.mxu0
        %892 = vmatprep.mubr.bf16.mxu0 0
        %893 = vmatmul.mubr.bf16.gmra.mxu0 %v804
        %v894 = vpop.f32.mrf.mxu0
        %v895 = vadd.f32 0.0, %v894
        %v896 = vpop.f32.mrf.mxu0
        %v897 = vpop.f32.mrf.mxu0
        %v898 = vadd.f32 0.0, %v897
        %v899 = vpop.f32.mrf.mxu0
        %900 = vmatprep.mubr.bf16.mxu0 0
        %901 = vmatmul.mubr.bf16.gmra.mxu0 %v807
        %v902 = vpop.f32.mrf.mxu0
        %v903 = vadd.f32 0.0, %v902
        %v904 = vpop.f32.mrf.mxu0
        %v905 = vpop.f32.mrf.mxu0
        %v906 = vadd.f32 0.0, %v905
        %v907 = vpop.f32.mrf.mxu0
        %908 = vmatprep.mubr.bf16.mxu0 0
        %909 = vmatmul.mubr.bf16.gmra.mxu0 %v810
        %v910 = vpop.f32.mrf.mxu0
        %v911 = vadd.f32 0.0, %v910
        %v912 = vpop.f32.mrf.mxu0
        %v913 = vpop.f32.mrf.mxu0
        %v914 = vadd.f32 0.0, %v913
        %v915 = vpop.f32.mrf.mxu0
        %916 = vmatprep.mubr.bf16.mxu0 0
        %917 = vmatmul.mubr.bf16.gmra.mxu0 %v813
        %v918 = vpop.f32.mrf.mxu0
        %v919 = vadd.f32 0.0, %v918
        %v920 = vpop.f32.mrf.mxu0
        %v921 = vpop.f32.mrf.mxu0
        %v922 = vadd.f32 0.0, %v921
        %v923 = vpop.f32.mrf.mxu0
        %924 = vmatprep.mubr.bf16.mxu0 0
        %925 = vmatmul.mubr.bf16.gmra.mxu0 %v816
        %v926 = vpop.f32.mrf.mxu0
        %v927 = vadd.f32 0.0, %v926
        %v928 = vpop.f32.mrf.mxu0
        %v929 = vpop.f32.mrf.mxu0
        %v930 = vadd.f32 0.0, %v929
        %v931 = vpop.f32.mrf.mxu0
        %932 = vmatprep.mubr.bf16.mxu0 0
        %933 = vmatmul.mubr.bf16.gmra.mxu0 %v819
        %v934 = vpop.f32.mrf.mxu0
        %v935 = vadd.f32 0.0, %v934
        %v936 = vpop.f32.mrf.mxu0
        %v937 = vpop.f32.mrf.mxu0
        %v938 = vadd.f32 0.0, %v937
        %v939 = vpop.f32.mrf.mxu0
        %940 = vmatprep.mubr.bf16.mxu0 0
        %941 = vmatmul.mubr.bf16.gmra.mxu0 %v822
        %v942 = vpop.f32.mrf.mxu0
        %v943 = vadd.f32 0.0, %v942
        %v944 = vpop.f32.mrf.mxu0
        %v945 = vpop.f32.mrf.mxu0
        %v946 = vadd.f32 0.0, %v945
        %v947 = vpop.f32.mrf.mxu0
        %948 = vmatprep.mubr.bf16.mxu0 0
        %949 = vmatmul.mubr.bf16.gmra.mxu0 %v825
        %v950 = vpop.f32.mrf.mxu0
        %v951 = vadd.f32 0.0, %v950
        %v952 = vpop.f32.mrf.mxu0
        %v953 = vpop.f32.mrf.mxu0
        %v954 = vadd.f32 0.0, %v953
        %v955 = vpop.f32.mrf.mxu0
        %956 = vmatprep.mubr.bf16.mxu0 0
        %957 = vmatmul.mubr.bf16.gmra.mxu0 %v828
        %v958 = vpop.f32.mrf.mxu0
        %v959 = vadd.f32 0.0, %v958
        %v960 = vpop.f32.mrf.mxu0
        %v961 = vpop.f32.mrf.mxu0
        %v962 = vadd.f32 0.0, %v961
        %v963 = vpop.f32.mrf.mxu0
        %964 = vmatprep.mubr.bf16.mxu0 0
        %965 = vmatmul.mubr.bf16.gmra.mxu0 %v831
        %v966 = vpop.f32.mrf.mxu0
        %v967 = vadd.f32 0.0, %v966
        %v968 = vpop.f32.mrf.mxu0
        %v969 = vpop.f32.mrf.mxu0
        %v970 = vadd.f32 0.0, %v969
        %v971 = vpop.f32.mrf.mxu0
        %972 = vmatprep.mubr.bf16.mxu0 0
        %973 = vmatmul.mubr.bf16.gmra.mxu0 %v834
        %v974 = vpop.f32.mrf.mxu0
        %v975 = vadd.f32 0.0, %v974
        %v976 = vpop.f32.mrf.mxu0
        %v977 = vpop.f32.mrf.mxu0
        %v978 = vadd.f32 0.0, %v977
        %v979 = vpop.f32.mrf.mxu0
        %980 = vmatprep.mubr.bf16.mxu0 0
        %981 = vmatmul.mubr.bf16.gmra.mxu0 %v837
        %v982 = vpop.f32.mrf.mxu0
        %v983 = vadd.f32 0.0, %v982
        %v984 = vpop.f32.mrf.mxu0
        %v985 = vpop.f32.mrf.mxu0
        %v986 = vadd.f32 0.0, %v985
        %v987 = vpop.f32.mrf.mxu0
        %988 = vmatprep.mubr.bf16.mxu0 0
        %989 = vmatmul.mubr.bf16.gmra.mxu0 %v840
        %v990 = vpop.f32.mrf.mxu0
        %v991 = vadd.f32 0.0, %v990
        %v992 = vpop.f32.mrf.mxu0
        %v993 = vpop.f32.mrf.mxu0
        %v994 = vadd.f32 0.0, %v993
        %v995 = vpop.f32.mrf.mxu0
        %996 = vmatprep.mubr.bf16.mxu0 0
        %997 = vmatmul.mubr.bf16.gmra.mxu0 %v843
        %v998 = vpop.f32.mrf.mxu0
        %v999 = vadd.f32 0.0, %v998
        %v1000 = vpop.f32.mrf.mxu0
        %v1001 = vpop.f32.mrf.mxu0
        %v1002 = vadd.f32 0.0, %v1001
        %v1003 = vpop.f32.mrf.mxu0
        %1004 = vmatprep.mubr.bf16.mxu0 0
        %1005 = vmatmul.mubr.bf16.gmra.mxu0 %v846
        %v1006 = vpop.f32.mrf.mxu0
        %v1007 = vadd.f32 0.0, %v1006
        %v1008 = vpop.f32.mrf.mxu0
        %v1009 = vpop.f32.mrf.mxu0
        %v1010 = vadd.f32 0.0, %v1009
        %v1011 = vpop.f32.mrf.mxu0
        %1012 = vdwg.mxu0
        %v1045 = vunpack.c.l.b16 %v313
        %v1046 = vunpack.c.l.b16 %v314
        %v1047 = vunpack.c.l.b16 %v315
        %v1048 = vunpack.c.l.b16 %v316
        %v1049 = vunpack.c.l.b16 %v317
        %v1050 = vunpack.c.l.b16 %v318
        %v1051 = vunpack.c.l.b16 %v319
        %v1052 = vunpack.c.l.b16 %v320
        %v1053 = vunpack.c.l.b16 %v321
        %v1054 = vunpack.c.l.b16 %v322
        %v1055 = vunpack.c.l.b16 %v323
        %v1056 = vunpack.c.l.b16 %v324
        %v1057 = vunpack.c.l.b16 %v325
        %v1058 = vunpack.c.l.b16 %v326
        %v1059 = vunpack.c.l.b16 %v327
        %v1060 = vunpack.c.l.b16 %v328
        %v1061 = vunpack.c.l.b16 %v329
        %v1062 = vunpack.c.l.b16 %v330
        %v1063 = vunpack.c.l.b16 %v331
        %v1064 = vunpack.c.l.b16 %v332
        %v1065 = vunpack.c.l.b16 %v333
        %v1066 = vunpack.c.l.b16 %v334
        %v1067 = vunpack.c.l.b16 %v335
        %v1068 = vunpack.c.l.b16 %v336
        %v1069 = vunpack.c.l.b16 %v337
        %v1070 = vunpack.c.l.b16 %v338
        %v1071 = vunpack.c.l.b16 %v339
        %v1072 = vunpack.c.l.b16 %v340
        %v1073 = vunpack.c.l.b16 %v341
        %v1074 = vunpack.c.l.b16 %v342
        %v1075 = vunpack.c.l.b16 %v343
        %v1076 = vunpack.c.l.b16 %v344
        %v1077 = vpack.c.b16 %v1046, %v1045
        %v1078 = vpack.c.b16 %v1048, %v1047
        %v1079 = vpack.c.b16 %v1050, %v1049
        %v1080 = vpack.c.b16 %v1052, %v1051
        %v1081 = vpack.c.b16 %v1054, %v1053
        %v1082 = vpack.c.b16 %v1056, %v1055
        %v1083 = vpack.c.b16 %v1058, %v1057
        %v1084 = vpack.c.b16 %v1060, %v1059
        %v1085 = vpack.c.b16 %v1062, %v1061
        %v1086 = vpack.c.b16 %v1064, %v1063
        %v1087 = vpack.c.b16 %v1066, %v1065
        %v1088 = vpack.c.b16 %v1068, %v1067
        %v1089 = vpack.c.b16 %v1070, %v1069
        %v1090 = vpack.c.b16 %v1072, %v1071
        %v1091 = vpack.c.b16 %v1074, %v1073
        %v1092 = vpack.c.b16 %v1076, %v1075
        %v1094 = vsel %vm799, %v1077, 0
        %v1097 = vsel %vm799, %v1078, 0
        %v1100 = vsel %vm799, %v1079, 0
        %v1103 = vsel %vm799, %v1080, 0
        %v1106 = vsel %vm799, %v1081, 0
        %v1109 = vsel %vm799, %v1082, 0
        %v1112 = vsel %vm799, %v1083, 0
        %v1115 = vsel %vm799, %v1084, 0
        %v1118 = vsel %vm799, %v1085, 0
        %v1121 = vsel %vm799, %v1086, 0
        %v1124 = vsel %vm799, %v1087, 0
        %v1127 = vsel %vm799, %v1088, 0
        %v1130 = vsel %vm799, %v1089, 0
        %v1133 = vsel %vm799, %v1090, 0
        %v1136 = vsel %vm799, %v1091, 0
        %v1139 = vsel %vm799, %v1092, 0
        %v1142 = vsel %vm848, %v345, 0
        %1144 = vmatprep.subr.bf16.mxu0 0
        %1145 = vmatpush1.bf16.msra.mxu0 0
        %1146 = vmatprep.subr.bf16.mxu0 0
        %1147 = vmatpush1.bf16.msra.mxu0 0
        %1148 = vmatprep.subr.bf16.mxu0 0
        %1149 = vmatpush1.bf16.msra.mxu0 0
        %1150 = vmatprep.subr.bf16.mxu0 0
        %1151 = vmatpush1.bf16.msra.mxu0 0
        %1152 = vmatprep.subr.bf16.mxu0 0
        %1153 = vmatpush1.bf16.msra.mxu0 0
        %1154 = vmatprep.subr.bf16.mxu0 0
        %1155 = vmatpush1.bf16.msra.mxu0 0
        %1156 = vmatprep.subr.bf16.mxu0 0
        %1157 = vmatpush1.bf16.msra.mxu0 0
        %1158 = vmatprep.subr.bf16.mxu0 0
        %1159 = vmatpush1.bf16.msra.mxu0 %v1142
        %1160 = vmatprep.subr.bf16.mxu0 0
        %1161 = vmatpush2.bf16.msra.mxu0 0
        %1162 = vmatprep.subr.bf16.mxu0 0
        %1163 = vmatpush2.bf16.msra.mxu0 0
        %1164 = vmatprep.subr.bf16.mxu0 0
        %1165 = vmatpush2.bf16.msra.mxu0 0
        %1166 = vmatprep.subr.bf16.mxu0 0
        %1167 = vmatpush2.bf16.msra.mxu0 0
        %1168 = vmatprep.subr.bf16.mxu0 0
        %1169 = vmatpush2.bf16.msra.mxu0 0
        %1170 = vmatprep.subr.bf16.mxu0 0
        %1171 = vmatpush2.bf16.msra.mxu0 0
        %1172 = vmatprep.subr.bf16.mxu0 0
        %1173 = vmatpush2.bf16.msra.mxu0 0
        %1174 = vmatprep.subr.bf16.mxu0 0
        %1175 = vmatpush2.bf16.msra.mxu0 0
        %1176 = vmatprep.mubr.bf16.mxu0 0
        %1177 = vmatmul.mubr.bf16.gmra.mxu0 %v1094
        %v1178 = vpop.f32.mrf.mxu0
        %v1179 = vadd.f32 %v887, %v1178
        %v1180 = vpop.f32.mrf.mxu0
        %v1181 = vpop.f32.mrf.mxu0
        %v1182 = vadd.f32 %v890, %v1181
        %v1183 = vpop.f32.mrf.mxu0
        %1184 = vmatprep.mubr.bf16.mxu0 0
        %1185 = vmatmul.mubr.bf16.gmra.mxu0 %v1097
        %v1186 = vpop.f32.mrf.mxu0
        %v1187 = vadd.f32 %v895, %v1186
        %v1188 = vpop.f32.mrf.mxu0
        %v1189 = vpop.f32.mrf.mxu0
        %v1190 = vadd.f32 %v898, %v1189
        %v1191 = vpop.f32.mrf.mxu0
        %1192 = vmatprep.mubr.bf16.mxu0 0
        %1193 = vmatmul.mubr.bf16.gmra.mxu0 %v1100
        %v1194 = vpop.f32.mrf.mxu0
        %v1195 = vadd.f32 %v903, %v1194
        %v1196 = vpop.f32.mrf.mxu0
        %v1197 = vpop.f32.mrf.mxu0
        %v1198 = vadd.f32 %v906, %v1197
        %v1199 = vpop.f32.mrf.mxu0
        %1200 = vmatprep.mubr.bf16.mxu0 0
        %1201 = vmatmul.mubr.bf16.gmra.mxu0 %v1103
        %v1202 = vpop.f32.mrf.mxu0
        %v1203 = vadd.f32 %v911, %v1202
        %v1204 = vpop.f32.mrf.mxu0
        %v1205 = vpop.f32.mrf.mxu0
        %v1206 = vadd.f32 %v914, %v1205
        %v1207 = vpop.f32.mrf.mxu0
        %1208 = vmatprep.mubr.bf16.mxu0 0
        %1209 = vmatmul.mubr.bf16.gmra.mxu0 %v1106
        %v1210 = vpop.f32.mrf.mxu0
        %v1211 = vadd.f32 %v919, %v1210
        %v1212 = vpop.f32.mrf.mxu0
        %v1213 = vpop.f32.mrf.mxu0
        %v1214 = vadd.f32 %v922, %v1213
        %v1215 = vpop.f32.mrf.mxu0
        %1216 = vmatprep.mubr.bf16.mxu0 0
        %1217 = vmatmul.mubr.bf16.gmra.mxu0 %v1109
        %v1218 = vpop.f32.mrf.mxu0
        %v1219 = vadd.f32 %v927, %v1218
        %v1220 = vpop.f32.mrf.mxu0
        %v1221 = vpop.f32.mrf.mxu0
        %v1222 = vadd.f32 %v930, %v1221
        %v1223 = vpop.f32.mrf.mxu0
        %1224 = vmatprep.mubr.bf16.mxu0 0
        %1225 = vmatmul.mubr.bf16.gmra.mxu0 %v1112
        %v1226 = vpop.f32.mrf.mxu0
        %v1227 = vadd.f32 %v935, %v1226
        %v1228 = vpop.f32.mrf.mxu0
        %v1229 = vpop.f32.mrf.mxu0
        %v1230 = vadd.f32 %v938, %v1229
        %v1231 = vpop.f32.mrf.mxu0
        %1232 = vmatprep.mubr.bf16.mxu0 0
        %1233 = vmatmul.mubr.bf16.gmra.mxu0 %v1115
        %v1234 = vpop.f32.mrf.mxu0
        %v1235 = vadd.f32 %v943, %v1234
        %v1236 = vpop.f32.mrf.mxu0
        %v1237 = vpop.f32.mrf.mxu0
        %v1238 = vadd.f32 %v946, %v1237
        %v1239 = vpop.f32.mrf.mxu0
        %1240 = vmatprep.mubr.bf16.mxu0 0
        %1241 = vmatmul.mubr.bf16.gmra.mxu0 %v1118
        %v1242 = vpop.f32.mrf.mxu0
        %v1243 = vadd.f32 %v951, %v1242
        %v1244 = vpop.f32.mrf.mxu0
        %v1245 = vpop.f32.mrf.mxu0
        %v1246 = vadd.f32 %v954, %v1245
        %v1247 = vpop.f32.mrf.mxu0
        %1248 = vmatprep.mubr.bf16.mxu0 0
        %1249 = vmatmul.mubr.bf16.gmra.mxu0 %v1121
        %v1250 = vpop.f32.mrf.mxu0
        %v1251 = vadd.f32 %v959, %v1250
        %v1252 = vpop.f32.mrf.mxu0
        %v1253 = vpop.f32.mrf.mxu0
        %v1254 = vadd.f32 %v962, %v1253
        %v1255 = vpop.f32.mrf.mxu0
        %1256 = vmatprep.mubr.bf16.mxu0 0
        %1257 = vmatmul.mubr.bf16.gmra.mxu0 %v1124
        %v1258 = vpop.f32.mrf.mxu0
        %v1259 = vadd.f32 %v967, %v1258
        %v1260 = vpop.f32.mrf.mxu0
        %v1261 = vpop.f32.mrf.mxu0
        %v1262 = vadd.f32 %v970, %v1261
        %v1263 = vpop.f32.mrf.mxu0
        %1264 = vmatprep.mubr.bf16.mxu0 0
        %1265 = vmatmul.mubr.bf16.gmra.mxu0 %v1127
        %v1266 = vpop.f32.mrf.mxu0
        %v1267 = vadd.f32 %v975, %v1266
        %v1268 = vpop.f32.mrf.mxu0
        %v1269 = vpop.f32.mrf.mxu0
        %v1270 = vadd.f32 %v978, %v1269
        %v1271 = vpop.f32.mrf.mxu0
        %1272 = vmatprep.mubr.bf16.mxu0 0
        %1273 = vmatmul.mubr.bf16.gmra.mxu0 %v1130
        %v1274 = vpop.f32.mrf.mxu0
        %v1275 = vadd.f32 %v983, %v1274
        %v1276 = vpop.f32.mrf.mxu0
        %v1277 = vpop.f32.mrf.mxu0
        %v1278 = vadd.f32 %v986, %v1277
        %v1279 = vpop.f32.mrf.mxu0
        %1280 = vmatprep.mubr.bf16.mxu0 0
        %1281 = vmatmul.mubr.bf16.gmra.mxu0 %v1133
        %v1282 = vpop.f32.mrf.mxu0
        %v1283 = vadd.f32 %v991, %v1282
        %v1284 = vpop.f32.mrf.mxu0
        %v1285 = vpop.f32.mrf.mxu0
        %v1286 = vadd.f32 %v994, %v1285
        %v1287 = vpop.f32.mrf.mxu0
        %1288 = vmatprep.mubr.bf16.mxu0 0
        %1289 = vmatmul.mubr.bf16.gmra.mxu0 %v1136
        %v1290 = vpop.f32.mrf.mxu0
        %v1291 = vadd.f32 %v999, %v1290
        %v1292 = vpop.f32.mrf.mxu0
        %v1293 = vpop.f32.mrf.mxu0
        %v1294 = vadd.f32 %v1002, %v1293
        %v1295 = vpop.f32.mrf.mxu0
        %1296 = vmatprep.mubr.bf16.mxu0 0
        %1297 = vmatmul.mubr.bf16.gmra.mxu0 %v1139
        %v1298 = vpop.f32.mrf.mxu0
        %v1299 = vadd.f32 %v1007, %v1298
        %v1300 = vpop.f32.mrf.mxu0
        %v1301 = vpop.f32.mrf.mxu0
        %v1302 = vadd.f32 %v1010, %v1301
        %v1303 = vpop.f32.mrf.mxu0
        %1304 = vdwg.mxu0
        %v1305 = vld [vmem:[%s306] sm:$0xe]
        %v1306 = vld [vmem:[%s306 + $0xc] sm:$0xe]
        %v1307 = vld [vmem:[%s306 + $0x18] sm:$0xe]
        %v1308 = vld [vmem:[%s306 + $0x24] sm:$0xe]
        %v1309 = vld [vmem:[%s306 + $0x30] sm:$0xe]
        %v1310 = vld [vmem:[%s306 + $0x3c] sm:$0xe]
        %v1311 = vld [vmem:[%s306 + $0x48] sm:$0xe]
        %v1312 = vld [vmem:[%s306 + $0x54] sm:$0xe]
        %v1313 = vld [vmem:[%s306 + $0x60] sm:$0xe]
        %v1314 = vld [vmem:[%s306 + $0x6c] sm:$0xe]
        %v1315 = vld [vmem:[%s306 + $0x78] sm:$0xe]
        %v1316 = vld [vmem:[%s306 + $0x84] sm:$0xe]
        %v1317 = vld [vmem:[%s306 + $0x90] sm:$0xe]
        %v1318 = vld [vmem:[%s306 + $0x9c] sm:$0xe]
        %v1319 = vld [vmem:[%s306 + $0xa8] sm:$0xe]
        %v1320 = vld [vmem:[%s306 + $0xb4] sm:$0xe]
        %vm1353 = vcmask 1042432
        %vm1354 = vcmask 1046532
        %vm1355 = vmor %vm1353, %vm1354
        %v1356 = vrot.slane %v1305, 5
        %v1357 = vrot.slane %v1356, 4
        %v1358 = vrot.slane %v314, 5
        %v1359 = vsel %vm1355, %v1357, %v1358
        %v1360 = vrot.slane %v1358, 4
        %v1361 = vrot.slane %v346, 5
        %v1362 = vsel %vm1355, %v1360, %v1361
        %v1363 = vrot.slane %v1306, 5
        %v1364 = vrot.slane %v1363, 4
        %v1365 = vrot.slane %v316, 5
        %v1366 = vsel %vm1355, %v1364, %v1365
        %v1367 = vrot.slane %v1365, 4
        %v1368 = vrot.slane %v347, 5
        %v1369 = vsel %vm1355, %v1367, %v1368
        %v1370 = vrot.slane %v1307, 5
        %v1371 = vrot.slane %v1370, 4
        %v1372 = vrot.slane %v318, 5
        %v1373 = vsel %vm1355, %v1371, %v1372
        %v1374 = vrot.slane %v1372, 4
        %v1375 = vrot.slane %v348, 5
        %v1376 = vsel %vm1355, %v1374, %v1375
        %v1377 = vrot.slane %v1308, 5
        %v1378 = vrot.slane %v1377, 4
        %v1379 = vrot.slane %v320, 5
        %v1380 = vsel %vm1355, %v1378, %v1379
        %v1381 = vrot.slane %v1379, 4
        %v1382 = vrot.slane %v349, 5
        %v1383 = vsel %vm1355, %v1381, %v1382
        %v1384 = vrot.slane %v1309, 5
        %v1385 = vrot.slane %v1384, 4
        %v1386 = vrot.slane %v322, 5
        %v1387 = vsel %vm1355, %v1385, %v1386
        %v1388 = vrot.slane %v1386, 4
        %v1389 = vrot.slane %v350, 5
        %v1390 = vsel %vm1355, %v1388, %v1389
        %v1391 = vrot.slane %v1310, 5
        %v1392 = vrot.slane %v1391, 4
        %v1393 = vrot.slane %v324, 5
        %v1394 = vsel %vm1355, %v1392, %v1393
        %v1395 = vrot.slane %v1393, 4
        %v1396 = vrot.slane %v351, 5
        %v1397 = vsel %vm1355, %v1395, %v1396
        %v1398 = vrot.slane %v1311, 5
        %v1399 = vrot.slane %v1398, 4
        %v1400 = vrot.slane %v326, 5
        %v1401 = vsel %vm1355, %v1399, %v1400
        %v1402 = vrot.slane %v1400, 4
        %v1403 = vrot.slane %v352, 5
        %v1404 = vsel %vm1355, %v1402, %v1403
        %v1405 = vrot.slane %v1312, 5
        %v1406 = vrot.slane %v1405, 4
        %v1407 = vrot.slane %v328, 5
        %v1408 = vsel %vm1355, %v1406, %v1407
        %v1409 = vrot.slane %v1407, 4
        %v1410 = vrot.slane %v353, 5
        %v1411 = vsel %vm1355, %v1409, %v1410
        %v1412 = vrot.slane %v1313, 5
        %v1413 = vrot.slane %v1412, 4
        %v1414 = vrot.slane %v330, 5
        %v1415 = vsel %vm1355, %v1413, %v1414
        %v1416 = vrot.slane %v1414, 4
        %v1417 = vrot.slane %v354, 5
        %v1418 = vsel %vm1355, %v1416, %v1417
        %v1419 = vrot.slane %v1314, 5
        %v1420 = vrot.slane %v1419, 4
        %v1421 = vrot.slane %v332, 5
        %v1422 = vsel %vm1355, %v1420, %v1421
        %v1423 = vrot.slane %v1421, 4
        %v1424 = vrot.slane %v355, 5
        %v1425 = vsel %vm1355, %v1423, %v1424
        %v1426 = vrot.slane %v1315, 5
        %v1427 = vrot.slane %v1426, 4
        %v1428 = vrot.slane %v334, 5
        %v1429 = vsel %vm1355, %v1427, %v1428
        %v1430 = vrot.slane %v1428, 4
        %v1431 = vrot.slane %v356, 5
        %v1432 = vsel %vm1355, %v1430, %v1431
        %v1433 = vrot.slane %v1316, 5
        %v1434 = vrot.slane %v1433, 4
        %v1435 = vrot.slane %v336, 5
        %v1436 = vsel %vm1355, %v1434, %v1435
        %v1437 = vrot.slane %v1435, 4
        %v1438 = vrot.slane %v357, 5
        %v1439 = vsel %vm1355, %v1437, %v1438
        %v1440 = vrot.slane %v1317, 5
        %v1441 = vrot.slane %v1440, 4
        %v1442 = vrot.slane %v338, 5
        %v1443 = vsel %vm1355, %v1441, %v1442
        %v1444 = vrot.slane %v1442, 4
        %v1445 = vrot.slane %v358, 5
        %v1446 = vsel %vm1355, %v1444, %v1445
        %v1447 = vrot.slane %v1318, 5
        %v1448 = vrot.slane %v1447, 4
        %v1449 = vrot.slane %v340, 5
        %v1450 = vsel %vm1355, %v1448, %v1449
        %v1451 = vrot.slane %v1449, 4
        %v1452 = vrot.slane %v359, 5
        %v1453 = vsel %vm1355, %v1451, %v1452
        %v1454 = vrot.slane %v1319, 5
        %v1455 = vrot.slane %v1454, 4
        %v1456 = vrot.slane %v342, 5
        %v1457 = vsel %vm1355, %v1455, %v1456
        %v1458 = vrot.slane %v1456, 4
        %v1459 = vrot.slane %v360, 5
        %v1460 = vsel %vm1355, %v1458, %v1459
        %v1461 = vrot.slane %v1320, 5
        %v1462 = vrot.slane %v1461, 4
        %v1463 = vrot.slane %v344, 5
        %v1464 = vsel %vm1355, %v1462, %v1463
        %v1465 = vrot.slane %v1463, 4
        %v1466 = vrot.slane %v361, 5
        %v1467 = vsel %vm1355, %v1465, %v1466
        %s1468 = scalar_lea.vmem [#allocation3], 4
        %v1469 = vld [vmem:[%s1468] sm:$0x3]
        %v1470 = vunpack.c.l.b16 %v1359
        %v1471 = vunpack.c.l.b16 %v1362
        %v1472 = vunpack.c.l.b16 %v1366
        %v1473 = vunpack.c.l.b16 %v1369
        %v1474 = vunpack.c.l.b16 %v1373
        %v1475 = vunpack.c.l.b16 %v1376
        %v1476 = vunpack.c.l.b16 %v1380
        %v1477 = vunpack.c.l.b16 %v1383
        %v1478 = vunpack.c.l.b16 %v1387
        %v1479 = vunpack.c.l.b16 %v1390
        %v1480 = vunpack.c.l.b16 %v1394
        %v1481 = vunpack.c.l.b16 %v1397
        %v1482 = vunpack.c.l.b16 %v1401
        %v1483 = vunpack.c.l.b16 %v1404
        %v1484 = vunpack.c.l.b16 %v1408
        %v1485 = vunpack.c.l.b16 %v1411
        %v1486 = vunpack.c.l.b16 %v1415
        %v1487 = vunpack.c.l.b16 %v1418
        %v1488 = vunpack.c.l.b16 %v1422
        %v1489 = vunpack.c.l.b16 %v1425
        %v1490 = vunpack.c.l.b16 %v1429
        %v1491 = vunpack.c.l.b16 %v1432
        %v1492 = vunpack.c.l.b16 %v1436
        %v1493 = vunpack.c.l.b16 %v1439
        %v1494 = vunpack.c.l.b16 %v1443
        %v1495 = vunpack.c.l.b16 %v1446
        %v1496 = vunpack.c.l.b16 %v1450
        %v1497 = vunpack.c.l.b16 %v1453
        %v1498 = vunpack.c.l.b16 %v1457
        %v1499 = vunpack.c.l.b16 %v1460
        %v1500 = vunpack.c.l.b16 %v1464
        %v1501 = vunpack.c.l.b16 %v1467
        %v1502 = vpack.c.b16 %v1471, %v1470
        %v1503 = vpack.c.b16 %v1473, %v1472
        %v1504 = vpack.c.b16 %v1475, %v1474
        %v1505 = vpack.c.b16 %v1477, %v1476
        %v1506 = vpack.c.b16 %v1479, %v1478
        %v1507 = vpack.c.b16 %v1481, %v1480
        %v1508 = vpack.c.b16 %v1483, %v1482
        %v1509 = vpack.c.b16 %v1485, %v1484
        %v1510 = vpack.c.b16 %v1487, %v1486
        %v1511 = vpack.c.b16 %v1489, %v1488
        %v1512 = vpack.c.b16 %v1491, %v1490
        %v1513 = vpack.c.b16 %v1493, %v1492
        %v1514 = vpack.c.b16 %v1495, %v1494
        %v1515 = vpack.c.b16 %v1497, %v1496
        %v1516 = vpack.c.b16 %v1499, %v1498
        %v1517 = vpack.c.b16 %v1501, %v1500
        %v1519 = vsel %vm799, %v1502, 0
        %v1522 = vsel %vm799, %v1503, 0
        %v1525 = vsel %vm799, %v1504, 0
        %v1528 = vsel %vm799, %v1505, 0
        %v1531 = vsel %vm799, %v1506, 0
        %v1534 = vsel %vm799, %v1507, 0
        %v1537 = vsel %vm799, %v1508, 0
        %v1540 = vsel %vm799, %v1509, 0
        %v1543 = vsel %vm799, %v1510, 0
        %v1546 = vsel %vm799, %v1511, 0
        %v1549 = vsel %vm799, %v1512, 0
        %v1552 = vsel %vm799, %v1513, 0
        %v1555 = vsel %vm799, %v1514, 0
        %v1558 = vsel %vm799, %v1515, 0
        %v1561 = vsel %vm799, %v1516, 0
        %v1564 = vsel %vm799, %v1517, 0
        %v1567 = vsel %vm848, %v1469, 0
        %1569 = vmatprep.subr.bf16.mxu0 0
        %1570 = vmatpush1.bf16.msra.mxu0 0
        %1571 = vmatprep.subr.bf16.mxu0 0
        %1572 = vmatpush1.bf16.msra.mxu0 0
        %1573 = vmatprep.subr.bf16.mxu0 0
        %1574 = vmatpush1.bf16.msra.mxu0 0
        %1575 = vmatprep.subr.bf16.mxu0 0
        %1576 = vmatpush1.bf16.msra.mxu0 0
        %1577 = vmatprep.subr.bf16.mxu0 0
        %1578 = vmatpush1.bf16.msra.mxu0 0
        %1579 = vmatprep.subr.bf16.mxu0 0
        %1580 = vmatpush1.bf16.msra.mxu0 0
        %1581 = vmatprep.subr.bf16.mxu0 0
        %1582 = vmatpush1.bf16.msra.mxu0 0
        %1583 = vmatprep.subr.bf16.mxu0 0
        %1584 = vmatpush1.bf16.msra.mxu0 %v1567
        %1585 = vmatprep.subr.bf16.mxu0 0
        %1586 = vmatpush2.bf16.msra.mxu0 0
        %1587 = vmatprep.subr.bf16.mxu0 0
        %1588 = vmatpush2.bf16.msra.mxu0 0
        %1589 = vmatprep.subr.bf16.mxu0 0
        %1590 = vmatpush2.bf16.msra.mxu0 0
        %1591 = vmatprep.subr.bf16.mxu0 0
        %1592 = vmatpush2.bf16.msra.mxu0 0
        %1593 = vmatprep.subr.bf16.mxu0 0
        %1594 = vmatpush2.bf16.msra.mxu0 0
        %1595 = vmatprep.subr.bf16.mxu0 0
        %1596 = vmatpush2.bf16.msra.mxu0 0
        %1597 = vmatprep.subr.bf16.mxu0 0
        %1598 = vmatpush2.bf16.msra.mxu0 0
        %1599 = vmatprep.subr.bf16.mxu0 0
        %1600 = vmatpush2.bf16.msra.mxu0 0
        %1601 = vmatprep.mubr.bf16.mxu0 0
        %1602 = vmatmul.mubr.bf16.gmra.mxu0 %v1519
        %v1603 = vpop.f32.mrf.mxu0
        %v1604 = vadd.f32 0.0, %v1603
        %v1605 = vpop.f32.mrf.mxu0
        %v1606 = vpop.f32.mrf.mxu0
        %v1607 = vadd.f32 0.0, %v1606
        %v1608 = vpop.f32.mrf.mxu0
        %1609 = vmatprep.mubr.bf16.mxu0 0
        %1610 = vmatmul.mubr.bf16.gmra.mxu0 %v1522
        %v1611 = vpop.f32.mrf.mxu0
        %v1612 = vadd.f32 0.0, %v1611
        %v1613 = vpop.f32.mrf.mxu0
        %v1614 = vpop.f32.mrf.mxu0
        %v1615 = vadd.f32 0.0, %v1614
        %v1616 = vpop.f32.mrf.mxu0
        %1617 = vmatprep.mubr.bf16.mxu0 0
        %1618 = vmatmul.mubr.bf16.gmra.mxu0 %v1525
        %v1619 = vpop.f32.mrf.mxu0
        %v1620 = vadd.f32 0.0, %v1619
        %v1621 = vpop.f32.mrf.mxu0
        %v1622 = vpop.f32.mrf.mxu0
        %v1623 = vadd.f32 0.0, %v1622
        %v1624 = vpop.f32.mrf.mxu0
        %1625 = vmatprep.mubr.bf16.mxu0 0
        %1626 = vmatmul.mubr.bf16.gmra.mxu0 %v1528
        %v1627 = vpop.f32.mrf.mxu0
        %v1628 = vadd.f32 0.0, %v1627
        %v1629 = vpop.f32.mrf.mxu0
        %v1630 = vpop.f32.mrf.mxu0
        %v1631 = vadd.f32 0.0, %v1630
        %v1632 = vpop.f32.mrf.mxu0
        %1633 = vmatprep.mubr.bf16.mxu0 0
        %1634 = vmatmul.mubr.bf16.gmra.mxu0 %v1531
        %v1635 = vpop.f32.mrf.mxu0
        %v1636 = vadd.f32 0.0, %v1635
        %v1637 = vpop.f32.mrf.mxu0
        %v1638 = vpop.f32.mrf.mxu0
        %v1639 = vadd.f32 0.0, %v1638
        %v1640 = vpop.f32.mrf.mxu0
        %1641 = vmatprep.mubr.bf16.mxu0 0
        %1642 = vmatmul.mubr.bf16.gmra.mxu0 %v1534
        %v1643 = vpop.f32.mrf.mxu0
        %v1644 = vadd.f32 0.0, %v1643
        %v1645 = vpop.f32.mrf.mxu0
        %v1646 = vpop.f32.mrf.mxu0
        %v1647 = vadd.f32 0.0, %v1646
        %v1648 = vpop.f32.mrf.mxu0
        %1649 = vmatprep.mubr.bf16.mxu0 0
        %1650 = vmatmul.mubr.bf16.gmra.mxu0 %v1537
        %v1651 = vpop.f32.mrf.mxu0
        %v1652 = vadd.f32 0.0, %v1651
        %v1653 = vpop.f32.mrf.mxu0
        %v1654 = vpop.f32.mrf.mxu0
        %v1655 = vadd.f32 0.0, %v1654
        %v1656 = vpop.f32.mrf.mxu0
        %1657 = vmatprep.mubr.bf16.mxu0 0
        %1658 = vmatmul.mubr.bf16.gmra.mxu0 %v1540
        %v1659 = vpop.f32.mrf.mxu0
        %v1660 = vadd.f32 0.0, %v1659
        %v1661 = vpop.f32.mrf.mxu0
        %v1662 = vpop.f32.mrf.mxu0
        %v1663 = vadd.f32 0.0, %v1662
        %v1664 = vpop.f32.mrf.mxu0
        %1665 = vmatprep.mubr.bf16.mxu0 0
        %1666 = vmatmul.mubr.bf16.gmra.mxu0 %v1543
        %v1667 = vpop.f32.mrf.mxu0
        %v1668 = vadd.f32 0.0, %v1667
        %v1669 = vpop.f32.mrf.mxu0
        %v1670 = vpop.f32.mrf.mxu0
        %v1671 = vadd.f32 0.0, %v1670
        %v1672 = vpop.f32.mrf.mxu0
        %1673 = vmatprep.mubr.bf16.mxu0 0
        %1674 = vmatmul.mubr.bf16.gmra.mxu0 %v1546
        %v1675 = vpop.f32.mrf.mxu0
        %v1676 = vadd.f32 0.0, %v1675
        %v1677 = vpop.f32.mrf.mxu0
        %v1678 = vpop.f32.mrf.mxu0
        %v1679 = vadd.f32 0.0, %v1678
        %v1680 = vpop.f32.mrf.mxu0
        %1681 = vmatprep.mubr.bf16.mxu0 0
        %1682 = vmatmul.mubr.bf16.gmra.mxu0 %v1549
        %v1683 = vpop.f32.mrf.mxu0
        %v1684 = vadd.f32 0.0, %v1683
        %v1685 = vpop.f32.mrf.mxu0
        %v1686 = vpop.f32.mrf.mxu0
        %v1687 = vadd.f32 0.0, %v1686
        %v1688 = vpop.f32.mrf.mxu0
        %1689 = vmatprep.mubr.bf16.mxu0 0
        %1690 = vmatmul.mubr.bf16.gmra.mxu0 %v1552
        %v1691 = vpop.f32.mrf.mxu0
        %v1692 = vadd.f32 0.0, %v1691
        %v1693 = vpop.f32.mrf.mxu0
        %v1694 = vpop.f32.mrf.mxu0
        %v1695 = vadd.f32 0.0, %v1694
        %v1696 = vpop.f32.mrf.mxu0
        %1697 = vmatprep.mubr.bf16.mxu0 0
        %1698 = vmatmul.mubr.bf16.gmra.mxu0 %v1555
        %v1699 = vpop.f32.mrf.mxu0
        %v1700 = vadd.f32 0.0, %v1699
        %v1701 = vpop.f32.mrf.mxu0
        %v1702 = vpop.f32.mrf.mxu0
        %v1703 = vadd.f32 0.0, %v1702
        %v1704 = vpop.f32.mrf.mxu0
        %1705 = vmatprep.mubr.bf16.mxu0 0
        %1706 = vmatmul.mubr.bf16.gmra.mxu0 %v1558
        %v1707 = vpop.f32.mrf.mxu0
        %v1708 = vadd.f32 0.0, %v1707
        %v1709 = vpop.f32.mrf.mxu0
        %v1710 = vpop.f32.mrf.mxu0
        %v1711 = vadd.f32 0.0, %v1710
        %v1712 = vpop.f32.mrf.mxu0
        %1713 = vmatprep.mubr.bf16.mxu0 0
        %1714 = vmatmul.mubr.bf16.gmra.mxu0 %v1561
        %v1715 = vpop.f32.mrf.mxu0
        %v1716 = vadd.f32 0.0, %v1715
        %v1717 = vpop.f32.mrf.mxu0
        %v1718 = vpop.f32.mrf.mxu0
        %v1719 = vadd.f32 0.0, %v1718
        %v1720 = vpop.f32.mrf.mxu0
        %1721 = vmatprep.mubr.bf16.mxu0 0
        %1722 = vmatmul.mubr.bf16.gmra.mxu0 %v1564
        %v1723 = vpop.f32.mrf.mxu0
        %v1724 = vadd.f32 0.0, %v1723
        %v1725 = vpop.f32.mrf.mxu0
        %v1726 = vpop.f32.mrf.mxu0
        %v1727 = vadd.f32 0.0, %v1726
        %v1728 = vpop.f32.mrf.mxu0
        %1729 = vdwg.mxu0
        %v1730 = vadd.f32 %v1179, %v1604
        %v1731 = vadd.f32 %v1182, %v1607
        %v1732 = vadd.f32 %v1187, %v1612
        %v1733 = vadd.f32 %v1190, %v1615
        %v1734 = vadd.f32 %v1195, %v1620
        %v1735 = vadd.f32 %v1198, %v1623
        %v1736 = vadd.f32 %v1203, %v1628
        %v1737 = vadd.f32 %v1206, %v1631
        %v1738 = vadd.f32 %v1211, %v1636
        %v1739 = vadd.f32 %v1214, %v1639
        %v1740 = vadd.f32 %v1219, %v1644
        %v1741 = vadd.f32 %v1222, %v1647
        %v1742 = vadd.f32 %v1227, %v1652
        %v1743 = vadd.f32 %v1230, %v1655
        %v1744 = vadd.f32 %v1235, %v1660
        %v1745 = vadd.f32 %v1238, %v1663
        %v1746 = vadd.f32 %v1243, %v1668
        %v1747 = vadd.f32 %v1246, %v1671
        %v1748 = vadd.f32 %v1251, %v1676
        %v1749 = vadd.f32 %v1254, %v1679
        %v1750 = vadd.f32 %v1259, %v1684
        %v1751 = vadd.f32 %v1262, %v1687
        %v1752 = vadd.f32 %v1267, %v1692
        %v1753 = vadd.f32 %v1270, %v1695
        %v1754 = vadd.f32 %v1275, %v1700
        %v1755 = vadd.f32 %v1278, %v1703
        %v1756 = vadd.f32 %v1283, %v1708
        %v1757 = vadd.f32 %v1286, %v1711
        %v1758 = vadd.f32 %v1291, %v1716
        %v1759 = vadd.f32 %v1294, %v1719
        %v1760 = vadd.f32 %v1299, %v1724
        %v1761 = vadd.f32 %v1302, %v1727
        %s1762 = scalar_lea.vmem %s306, 12
        %v1763 = vld [vmem:[%s1762] sm:$0xf]
        %v1764 = vld [vmem:[%s1762 + $0x4] sm:$0xf]
        %v1765 = vld [vmem:[%s1762 + $0xc] sm:$0xf]
        %v1766 = vld [vmem:[%s1762 + $0x10] sm:$0xf]
        %v1767 = vld [vmem:[%s1762 + $0x18] sm:$0xf]
        %v1768 = vld [vmem:[%s1762 + $0x1c] sm:$0xf]
        %v1769 = vld [vmem:[%s1762 + $0x24] sm:$0xf]
        %v1770 = vld [vmem:[%s1762 + $0x28] sm:$0xf]
        %v1771 = vld [vmem:[%s1762 + $0x30] sm:$0xf]
        %v1772 = vld [vmem:[%s1762 + $0x34] sm:$0xf]
        %v1773 = vld [vmem:[%s1762 + $0x3c] sm:$0xf]
        %v1774 = vld [vmem:[%s1762 + $0x40] sm:$0xf]
        %v1775 = vld [vmem:[%s1762 + $0x48] sm:$0xf]
        %v1776 = vld [vmem:[%s1762 + $0x4c] sm:$0xf]
        %v1777 = vld [vmem:[%s1762 + $0x54] sm:$0xf]
        %v1778 = vld [vmem:[%s1762 + $0x58] sm:$0xf]
        %v1779 = vld [vmem:[%s1762 + $0x60] sm:$0xf]
        %v1780 = vld [vmem:[%s1762 + $0x64] sm:$0xf]
        %v1781 = vld [vmem:[%s1762 + $0x6c] sm:$0xf]
        %v1782 = vld [vmem:[%s1762 + $0x70] sm:$0xf]
        %v1783 = vld [vmem:[%s1762 + $0x78] sm:$0xf]
        %v1784 = vld [vmem:[%s1762 + $0x7c] sm:$0xf]
        %v1785 = vld [vmem:[%s1762 + $0x84] sm:$0xf]
        %v1786 = vld [vmem:[%s1762 + $0x88] sm:$0xf]
        %v1787 = vld [vmem:[%s1762 + $0x90] sm:$0xf]
        %v1788 = vld [vmem:[%s1762 + $0x94] sm:$0xf]
        %v1789 = vld [vmem:[%s1762 + $0x9c] sm:$0xf]
        %v1790 = vld [vmem:[%s1762 + $0xa0] sm:$0xf]
        %v1791 = vld [vmem:[%s1762 + $0xa8] sm:$0xf]
        %v1792 = vld [vmem:[%s1762 + $0xac] sm:$0xf]
        %v1793 = vld [vmem:[%s1762 + $0xb4] sm:$0xf]
        %v1794 = vld [vmem:[%s1762 + $0xb8] sm:$0xf]
        %s1795 = scalar_lea.vmem [#allocation3], 6
        %v1796 = vld [vmem:[%s1795] sm:$0x3]
        %v1829 = vunpack.c.l.b16 %v1763
        %v1830 = vunpack.c.l.b16 %v1764
        %v1831 = vunpack.c.l.b16 %v1765
        %v1832 = vunpack.c.l.b16 %v1766
        %v1833 = vunpack.c.l.b16 %v1767
        %v1834 = vunpack.c.l.b16 %v1768
        %v1835 = vunpack.c.l.b16 %v1769
        %v1836 = vunpack.c.l.b16 %v1770
        %v1837 = vunpack.c.l.b16 %v1771
        %v1838 = vunpack.c.l.b16 %v1772
        %v1839 = vunpack.c.l.b16 %v1773
        %v1840 = vunpack.c.l.b16 %v1774
        %v1841 = vunpack.c.l.b16 %v1775
        %v1842 = vunpack.c.l.b16 %v1776
        %v1843 = vunpack.c.l.b16 %v1777
        %v1844 = vunpack.c.l.b16 %v1778
        %v1845 = vunpack.c.l.b16 %v1779
        %v1846 = vunpack.c.l.b16 %v1780
        %v1847 = vunpack.c.l.b16 %v1781
        %v1848 = vunpack.c.l.b16 %v1782
        %v1849 = vunpack.c.l.b16 %v1783
        %v1850 = vunpack.c.l.b16 %v1784
        %v1851 = vunpack.c.l.b16 %v1785
        %v1852 = vunpack.c.l.b16 %v1786
        %v1853 = vunpack.c.l.b16 %v1787
        %v1854 = vunpack.c.l.b16 %v1788
        %v1855 = vunpack.c.l.b16 %v1789
        %v1856 = vunpack.c.l.b16 %v1790
        %v1857 = vunpack.c.l.b16 %v1791
        %v1858 = vunpack.c.l.b16 %v1792
        %v1859 = vunpack.c.l.b16 %v1793
        %v1860 = vunpack.c.l.b16 %v1794
        %v1861 = vpack.c.b16 %v1830, %v1829
        %v1862 = vpack.c.b16 %v1832, %v1831
        %v1863 = vpack.c.b16 %v1834, %v1833
        %v1864 = vpack.c.b16 %v1836, %v1835
        %v1865 = vpack.c.b16 %v1838, %v1837
        %v1866 = vpack.c.b16 %v1840, %v1839
        %v1867 = vpack.c.b16 %v1842, %v1841
        %v1868 = vpack.c.b16 %v1844, %v1843
        %v1869 = vpack.c.b16 %v1846, %v1845
        %v1870 = vpack.c.b16 %v1848, %v1847
        %v1871 = vpack.c.b16 %v1850, %v1849
        %v1872 = vpack.c.b16 %v1852, %v1851
        %v1873 = vpack.c.b16 %v1854, %v1853
        %v1874 = vpack.c.b16 %v1856, %v1855
        %v1875 = vpack.c.b16 %v1858, %v1857
        %v1876 = vpack.c.b16 %v1860, %v1859
        %v1878 = vsel %vm799, %v1861, 0
        %v1881 = vsel %vm799, %v1862, 0
        %v1884 = vsel %vm799, %v1863, 0
        %v1887 = vsel %vm799, %v1864, 0
        %v1890 = vsel %vm799, %v1865, 0
        %v1893 = vsel %vm799, %v1866, 0
        %v1896 = vsel %vm799, %v1867, 0
        %v1899 = vsel %vm799, %v1868, 0
        %v1902 = vsel %vm799, %v1869, 0
        %v1905 = vsel %vm799, %v1870, 0
        %v1908 = vsel %vm799, %v1871, 0
        %v1911 = vsel %vm799, %v1872, 0
        %v1914 = vsel %vm799, %v1873, 0
        %v1917 = vsel %vm799, %v1874, 0
        %v1920 = vsel %vm799, %v1875, 0
        %v1923 = vsel %vm799, %v1876, 0
        %v1926 = vsel %vm848, %v1796, 0
        %1928 = vmatprep.subr.bf16.mxu0 0
        %1929 = vmatpush1.bf16.msra.mxu0 0
        %1930 = vmatprep.subr.bf16.mxu0 0
        %1931 = vmatpush1.bf16.msra.mxu0 0
        %1932 = vmatprep.subr.bf16.mxu0 0
        %1933 = vmatpush1.bf16.msra.mxu0 0
        %1934 = vmatprep.subr.bf16.mxu0 0
        %1935 = vmatpush1.bf16.msra.mxu0 0
        %1936 = vmatprep.subr.bf16.mxu0 0
        %1937 = vmatpush1.bf16.msra.mxu0 0
        %1938 = vmatprep.subr.bf16.mxu0 0
        %1939 = vmatpush1.bf16.msra.mxu0 0
        %1940 = vmatprep.subr.bf16.mxu0 0
        %1941 = vmatpush1.bf16.msra.mxu0 0
        %1942 = vmatprep.subr.bf16.mxu0 0
        %1943 = vmatpush1.bf16.msra.mxu0 %v1926
        %1944 = vmatprep.subr.bf16.mxu0 0
        %1945 = vmatpush2.bf16.msra.mxu0 0
        %1946 = vmatprep.subr.bf16.mxu0 0
        %1947 = vmatpush2.bf16.msra.mxu0 0
        %1948 = vmatprep.subr.bf16.mxu0 0
        %1949 = vmatpush2.bf16.msra.mxu0 0
        %1950 = vmatprep.subr.bf16.mxu0 0
        %1951 = vmatpush2.bf16.msra.mxu0 0
        %1952 = vmatprep.subr.bf16.mxu0 0
        %1953 = vmatpush2.bf16.msra.mxu0 0
        %1954 = vmatprep.subr.bf16.mxu0 0
        %1955 = vmatpush2.bf16.msra.mxu0 0
        %1956 = vmatprep.subr.bf16.mxu0 0
        %1957 = vmatpush2.bf16.msra.mxu0 0
        %1958 = vmatprep.subr.bf16.mxu0 0
        %1959 = vmatpush2.bf16.msra.mxu0 0
        %1960 = vmatprep.mubr.bf16.mxu0 0
        %1961 = vmatmul.mubr.bf16.gmra.mxu0 %v1878
        %v1962 = vpop.f32.mrf.mxu0
        %v1963 = vadd.f32 0.0, %v1962
        %v1964 = vpop.f32.mrf.mxu0
        %v1965 = vpop.f32.mrf.mxu0
        %v1966 = vadd.f32 0.0, %v1965
        %v1967 = vpop.f32.mrf.mxu0
        %1968 = vmatprep.mubr.bf16.mxu0 0
        %1969 = vmatmul.mubr.bf16.gmra.mxu0 %v1881
        %v1970 = vpop.f32.mrf.mxu0
        %v1971 = vadd.f32 0.0, %v1970
        %v1972 = vpop.f32.mrf.mxu0
        %v1973 = vpop.f32.mrf.mxu0
        %v1974 = vadd.f32 0.0, %v1973
        %v1975 = vpop.f32.mrf.mxu0
        %1976 = vmatprep.mubr.bf16.mxu0 0
        %1977 = vmatmul.mubr.bf16.gmra.mxu0 %v1884
        %v1978 = vpop.f32.mrf.mxu0
        %v1979 = vadd.f32 0.0, %v1978
        %v1980 = vpop.f32.mrf.mxu0
        %v1981 = vpop.f32.mrf.mxu0
        %v1982 = vadd.f32 0.0, %v1981
        %v1983 = vpop.f32.mrf.mxu0
        %1984 = vmatprep.mubr.bf16.mxu0 0
        %1985 = vmatmul.mubr.bf16.gmra.mxu0 %v1887
        %v1986 = vpop.f32.mrf.mxu0
        %v1987 = vadd.f32 0.0, %v1986
        %v1988 = vpop.f32.mrf.mxu0
        %v1989 = vpop.f32.mrf.mxu0
        %v1990 = vadd.f32 0.0, %v1989
        %v1991 = vpop.f32.mrf.mxu0
        %1992 = vmatprep.mubr.bf16.mxu0 0
        %1993 = vmatmul.mubr.bf16.gmra.mxu0 %v1890
        %v1994 = vpop.f32.mrf.mxu0
        %v1995 = vadd.f32 0.0, %v1994
        %v1996 = vpop.f32.mrf.mxu0
        %v1997 = vpop.f32.mrf.mxu0
        %v1998 = vadd.f32 0.0, %v1997
        %v1999 = vpop.f32.mrf.mxu0
        %2000 = vmatprep.mubr.bf16.mxu0 0
        %2001 = vmatmul.mubr.bf16.gmra.mxu0 %v1893
        %v2002 = vpop.f32.mrf.mxu0
        %v2003 = vadd.f32 0.0, %v2002
        %v2004 = vpop.f32.mrf.mxu0
        %v2005 = vpop.f32.mrf.mxu0
        %v2006 = vadd.f32 0.0, %v2005
        %v2007 = vpop.f32.mrf.mxu0
        %2008 = vmatprep.mubr.bf16.mxu0 0
        %2009 = vmatmul.mubr.bf16.gmra.mxu0 %v1896
        %v2010 = vpop.f32.mrf.mxu0
        %v2011 = vadd.f32 0.0, %v2010
        %v2012 = vpop.f32.mrf.mxu0
        %v2013 = vpop.f32.mrf.mxu0
        %v2014 = vadd.f32 0.0, %v2013
        %v2015 = vpop.f32.mrf.mxu0
        %2016 = vmatprep.mubr.bf16.mxu0 0
        %2017 = vmatmul.mubr.bf16.gmra.mxu0 %v1899
        %v2018 = vpop.f32.mrf.mxu0
        %v2019 = vadd.f32 0.0, %v2018
        %v2020 = vpop.f32.mrf.mxu0
        %v2021 = vpop.f32.mrf.mxu0
        %v2022 = vadd.f32 0.0, %v2021
        %v2023 = vpop.f32.mrf.mxu0
        %2024 = vmatprep.mubr.bf16.mxu0 0
        %2025 = vmatmul.mubr.bf16.gmra.mxu0 %v1902
        %v2026 = vpop.f32.mrf.mxu0
        %v2027 = vadd.f32 0.0, %v2026
        %v2028 = vpop.f32.mrf.mxu0
        %v2029 = vpop.f32.mrf.mxu0
        %v2030 = vadd.f32 0.0, %v2029
        %v2031 = vpop.f32.mrf.mxu0
        %2032 = vmatprep.mubr.bf16.mxu0 0
        %2033 = vmatmul.mubr.bf16.gmra.mxu0 %v1905
        %v2034 = vpop.f32.mrf.mxu0
        %v2035 = vadd.f32 0.0, %v2034
        %v2036 = vpop.f32.mrf.mxu0
        %v2037 = vpop.f32.mrf.mxu0
        %v2038 = vadd.f32 0.0, %v2037
        %v2039 = vpop.f32.mrf.mxu0
        %2040 = vmatprep.mubr.bf16.mxu0 0
        %2041 = vmatmul.mubr.bf16.gmra.mxu0 %v1908
        %v2042 = vpop.f32.mrf.mxu0
        %v2043 = vadd.f32 0.0, %v2042
        %v2044 = vpop.f32.mrf.mxu0
        %v2045 = vpop.f32.mrf.mxu0
        %v2046 = vadd.f32 0.0, %v2045
        %v2047 = vpop.f32.mrf.mxu0
        %2048 = vmatprep.mubr.bf16.mxu0 0
        %2049 = vmatmul.mubr.bf16.gmra.mxu0 %v1911
        %v2050 = vpop.f32.mrf.mxu0
        %v2051 = vadd.f32 0.0, %v2050
        %v2052 = vpop.f32.mrf.mxu0
        %v2053 = vpop.f32.mrf.mxu0
        %v2054 = vadd.f32 0.0, %v2053
        %v2055 = vpop.f32.mrf.mxu0
        %2056 = vmatprep.mubr.bf16.mxu0 0
        %2057 = vmatmul.mubr.bf16.gmra.mxu0 %v1914
        %v2058 = vpop.f32.mrf.mxu0
        %v2059 = vadd.f32 0.0, %v2058
        %v2060 = vpop.f32.mrf.mxu0
        %v2061 = vpop.f32.mrf.mxu0
        %v2062 = vadd.f32 0.0, %v2061
        %v2063 = vpop.f32.mrf.mxu0
        %2064 = vmatprep.mubr.bf16.mxu0 0
        %2065 = vmatmul.mubr.bf16.gmra.mxu0 %v1917
        %v2066 = vpop.f32.mrf.mxu0
        %v2067 = vadd.f32 0.0, %v2066
        %v2068 = vpop.f32.mrf.mxu0
        %v2069 = vpop.f32.mrf.mxu0
        %v2070 = vadd.f32 0.0, %v2069
        %v2071 = vpop.f32.mrf.mxu0
        %2072 = vmatprep.mubr.bf16.mxu0 0
        %2073 = vmatmul.mubr.bf16.gmra.mxu0 %v1920
        %v2074 = vpop.f32.mrf.mxu0
        %v2075 = vadd.f32 0.0, %v2074
        %v2076 = vpop.f32.mrf.mxu0
        %v2077 = vpop.f32.mrf.mxu0
        %v2078 = vadd.f32 0.0, %v2077
        %v2079 = vpop.f32.mrf.mxu0
        %2080 = vmatprep.mubr.bf16.mxu0 0
        %2081 = vmatmul.mubr.bf16.gmra.mxu0 %v1923
        %v2082 = vpop.f32.mrf.mxu0
        %v2083 = vadd.f32 0.0, %v2082
        %v2084 = vpop.f32.mrf.mxu0
        %v2085 = vpop.f32.mrf.mxu0
        %v2086 = vadd.f32 0.0, %v2085
        %v2087 = vpop.f32.mrf.mxu0
        %2088 = vdwg.mxu0
        %v2089 = vadd.f32 %v1730, %v1963
        %v2090 = vadd.f32 %v1731, %v1966
        %v2091 = vadd.f32 %v1732, %v1971
        %v2092 = vadd.f32 %v1733, %v1974
        %v2093 = vadd.f32 %v1734, %v1979
        %v2094 = vadd.f32 %v1735, %v1982
        %v2095 = vadd.f32 %v1736, %v1987
        %v2096 = vadd.f32 %v1737, %v1990
        %v2097 = vadd.f32 %v1738, %v1995
        %v2098 = vadd.f32 %v1739, %v1998
        %v2099 = vadd.f32 %v1740, %v2003
        %v2100 = vadd.f32 %v1741, %v2006
        %v2101 = vadd.f32 %v1742, %v2011
        %v2102 = vadd.f32 %v1743, %v2014
        %v2103 = vadd.f32 %v1744, %v2019
        %v2104 = vadd.f32 %v1745, %v2022
        %v2105 = vadd.f32 %v1746, %v2027
        %v2106 = vadd.f32 %v1747, %v2030
        %v2107 = vadd.f32 %v1748, %v2035
        %v2108 = vadd.f32 %v1749, %v2038
        %v2109 = vadd.f32 %v1750, %v2043
        %v2110 = vadd.f32 %v1751, %v2046
        %v2111 = vadd.f32 %v1752, %v2051
        %v2112 = vadd.f32 %v1753, %v2054
        %v2113 = vadd.f32 %v1754, %v2059
        %v2114 = vadd.f32 %v1755, %v2062
        %v2115 = vadd.f32 %v1756, %v2067
        %v2116 = vadd.f32 %v1757, %v2070
        %v2117 = vadd.f32 %v1758, %v2075
        %v2118 = vadd.f32 %v1759, %v2078
        %v2119 = vadd.f32 %v1760, %v2083
        %v2120 = vadd.f32 %v1761, %v2086
        %v2121 = vld [vmem:[%s1762] sm:$0xf]
        %v2122 = vld [vmem:[%s1762 + $0x4] sm:$0xf]
        %v2123 = vld [vmem:[%s1762 + $0x8] sm:$0x1]
        %v2124 = vld [vmem:[%s1762 + $0xc] sm:$0xf]
        %v2125 = vld [vmem:[%s1762 + $0x10] sm:$0xf]
        %v2126 = vld [vmem:[%s1762 + $0x14] sm:$0x1]
        %v2127 = vld [vmem:[%s1762 + $0x18] sm:$0xf]
        %v2128 = vld [vmem:[%s1762 + $0x1c] sm:$0xf]
        %v2129 = vld [vmem:[%s1762 + $0x20] sm:$0x1]
        %v2130 = vld [vmem:[%s1762 + $0x24] sm:$0xf]
        %v2131 = vld [vmem:[%s1762 + $0x28] sm:$0xf]
        %v2132 = vld [vmem:[%s1762 + $0x2c] sm:$0x1]
        %v2133 = vld [vmem:[%s1762 + $0x30] sm:$0xf]
        %v2134 = vld [vmem:[%s1762 + $0x34] sm:$0xf]
        %v2135 = vld [vmem:[%s1762 + $0x38] sm:$0x1]
        %v2136 = vld [vmem:[%s1762 + $0x3c] sm:$0xf]
        %v2137 = vld [vmem:[%s1762 + $0x40] sm:$0xf]
        %v2138 = vld [vmem:[%s1762 + $0x44] sm:$0x1]
        %v2139 = vld [vmem:[%s1762 + $0x48] sm:$0xf]
        %v2140 = vld [vmem:[%s1762 + $0x4c] sm:$0xf]
        %v2141 = vld [vmem:[%s1762 + $0x50] sm:$0x1]
        %v2142 = vld [vmem:[%s1762 + $0x54] sm:$0xf]
        %v2143 = vld [vmem:[%s1762 + $0x58] sm:$0xf]
        %v2144 = vld [vmem:[%s1762 + $0x5c] sm:$0x1]
        %v2145 = vld [vmem:[%s1762 + $0x60] sm:$0xf]
        %v2146 = vld [vmem:[%s1762 + $0x64] sm:$0xf]
        %v2147 = vld [vmem:[%s1762 + $0x68] sm:$0x1]
        %v2148 = vld [vmem:[%s1762 + $0x6c] sm:$0xf]
        %v2149 = vld [vmem:[%s1762 + $0x70] sm:$0xf]
        %v2150 = vld [vmem:[%s1762 + $0x74] sm:$0x1]
        %v2151 = vld [vmem:[%s1762 + $0x78] sm:$0xf]
        %v2152 = vld [vmem:[%s1762 + $0x7c] sm:$0xf]
        %v2153 = vld [vmem:[%s1762 + $0x80] sm:$0x1]
        %v2154 = vld [vmem:[%s1762 + $0x84] sm:$0xf]
        %v2155 = vld [vmem:[%s1762 + $0x88] sm:$0xf]
        %v2156 = vld [vmem:[%s1762 + $0x8c] sm:$0x1]
        %v2157 = vld [vmem:[%s1762 + $0x90] sm:$0xf]
        %v2158 = vld [vmem:[%s1762 + $0x94] sm:$0xf]
        %v2159 = vld [vmem:[%s1762 + $0x98] sm:$0x1]
        %v2160 = vld [vmem:[%s1762 + $0x9c] sm:$0xf]
        %v2161 = vld [vmem:[%s1762 + $0xa0] sm:$0xf]
        %v2162 = vld [vmem:[%s1762 + $0xa4] sm:$0x1]
        %v2163 = vld [vmem:[%s1762 + $0xa8] sm:$0xf]
        %v2164 = vld [vmem:[%s1762 + $0xac] sm:$0xf]
        %v2165 = vld [vmem:[%s1762 + $0xb0] sm:$0x1]
        %v2166 = vld [vmem:[%s1762 + $0xb4] sm:$0xf]
        %v2167 = vld [vmem:[%s1762 + $0xb8] sm:$0xf]
        %v2168 = vld [vmem:[%s1762 + $0xbc] sm:$0x1]
        %v2170 = vshrl.u32 %v2121, 16
        %v2172 = vrot.slane %v2170, 4
        %v2173 = vshll.u32 %v2121, 16
        %v2175 = vrot.slane %v2173, 5
        %v2176 = vor.u32 %v2172, %v2175
        %v2177 = vrot.slane %v2176, 4
        %v2179 = vshll.u32 %v2122, 16
        %v2181 = vrot.slane %v2179, 5
        %v2182 = vsel %vm364, %v2177, %v2181
        %v2183 = vshrl.u32 %v2122, 16
        %v2185 = vrot.slane %v2183, 4
        %v2186 = vor.u32 %v2185, %v2181
        %v2187 = vrot.slane %v2186, 4
        %v2189 = vshll.u32 %v2123, 16
        %v2191 = vrot.slane %v2189, 5
        %v2192 = vsel %vm364, %v2187, %v2191
        %v2194 = vshrl.u32 %v2124, 16
        %v2196 = vrot.slane %v2194, 4
        %v2197 = vshll.u32 %v2124, 16
        %v2199 = vrot.slane %v2197, 5
        %v2200 = vor.u32 %v2196, %v2199
        %v2201 = vrot.slane %v2200, 4
        %v2203 = vshll.u32 %v2125, 16
        %v2205 = vrot.slane %v2203, 5
        %v2206 = vsel %vm364, %v2201, %v2205
        %v2207 = vshrl.u32 %v2125, 16
        %v2209 = vrot.slane %v2207, 4
        %v2210 = vor.u32 %v2209, %v2205
        %v2211 = vrot.slane %v2210, 4
        %v2213 = vshll.u32 %v2126, 16
        %v2215 = vrot.slane %v2213, 5
        %v2216 = vsel %vm364, %v2211, %v2215
        %v2218 = vshrl.u32 %v2127, 16
        %v2220 = vrot.slane %v2218, 4
        %v2221 = vshll.u32 %v2127, 16
        %v2223 = vrot.slane %v2221, 5
        %v2224 = vor.u32 %v2220, %v2223
        %v2225 = vrot.slane %v2224, 4
        %v2227 = vshll.u32 %v2128, 16
        %v2229 = vrot.slane %v2227, 5
        %v2230 = vsel %vm364, %v2225, %v2229
        %v2231 = vshrl.u32 %v2128, 16
        %v2233 = vrot.slane %v2231, 4
        %v2234 = vor.u32 %v2233, %v2229
        %v2235 = vrot.slane %v2234, 4
        %v2237 = vshll.u32 %v2129, 16
        %v2239 = vrot.slane %v2237, 5
        %v2240 = vsel %vm364, %v2235, %v2239
        %v2242 = vshrl.u32 %v2130, 16
        %v2244 = vrot.slane %v2242, 4
        %v2245 = vshll.u32 %v2130, 16
        %v2247 = vrot.slane %v2245, 5
        %v2248 = vor.u32 %v2244, %v2247
        %v2249 = vrot.slane %v2248, 4
        %v2251 = vshll.u32 %v2131, 16
        %v2253 = vrot.slane %v2251, 5
        %v2254 = vsel %vm364, %v2249, %v2253
        %v2255 = vshrl.u32 %v2131, 16
        %v2257 = vrot.slane %v2255, 4
        %v2258 = vor.u32 %v2257, %v2253
        %v2259 = vrot.slane %v2258, 4
        %v2261 = vshll.u32 %v2132, 16
        %v2263 = vrot.slane %v2261, 5
        %v2264 = vsel %vm364, %v2259, %v2263
        %v2266 = vshrl.u32 %v2133, 16
        %v2268 = vrot.slane %v2266, 4
        %v2269 = vshll.u32 %v2133, 16
        %v2271 = vrot.slane %v2269, 5
        %v2272 = vor.u32 %v2268, %v2271
        %v2273 = vrot.slane %v2272, 4
        %v2275 = vshll.u32 %v2134, 16
        %v2277 = vrot.slane %v2275, 5
        %v2278 = vsel %vm364, %v2273, %v2277
        %v2279 = vshrl.u32 %v2134, 16
        %v2281 = vrot.slane %v2279, 4
        %v2282 = vor.u32 %v2281, %v2277
        %v2283 = vrot.slane %v2282, 4
        %v2285 = vshll.u32 %v2135, 16
        %v2287 = vrot.slane %v2285, 5
        %v2288 = vsel %vm364, %v2283, %v2287
        %v2290 = vshrl.u32 %v2136, 16
        %v2292 = vrot.slane %v2290, 4
        %v2293 = vshll.u32 %v2136, 16
        %v2295 = vrot.slane %v2293, 5
        %v2296 = vor.u32 %v2292, %v2295
        %v2297 = vrot.slane %v2296, 4
        %v2299 = vshll.u32 %v2137, 16
        %v2301 = vrot.slane %v2299, 5
        %v2302 = vsel %vm364, %v2297, %v2301
        %v2303 = vshrl.u32 %v2137, 16
        %v2305 = vrot.slane %v2303, 4
        %v2306 = vor.u32 %v2305, %v2301
        %v2307 = vrot.slane %v2306, 4
        %v2309 = vshll.u32 %v2138, 16
        %v2311 = vrot.slane %v2309, 5
        %v2312 = vsel %vm364, %v2307, %v2311
        %v2314 = vshrl.u32 %v2139, 16
        %v2316 = vrot.slane %v2314, 4
        %v2317 = vshll.u32 %v2139, 16
        %v2319 = vrot.slane %v2317, 5
        %v2320 = vor.u32 %v2316, %v2319
        %v2321 = vrot.slane %v2320, 4
        %v2323 = vshll.u32 %v2140, 16
        %v2325 = vrot.slane %v2323, 5
        %v2326 = vsel %vm364, %v2321, %v2325
        %v2327 = vshrl.u32 %v2140, 16
        %v2329 = vrot.slane %v2327, 4
        %v2330 = vor.u32 %v2329, %v2325
        %v2331 = vrot.slane %v2330, 4
        %v2333 = vshll.u32 %v2141, 16
        %v2335 = vrot.slane %v2333, 5
        %v2336 = vsel %vm364, %v2331, %v2335
        %v2338 = vshrl.u32 %v2142, 16
        %v2340 = vrot.slane %v2338, 4
        %v2341 = vshll.u32 %v2142, 16
        %v2343 = vrot.slane %v2341, 5
        %v2344 = vor.u32 %v2340, %v2343
        %v2345 = vrot.slane %v2344, 4
        %v2347 = vshll.u32 %v2143, 16
        %v2349 = vrot.slane %v2347, 5
        %v2350 = vsel %vm364, %v2345, %v2349
        %v2351 = vshrl.u32 %v2143, 16
        %v2353 = vrot.slane %v2351, 4
        %v2354 = vor.u32 %v2353, %v2349
        %v2355 = vrot.slane %v2354, 4
        %v2357 = vshll.u32 %v2144, 16
        %v2359 = vrot.slane %v2357, 5
        %v2360 = vsel %vm364, %v2355, %v2359
        %v2362 = vshrl.u32 %v2145, 16
        %v2364 = vrot.slane %v2362, 4
        %v2365 = vshll.u32 %v2145, 16
        %v2367 = vrot.slane %v2365, 5
        %v2368 = vor.u32 %v2364, %v2367
        %v2369 = vrot.slane %v2368, 4
        %v2371 = vshll.u32 %v2146, 16
        %v2373 = vrot.slane %v2371, 5
        %v2374 = vsel %vm364, %v2369, %v2373
        %v2375 = vshrl.u32 %v2146, 16
        %v2377 = vrot.slane %v2375, 4
        %v2378 = vor.u32 %v2377, %v2373
        %v2379 = vrot.slane %v2378, 4
        %v2381 = vshll.u32 %v2147, 16
        %v2383 = vrot.slane %v2381, 5
        %v2384 = vsel %vm364, %v2379, %v2383
        %v2386 = vshrl.u32 %v2148, 16
        %v2388 = vrot.slane %v2386, 4
        %v2389 = vshll.u32 %v2148, 16
        %v2391 = vrot.slane %v2389, 5
        %v2392 = vor.u32 %v2388, %v2391
        %v2393 = vrot.slane %v2392, 4
        %v2395 = vshll.u32 %v2149, 16
        %v2397 = vrot.slane %v2395, 5
        %v2398 = vsel %vm364, %v2393, %v2397
        %v2399 = vshrl.u32 %v2149, 16
        %v2401 = vrot.slane %v2399, 4
        %v2402 = vor.u32 %v2401, %v2397
        %v2403 = vrot.slane %v2402, 4
        %v2405 = vshll.u32 %v2150, 16
        %v2407 = vrot.slane %v2405, 5
        %v2408 = vsel %vm364, %v2403, %v2407
        %v2410 = vshrl.u32 %v2151, 16
        %v2412 = vrot.slane %v2410, 4
        %v2413 = vshll.u32 %v2151, 16
        %v2415 = vrot.slane %v2413, 5
        %v2416 = vor.u32 %v2412, %v2415
        %v2417 = vrot.slane %v2416, 4
        %v2419 = vshll.u32 %v2152, 16
        %v2421 = vrot.slane %v2419, 5
        %v2422 = vsel %vm364, %v2417, %v2421
        %v2423 = vshrl.u32 %v2152, 16
        %v2425 = vrot.slane %v2423, 4
        %v2426 = vor.u32 %v2425, %v2421
        %v2427 = vrot.slane %v2426, 4
        %v2429 = vshll.u32 %v2153, 16
        %v2431 = vrot.slane %v2429, 5
        %v2432 = vsel %vm364, %v2427, %v2431
        %v2434 = vshrl.u32 %v2154, 16
        %v2436 = vrot.slane %v2434, 4
        %v2437 = vshll.u32 %v2154, 16
        %v2439 = vrot.slane %v2437, 5
        %v2440 = vor.u32 %v2436, %v2439
        %v2441 = vrot.slane %v2440, 4
        %v2443 = vshll.u32 %v2155, 16
        %v2445 = vrot.slane %v2443, 5
        %v2446 = vsel %vm364, %v2441, %v2445
        %v2447 = vshrl.u32 %v2155, 16
        %v2449 = vrot.slane %v2447, 4
        %v2450 = vor.u32 %v2449, %v2445
        %v2451 = vrot.slane %v2450, 4
        %v2453 = vshll.u32 %v2156, 16
        %v2455 = vrot.slane %v2453, 5
        %v2456 = vsel %vm364, %v2451, %v2455
        %v2458 = vshrl.u32 %v2157, 16
        %v2460 = vrot.slane %v2458, 4
        %v2461 = vshll.u32 %v2157, 16
        %v2463 = vrot.slane %v2461, 5
        %v2464 = vor.u32 %v2460, %v2463
        %v2465 = vrot.slane %v2464, 4
        %v2467 = vshll.u32 %v2158, 16
        %v2469 = vrot.slane %v2467, 5
        %v2470 = vsel %vm364, %v2465, %v2469
        %v2471 = vshrl.u32 %v2158, 16
        %v2473 = vrot.slane %v2471, 4
        %v2474 = vor.u32 %v2473, %v2469
        %v2475 = vrot.slane %v2474, 4
        %v2477 = vshll.u32 %v2159, 16
        %v2479 = vrot.slane %v2477, 5
        %v2480 = vsel %vm364, %v2475, %v2479
        %v2482 = vshrl.u32 %v2160, 16
        %v2484 = vrot.slane %v2482, 4
        %v2485 = vshll.u32 %v2160, 16
        %v2487 = vrot.slane %v2485, 5
        %v2488 = vor.u32 %v2484, %v2487
        %v2489 = vrot.slane %v2488, 4
        %v2491 = vshll.u32 %v2161, 16
        %v2493 = vrot.slane %v2491, 5
        %v2494 = vsel %vm364, %v2489, %v2493
        %v2495 = vshrl.u32 %v2161, 16
        %v2497 = vrot.slane %v2495, 4
        %v2498 = vor.u32 %v2497, %v2493
        %v2499 = vrot.slane %v2498, 4
        %v2501 = vshll.u32 %v2162, 16
        %v2503 = vrot.slane %v2501, 5
        %v2504 = vsel %vm364, %v2499, %v2503
        %v2506 = vshrl.u32 %v2163, 16
        %v2508 = vrot.slane %v2506, 4
        %v2509 = vshll.u32 %v2163, 16
        %v2511 = vrot.slane %v2509, 5
        %v2512 = vor.u32 %v2508, %v2511
        %v2513 = vrot.slane %v2512, 4
        %v2515 = vshll.u32 %v2164, 16
        %v2517 = vrot.slane %v2515, 5
        %v2518 = vsel %vm364, %v2513, %v2517
        %v2519 = vshrl.u32 %v2164, 16
        %v2521 = vrot.slane %v2519, 4
        %v2522 = vor.u32 %v2521, %v2517
        %v2523 = vrot.slane %v2522, 4
        %v2525 = vshll.u32 %v2165, 16
        %v2527 = vrot.slane %v2525, 5
        %v2528 = vsel %vm364, %v2523, %v2527
        %v2530 = vshrl.u32 %v2166, 16
        %v2532 = vrot.slane %v2530, 4
        %v2533 = vshll.u32 %v2166, 16
        %v2535 = vrot.slane %v2533, 5
        %v2536 = vor.u32 %v2532, %v2535
        %v2537 = vrot.slane %v2536, 4
        %v2539 = vshll.u32 %v2167, 16
        %v2541 = vrot.slane %v2539, 5
        %v2542 = vsel %vm364, %v2537, %v2541
        %v2543 = vshrl.u32 %v2167, 16
        %v2545 = vrot.slane %v2543, 4
        %v2546 = vor.u32 %v2545, %v2541
        %v2547 = vrot.slane %v2546, 4
        %v2549 = vshll.u32 %v2168, 16
        %v2551 = vrot.slane %v2549, 5
        %v2552 = vsel %vm364, %v2547, %v2551
        %s2553 = scalar_lea.vmem [#allocation3], 8
        %v2554 = vld [vmem:[%s2553] sm:$0x3]
        %v2555 = vunpack.c.l.b16 %v2182
        %v2556 = vunpack.c.l.b16 %v2192
        %v2557 = vunpack.c.l.b16 %v2206
        %v2558 = vunpack.c.l.b16 %v2216
        %v2559 = vunpack.c.l.b16 %v2230
        %v2560 = vunpack.c.l.b16 %v2240
        %v2561 = vunpack.c.l.b16 %v2254
        %v2562 = vunpack.c.l.b16 %v2264
        %v2563 = vunpack.c.l.b16 %v2278
        %v2564 = vunpack.c.l.b16 %v2288
        %v2565 = vunpack.c.l.b16 %v2302
        %v2566 = vunpack.c.l.b16 %v2312
        %v2567 = vunpack.c.l.b16 %v2326
        %v2568 = vunpack.c.l.b16 %v2336
        %v2569 = vunpack.c.l.b16 %v2350
        %v2570 = vunpack.c.l.b16 %v2360
        %v2571 = vunpack.c.l.b16 %v2374
        %v2572 = vunpack.c.l.b16 %v2384
        %v2573 = vunpack.c.l.b16 %v2398
        %v2574 = vunpack.c.l.b16 %v2408
        %v2575 = vunpack.c.l.b16 %v2422
        %v2576 = vunpack.c.l.b16 %v2432
        %v2577 = vunpack.c.l.b16 %v2446
        %v2578 = vunpack.c.l.b16 %v2456
        %v2579 = vunpack.c.l.b16 %v2470
        %v2580 = vunpack.c.l.b16 %v2480
        %v2581 = vunpack.c.l.b16 %v2494
        %v2582 = vunpack.c.l.b16 %v2504
        %v2583 = vunpack.c.l.b16 %v2518
        %v2584 = vunpack.c.l.b16 %v2528
        %v2585 = vunpack.c.l.b16 %v2542
        %v2586 = vunpack.c.l.b16 %v2552
        %v2587 = vpack.c.b16 %v2556, %v2555
        %v2588 = vpack.c.b16 %v2558, %v2557
        %v2589 = vpack.c.b16 %v2560, %v2559
        %v2590 = vpack.c.b16 %v2562, %v2561
        %v2591 = vpack.c.b16 %v2564, %v2563
        %v2592 = vpack.c.b16 %v2566, %v2565
        %v2593 = vpack.c.b16 %v2568, %v2567
        %v2594 = vpack.c.b16 %v2570, %v2569
        %v2595 = vpack.c.b16 %v2572, %v2571
        %v2596 = vpack.c.b16 %v2574, %v2573
        %v2597 = vpack.c.b16 %v2576, %v2575
        %v2598 = vpack.c.b16 %v2578, %v2577
        %v2599 = vpack.c.b16 %v2580, %v2579
        %v2600 = vpack.c.b16 %v2582, %v2581
        %v2601 = vpack.c.b16 %v2584, %v2583
        %v2602 = vpack.c.b16 %v2586, %v2585
        %v2604 = vsel %vm799, %v2587, 0
        %v2607 = vsel %vm799, %v2588, 0
        %v2610 = vsel %vm799, %v2589, 0
        %v2613 = vsel %vm799, %v2590, 0
        %v2616 = vsel %vm799, %v2591, 0
        %v2619 = vsel %vm799, %v2592, 0
        %v2622 = vsel %vm799, %v2593, 0
        %v2625 = vsel %vm799, %v2594, 0
        %v2628 = vsel %vm799, %v2595, 0
        %v2631 = vsel %vm799, %v2596, 0
        %v2634 = vsel %vm799, %v2597, 0
        %v2637 = vsel %vm799, %v2598, 0
        %v2640 = vsel %vm799, %v2599, 0
        %v2643 = vsel %vm799, %v2600, 0
        %v2646 = vsel %vm799, %v2601, 0
        %v2649 = vsel %vm799, %v2602, 0
        %v2652 = vsel %vm848, %v2554, 0
        %2654 = vmatprep.subr.bf16.mxu0 0
        %2655 = vmatpush1.bf16.msra.mxu0 0
        %2656 = vmatprep.subr.bf16.mxu0 0
        %2657 = vmatpush1.bf16.msra.mxu0 0
        %2658 = vmatprep.subr.bf16.mxu0 0
        %2659 = vmatpush1.bf16.msra.mxu0 0
        %2660 = vmatprep.subr.bf16.mxu0 0
        %2661 = vmatpush1.bf16.msra.mxu0 0
        %2662 = vmatprep.subr.bf16.mxu0 0
        %2663 = vmatpush1.bf16.msra.mxu0 0
        %2664 = vmatprep.subr.bf16.mxu0 0
        %2665 = vmatpush1.bf16.msra.mxu0 0
        %2666 = vmatprep.subr.bf16.mxu0 0
        %2667 = vmatpush1.bf16.msra.mxu0 0
        %2668 = vmatprep.subr.bf16.mxu0 0
        %2669 = vmatpush1.bf16.msra.mxu0 %v2652
        %2670 = vmatprep.subr.bf16.mxu0 0
        %2671 = vmatpush2.bf16.msra.mxu0 0
        %2672 = vmatprep.subr.bf16.mxu0 0
        %2673 = vmatpush2.bf16.msra.mxu0 0
        %2674 = vmatprep.subr.bf16.mxu0 0
        %2675 = vmatpush2.bf16.msra.mxu0 0
        %2676 = vmatprep.subr.bf16.mxu0 0
        %2677 = vmatpush2.bf16.msra.mxu0 0
        %2678 = vmatprep.subr.bf16.mxu0 0
        %2679 = vmatpush2.bf16.msra.mxu0 0
        %2680 = vmatprep.subr.bf16.mxu0 0
        %2681 = vmatpush2.bf16.msra.mxu0 0
        %2682 = vmatprep.subr.bf16.mxu0 0
        %2683 = vmatpush2.bf16.msra.mxu0 0
        %2684 = vmatprep.subr.bf16.mxu0 0
        %2685 = vmatpush2.bf16.msra.mxu0 0
        %2686 = vmatprep.mubr.bf16.mxu0 0
        %2687 = vmatmul.mubr.bf16.gmra.mxu0 %v2604
        %v2688 = vpop.f32.mrf.mxu0
        %v2689 = vadd.f32 0.0, %v2688
        %v2690 = vpop.f32.mrf.mxu0
        %v2691 = vpop.f32.mrf.mxu0
        %v2692 = vadd.f32 0.0, %v2691
        %v2693 = vpop.f32.mrf.mxu0
        %2694 = vmatprep.mubr.bf16.mxu0 0
        %2695 = vmatmul.mubr.bf16.gmra.mxu0 %v2607
        %v2696 = vpop.f32.mrf.mxu0
        %v2697 = vadd.f32 0.0, %v2696
        %v2698 = vpop.f32.mrf.mxu0
        %v2699 = vpop.f32.mrf.mxu0
        %v2700 = vadd.f32 0.0, %v2699
        %v2701 = vpop.f32.mrf.mxu0
        %2702 = vmatprep.mubr.bf16.mxu0 0
        %2703 = vmatmul.mubr.bf16.gmra.mxu0 %v2610
        %v2704 = vpop.f32.mrf.mxu0
        %v2705 = vadd.f32 0.0, %v2704
        %v2706 = vpop.f32.mrf.mxu0
        %v2707 = vpop.f32.mrf.mxu0
        %v2708 = vadd.f32 0.0, %v2707
        %v2709 = vpop.f32.mrf.mxu0
        %2710 = vmatprep.mubr.bf16.mxu0 0
        %2711 = vmatmul.mubr.bf16.gmra.mxu0 %v2613
        %v2712 = vpop.f32.mrf.mxu0
        %v2713 = vadd.f32 0.0, %v2712
        %v2714 = vpop.f32.mrf.mxu0
        %v2715 = vpop.f32.mrf.mxu0
        %v2716 = vadd.f32 0.0, %v2715
        %v2717 = vpop.f32.mrf.mxu0
        %2718 = vmatprep.mubr.bf16.mxu0 0
        %2719 = vmatmul.mubr.bf16.gmra.mxu0 %v2616
        %v2720 = vpop.f32.mrf.mxu0
        %v2721 = vadd.f32 0.0, %v2720
        %v2722 = vpop.f32.mrf.mxu0
        %v2723 = vpop.f32.mrf.mxu0
        %v2724 = vadd.f32 0.0, %v2723
        %v2725 = vpop.f32.mrf.mxu0
        %2726 = vmatprep.mubr.bf16.mxu0 0
        %2727 = vmatmul.mubr.bf16.gmra.mxu0 %v2619
        %v2728 = vpop.f32.mrf.mxu0
        %v2729 = vadd.f32 0.0, %v2728
        %v2730 = vpop.f32.mrf.mxu0
        %v2731 = vpop.f32.mrf.mxu0
        %v2732 = vadd.f32 0.0, %v2731
        %v2733 = vpop.f32.mrf.mxu0
        %2734 = vmatprep.mubr.bf16.mxu0 0
        %2735 = vmatmul.mubr.bf16.gmra.mxu0 %v2622
        %v2736 = vpop.f32.mrf.mxu0
        %v2737 = vadd.f32 0.0, %v2736
        %v2738 = vpop.f32.mrf.mxu0
        %v2739 = vpop.f32.mrf.mxu0
        %v2740 = vadd.f32 0.0, %v2739
        %v2741 = vpop.f32.mrf.mxu0
        %2742 = vmatprep.mubr.bf16.mxu0 0
        %2743 = vmatmul.mubr.bf16.gmra.mxu0 %v2625
        %v2744 = vpop.f32.mrf.mxu0
        %v2745 = vadd.f32 0.0, %v2744
        %v2746 = vpop.f32.mrf.mxu0
        %v2747 = vpop.f32.mrf.mxu0
        %v2748 = vadd.f32 0.0, %v2747
        %v2749 = vpop.f32.mrf.mxu0
        %2750 = vmatprep.mubr.bf16.mxu0 0
        %2751 = vmatmul.mubr.bf16.gmra.mxu0 %v2628
        %v2752 = vpop.f32.mrf.mxu0
        %v2753 = vadd.f32 0.0, %v2752
        %v2754 = vpop.f32.mrf.mxu0
        %v2755 = vpop.f32.mrf.mxu0
        %v2756 = vadd.f32 0.0, %v2755
        %v2757 = vpop.f32.mrf.mxu0
        %2758 = vmatprep.mubr.bf16.mxu0 0
        %2759 = vmatmul.mubr.bf16.gmra.mxu0 %v2631
        %v2760 = vpop.f32.mrf.mxu0
        %v2761 = vadd.f32 0.0, %v2760
        %v2762 = vpop.f32.mrf.mxu0
        %v2763 = vpop.f32.mrf.mxu0
        %v2764 = vadd.f32 0.0, %v2763
        %v2765 = vpop.f32.mrf.mxu0
        %2766 = vmatprep.mubr.bf16.mxu0 0
        %2767 = vmatmul.mubr.bf16.gmra.mxu0 %v2634
        %v2768 = vpop.f32.mrf.mxu0
        %v2769 = vadd.f32 0.0, %v2768
        %v2770 = vpop.f32.mrf.mxu0
        %v2771 = vpop.f32.mrf.mxu0
        %v2772 = vadd.f32 0.0, %v2771
        %v2773 = vpop.f32.mrf.mxu0
        %2774 = vmatprep.mubr.bf16.mxu0 0
        %2775 = vmatmul.mubr.bf16.gmra.mxu0 %v2637
        %v2776 = vpop.f32.mrf.mxu0
        %v2777 = vadd.f32 0.0, %v2776
        %v2778 = vpop.f32.mrf.mxu0
        %v2779 = vpop.f32.mrf.mxu0
        %v2780 = vadd.f32 0.0, %v2779
        %v2781 = vpop.f32.mrf.mxu0
        %2782 = vmatprep.mubr.bf16.mxu0 0
        %2783 = vmatmul.mubr.bf16.gmra.mxu0 %v2640
        %v2784 = vpop.f32.mrf.mxu0
        %v2785 = vadd.f32 0.0, %v2784
        %v2786 = vpop.f32.mrf.mxu0
        %v2787 = vpop.f32.mrf.mxu0
        %v2788 = vadd.f32 0.0, %v2787
        %v2789 = vpop.f32.mrf.mxu0
        %2790 = vmatprep.mubr.bf16.mxu0 0
        %2791 = vmatmul.mubr.bf16.gmra.mxu0 %v2643
        %v2792 = vpop.f32.mrf.mxu0
        %v2793 = vadd.f32 0.0, %v2792
        %v2794 = vpop.f32.mrf.mxu0
        %v2795 = vpop.f32.mrf.mxu0
        %v2796 = vadd.f32 0.0, %v2795
        %v2797 = vpop.f32.mrf.mxu0
        %2798 = vmatprep.mubr.bf16.mxu0 0
        %2799 = vmatmul.mubr.bf16.gmra.mxu0 %v2646
        %v2800 = vpop.f32.mrf.mxu0
        %v2801 = vadd.f32 0.0, %v2800
        %v2802 = vpop.f32.mrf.mxu0
        %v2803 = vpop.f32.mrf.mxu0
        %v2804 = vadd.f32 0.0, %v2803
        %v2805 = vpop.f32.mrf.mxu0
        %2806 = vmatprep.mubr.bf16.mxu0 0
        %2807 = vmatmul.mubr.bf16.gmra.mxu0 %v2649
        %v2808 = vpop.f32.mrf.mxu0
        %v2809 = vadd.f32 0.0, %v2808
        %v2810 = vpop.f32.mrf.mxu0
        %v2811 = vpop.f32.mrf.mxu0
        %v2812 = vadd.f32 0.0, %v2811
        %v2813 = vpop.f32.mrf.mxu0
        %2814 = vdwg.mxu0
        %v2815 = vadd.f32 %v2089, %v2689
        %v2816 = vadd.f32 %v2090, %v2692
        %v2817 = vadd.f32 %v2091, %v2697
        %v2818 = vadd.f32 %v2092, %v2700
        %v2819 = vadd.f32 %v2093, %v2705
        %v2820 = vadd.f32 %v2094, %v2708
        %v2821 = vadd.f32 %v2095, %v2713
        %v2822 = vadd.f32 %v2096, %v2716
        %v2823 = vadd.f32 %v2097, %v2721
        %v2824 = vadd.f32 %v2098, %v2724
        %v2825 = vadd.f32 %v2099, %v2729
        %v2826 = vadd.f32 %v2100, %v2732
        %v2827 = vadd.f32 %v2101, %v2737
        %v2828 = vadd.f32 %v2102, %v2740
        %v2829 = vadd.f32 %v2103, %v2745
        %v2830 = vadd.f32 %v2104, %v2748
        %v2831 = vadd.f32 %v2105, %v2753
        %v2832 = vadd.f32 %v2106, %v2756
        %v2833 = vadd.f32 %v2107, %v2761
        %v2834 = vadd.f32 %v2108, %v2764
        %v2835 = vadd.f32 %v2109, %v2769
        %v2836 = vadd.f32 %v2110, %v2772
        %v2837 = vadd.f32 %v2111, %v2777
        %v2838 = vadd.f32 %v2112, %v2780
        %v2839 = vadd.f32 %v2113, %v2785
        %v2840 = vadd.f32 %v2114, %v2788
        %v2841 = vadd.f32 %v2115, %v2793
        %v2842 = vadd.f32 %v2116, %v2796
        %v2843 = vadd.f32 %v2117, %v2801
        %v2844 = vadd.f32 %v2118, %v2804
        %v2845 = vadd.f32 %v2119, %v2809
        %v2846 = vadd.f32 %v2120, %v2812
        %v2847 = vld [vmem:[%s1762] sm:$0xe]
        %v2848 = vld [vmem:[%s1762 + $0xc] sm:$0xe]
        %v2849 = vld [vmem:[%s1762 + $0x18] sm:$0xe]
        %v2850 = vld [vmem:[%s1762 + $0x24] sm:$0xe]
        %v2851 = vld [vmem:[%s1762 + $0x30] sm:$0xe]
        %v2852 = vld [vmem:[%s1762 + $0x3c] sm:$0xe]
        %v2853 = vld [vmem:[%s1762 + $0x48] sm:$0xe]
        %v2854 = vld [vmem:[%s1762 + $0x54] sm:$0xe]
        %v2855 = vld [vmem:[%s1762 + $0x60] sm:$0xe]
        %v2856 = vld [vmem:[%s1762 + $0x6c] sm:$0xe]
        %v2857 = vld [vmem:[%s1762 + $0x78] sm:$0xe]
        %v2858 = vld [vmem:[%s1762 + $0x84] sm:$0xe]
        %v2859 = vld [vmem:[%s1762 + $0x90] sm:$0xe]
        %v2860 = vld [vmem:[%s1762 + $0x9c] sm:$0xe]
        %v2861 = vld [vmem:[%s1762 + $0xa8] sm:$0xe]
        %v2862 = vld [vmem:[%s1762 + $0xb4] sm:$0xe]
        %v2911 = vrot.slane %v2847, 5
        %v2912 = vrot.slane %v2911, 4
        %v2913 = vrot.slane %v2122, 5
        %v2914 = vsel %vm1355, %v2912, %v2913
        %v2915 = vrot.slane %v2913, 4
        %v2916 = vrot.slane %v2123, 5
        %v2917 = vsel %vm1355, %v2915, %v2916
        %v2918 = vrot.slane %v2848, 5
        %v2919 = vrot.slane %v2918, 4
        %v2920 = vrot.slane %v2125, 5
        %v2921 = vsel %vm1355, %v2919, %v2920
        %v2922 = vrot.slane %v2920, 4
        %v2923 = vrot.slane %v2126, 5
        %v2924 = vsel %vm1355, %v2922, %v2923
        %v2925 = vrot.slane %v2849, 5
        %v2926 = vrot.slane %v2925, 4
        %v2927 = vrot.slane %v2128, 5
        %v2928 = vsel %vm1355, %v2926, %v2927
        %v2929 = vrot.slane %v2927, 4
        %v2930 = vrot.slane %v2129, 5
        %v2931 = vsel %vm1355, %v2929, %v2930
        %v2932 = vrot.slane %v2850, 5
        %v2933 = vrot.slane %v2932, 4
        %v2934 = vrot.slane %v2131, 5
        %v2935 = vsel %vm1355, %v2933, %v2934
        %v2936 = vrot.slane %v2934, 4
        %v2937 = vrot.slane %v2132, 5
        %v2938 = vsel %vm1355, %v2936, %v2937
        %v2939 = vrot.slane %v2851, 5
        %v2940 = vrot.slane %v2939, 4
        %v2941 = vrot.slane %v2134, 5
        %v2942 = vsel %vm1355, %v2940, %v2941
        %v2943 = vrot.slane %v2941, 4
        %v2944 = vrot.slane %v2135, 5
        %v2945 = vsel %vm1355, %v2943, %v2944
        %v2946 = vrot.slane %v2852, 5
        %v2947 = vrot.slane %v2946, 4
        %v2948 = vrot.slane %v2137, 5
        %v2949 = vsel %vm1355, %v2947, %v2948
        %v2950 = vrot.slane %v2948, 4
        %v2951 = vrot.slane %v2138, 5
        %v2952 = vsel %vm1355, %v2950, %v2951
        %v2953 = vrot.slane %v2853, 5
        %v2954 = vrot.slane %v2953, 4
        %v2955 = vrot.slane %v2140, 5
        %v2956 = vsel %vm1355, %v2954, %v2955
        %v2957 = vrot.slane %v2955, 4
        %v2958 = vrot.slane %v2141, 5
        %v2959 = vsel %vm1355, %v2957, %v2958
        %v2960 = vrot.slane %v2854, 5
        %v2961 = vrot.slane %v2960, 4
        %v2962 = vrot.slane %v2143, 5
        %v2963 = vsel %vm1355, %v2961, %v2962
        %v2964 = vrot.slane %v2962, 4
        %v2965 = vrot.slane %v2144, 5
        %v2966 = vsel %vm1355, %v2964, %v2965
        %v2967 = vrot.slane %v2855, 5
        %v2968 = vrot.slane %v2967, 4
        %v2969 = vrot.slane %v2146, 5
        %v2970 = vsel %vm1355, %v2968, %v2969
        %v2971 = vrot.slane %v2969, 4
        %v2972 = vrot.slane %v2147, 5
        %v2973 = vsel %vm1355, %v2971, %v2972
        %v2974 = vrot.slane %v2856, 5
        %v2975 = vrot.slane %v2974, 4
        %v2976 = vrot.slane %v2149, 5
        %v2977 = vsel %vm1355, %v2975, %v2976
        %v2978 = vrot.slane %v2976, 4
        %v2979 = vrot.slane %v2150, 5
        %v2980 = vsel %vm1355, %v2978, %v2979
        %v2981 = vrot.slane %v2857, 5
        %v2982 = vrot.slane %v2981, 4
        %v2983 = vrot.slane %v2152, 5
        %v2984 = vsel %vm1355, %v2982, %v2983
        %v2985 = vrot.slane %v2983, 4
        %v2986 = vrot.slane %v2153, 5
        %v2987 = vsel %vm1355, %v2985, %v2986
        %v2988 = vrot.slane %v2858, 5
        %v2989 = vrot.slane %v2988, 4
        %v2990 = vrot.slane %v2155, 5
        %v2991 = vsel %vm1355, %v2989, %v2990
        %v2992 = vrot.slane %v2990, 4
        %v2993 = vrot.slane %v2156, 5
        %v2994 = vsel %vm1355, %v2992, %v2993
        %v2995 = vrot.slane %v2859, 5
        %v2996 = vrot.slane %v2995, 4
        %v2997 = vrot.slane %v2158, 5
        %v2998 = vsel %vm1355, %v2996, %v2997
        %v2999 = vrot.slane %v2997, 4
        %v3000 = vrot.slane %v2159, 5
        %v3001 = vsel %vm1355, %v2999, %v3000
        %v3002 = vrot.slane %v2860, 5
        %v3003 = vrot.slane %v3002, 4
        %v3004 = vrot.slane %v2161, 5
        %v3005 = vsel %vm1355, %v3003, %v3004
        %v3006 = vrot.slane %v3004, 4
        %v3007 = vrot.slane %v2162, 5
        %v3008 = vsel %vm1355, %v3006, %v3007
        %v3009 = vrot.slane %v2861, 5
        %v3010 = vrot.slane %v3009, 4
        %v3011 = vrot.slane %v2164, 5
        %v3012 = vsel %vm1355, %v3010, %v3011
        %v3013 = vrot.slane %v3011, 4
        %v3014 = vrot.slane %v2165, 5
        %v3015 = vsel %vm1355, %v3013, %v3014
        %v3016 = vrot.slane %v2862, 5
        %v3017 = vrot.slane %v3016, 4
        %v3018 = vrot.slane %v2167, 5
        %v3019 = vsel %vm1355, %v3017, %v3018
        %v3020 = vrot.slane %v3018, 4
        %v3021 = vrot.slane %v2168, 5
        %v3022 = vsel %vm1355, %v3020, %v3021
        %s3023 = scalar_lea.vmem [#allocation3], 10
        %v3024 = vld [vmem:[%s3023] sm:$0x3]
        %v3025 = vunpack.c.l.b16 %v2914
        %v3026 = vunpack.c.l.b16 %v2917
        %v3027 = vunpack.c.l.b16 %v2921
        %v3028 = vunpack.c.l.b16 %v2924
        %v3029 = vunpack.c.l.b16 %v2928
        %v3030 = vunpack.c.l.b16 %v2931
        %v3031 = vunpack.c.l.b16 %v2935
        %v3032 = vunpack.c.l.b16 %v2938
        %v3033 = vunpack.c.l.b16 %v2942
        %v3034 = vunpack.c.l.b16 %v2945
        %v3035 = vunpack.c.l.b16 %v2949
        %v3036 = vunpack.c.l.b16 %v2952
        %v3037 = vunpack.c.l.b16 %v2956
        %v3038 = vunpack.c.l.b16 %v2959
        %v3039 = vunpack.c.l.b16 %v2963
        %v3040 = vunpack.c.l.b16 %v2966
        %v3041 = vunpack.c.l.b16 %v2970
        %v3042 = vunpack.c.l.b16 %v2973
        %v3043 = vunpack.c.l.b16 %v2977
        %v3044 = vunpack.c.l.b16 %v2980
        %v3045 = vunpack.c.l.b16 %v2984
        %v3046 = vunpack.c.l.b16 %v2987
        %v3047 = vunpack.c.l.b16 %v2991
        %v3048 = vunpack.c.l.b16 %v2994
        %v3049 = vunpack.c.l.b16 %v2998
        %v3050 = vunpack.c.l.b16 %v3001
        %v3051 = vunpack.c.l.b16 %v3005
        %v3052 = vunpack.c.l.b16 %v3008
        %v3053 = vunpack.c.l.b16 %v3012
        %v3054 = vunpack.c.l.b16 %v3015
        %v3055 = vunpack.c.l.b16 %v3019
        %v3056 = vunpack.c.l.b16 %v3022
        %v3057 = vpack.c.b16 %v3026, %v3025
        %v3058 = vpack.c.b16 %v3028, %v3027
        %v3059 = vpack.c.b16 %v3030, %v3029
        %v3060 = vpack.c.b16 %v3032, %v3031
        %v3061 = vpack.c.b16 %v3034, %v3033
        %v3062 = vpack.c.b16 %v3036, %v3035
        %v3063 = vpack.c.b16 %v3038, %v3037
        %v3064 = vpack.c.b16 %v3040, %v3039
        %v3065 = vpack.c.b16 %v3042, %v3041
        %v3066 = vpack.c.b16 %v3044, %v3043
        %v3067 = vpack.c.b16 %v3046, %v3045
        %v3068 = vpack.c.b16 %v3048, %v3047
        %v3069 = vpack.c.b16 %v3050, %v3049
        %v3070 = vpack.c.b16 %v3052, %v3051
        %v3071 = vpack.c.b16 %v3054, %v3053
        %v3072 = vpack.c.b16 %v3056, %v3055
        %v3074 = vsel %vm799, %v3057, 0
        %v3077 = vsel %vm799, %v3058, 0
        %v3080 = vsel %vm799, %v3059, 0
        %v3083 = vsel %vm799, %v3060, 0
        %v3086 = vsel %vm799, %v3061, 0
        %v3089 = vsel %vm799, %v3062, 0
        %v3092 = vsel %vm799, %v3063, 0
        %v3095 = vsel %vm799, %v3064, 0
        %v3098 = vsel %vm799, %v3065, 0
        %v3101 = vsel %vm799, %v3066, 0
        %v3104 = vsel %vm799, %v3067, 0
        %v3107 = vsel %vm799, %v3068, 0
        %v3110 = vsel %vm799, %v3069, 0
        %v3113 = vsel %vm799, %v3070, 0
        %v3116 = vsel %vm799, %v3071, 0
        %v3119 = vsel %vm799, %v3072, 0
        %v3122 = vsel %vm848, %v3024, 0
        %3124 = vmatprep.subr.bf16.mxu0 0
        %3125 = vmatpush1.bf16.msra.mxu0 0
        %3126 = vmatprep.subr.bf16.mxu0 0
        %3127 = vmatpush1.bf16.msra.mxu0 0
        %3128 = vmatprep.subr.bf16.mxu0 0
        %3129 = vmatpush1.bf16.msra.mxu0 0
        %3130 = vmatprep.subr.bf16.mxu0 0
        %3131 = vmatpush1.bf16.msra.mxu0 0
        %3132 = vmatprep.subr.bf16.mxu0 0
        %3133 = vmatpush1.bf16.msra.mxu0 0
        %3134 = vmatprep.subr.bf16.mxu0 0
        %3135 = vmatpush1.bf16.msra.mxu0 0
        %3136 = vmatprep.subr.bf16.mxu0 0
        %3137 = vmatpush1.bf16.msra.mxu0 0
        %3138 = vmatprep.subr.bf16.mxu0 0
        %3139 = vmatpush1.bf16.msra.mxu0 %v3122
        %3140 = vmatprep.subr.bf16.mxu0 0
        %3141 = vmatpush2.bf16.msra.mxu0 0
        %3142 = vmatprep.subr.bf16.mxu0 0
        %3143 = vmatpush2.bf16.msra.mxu0 0
        %3144 = vmatprep.subr.bf16.mxu0 0
        %3145 = vmatpush2.bf16.msra.mxu0 0
        %3146 = vmatprep.subr.bf16.mxu0 0
        %3147 = vmatpush2.bf16.msra.mxu0 0
        %3148 = vmatprep.subr.bf16.mxu0 0
        %3149 = vmatpush2.bf16.msra.mxu0 0
        %3150 = vmatprep.subr.bf16.mxu0 0
        %3151 = vmatpush2.bf16.msra.mxu0 0
        %3152 = vmatprep.subr.bf16.mxu0 0
        %3153 = vmatpush2.bf16.msra.mxu0 0
        %3154 = vmatprep.subr.bf16.mxu0 0
        %3155 = vmatpush2.bf16.msra.mxu0 0
        %3156 = vmatprep.mubr.bf16.mxu0 0
        %3157 = vmatmul.mubr.bf16.gmra.mxu0 %v3074
        %v3158 = vpop.f32.mrf.mxu0
        %v3159 = vadd.f32 0.0, %v3158
        %v3160 = vpop.f32.mrf.mxu0
        %v3161 = vpop.f32.mrf.mxu0
        %v3162 = vadd.f32 0.0, %v3161
        %v3163 = vpop.f32.mrf.mxu0
        %3164 = vmatprep.mubr.bf16.mxu0 0
        %3165 = vmatmul.mubr.bf16.gmra.mxu0 %v3077
        %v3166 = vpop.f32.mrf.mxu0
        %v3167 = vadd.f32 0.0, %v3166
        %v3168 = vpop.f32.mrf.mxu0
        %v3169 = vpop.f32.mrf.mxu0
        %v3170 = vadd.f32 0.0, %v3169
        %v3171 = vpop.f32.mrf.mxu0
        %3172 = vmatprep.mubr.bf16.mxu0 0
        %3173 = vmatmul.mubr.bf16.gmra.mxu0 %v3080
        %v3174 = vpop.f32.mrf.mxu0
        %v3175 = vadd.f32 0.0, %v3174
        %v3176 = vpop.f32.mrf.mxu0
        %v3177 = vpop.f32.mrf.mxu0
        %v3178 = vadd.f32 0.0, %v3177
        %v3179 = vpop.f32.mrf.mxu0
        %3180 = vmatprep.mubr.bf16.mxu0 0
        %3181 = vmatmul.mubr.bf16.gmra.mxu0 %v3083
        %v3182 = vpop.f32.mrf.mxu0
        %v3183 = vadd.f32 0.0, %v3182
        %v3184 = vpop.f32.mrf.mxu0
        %v3185 = vpop.f32.mrf.mxu0
        %v3186 = vadd.f32 0.0, %v3185
        %v3187 = vpop.f32.mrf.mxu0
        %3188 = vmatprep.mubr.bf16.mxu0 0
        %3189 = vmatmul.mubr.bf16.gmra.mxu0 %v3086
        %v3190 = vpop.f32.mrf.mxu0
        %v3191 = vadd.f32 0.0, %v3190
        %v3192 = vpop.f32.mrf.mxu0
        %v3193 = vpop.f32.mrf.mxu0
        %v3194 = vadd.f32 0.0, %v3193
        %v3195 = vpop.f32.mrf.mxu0
        %3196 = vmatprep.mubr.bf16.mxu0 0
        %3197 = vmatmul.mubr.bf16.gmra.mxu0 %v3089
        %v3198 = vpop.f32.mrf.mxu0
        %v3199 = vadd.f32 0.0, %v3198
        %v3200 = vpop.f32.mrf.mxu0
        %v3201 = vpop.f32.mrf.mxu0
        %v3202 = vadd.f32 0.0, %v3201
        %v3203 = vpop.f32.mrf.mxu0
        %3204 = vmatprep.mubr.bf16.mxu0 0
        %3205 = vmatmul.mubr.bf16.gmra.mxu0 %v3092
        %v3206 = vpop.f32.mrf.mxu0
        %v3207 = vadd.f32 0.0, %v3206
        %v3208 = vpop.f32.mrf.mxu0
        %v3209 = vpop.f32.mrf.mxu0
        %v3210 = vadd.f32 0.0, %v3209
        %v3211 = vpop.f32.mrf.mxu0
        %3212 = vmatprep.mubr.bf16.mxu0 0
        %3213 = vmatmul.mubr.bf16.gmra.mxu0 %v3095
        %v3214 = vpop.f32.mrf.mxu0
        %v3215 = vadd.f32 0.0, %v3214
        %v3216 = vpop.f32.mrf.mxu0
        %v3217 = vpop.f32.mrf.mxu0
        %v3218 = vadd.f32 0.0, %v3217
        %v3219 = vpop.f32.mrf.mxu0
        %3220 = vmatprep.mubr.bf16.mxu0 0
        %3221 = vmatmul.mubr.bf16.gmra.mxu0 %v3098
        %v3222 = vpop.f32.mrf.mxu0
        %v3223 = vadd.f32 0.0, %v3222
        %v3224 = vpop.f32.mrf.mxu0
        %v3225 = vpop.f32.mrf.mxu0
        %v3226 = vadd.f32 0.0, %v3225
        %v3227 = vpop.f32.mrf.mxu0
        %3228 = vmatprep.mubr.bf16.mxu0 0
        %3229 = vmatmul.mubr.bf16.gmra.mxu0 %v3101
        %v3230 = vpop.f32.mrf.mxu0
        %v3231 = vadd.f32 0.0, %v3230
        %v3232 = vpop.f32.mrf.mxu0
        %v3233 = vpop.f32.mrf.mxu0
        %v3234 = vadd.f32 0.0, %v3233
        %v3235 = vpop.f32.mrf.mxu0
        %3236 = vmatprep.mubr.bf16.mxu0 0
        %3237 = vmatmul.mubr.bf16.gmra.mxu0 %v3104
        %v3238 = vpop.f32.mrf.mxu0
        %v3239 = vadd.f32 0.0, %v3238
        %v3240 = vpop.f32.mrf.mxu0
        %v3241 = vpop.f32.mrf.mxu0
        %v3242 = vadd.f32 0.0, %v3241
        %v3243 = vpop.f32.mrf.mxu0
        %3244 = vmatprep.mubr.bf16.mxu0 0
        %3245 = vmatmul.mubr.bf16.gmra.mxu0 %v3107
        %v3246 = vpop.f32.mrf.mxu0
        %v3247 = vadd.f32 0.0, %v3246
        %v3248 = vpop.f32.mrf.mxu0
        %v3249 = vpop.f32.mrf.mxu0
        %v3250 = vadd.f32 0.0, %v3249
        %v3251 = vpop.f32.mrf.mxu0
        %3252 = vmatprep.mubr.bf16.mxu0 0
        %3253 = vmatmul.mubr.bf16.gmra.mxu0 %v3110
        %v3254 = vpop.f32.mrf.mxu0
        %v3255 = vadd.f32 0.0, %v3254
        %v3256 = vpop.f32.mrf.mxu0
        %v3257 = vpop.f32.mrf.mxu0
        %v3258 = vadd.f32 0.0, %v3257
        %v3259 = vpop.f32.mrf.mxu0
        %3260 = vmatprep.mubr.bf16.mxu0 0
        %3261 = vmatmul.mubr.bf16.gmra.mxu0 %v3113
        %v3262 = vpop.f32.mrf.mxu0
        %v3263 = vadd.f32 0.0, %v3262
        %v3264 = vpop.f32.mrf.mxu0
        %v3265 = vpop.f32.mrf.mxu0
        %v3266 = vadd.f32 0.0, %v3265
        %v3267 = vpop.f32.mrf.mxu0
        %3268 = vmatprep.mubr.bf16.mxu0 0
        %3269 = vmatmul.mubr.bf16.gmra.mxu0 %v3116
        %v3270 = vpop.f32.mrf.mxu0
        %v3271 = vadd.f32 0.0, %v3270
        %v3272 = vpop.f32.mrf.mxu0
        %v3273 = vpop.f32.mrf.mxu0
        %v3274 = vadd.f32 0.0, %v3273
        %v3275 = vpop.f32.mrf.mxu0
        %3276 = vmatprep.mubr.bf16.mxu0 0
        %3277 = vmatmul.mubr.bf16.gmra.mxu0 %v3119
        %v3278 = vpop.f32.mrf.mxu0
        %v3279 = vadd.f32 0.0, %v3278
        %v3280 = vpop.f32.mrf.mxu0
        %v3281 = vpop.f32.mrf.mxu0
        %v3282 = vadd.f32 0.0, %v3281
        %v3283 = vpop.f32.mrf.mxu0
        %3284 = vdwg.mxu0
        %v3285 = vadd.f32 %v2815, %v3159
        %v3286 = vadd.f32 %v2816, %v3162
        %v3287 = vadd.f32 %v2817, %v3167
        %v3288 = vadd.f32 %v2818, %v3170
        %v3289 = vadd.f32 %v2819, %v3175
        %v3290 = vadd.f32 %v2820, %v3178
        %v3291 = vadd.f32 %v2821, %v3183
        %v3292 = vadd.f32 %v2822, %v3186
        %v3293 = vadd.f32 %v2823, %v3191
        %v3294 = vadd.f32 %v2824, %v3194
        %v3295 = vadd.f32 %v2825, %v3199
        %v3296 = vadd.f32 %v2826, %v3202
        %v3297 = vadd.f32 %v2827, %v3207
        %v3298 = vadd.f32 %v2828, %v3210
        %v3299 = vadd.f32 %v2829, %v3215
        %v3300 = vadd.f32 %v2830, %v3218
        %v3301 = vadd.f32 %v2831, %v3223
        %v3302 = vadd.f32 %v2832, %v3226
        %v3303 = vadd.f32 %v2833, %v3231
        %v3304 = vadd.f32 %v2834, %v3234
        %v3305 = vadd.f32 %v2835, %v3239
        %v3306 = vadd.f32 %v2836, %v3242
        %v3307 = vadd.f32 %v2837, %v3247
        %v3308 = vadd.f32 %v2838, %v3250
        %v3309 = vadd.f32 %v2839, %v3255
        %v3310 = vadd.f32 %v2840, %v3258
        %v3311 = vadd.f32 %v2841, %v3263
        %v3312 = vadd.f32 %v2842, %v3266
        %v3313 = vadd.f32 %v2843, %v3271
        %v3314 = vadd.f32 %v2844, %v3274
        %v3315 = vadd.f32 %v2845, %v3279
        %v3316 = vadd.f32 %v2846, %v3282
        %s3317 = scalar_lea.vmem %s306, 24
        %v3318 = vld [vmem:[%s3317] sm:$0xf]
        %v3319 = vld [vmem:[%s3317 + $0x4] sm:$0xf]
        %v3320 = vld [vmem:[%s3317 + $0xc] sm:$0xf]
        %v3321 = vld [vmem:[%s3317 + $0x10] sm:$0xf]
        %v3322 = vld [vmem:[%s3317 + $0x18] sm:$0xf]
        %v3323 = vld [vmem:[%s3317 + $0x1c] sm:$0xf]
        %v3324 = vld [vmem:[%s3317 + $0x24] sm:$0xf]
        %v3325 = vld [vmem:[%s3317 + $0x28] sm:$0xf]
        %v3326 = vld [vmem:[%s3317 + $0x30] sm:$0xf]
        %v3327 = vld [vmem:[%s3317 + $0x34] sm:$0xf]
        %v3328 = vld [vmem:[%s3317 + $0x3c] sm:$0xf]
        %v3329 = vld [vmem:[%s3317 + $0x40] sm:$0xf]
        %v3330 = vld [vmem:[%s3317 + $0x48] sm:$0xf]
        %v3331 = vld [vmem:[%s3317 + $0x4c] sm:$0xf]
        %v3332 = vld [vmem:[%s3317 + $0x54] sm:$0xf]
        %v3333 = vld [vmem:[%s3317 + $0x58] sm:$0xf]
        %v3334 = vld [vmem:[%s3317 + $0x60] sm:$0xf]
        %v3335 = vld [vmem:[%s3317 + $0x64] sm:$0xf]
        %v3336 = vld [vmem:[%s3317 + $0x6c] sm:$0xf]
        %v3337 = vld [vmem:[%s3317 + $0x70] sm:$0xf]
        %v3338 = vld [vmem:[%s3317 + $0x78] sm:$0xf]
        %v3339 = vld [vmem:[%s3317 + $0x7c] sm:$0xf]
        %v3340 = vld [vmem:[%s3317 + $0x84] sm:$0xf]
        %v3341 = vld [vmem:[%s3317 + $0x88] sm:$0xf]
        %v3342 = vld [vmem:[%s3317 + $0x90] sm:$0xf]
        %v3343 = vld [vmem:[%s3317 + $0x94] sm:$0xf]
        %v3344 = vld [vmem:[%s3317 + $0x9c] sm:$0xf]
        %v3345 = vld [vmem:[%s3317 + $0xa0] sm:$0xf]
        %v3346 = vld [vmem:[%s3317 + $0xa8] sm:$0xf]
        %v3347 = vld [vmem:[%s3317 + $0xac] sm:$0xf]
        %v3348 = vld [vmem:[%s3317 + $0xb4] sm:$0xf]
        %v3349 = vld [vmem:[%s3317 + $0xb8] sm:$0xf]
        %s3350 = scalar_lea.vmem [#allocation3], 12
        %v3351 = vld [vmem:[%s3350] sm:$0x3]
        %v3384 = vunpack.c.l.b16 %v3318
        %v3385 = vunpack.c.l.b16 %v3319
        %v3386 = vunpack.c.l.b16 %v3320
        %v3387 = vunpack.c.l.b16 %v3321
        %v3388 = vunpack.c.l.b16 %v3322
        %v3389 = vunpack.c.l.b16 %v3323
        %v3390 = vunpack.c.l.b16 %v3324
        %v3391 = vunpack.c.l.b16 %v3325
        %v3392 = vunpack.c.l.b16 %v3326
        %v3393 = vunpack.c.l.b16 %v3327
        %v3394 = vunpack.c.l.b16 %v3328
        %v3395 = vunpack.c.l.b16 %v3329
        %v3396 = vunpack.c.l.b16 %v3330
        %v3397 = vunpack.c.l.b16 %v3331
        %v3398 = vunpack.c.l.b16 %v3332
        %v3399 = vunpack.c.l.b16 %v3333
        %v3400 = vunpack.c.l.b16 %v3334
        %v3401 = vunpack.c.l.b16 %v3335
        %v3402 = vunpack.c.l.b16 %v3336
        %v3403 = vunpack.c.l.b16 %v3337
        %v3404 = vunpack.c.l.b16 %v3338
        %v3405 = vunpack.c.l.b16 %v3339
        %v3406 = vunpack.c.l.b16 %v3340
        %v3407 = vunpack.c.l.b16 %v3341
        %v3408 = vunpack.c.l.b16 %v3342
        %v3409 = vunpack.c.l.b16 %v3343
        %v3410 = vunpack.c.l.b16 %v3344
        %v3411 = vunpack.c.l.b16 %v3345
        %v3412 = vunpack.c.l.b16 %v3346
        %v3413 = vunpack.c.l.b16 %v3347
        %v3414 = vunpack.c.l.b16 %v3348
        %v3415 = vunpack.c.l.b16 %v3349
        %v3416 = vpack.c.b16 %v3385, %v3384
        %v3417 = vpack.c.b16 %v3387, %v3386
        %v3418 = vpack.c.b16 %v3389, %v3388
        %v3419 = vpack.c.b16 %v3391, %v3390
        %v3420 = vpack.c.b16 %v3393, %v3392
        %v3421 = vpack.c.b16 %v3395, %v3394
        %v3422 = vpack.c.b16 %v3397, %v3396
        %v3423 = vpack.c.b16 %v3399, %v3398
        %v3424 = vpack.c.b16 %v3401, %v3400
        %v3425 = vpack.c.b16 %v3403, %v3402
        %v3426 = vpack.c.b16 %v3405, %v3404
        %v3427 = vpack.c.b16 %v3407, %v3406
        %v3428 = vpack.c.b16 %v3409, %v3408
        %v3429 = vpack.c.b16 %v3411, %v3410
        %v3430 = vpack.c.b16 %v3413, %v3412
        %v3431 = vpack.c.b16 %v3415, %v3414
        %v3433 = vsel %vm799, %v3416, 0
        %v3436 = vsel %vm799, %v3417, 0
        %v3439 = vsel %vm799, %v3418, 0
        %v3442 = vsel %vm799, %v3419, 0
        %v3445 = vsel %vm799, %v3420, 0
        %v3448 = vsel %vm799, %v3421, 0
        %v3451 = vsel %vm799, %v3422, 0
        %v3454 = vsel %vm799, %v3423, 0
        %v3457 = vsel %vm799, %v3424, 0
        %v3460 = vsel %vm799, %v3425, 0
        %v3463 = vsel %vm799, %v3426, 0
        %v3466 = vsel %vm799, %v3427, 0
        %v3469 = vsel %vm799, %v3428, 0
        %v3472 = vsel %vm799, %v3429, 0
        %v3475 = vsel %vm799, %v3430, 0
        %v3478 = vsel %vm799, %v3431, 0
        %v3481 = vsel %vm848, %v3351, 0
        %3483 = vmatprep.subr.bf16.mxu0 0
        %3484 = vmatpush1.bf16.msra.mxu0 0
        %3485 = vmatprep.subr.bf16.mxu0 0
        %3486 = vmatpush1.bf16.msra.mxu0 0
        %3487 = vmatprep.subr.bf16.mxu0 0
        %3488 = vmatpush1.bf16.msra.mxu0 0
        %3489 = vmatprep.subr.bf16.mxu0 0
        %3490 = vmatpush1.bf16.msra.mxu0 0
        %3491 = vmatprep.subr.bf16.mxu0 0
        %3492 = vmatpush1.bf16.msra.mxu0 0
        %3493 = vmatprep.subr.bf16.mxu0 0
        %3494 = vmatpush1.bf16.msra.mxu0 0
        %3495 = vmatprep.subr.bf16.mxu0 0
        %3496 = vmatpush1.bf16.msra.mxu0 0
        %3497 = vmatprep.subr.bf16.mxu0 0
        %3498 = vmatpush1.bf16.msra.mxu0 %v3481
        %3499 = vmatprep.subr.bf16.mxu0 0
        %3500 = vmatpush2.bf16.msra.mxu0 0
        %3501 = vmatprep.subr.bf16.mxu0 0
        %3502 = vmatpush2.bf16.msra.mxu0 0
        %3503 = vmatprep.subr.bf16.mxu0 0
        %3504 = vmatpush2.bf16.msra.mxu0 0
        %3505 = vmatprep.subr.bf16.mxu0 0
        %3506 = vmatpush2.bf16.msra.mxu0 0
        %3507 = vmatprep.subr.bf16.mxu0 0
        %3508 = vmatpush2.bf16.msra.mxu0 0
        %3509 = vmatprep.subr.bf16.mxu0 0
        %3510 = vmatpush2.bf16.msra.mxu0 0
        %3511 = vmatprep.subr.bf16.mxu0 0
        %3512 = vmatpush2.bf16.msra.mxu0 0
        %3513 = vmatprep.subr.bf16.mxu0 0
        %3514 = vmatpush2.bf16.msra.mxu0 0
        %3515 = vmatprep.mubr.bf16.mxu0 0
        %3516 = vmatmul.mubr.bf16.gmra.mxu0 %v3433
        %v3517 = vpop.f32.mrf.mxu0
        %v3518 = vadd.f32 0.0, %v3517
        %v3519 = vpop.f32.mrf.mxu0
        %v3520 = vpop.f32.mrf.mxu0
        %v3521 = vadd.f32 0.0, %v3520
        %v3522 = vpop.f32.mrf.mxu0
        %3523 = vmatprep.mubr.bf16.mxu0 0
        %3524 = vmatmul.mubr.bf16.gmra.mxu0 %v3436
        %v3525 = vpop.f32.mrf.mxu0
        %v3526 = vadd.f32 0.0, %v3525
        %v3527 = vpop.f32.mrf.mxu0
        %v3528 = vpop.f32.mrf.mxu0
        %v3529 = vadd.f32 0.0, %v3528
        %v3530 = vpop.f32.mrf.mxu0
        %3531 = vmatprep.mubr.bf16.mxu0 0
        %3532 = vmatmul.mubr.bf16.gmra.mxu0 %v3439
        %v3533 = vpop.f32.mrf.mxu0
        %v3534 = vadd.f32 0.0, %v3533
        %v3535 = vpop.f32.mrf.mxu0
        %v3536 = vpop.f32.mrf.mxu0
        %v3537 = vadd.f32 0.0, %v3536
        %v3538 = vpop.f32.mrf.mxu0
        %3539 = vmatprep.mubr.bf16.mxu0 0
        %3540 = vmatmul.mubr.bf16.gmra.mxu0 %v3442
        %v3541 = vpop.f32.mrf.mxu0
        %v3542 = vadd.f32 0.0, %v3541
        %v3543 = vpop.f32.mrf.mxu0
        %v3544 = vpop.f32.mrf.mxu0
        %v3545 = vadd.f32 0.0, %v3544
        %v3546 = vpop.f32.mrf.mxu0
        %3547 = vmatprep.mubr.bf16.mxu0 0
        %3548 = vmatmul.mubr.bf16.gmra.mxu0 %v3445
        %v3549 = vpop.f32.mrf.mxu0
        %v3550 = vadd.f32 0.0, %v3549
        %v3551 = vpop.f32.mrf.mxu0
        %v3552 = vpop.f32.mrf.mxu0
        %v3553 = vadd.f32 0.0, %v3552
        %v3554 = vpop.f32.mrf.mxu0
        %3555 = vmatprep.mubr.bf16.mxu0 0
        %3556 = vmatmul.mubr.bf16.gmra.mxu0 %v3448
        %v3557 = vpop.f32.mrf.mxu0
        %v3558 = vadd.f32 0.0, %v3557
        %v3559 = vpop.f32.mrf.mxu0
        %v3560 = vpop.f32.mrf.mxu0
        %v3561 = vadd.f32 0.0, %v3560
        %v3562 = vpop.f32.mrf.mxu0
        %3563 = vmatprep.mubr.bf16.mxu0 0
        %3564 = vmatmul.mubr.bf16.gmra.mxu0 %v3451
        %v3565 = vpop.f32.mrf.mxu0
        %v3566 = vadd.f32 0.0, %v3565
        %v3567 = vpop.f32.mrf.mxu0
        %v3568 = vpop.f32.mrf.mxu0
        %v3569 = vadd.f32 0.0, %v3568
        %v3570 = vpop.f32.mrf.mxu0
        %3571 = vmatprep.mubr.bf16.mxu0 0
        %3572 = vmatmul.mubr.bf16.gmra.mxu0 %v3454
        %v3573 = vpop.f32.mrf.mxu0
        %v3574 = vadd.f32 0.0, %v3573
        %v3575 = vpop.f32.mrf.mxu0
        %v3576 = vpop.f32.mrf.mxu0
        %v3577 = vadd.f32 0.0, %v3576
        %v3578 = vpop.f32.mrf.mxu0
        %3579 = vmatprep.mubr.bf16.mxu0 0
        %3580 = vmatmul.mubr.bf16.gmra.mxu0 %v3457
        %v3581 = vpop.f32.mrf.mxu0
        %v3582 = vadd.f32 0.0, %v3581
        %v3583 = vpop.f32.mrf.mxu0
        %v3584 = vpop.f32.mrf.mxu0
        %v3585 = vadd.f32 0.0, %v3584
        %v3586 = vpop.f32.mrf.mxu0
        %3587 = vmatprep.mubr.bf16.mxu0 0
        %3588 = vmatmul.mubr.bf16.gmra.mxu0 %v3460
        %v3589 = vpop.f32.mrf.mxu0
        %v3590 = vadd.f32 0.0, %v3589
        %v3591 = vpop.f32.mrf.mxu0
        %v3592 = vpop.f32.mrf.mxu0
        %v3593 = vadd.f32 0.0, %v3592
        %v3594 = vpop.f32.mrf.mxu0
        %3595 = vmatprep.mubr.bf16.mxu0 0
        %3596 = vmatmul.mubr.bf16.gmra.mxu0 %v3463
        %v3597 = vpop.f32.mrf.mxu0
        %v3598 = vadd.f32 0.0, %v3597
        %v3599 = vpop.f32.mrf.mxu0
        %v3600 = vpop.f32.mrf.mxu0
        %v3601 = vadd.f32 0.0, %v3600
        %v3602 = vpop.f32.mrf.mxu0
        %3603 = vmatprep.mubr.bf16.mxu0 0
        %3604 = vmatmul.mubr.bf16.gmra.mxu0 %v3466
        %v3605 = vpop.f32.mrf.mxu0
        %v3606 = vadd.f32 0.0, %v3605
        %v3607 = vpop.f32.mrf.mxu0
        %v3608 = vpop.f32.mrf.mxu0
        %v3609 = vadd.f32 0.0, %v3608
        %v3610 = vpop.f32.mrf.mxu0
        %3611 = vmatprep.mubr.bf16.mxu0 0
        %3612 = vmatmul.mubr.bf16.gmra.mxu0 %v3469
        %v3613 = vpop.f32.mrf.mxu0
        %v3614 = vadd.f32 0.0, %v3613
        %v3615 = vpop.f32.mrf.mxu0
        %v3616 = vpop.f32.mrf.mxu0
        %v3617 = vadd.f32 0.0, %v3616
        %v3618 = vpop.f32.mrf.mxu0
        %3619 = vmatprep.mubr.bf16.mxu0 0
        %3620 = vmatmul.mubr.bf16.gmra.mxu0 %v3472
        %v3621 = vpop.f32.mrf.mxu0
        %v3622 = vadd.f32 0.0, %v3621
        %v3623 = vpop.f32.mrf.mxu0
        %v3624 = vpop.f32.mrf.mxu0
        %v3625 = vadd.f32 0.0, %v3624
        %v3626 = vpop.f32.mrf.mxu0
        %3627 = vmatprep.mubr.bf16.mxu0 0
        %3628 = vmatmul.mubr.bf16.gmra.mxu0 %v3475
        %v3629 = vpop.f32.mrf.mxu0
        %v3630 = vadd.f32 0.0, %v3629
        %v3631 = vpop.f32.mrf.mxu0
        %v3632 = vpop.f32.mrf.mxu0
        %v3633 = vadd.f32 0.0, %v3632
        %v3634 = vpop.f32.mrf.mxu0
        %3635 = vmatprep.mubr.bf16.mxu0 0
        %3636 = vmatmul.mubr.bf16.gmra.mxu0 %v3478
        %v3637 = vpop.f32.mrf.mxu0
        %v3638 = vadd.f32 0.0, %v3637
        %v3639 = vpop.f32.mrf.mxu0
        %v3640 = vpop.f32.mrf.mxu0
        %v3641 = vadd.f32 0.0, %v3640
        %v3642 = vpop.f32.mrf.mxu0
        %3643 = vdwg.mxu0
        %v3644 = vadd.f32 %v3285, %v3518
        %v3645 = vadd.f32 %v3286, %v3521
        %v3646 = vadd.f32 %v3287, %v3526
        %v3647 = vadd.f32 %v3288, %v3529
        %v3648 = vadd.f32 %v3289, %v3534
        %v3649 = vadd.f32 %v3290, %v3537
        %v3650 = vadd.f32 %v3291, %v3542
        %v3651 = vadd.f32 %v3292, %v3545
        %v3652 = vadd.f32 %v3293, %v3550
        %v3653 = vadd.f32 %v3294, %v3553
        %v3654 = vadd.f32 %v3295, %v3558
        %v3655 = vadd.f32 %v3296, %v3561
        %v3656 = vadd.f32 %v3297, %v3566
        %v3657 = vadd.f32 %v3298, %v3569
        %v3658 = vadd.f32 %v3299, %v3574
        %v3659 = vadd.f32 %v3300, %v3577
        %v3660 = vadd.f32 %v3301, %v3582
        %v3661 = vadd.f32 %v3302, %v3585
        %v3662 = vadd.f32 %v3303, %v3590
        %v3663 = vadd.f32 %v3304, %v3593
        %v3664 = vadd.f32 %v3305, %v3598
        %v3665 = vadd.f32 %v3306, %v3601
        %v3666 = vadd.f32 %v3307, %v3606
        %v3667 = vadd.f32 %v3308, %v3609
        %v3668 = vadd.f32 %v3309, %v3614
        %v3669 = vadd.f32 %v3310, %v3617
        %v3670 = vadd.f32 %v3311, %v3622
        %v3671 = vadd.f32 %v3312, %v3625
        %v3672 = vadd.f32 %v3313, %v3630
        %v3673 = vadd.f32 %v3314, %v3633
        %v3674 = vadd.f32 %v3315, %v3638
        %v3675 = vadd.f32 %v3316, %v3641
        %v3676 = vld [vmem:[%s3317] sm:$0xf]
        %v3677 = vld [vmem:[%s3317 + $0x4] sm:$0xf]
        %v3678 = vld [vmem:[%s3317 + $0x8] sm:$0x1]
        %v3679 = vld [vmem:[%s3317 + $0xc] sm:$0xf]
        %v3680 = vld [vmem:[%s3317 + $0x10] sm:$0xf]
        %v3681 = vld [vmem:[%s3317 + $0x14] sm:$0x1]
        %v3682 = vld [vmem:[%s3317 + $0x18] sm:$0xf]
        %v3683 = vld [vmem:[%s3317 + $0x1c] sm:$0xf]
        %v3684 = vld [vmem:[%s3317 + $0x20] sm:$0x1]
        %v3685 = vld [vmem:[%s3317 + $0x24] sm:$0xf]
        %v3686 = vld [vmem:[%s3317 + $0x28] sm:$0xf]
        %v3687 = vld [vmem:[%s3317 + $0x2c] sm:$0x1]
        %v3688 = vld [vmem:[%s3317 + $0x30] sm:$0xf]
        %v3689 = vld [vmem:[%s3317 + $0x34] sm:$0xf]
        %v3690 = vld [vmem:[%s3317 + $0x38] sm:$0x1]
        %v3691 = vld [vmem:[%s3317 + $0x3c] sm:$0xf]
        %v3692 = vld [vmem:[%s3317 + $0x40] sm:$0xf]
        %v3693 = vld [vmem:[%s3317 + $0x44] sm:$0x1]
        %v3694 = vld [vmem:[%s3317 + $0x48] sm:$0xf]
        %v3695 = vld [vmem:[%s3317 + $0x4c] sm:$0xf]
        %v3696 = vld [vmem:[%s3317 + $0x50] sm:$0x1]
        %v3697 = vld [vmem:[%s3317 + $0x54] sm:$0xf]
        %v3698 = vld [vmem:[%s3317 + $0x58] sm:$0xf]
        %v3699 = vld [vmem:[%s3317 + $0x5c] sm:$0x1]
        %v3700 = vld [vmem:[%s3317 + $0x60] sm:$0xf]
        %v3701 = vld [vmem:[%s3317 + $0x64] sm:$0xf]
        %v3702 = vld [vmem:[%s3317 + $0x68] sm:$0x1]
        %v3703 = vld [vmem:[%s3317 + $0x6c] sm:$0xf]
        %v3704 = vld [vmem:[%s3317 + $0x70] sm:$0xf]
        %v3705 = vld [vmem:[%s3317 + $0x74] sm:$0x1]
        %v3706 = vld [vmem:[%s3317 + $0x78] sm:$0xf]
        %v3707 = vld [vmem:[%s3317 + $0x7c] sm:$0xf]
        %v3708 = vld [vmem:[%s3317 + $0x80] sm:$0x1]
        %v3709 = vld [vmem:[%s3317 + $0x84] sm:$0xf]
        %v3710 = vld [vmem:[%s3317 + $0x88] sm:$0xf]
        %v3711 = vld [vmem:[%s3317 + $0x8c] sm:$0x1]
        %v3712 = vld [vmem:[%s3317 + $0x90] sm:$0xf]
        %v3713 = vld [vmem:[%s3317 + $0x94] sm:$0xf]
        %v3714 = vld [vmem:[%s3317 + $0x98] sm:$0x1]
        %v3715 = vld [vmem:[%s3317 + $0x9c] sm:$0xf]
        %v3716 = vld [vmem:[%s3317 + $0xa0] sm:$0xf]
        %v3717 = vld [vmem:[%s3317 + $0xa4] sm:$0x1]
        %v3718 = vld [vmem:[%s3317 + $0xa8] sm:$0xf]
        %v3719 = vld [vmem:[%s3317 + $0xac] sm:$0xf]
        %v3720 = vld [vmem:[%s3317 + $0xb0] sm:$0x1]
        %v3721 = vld [vmem:[%s3317 + $0xb4] sm:$0xf]
        %v3722 = vld [vmem:[%s3317 + $0xb8] sm:$0xf]
        %v3723 = vld [vmem:[%s3317 + $0xbc] sm:$0x1]
        %v3725 = vshrl.u32 %v3676, 16
        %v3727 = vrot.slane %v3725, 4
        %v3728 = vshll.u32 %v3676, 16
        %v3730 = vrot.slane %v3728, 5
        %v3731 = vor.u32 %v3727, %v3730
        %v3732 = vrot.slane %v3731, 4
        %v3734 = vshll.u32 %v3677, 16
        %v3736 = vrot.slane %v3734, 5
        %v3737 = vsel %vm364, %v3732, %v3736
        %v3738 = vshrl.u32 %v3677, 16
        %v3740 = vrot.slane %v3738, 4
        %v3741 = vor.u32 %v3740, %v3736
        %v3742 = vrot.slane %v3741, 4
        %v3744 = vshll.u32 %v3678, 16
        %v3746 = vrot.slane %v3744, 5
        %v3747 = vsel %vm364, %v3742, %v3746
        %v3749 = vshrl.u32 %v3679, 16
        %v3751 = vrot.slane %v3749, 4
        %v3752 = vshll.u32 %v3679, 16
        %v3754 = vrot.slane %v3752, 5
        %v3755 = vor.u32 %v3751, %v3754
        %v3756 = vrot.slane %v3755, 4
        %v3758 = vshll.u32 %v3680, 16
        %v3760 = vrot.slane %v3758, 5
        %v3761 = vsel %vm364, %v3756, %v3760
        %v3762 = vshrl.u32 %v3680, 16
        %v3764 = vrot.slane %v3762, 4
        %v3765 = vor.u32 %v3764, %v3760
        %v3766 = vrot.slane %v3765, 4
        %v3768 = vshll.u32 %v3681, 16
        %v3770 = vrot.slane %v3768, 5
        %v3771 = vsel %vm364, %v3766, %v3770
        %v3773 = vshrl.u32 %v3682, 16
        %v3775 = vrot.slane %v3773, 4
        %v3776 = vshll.u32 %v3682, 16
        %v3778 = vrot.slane %v3776, 5
        %v3779 = vor.u32 %v3775, %v3778
        %v3780 = vrot.slane %v3779, 4
        %v3782 = vshll.u32 %v3683, 16
        %v3784 = vrot.slane %v3782, 5
        %v3785 = vsel %vm364, %v3780, %v3784
        %v3786 = vshrl.u32 %v3683, 16
        %v3788 = vrot.slane %v3786, 4
        %v3789 = vor.u32 %v3788, %v3784
        %v3790 = vrot.slane %v3789, 4
        %v3792 = vshll.u32 %v3684, 16
        %v3794 = vrot.slane %v3792, 5
        %v3795 = vsel %vm364, %v3790, %v3794
        %v3797 = vshrl.u32 %v3685, 16
        %v3799 = vrot.slane %v3797, 4
        %v3800 = vshll.u32 %v3685, 16
        %v3802 = vrot.slane %v3800, 5
        %v3803 = vor.u32 %v3799, %v3802
        %v3804 = vrot.slane %v3803, 4
        %v3806 = vshll.u32 %v3686, 16
        %v3808 = vrot.slane %v3806, 5
        %v3809 = vsel %vm364, %v3804, %v3808
        %v3810 = vshrl.u32 %v3686, 16
        %v3812 = vrot.slane %v3810, 4
        %v3813 = vor.u32 %v3812, %v3808
        %v3814 = vrot.slane %v3813, 4
        %v3816 = vshll.u32 %v3687, 16
        %v3818 = vrot.slane %v3816, 5
        %v3819 = vsel %vm364, %v3814, %v3818
        %v3821 = vshrl.u32 %v3688, 16
        %v3823 = vrot.slane %v3821, 4
        %v3824 = vshll.u32 %v3688, 16
        %v3826 = vrot.slane %v3824, 5
        %v3827 = vor.u32 %v3823, %v3826
        %v3828 = vrot.slane %v3827, 4
        %v3830 = vshll.u32 %v3689, 16
        %v3832 = vrot.slane %v3830, 5
        %v3833 = vsel %vm364, %v3828, %v3832
        %v3834 = vshrl.u32 %v3689, 16
        %v3836 = vrot.slane %v3834, 4
        %v3837 = vor.u32 %v3836, %v3832
        %v3838 = vrot.slane %v3837, 4
        %v3840 = vshll.u32 %v3690, 16
        %v3842 = vrot.slane %v3840, 5
        %v3843 = vsel %vm364, %v3838, %v3842
        %v3845 = vshrl.u32 %v3691, 16
        %v3847 = vrot.slane %v3845, 4
        %v3848 = vshll.u32 %v3691, 16
        %v3850 = vrot.slane %v3848, 5
        %v3851 = vor.u32 %v3847, %v3850
        %v3852 = vrot.slane %v3851, 4
        %v3854 = vshll.u32 %v3692, 16
        %v3856 = vrot.slane %v3854, 5
        %v3857 = vsel %vm364, %v3852, %v3856
        %v3858 = vshrl.u32 %v3692, 16
        %v3860 = vrot.slane %v3858, 4
        %v3861 = vor.u32 %v3860, %v3856
        %v3862 = vrot.slane %v3861, 4
        %v3864 = vshll.u32 %v3693, 16
        %v3866 = vrot.slane %v3864, 5
        %v3867 = vsel %vm364, %v3862, %v3866
        %v3869 = vshrl.u32 %v3694, 16
        %v3871 = vrot.slane %v3869, 4
        %v3872 = vshll.u32 %v3694, 16
        %v3874 = vrot.slane %v3872, 5
        %v3875 = vor.u32 %v3871, %v3874
        %v3876 = vrot.slane %v3875, 4
        %v3878 = vshll.u32 %v3695, 16
        %v3880 = vrot.slane %v3878, 5
        %v3881 = vsel %vm364, %v3876, %v3880
        %v3882 = vshrl.u32 %v3695, 16
        %v3884 = vrot.slane %v3882, 4
        %v3885 = vor.u32 %v3884, %v3880
        %v3886 = vrot.slane %v3885, 4
        %v3888 = vshll.u32 %v3696, 16
        %v3890 = vrot.slane %v3888, 5
        %v3891 = vsel %vm364, %v3886, %v3890
        %v3893 = vshrl.u32 %v3697, 16
        %v3895 = vrot.slane %v3893, 4
        %v3896 = vshll.u32 %v3697, 16
        %v3898 = vrot.slane %v3896, 5
        %v3899 = vor.u32 %v3895, %v3898
        %v3900 = vrot.slane %v3899, 4
        %v3902 = vshll.u32 %v3698, 16
        %v3904 = vrot.slane %v3902, 5
        %v3905 = vsel %vm364, %v3900, %v3904
        %v3906 = vshrl.u32 %v3698, 16
        %v3908 = vrot.slane %v3906, 4
        %v3909 = vor.u32 %v3908, %v3904
        %v3910 = vrot.slane %v3909, 4
        %v3912 = vshll.u32 %v3699, 16
        %v3914 = vrot.slane %v3912, 5
        %v3915 = vsel %vm364, %v3910, %v3914
        %v3917 = vshrl.u32 %v3700, 16
        %v3919 = vrot.slane %v3917, 4
        %v3920 = vshll.u32 %v3700, 16
        %v3922 = vrot.slane %v3920, 5
        %v3923 = vor.u32 %v3919, %v3922
        %v3924 = vrot.slane %v3923, 4
        %v3926 = vshll.u32 %v3701, 16
        %v3928 = vrot.slane %v3926, 5
        %v3929 = vsel %vm364, %v3924, %v3928
        %v3930 = vshrl.u32 %v3701, 16
        %v3932 = vrot.slane %v3930, 4
        %v3933 = vor.u32 %v3932, %v3928
        %v3934 = vrot.slane %v3933, 4
        %v3936 = vshll.u32 %v3702, 16
        %v3938 = vrot.slane %v3936, 5
        %v3939 = vsel %vm364, %v3934, %v3938
        %v3941 = vshrl.u32 %v3703, 16
        %v3943 = vrot.slane %v3941, 4
        %v3944 = vshll.u32 %v3703, 16
        %v3946 = vrot.slane %v3944, 5
        %v3947 = vor.u32 %v3943, %v3946
        %v3948 = vrot.slane %v3947, 4
        %v3950 = vshll.u32 %v3704, 16
        %v3952 = vrot.slane %v3950, 5
        %v3953 = vsel %vm364, %v3948, %v3952
        %v3954 = vshrl.u32 %v3704, 16
        %v3956 = vrot.slane %v3954, 4
        %v3957 = vor.u32 %v3956, %v3952
        %v3958 = vrot.slane %v3957, 4
        %v3960 = vshll.u32 %v3705, 16
        %v3962 = vrot.slane %v3960, 5
        %v3963 = vsel %vm364, %v3958, %v3962
        %v3965 = vshrl.u32 %v3706, 16
        %v3967 = vrot.slane %v3965, 4
        %v3968 = vshll.u32 %v3706, 16
        %v3970 = vrot.slane %v3968, 5
        %v3971 = vor.u32 %v3967, %v3970
        %v3972 = vrot.slane %v3971, 4
        %v3974 = vshll.u32 %v3707, 16
        %v3976 = vrot.slane %v3974, 5
        %v3977 = vsel %vm364, %v3972, %v3976
        %v3978 = vshrl.u32 %v3707, 16
        %v3980 = vrot.slane %v3978, 4
        %v3981 = vor.u32 %v3980, %v3976
        %v3982 = vrot.slane %v3981, 4
        %v3984 = vshll.u32 %v3708, 16
        %v3986 = vrot.slane %v3984, 5
        %v3987 = vsel %vm364, %v3982, %v3986
        %v3989 = vshrl.u32 %v3709, 16
        %v3991 = vrot.slane %v3989, 4
        %v3992 = vshll.u32 %v3709, 16
        %v3994 = vrot.slane %v3992, 5
        %v3995 = vor.u32 %v3991, %v3994
        %v3996 = vrot.slane %v3995, 4
        %v3998 = vshll.u32 %v3710, 16
        %v4000 = vrot.slane %v3998, 5
        %v4001 = vsel %vm364, %v3996, %v4000
        %v4002 = vshrl.u32 %v3710, 16
        %v4004 = vrot.slane %v4002, 4
        %v4005 = vor.u32 %v4004, %v4000
        %v4006 = vrot.slane %v4005, 4
        %v4008 = vshll.u32 %v3711, 16
        %v4010 = vrot.slane %v4008, 5
        %v4011 = vsel %vm364, %v4006, %v4010
        %v4013 = vshrl.u32 %v3712, 16
        %v4015 = vrot.slane %v4013, 4
        %v4016 = vshll.u32 %v3712, 16
        %v4018 = vrot.slane %v4016, 5
        %v4019 = vor.u32 %v4015, %v4018
        %v4020 = vrot.slane %v4019, 4
        %v4022 = vshll.u32 %v3713, 16
        %v4024 = vrot.slane %v4022, 5
        %v4025 = vsel %vm364, %v4020, %v4024
        %v4026 = vshrl.u32 %v3713, 16
        %v4028 = vrot.slane %v4026, 4
        %v4029 = vor.u32 %v4028, %v4024
        %v4030 = vrot.slane %v4029, 4
        %v4032 = vshll.u32 %v3714, 16
        %v4034 = vrot.slane %v4032, 5
        %v4035 = vsel %vm364, %v4030, %v4034
        %v4037 = vshrl.u32 %v3715, 16
        %v4039 = vrot.slane %v4037, 4
        %v4040 = vshll.u32 %v3715, 16
        %v4042 = vrot.slane %v4040, 5
        %v4043 = vor.u32 %v4039, %v4042
        %v4044 = vrot.slane %v4043, 4
        %v4046 = vshll.u32 %v3716, 16
        %v4048 = vrot.slane %v4046, 5
        %v4049 = vsel %vm364, %v4044, %v4048
        %v4050 = vshrl.u32 %v3716, 16
        %v4052 = vrot.slane %v4050, 4
        %v4053 = vor.u32 %v4052, %v4048
        %v4054 = vrot.slane %v4053, 4
        %v4056 = vshll.u32 %v3717, 16
        %v4058 = vrot.slane %v4056, 5
        %v4059 = vsel %vm364, %v4054, %v4058
        %v4061 = vshrl.u32 %v3718, 16
        %v4063 = vrot.slane %v4061, 4
        %v4064 = vshll.u32 %v3718, 16
        %v4066 = vrot.slane %v4064, 5
        %v4067 = vor.u32 %v4063, %v4066
        %v4068 = vrot.slane %v4067, 4
        %v4070 = vshll.u32 %v3719, 16
        %v4072 = vrot.slane %v4070, 5
        %v4073 = vsel %vm364, %v4068, %v4072
        %v4074 = vshrl.u32 %v3719, 16
        %v4076 = vrot.slane %v4074, 4
        %v4077 = vor.u32 %v4076, %v4072
        %v4078 = vrot.slane %v4077, 4
        %v4080 = vshll.u32 %v3720, 16
        %v4082 = vrot.slane %v4080, 5
        %v4083 = vsel %vm364, %v4078, %v4082
        %v4085 = vshrl.u32 %v3721, 16
        %v4087 = vrot.slane %v4085, 4
        %v4088 = vshll.u32 %v3721, 16
        %v4090 = vrot.slane %v4088, 5
        %v4091 = vor.u32 %v4087, %v4090
        %v4092 = vrot.slane %v4091, 4
        %v4094 = vshll.u32 %v3722, 16
        %v4096 = vrot.slane %v4094, 5
        %v4097 = vsel %vm364, %v4092, %v4096
        %v4098 = vshrl.u32 %v3722, 16
        %v4100 = vrot.slane %v4098, 4
        %v4101 = vor.u32 %v4100, %v4096
        %v4102 = vrot.slane %v4101, 4
        %v4104 = vshll.u32 %v3723, 16
        %v4106 = vrot.slane %v4104, 5
        %v4107 = vsel %vm364, %v4102, %v4106
        %s4108 = scalar_lea.vmem [#allocation3], 14
        %v4109 = vld [vmem:[%s4108] sm:$0x3]
        %v4110 = vunpack.c.l.b16 %v3737
        %v4111 = vunpack.c.l.b16 %v3747
        %v4112 = vunpack.c.l.b16 %v3761
        %v4113 = vunpack.c.l.b16 %v3771
        %v4114 = vunpack.c.l.b16 %v3785
        %v4115 = vunpack.c.l.b16 %v3795
        %v4116 = vunpack.c.l.b16 %v3809
        %v4117 = vunpack.c.l.b16 %v3819
        %v4118 = vunpack.c.l.b16 %v3833
        %v4119 = vunpack.c.l.b16 %v3843
        %v4120 = vunpack.c.l.b16 %v3857
        %v4121 = vunpack.c.l.b16 %v3867
        %v4122 = vunpack.c.l.b16 %v3881
        %v4123 = vunpack.c.l.b16 %v3891
        %v4124 = vunpack.c.l.b16 %v3905
        %v4125 = vunpack.c.l.b16 %v3915
        %v4126 = vunpack.c.l.b16 %v3929
        %v4127 = vunpack.c.l.b16 %v3939
        %v4128 = vunpack.c.l.b16 %v3953
        %v4129 = vunpack.c.l.b16 %v3963
        %v4130 = vunpack.c.l.b16 %v3977
        %v4131 = vunpack.c.l.b16 %v3987
        %v4132 = vunpack.c.l.b16 %v4001
        %v4133 = vunpack.c.l.b16 %v4011
        %v4134 = vunpack.c.l.b16 %v4025
        %v4135 = vunpack.c.l.b16 %v4035
        %v4136 = vunpack.c.l.b16 %v4049
        %v4137 = vunpack.c.l.b16 %v4059
        %v4138 = vunpack.c.l.b16 %v4073
        %v4139 = vunpack.c.l.b16 %v4083
        %v4140 = vunpack.c.l.b16 %v4097
        %v4141 = vunpack.c.l.b16 %v4107
        %v4142 = vpack.c.b16 %v4111, %v4110
        %v4143 = vpack.c.b16 %v4113, %v4112
        %v4144 = vpack.c.b16 %v4115, %v4114
        %v4145 = vpack.c.b16 %v4117, %v4116
        %v4146 = vpack.c.b16 %v4119, %v4118
        %v4147 = vpack.c.b16 %v4121, %v4120
        %v4148 = vpack.c.b16 %v4123, %v4122
        %v4149 = vpack.c.b16 %v4125, %v4124
        %v4150 = vpack.c.b16 %v4127, %v4126
        %v4151 = vpack.c.b16 %v4129, %v4128
        %v4152 = vpack.c.b16 %v4131, %v4130
        %v4153 = vpack.c.b16 %v4133, %v4132
        %v4154 = vpack.c.b16 %v4135, %v4134
        %v4155 = vpack.c.b16 %v4137, %v4136
        %v4156 = vpack.c.b16 %v4139, %v4138
        %v4157 = vpack.c.b16 %v4141, %v4140
        %v4159 = vsel %vm799, %v4142, 0
        %v4162 = vsel %vm799, %v4143, 0
        %v4165 = vsel %vm799, %v4144, 0
        %v4168 = vsel %vm799, %v4145, 0
        %v4171 = vsel %vm799, %v4146, 0
        %v4174 = vsel %vm799, %v4147, 0
        %v4177 = vsel %vm799, %v4148, 0
        %v4180 = vsel %vm799, %v4149, 0
        %v4183 = vsel %vm799, %v4150, 0
        %v4186 = vsel %vm799, %v4151, 0
        %v4189 = vsel %vm799, %v4152, 0
        %v4192 = vsel %vm799, %v4153, 0
        %v4195 = vsel %vm799, %v4154, 0
        %v4198 = vsel %vm799, %v4155, 0
        %v4201 = vsel %vm799, %v4156, 0
        %v4204 = vsel %vm799, %v4157, 0
        %v4207 = vsel %vm848, %v4109, 0
        %4209 = vmatprep.subr.bf16.mxu0 0
        %4210 = vmatpush1.bf16.msra.mxu0 0
        %4211 = vmatprep.subr.bf16.mxu0 0
        %4212 = vmatpush1.bf16.msra.mxu0 0
        %4213 = vmatprep.subr.bf16.mxu0 0
        %4214 = vmatpush1.bf16.msra.mxu0 0
        %4215 = vmatprep.subr.bf16.mxu0 0
        %4216 = vmatpush1.bf16.msra.mxu0 0
        %4217 = vmatprep.subr.bf16.mxu0 0
        %4218 = vmatpush1.bf16.msra.mxu0 0
        %4219 = vmatprep.subr.bf16.mxu0 0
        %4220 = vmatpush1.bf16.msra.mxu0 0
        %4221 = vmatprep.subr.bf16.mxu0 0
        %4222 = vmatpush1.bf16.msra.mxu0 0
        %4223 = vmatprep.subr.bf16.mxu0 0
        %4224 = vmatpush1.bf16.msra.mxu0 %v4207
        %4225 = vmatprep.subr.bf16.mxu0 0
        %4226 = vmatpush2.bf16.msra.mxu0 0
        %4227 = vmatprep.subr.bf16.mxu0 0
        %4228 = vmatpush2.bf16.msra.mxu0 0
        %4229 = vmatprep.subr.bf16.mxu0 0
        %4230 = vmatpush2.bf16.msra.mxu0 0
        %4231 = vmatprep.subr.bf16.mxu0 0
        %4232 = vmatpush2.bf16.msra.mxu0 0
        %4233 = vmatprep.subr.bf16.mxu0 0
        %4234 = vmatpush2.bf16.msra.mxu0 0
        %4235 = vmatprep.subr.bf16.mxu0 0
        %4236 = vmatpush2.bf16.msra.mxu0 0
        %4237 = vmatprep.subr.bf16.mxu0 0
        %4238 = vmatpush2.bf16.msra.mxu0 0
        %4239 = vmatprep.subr.bf16.mxu0 0
        %4240 = vmatpush2.bf16.msra.mxu0 0
        %4241 = vmatprep.mubr.bf16.mxu0 0
        %4242 = vmatmul.mubr.bf16.gmra.mxu0 %v4159
        %v4243 = vpop.f32.mrf.mxu0
        %v4244 = vadd.f32 0.0, %v4243
        %v4245 = vpop.f32.mrf.mxu0
        %v4246 = vpop.f32.mrf.mxu0
        %v4247 = vadd.f32 0.0, %v4246
        %v4248 = vpop.f32.mrf.mxu0
        %4249 = vmatprep.mubr.bf16.mxu0 0
        %4250 = vmatmul.mubr.bf16.gmra.mxu0 %v4162
        %v4251 = vpop.f32.mrf.mxu0
        %v4252 = vadd.f32 0.0, %v4251
        %v4253 = vpop.f32.mrf.mxu0
        %v4254 = vpop.f32.mrf.mxu0
        %v4255 = vadd.f32 0.0, %v4254
        %v4256 = vpop.f32.mrf.mxu0
        %4257 = vmatprep.mubr.bf16.mxu0 0
        %4258 = vmatmul.mubr.bf16.gmra.mxu0 %v4165
        %v4259 = vpop.f32.mrf.mxu0
        %v4260 = vadd.f32 0.0, %v4259
        %v4261 = vpop.f32.mrf.mxu0
        %v4262 = vpop.f32.mrf.mxu0
        %v4263 = vadd.f32 0.0, %v4262
        %v4264 = vpop.f32.mrf.mxu0
        %4265 = vmatprep.mubr.bf16.mxu0 0
        %4266 = vmatmul.mubr.bf16.gmra.mxu0 %v4168
        %v4267 = vpop.f32.mrf.mxu0
        %v4268 = vadd.f32 0.0, %v4267
        %v4269 = vpop.f32.mrf.mxu0
        %v4270 = vpop.f32.mrf.mxu0
        %v4271 = vadd.f32 0.0, %v4270
        %v4272 = vpop.f32.mrf.mxu0
        %4273 = vmatprep.mubr.bf16.mxu0 0
        %4274 = vmatmul.mubr.bf16.gmra.mxu0 %v4171
        %v4275 = vpop.f32.mrf.mxu0
        %v4276 = vadd.f32 0.0, %v4275
        %v4277 = vpop.f32.mrf.mxu0
        %v4278 = vpop.f32.mrf.mxu0
        %v4279 = vadd.f32 0.0, %v4278
        %v4280 = vpop.f32.mrf.mxu0
        %4281 = vmatprep.mubr.bf16.mxu0 0
        %4282 = vmatmul.mubr.bf16.gmra.mxu0 %v4174
        %v4283 = vpop.f32.mrf.mxu0
        %v4284 = vadd.f32 0.0, %v4283
        %v4285 = vpop.f32.mrf.mxu0
        %v4286 = vpop.f32.mrf.mxu0
        %v4287 = vadd.f32 0.0, %v4286
        %v4288 = vpop.f32.mrf.mxu0
        %4289 = vmatprep.mubr.bf16.mxu0 0
        %4290 = vmatmul.mubr.bf16.gmra.mxu0 %v4177
        %v4291 = vpop.f32.mrf.mxu0
        %v4292 = vadd.f32 0.0, %v4291
        %v4293 = vpop.f32.mrf.mxu0
        %v4294 = vpop.f32.mrf.mxu0
        %v4295 = vadd.f32 0.0, %v4294
        %v4296 = vpop.f32.mrf.mxu0
        %4297 = vmatprep.mubr.bf16.mxu0 0
        %4298 = vmatmul.mubr.bf16.gmra.mxu0 %v4180
        %v4299 = vpop.f32.mrf.mxu0
        %v4300 = vadd.f32 0.0, %v4299
        %v4301 = vpop.f32.mrf.mxu0
        %v4302 = vpop.f32.mrf.mxu0
        %v4303 = vadd.f32 0.0, %v4302
        %v4304 = vpop.f32.mrf.mxu0
        %4305 = vmatprep.mubr.bf16.mxu0 0
        %4306 = vmatmul.mubr.bf16.gmra.mxu0 %v4183
        %v4307 = vpop.f32.mrf.mxu0
        %v4308 = vadd.f32 0.0, %v4307
        %v4309 = vpop.f32.mrf.mxu0
        %v4310 = vpop.f32.mrf.mxu0
        %v4311 = vadd.f32 0.0, %v4310
        %v4312 = vpop.f32.mrf.mxu0
        %4313 = vmatprep.mubr.bf16.mxu0 0
        %4314 = vmatmul.mubr.bf16.gmra.mxu0 %v4186
        %v4315 = vpop.f32.mrf.mxu0
        %v4316 = vadd.f32 0.0, %v4315
        %v4317 = vpop.f32.mrf.mxu0
        %v4318 = vpop.f32.mrf.mxu0
        %v4319 = vadd.f32 0.0, %v4318
        %v4320 = vpop.f32.mrf.mxu0
        %4321 = vmatprep.mubr.bf16.mxu0 0
        %4322 = vmatmul.mubr.bf16.gmra.mxu0 %v4189
        %v4323 = vpop.f32.mrf.mxu0
        %v4324 = vadd.f32 0.0, %v4323
        %v4325 = vpop.f32.mrf.mxu0
        %v4326 = vpop.f32.mrf.mxu0
        %v4327 = vadd.f32 0.0, %v4326
        %v4328 = vpop.f32.mrf.mxu0
        %4329 = vmatprep.mubr.bf16.mxu0 0
        %4330 = vmatmul.mubr.bf16.gmra.mxu0 %v4192
        %v4331 = vpop.f32.mrf.mxu0
        %v4332 = vadd.f32 0.0, %v4331
        %v4333 = vpop.f32.mrf.mxu0
        %v4334 = vpop.f32.mrf.mxu0
        %v4335 = vadd.f32 0.0, %v4334
        %v4336 = vpop.f32.mrf.mxu0
        %4337 = vmatprep.mubr.bf16.mxu0 0
        %4338 = vmatmul.mubr.bf16.gmra.mxu0 %v4195
        %v4339 = vpop.f32.mrf.mxu0
        %v4340 = vadd.f32 0.0, %v4339
        %v4341 = vpop.f32.mrf.mxu0
        %v4342 = vpop.f32.mrf.mxu0
        %v4343 = vadd.f32 0.0, %v4342
        %v4344 = vpop.f32.mrf.mxu0
        %4345 = vmatprep.mubr.bf16.mxu0 0
        %4346 = vmatmul.mubr.bf16.gmra.mxu0 %v4198
        %v4347 = vpop.f32.mrf.mxu0
        %v4348 = vadd.f32 0.0, %v4347
        %v4349 = vpop.f32.mrf.mxu0
        %v4350 = vpop.f32.mrf.mxu0
        %v4351 = vadd.f32 0.0, %v4350
        %v4352 = vpop.f32.mrf.mxu0
        %4353 = vmatprep.mubr.bf16.mxu0 0
        %4354 = vmatmul.mubr.bf16.gmra.mxu0 %v4201
        %v4355 = vpop.f32.mrf.mxu0
        %v4356 = vadd.f32 0.0, %v4355
        %v4357 = vpop.f32.mrf.mxu0
        %v4358 = vpop.f32.mrf.mxu0
        %v4359 = vadd.f32 0.0, %v4358
        %v4360 = vpop.f32.mrf.mxu0
        %4361 = vmatprep.mubr.bf16.mxu0 0
        %4362 = vmatmul.mubr.bf16.gmra.mxu0 %v4204
        %v4363 = vpop.f32.mrf.mxu0
        %v4364 = vadd.f32 0.0, %v4363
        %v4365 = vpop.f32.mrf.mxu0
        %v4366 = vpop.f32.mrf.mxu0
        %v4367 = vadd.f32 0.0, %v4366
        %v4368 = vpop.f32.mrf.mxu0
        %4369 = vdwg.mxu0
        %v4370 = vadd.f32 %v3644, %v4244
        %v4371 = vadd.f32 %v3645, %v4247
        %v4372 = vadd.f32 %v3646, %v4252
        %v4373 = vadd.f32 %v3647, %v4255
        %v4374 = vadd.f32 %v3648, %v4260
        %v4375 = vadd.f32 %v3649, %v4263
        %v4376 = vadd.f32 %v3650, %v4268
        %v4377 = vadd.f32 %v3651, %v4271
        %v4378 = vadd.f32 %v3652, %v4276
        %v4379 = vadd.f32 %v3653, %v4279
        %v4380 = vadd.f32 %v3654, %v4284
        %v4381 = vadd.f32 %v3655, %v4287
        %v4382 = vadd.f32 %v3656, %v4292
        %v4383 = vadd.f32 %v3657, %v4295
        %v4384 = vadd.f32 %v3658, %v4300
        %v4385 = vadd.f32 %v3659, %v4303
        %v4386 = vadd.f32 %v3660, %v4308
        %v4387 = vadd.f32 %v3661, %v4311
        %v4388 = vadd.f32 %v3662, %v4316
        %v4389 = vadd.f32 %v3663, %v4319
        %v4390 = vadd.f32 %v3664, %v4324
        %v4391 = vadd.f32 %v3665, %v4327
        %v4392 = vadd.f32 %v3666, %v4332
        %v4393 = vadd.f32 %v3667, %v4335
        %v4394 = vadd.f32 %v3668, %v4340
        %v4395 = vadd.f32 %v3669, %v4343
        %v4396 = vadd.f32 %v3670, %v4348
        %v4397 = vadd.f32 %v3671, %v4351
        %v4398 = vadd.f32 %v3672, %v4356
        %v4399 = vadd.f32 %v3673, %v4359
        %v4400 = vadd.f32 %v3674, %v4364
        %v4401 = vadd.f32 %v3675, %v4367
        %v4402 = vld [vmem:[%s3317] sm:$0xe]
        %v4403 = vld [vmem:[%s3317 + $0xc] sm:$0xe]
        %v4404 = vld [vmem:[%s3317 + $0x18] sm:$0xe]
        %v4405 = vld [vmem:[%s3317 + $0x24] sm:$0xe]
        %v4406 = vld [vmem:[%s3317 + $0x30] sm:$0xe]
        %v4407 = vld [vmem:[%s3317 + $0x3c] sm:$0xe]
        %v4408 = vld [vmem:[%s3317 + $0x48] sm:$0xe]
        %v4409 = vld [vmem:[%s3317 + $0x54] sm:$0xe]
        %v4410 = vld [vmem:[%s3317 + $0x60] sm:$0xe]
        %v4411 = vld [vmem:[%s3317 + $0x6c] sm:$0xe]
        %v4412 = vld [vmem:[%s3317 + $0x78] sm:$0xe]
        %v4413 = vld [vmem:[%s3317 + $0x84] sm:$0xe]
        %v4414 = vld [vmem:[%s3317 + $0x90] sm:$0xe]
        %v4415 = vld [vmem:[%s3317 + $0x9c] sm:$0xe]
        %v4416 = vld [vmem:[%s3317 + $0xa8] sm:$0xe]
        %v4417 = vld [vmem:[%s3317 + $0xb4] sm:$0xe]
        %v4466 = vrot.slane %v4402, 5
        %v4467 = vrot.slane %v4466, 4
        %v4468 = vrot.slane %v3677, 5
        %v4469 = vsel %vm1355, %v4467, %v4468
        %v4470 = vrot.slane %v4468, 4
        %v4471 = vrot.slane %v3678, 5
        %v4472 = vsel %vm1355, %v4470, %v4471
        %v4473 = vrot.slane %v4403, 5
        %v4474 = vrot.slane %v4473, 4
        %v4475 = vrot.slane %v3680, 5
        %v4476 = vsel %vm1355, %v4474, %v4475
        %v4477 = vrot.slane %v4475, 4
        %v4478 = vrot.slane %v3681, 5
        %v4479 = vsel %vm1355, %v4477, %v4478
        %v4480 = vrot.slane %v4404, 5
        %v4481 = vrot.slane %v4480, 4
        %v4482 = vrot.slane %v3683, 5
        %v4483 = vsel %vm1355, %v4481, %v4482
        %v4484 = vrot.slane %v4482, 4
        %v4485 = vrot.slane %v3684, 5
        %v4486 = vsel %vm1355, %v4484, %v4485
        %v4487 = vrot.slane %v4405, 5
        %v4488 = vrot.slane %v4487, 4
        %v4489 = vrot.slane %v3686, 5
        %v4490 = vsel %vm1355, %v4488, %v4489
        %v4491 = vrot.slane %v4489, 4
        %v4492 = vrot.slane %v3687, 5
        %v4493 = vsel %vm1355, %v4491, %v4492
        %v4494 = vrot.slane %v4406, 5
        %v4495 = vrot.slane %v4494, 4
        %v4496 = vrot.slane %v3689, 5
        %v4497 = vsel %vm1355, %v4495, %v4496
        %v4498 = vrot.slane %v4496, 4
        %v4499 = vrot.slane %v3690, 5
        %v4500 = vsel %vm1355, %v4498, %v4499
        %v4501 = vrot.slane %v4407, 5
        %v4502 = vrot.slane %v4501, 4
        %v4503 = vrot.slane %v3692, 5
        %v4504 = vsel %vm1355, %v4502, %v4503
        %v4505 = vrot.slane %v4503, 4
        %v4506 = vrot.slane %v3693, 5
        %v4507 = vsel %vm1355, %v4505, %v4506
        %v4508 = vrot.slane %v4408, 5
        %v4509 = vrot.slane %v4508, 4
        %v4510 = vrot.slane %v3695, 5
        %v4511 = vsel %vm1355, %v4509, %v4510
        %v4512 = vrot.slane %v4510, 4
        %v4513 = vrot.slane %v3696, 5
        %v4514 = vsel %vm1355, %v4512, %v4513
        %v4515 = vrot.slane %v4409, 5
        %v4516 = vrot.slane %v4515, 4
        %v4517 = vrot.slane %v3698, 5
        %v4518 = vsel %vm1355, %v4516, %v4517
        %v4519 = vrot.slane %v4517, 4
        %v4520 = vrot.slane %v3699, 5
        %v4521 = vsel %vm1355, %v4519, %v4520
        %v4522 = vrot.slane %v4410, 5
        %v4523 = vrot.slane %v4522, 4
        %v4524 = vrot.slane %v3701, 5
        %v4525 = vsel %vm1355, %v4523, %v4524
        %v4526 = vrot.slane %v4524, 4
        %v4527 = vrot.slane %v3702, 5
        %v4528 = vsel %vm1355, %v4526, %v4527
        %v4529 = vrot.slane %v4411, 5
        %v4530 = vrot.slane %v4529, 4
        %v4531 = vrot.slane %v3704, 5
        %v4532 = vsel %vm1355, %v4530, %v4531
        %v4533 = vrot.slane %v4531, 4
        %v4534 = vrot.slane %v3705, 5
        %v4535 = vsel %vm1355, %v4533, %v4534
        %v4536 = vrot.slane %v4412, 5
        %v4537 = vrot.slane %v4536, 4
        %v4538 = vrot.slane %v3707, 5
        %v4539 = vsel %vm1355, %v4537, %v4538
        %v4540 = vrot.slane %v4538, 4
        %v4541 = vrot.slane %v3708, 5
        %v4542 = vsel %vm1355, %v4540, %v4541
        %v4543 = vrot.slane %v4413, 5
        %v4544 = vrot.slane %v4543, 4
        %v4545 = vrot.slane %v3710, 5
        %v4546 = vsel %vm1355, %v4544, %v4545
        %v4547 = vrot.slane %v4545, 4
        %v4548 = vrot.slane %v3711, 5
        %v4549 = vsel %vm1355, %v4547, %v4548
        %v4550 = vrot.slane %v4414, 5
        %v4551 = vrot.slane %v4550, 4
        %v4552 = vrot.slane %v3713, 5
        %v4553 = vsel %vm1355, %v4551, %v4552
        %v4554 = vrot.slane %v4552, 4
        %v4555 = vrot.slane %v3714, 5
        %v4556 = vsel %vm1355, %v4554, %v4555
        %v4557 = vrot.slane %v4415, 5
        %v4558 = vrot.slane %v4557, 4
        %v4559 = vrot.slane %v3716, 5
        %v4560 = vsel %vm1355, %v4558, %v4559
        %v4561 = vrot.slane %v4559, 4
        %v4562 = vrot.slane %v3717, 5
        %v4563 = vsel %vm1355, %v4561, %v4562
        %v4564 = vrot.slane %v4416, 5
        %v4565 = vrot.slane %v4564, 4
        %v4566 = vrot.slane %v3719, 5
        %v4567 = vsel %vm1355, %v4565, %v4566
        %v4568 = vrot.slane %v4566, 4
        %v4569 = vrot.slane %v3720, 5
        %v4570 = vsel %vm1355, %v4568, %v4569
        %v4571 = vrot.slane %v4417, 5
        %v4572 = vrot.slane %v4571, 4
        %v4573 = vrot.slane %v3722, 5
        %v4574 = vsel %vm1355, %v4572, %v4573
        %v4575 = vrot.slane %v4573, 4
        %v4576 = vrot.slane %v3723, 5
        %v4577 = vsel %vm1355, %v4575, %v4576
        %s4578 = scalar_lea.vmem [#allocation3], 16
        %v4579 = vld [vmem:[%s4578] sm:$0x3]
        %v4580 = vunpack.c.l.b16 %v4469
        %v4581 = vunpack.c.l.b16 %v4472
        %v4582 = vunpack.c.l.b16 %v4476
        %v4583 = vunpack.c.l.b16 %v4479
        %v4584 = vunpack.c.l.b16 %v4483
        %v4585 = vunpack.c.l.b16 %v4486
        %v4586 = vunpack.c.l.b16 %v4490
        %v4587 = vunpack.c.l.b16 %v4493
        %v4588 = vunpack.c.l.b16 %v4497
        %v4589 = vunpack.c.l.b16 %v4500
        %v4590 = vunpack.c.l.b16 %v4504
        %v4591 = vunpack.c.l.b16 %v4507
        %v4592 = vunpack.c.l.b16 %v4511
        %v4593 = vunpack.c.l.b16 %v4514
        %v4594 = vunpack.c.l.b16 %v4518
        %v4595 = vunpack.c.l.b16 %v4521
        %v4596 = vunpack.c.l.b16 %v4525
        %v4597 = vunpack.c.l.b16 %v4528
        %v4598 = vunpack.c.l.b16 %v4532
        %v4599 = vunpack.c.l.b16 %v4535
        %v4600 = vunpack.c.l.b16 %v4539
        %v4601 = vunpack.c.l.b16 %v4542
        %v4602 = vunpack.c.l.b16 %v4546
        %v4603 = vunpack.c.l.b16 %v4549
        %v4604 = vunpack.c.l.b16 %v4553
        %v4605 = vunpack.c.l.b16 %v4556
        %v4606 = vunpack.c.l.b16 %v4560
        %v4607 = vunpack.c.l.b16 %v4563
        %v4608 = vunpack.c.l.b16 %v4567
        %v4609 = vunpack.c.l.b16 %v4570
        %v4610 = vunpack.c.l.b16 %v4574
        %v4611 = vunpack.c.l.b16 %v4577
        %v4612 = vpack.c.b16 %v4581, %v4580
        %v4613 = vpack.c.b16 %v4583, %v4582
        %v4614 = vpack.c.b16 %v4585, %v4584
        %v4615 = vpack.c.b16 %v4587, %v4586
        %v4616 = vpack.c.b16 %v4589, %v4588
        %v4617 = vpack.c.b16 %v4591, %v4590
        %v4618 = vpack.c.b16 %v4593, %v4592
        %v4619 = vpack.c.b16 %v4595, %v4594
        %v4620 = vpack.c.b16 %v4597, %v4596
        %v4621 = vpack.c.b16 %v4599, %v4598
        %v4622 = vpack.c.b16 %v4601, %v4600
        %v4623 = vpack.c.b16 %v4603, %v4602
        %v4624 = vpack.c.b16 %v4605, %v4604
        %v4625 = vpack.c.b16 %v4607, %v4606
        %v4626 = vpack.c.b16 %v4609, %v4608
        %v4627 = vpack.c.b16 %v4611, %v4610
        %v4629 = vsel %vm799, %v4612, 0
        %v4632 = vsel %vm799, %v4613, 0
        %v4635 = vsel %vm799, %v4614, 0
        %v4638 = vsel %vm799, %v4615, 0
        %v4641 = vsel %vm799, %v4616, 0
        %v4644 = vsel %vm799, %v4617, 0
        %v4647 = vsel %vm799, %v4618, 0
        %v4650 = vsel %vm799, %v4619, 0
        %v4653 = vsel %vm799, %v4620, 0
        %v4656 = vsel %vm799, %v4621, 0
        %v4659 = vsel %vm799, %v4622, 0
        %v4662 = vsel %vm799, %v4623, 0
        %v4665 = vsel %vm799, %v4624, 0
        %v4668 = vsel %vm799, %v4625, 0
        %v4671 = vsel %vm799, %v4626, 0
        %v4674 = vsel %vm799, %v4627, 0
        %v4677 = vsel %vm848, %v4579, 0
        %4679 = vmatprep.subr.bf16.mxu0 0
        %4680 = vmatpush1.bf16.msra.mxu0 0
        %4681 = vmatprep.subr.bf16.mxu0 0
        %4682 = vmatpush1.bf16.msra.mxu0 0
        %4683 = vmatprep.subr.bf16.mxu0 0
        %4684 = vmatpush1.bf16.msra.mxu0 0
        %4685 = vmatprep.subr.bf16.mxu0 0
        %4686 = vmatpush1.bf16.msra.mxu0 0
        %4687 = vmatprep.subr.bf16.mxu0 0
        %4688 = vmatpush1.bf16.msra.mxu0 0
        %4689 = vmatprep.subr.bf16.mxu0 0
        %4690 = vmatpush1.bf16.msra.mxu0 0
        %4691 = vmatprep.subr.bf16.mxu0 0
        %4692 = vmatpush1.bf16.msra.mxu0 0
        %4693 = vmatprep.subr.bf16.mxu0 0
        %4694 = vmatpush1.bf16.msra.mxu0 %v4677
        %4695 = vmatprep.subr.bf16.mxu0 0
        %4696 = vmatpush2.bf16.msra.mxu0 0
        %4697 = vmatprep.subr.bf16.mxu0 0
        %4698 = vmatpush2.bf16.msra.mxu0 0
        %4699 = vmatprep.subr.bf16.mxu0 0
        %4700 = vmatpush2.bf16.msra.mxu0 0
        %4701 = vmatprep.subr.bf16.mxu0 0
        %4702 = vmatpush2.bf16.msra.mxu0 0
        %4703 = vmatprep.subr.bf16.mxu0 0
        %4704 = vmatpush2.bf16.msra.mxu0 0
        %4705 = vmatprep.subr.bf16.mxu0 0
        %4706 = vmatpush2.bf16.msra.mxu0 0
        %4707 = vmatprep.subr.bf16.mxu0 0
        %4708 = vmatpush2.bf16.msra.mxu0 0
        %4709 = vmatprep.subr.bf16.mxu0 0
        %4710 = vmatpush2.bf16.msra.mxu0 0
        %4711 = vmatprep.mubr.bf16.mxu0 0
        %4712 = vmatmul.mubr.bf16.gmra.mxu0 %v4629
        %v4713 = vpop.f32.mrf.mxu0
        %v4714 = vadd.f32 0.0, %v4713
        %v4715 = vpop.f32.mrf.mxu0
        %v4716 = vpop.f32.mrf.mxu0
        %v4717 = vadd.f32 0.0, %v4716
        %v4718 = vpop.f32.mrf.mxu0
        %4719 = vmatprep.mubr.bf16.mxu0 0
        %4720 = vmatmul.mubr.bf16.gmra.mxu0 %v4632
        %v4721 = vpop.f32.mrf.mxu0
        %v4722 = vadd.f32 0.0, %v4721
        %v4723 = vpop.f32.mrf.mxu0
        %v4724 = vpop.f32.mrf.mxu0
        %v4725 = vadd.f32 0.0, %v4724
        %v4726 = vpop.f32.mrf.mxu0
        %4727 = vmatprep.mubr.bf16.mxu0 0
        %4728 = vmatmul.mubr.bf16.gmra.mxu0 %v4635
        %v4729 = vpop.f32.mrf.mxu0
        %v4730 = vadd.f32 0.0, %v4729
        %v4731 = vpop.f32.mrf.mxu0
        %v4732 = vpop.f32.mrf.mxu0
        %v4733 = vadd.f32 0.0, %v4732
        %v4734 = vpop.f32.mrf.mxu0
        %4735 = vmatprep.mubr.bf16.mxu0 0
        %4736 = vmatmul.mubr.bf16.gmra.mxu0 %v4638
        %v4737 = vpop.f32.mrf.mxu0
        %v4738 = vadd.f32 0.0, %v4737
        %v4739 = vpop.f32.mrf.mxu0
        %v4740 = vpop.f32.mrf.mxu0
        %v4741 = vadd.f32 0.0, %v4740
        %v4742 = vpop.f32.mrf.mxu0
        %4743 = vmatprep.mubr.bf16.mxu0 0
        %4744 = vmatmul.mubr.bf16.gmra.mxu0 %v4641
        %v4745 = vpop.f32.mrf.mxu0
        %v4746 = vadd.f32 0.0, %v4745
        %v4747 = vpop.f32.mrf.mxu0
        %v4748 = vpop.f32.mrf.mxu0
        %v4749 = vadd.f32 0.0, %v4748
        %v4750 = vpop.f32.mrf.mxu0
        %4751 = vmatprep.mubr.bf16.mxu0 0
        %4752 = vmatmul.mubr.bf16.gmra.mxu0 %v4644
        %v4753 = vpop.f32.mrf.mxu0
        %v4754 = vadd.f32 0.0, %v4753
        %v4755 = vpop.f32.mrf.mxu0
        %v4756 = vpop.f32.mrf.mxu0
        %v4757 = vadd.f32 0.0, %v4756
        %v4758 = vpop.f32.mrf.mxu0
        %4759 = vmatprep.mubr.bf16.mxu0 0
        %4760 = vmatmul.mubr.bf16.gmra.mxu0 %v4647
        %v4761 = vpop.f32.mrf.mxu0
        %v4762 = vadd.f32 0.0, %v4761
        %v4763 = vpop.f32.mrf.mxu0
        %v4764 = vpop.f32.mrf.mxu0
        %v4765 = vadd.f32 0.0, %v4764
        %v4766 = vpop.f32.mrf.mxu0
        %4767 = vmatprep.mubr.bf16.mxu0 0
        %4768 = vmatmul.mubr.bf16.gmra.mxu0 %v4650
        %v4769 = vpop.f32.mrf.mxu0
        %v4770 = vadd.f32 0.0, %v4769
        %v4771 = vpop.f32.mrf.mxu0
        %v4772 = vpop.f32.mrf.mxu0
        %v4773 = vadd.f32 0.0, %v4772
        %v4774 = vpop.f32.mrf.mxu0
        %4775 = vmatprep.mubr.bf16.mxu0 0
        %4776 = vmatmul.mubr.bf16.gmra.mxu0 %v4653
        %v4777 = vpop.f32.mrf.mxu0
        %v4778 = vadd.f32 0.0, %v4777
        %v4779 = vpop.f32.mrf.mxu0
        %v4780 = vpop.f32.mrf.mxu0
        %v4781 = vadd.f32 0.0, %v4780
        %v4782 = vpop.f32.mrf.mxu0
        %4783 = vmatprep.mubr.bf16.mxu0 0
        %4784 = vmatmul.mubr.bf16.gmra.mxu0 %v4656
        %v4785 = vpop.f32.mrf.mxu0
        %v4786 = vadd.f32 0.0, %v4785
        %v4787 = vpop.f32.mrf.mxu0
        %v4788 = vpop.f32.mrf.mxu0
        %v4789 = vadd.f32 0.0, %v4788
        %v4790 = vpop.f32.mrf.mxu0
        %4791 = vmatprep.mubr.bf16.mxu0 0
        %4792 = vmatmul.mubr.bf16.gmra.mxu0 %v4659
        %v4793 = vpop.f32.mrf.mxu0
        %v4794 = vadd.f32 0.0, %v4793
        %v4795 = vpop.f32.mrf.mxu0
        %v4796 = vpop.f32.mrf.mxu0
        %v4797 = vadd.f32 0.0, %v4796
        %v4798 = vpop.f32.mrf.mxu0
        %4799 = vmatprep.mubr.bf16.mxu0 0
        %4800 = vmatmul.mubr.bf16.gmra.mxu0 %v4662
        %v4801 = vpop.f32.mrf.mxu0
        %v4802 = vadd.f32 0.0, %v4801
        %v4803 = vpop.f32.mrf.mxu0
        %v4804 = vpop.f32.mrf.mxu0
        %v4805 = vadd.f32 0.0, %v4804
        %v4806 = vpop.f32.mrf.mxu0
        %4807 = vmatprep.mubr.bf16.mxu0 0
        %4808 = vmatmul.mubr.bf16.gmra.mxu0 %v4665
        %v4809 = vpop.f32.mrf.mxu0
        %v4810 = vadd.f32 0.0, %v4809
        %v4811 = vpop.f32.mrf.mxu0
        %v4812 = vpop.f32.mrf.mxu0
        %v4813 = vadd.f32 0.0, %v4812
        %v4814 = vpop.f32.mrf.mxu0
        %4815 = vmatprep.mubr.bf16.mxu0 0
        %4816 = vmatmul.mubr.bf16.gmra.mxu0 %v4668
        %v4817 = vpop.f32.mrf.mxu0
        %v4818 = vadd.f32 0.0, %v4817
        %v4819 = vpop.f32.mrf.mxu0
        %v4820 = vpop.f32.mrf.mxu0
        %v4821 = vadd.f32 0.0, %v4820
        %v4822 = vpop.f32.mrf.mxu0
        %4823 = vmatprep.mubr.bf16.mxu0 0
        %4824 = vmatmul.mubr.bf16.gmra.mxu0 %v4671
        %v4825 = vpop.f32.mrf.mxu0
        %v4826 = vadd.f32 0.0, %v4825
        %v4827 = vpop.f32.mrf.mxu0
        %v4828 = vpop.f32.mrf.mxu0
        %v4829 = vadd.f32 0.0, %v4828
        %v4830 = vpop.f32.mrf.mxu0
        %4831 = vmatprep.mubr.bf16.mxu0 0
        %4832 = vmatmul.mubr.bf16.gmra.mxu0 %v4674
        %v4833 = vpop.f32.mrf.mxu0
        %v4834 = vadd.f32 0.0, %v4833
        %v4835 = vpop.f32.mrf.mxu0
        %v4836 = vpop.f32.mrf.mxu0
        %v4837 = vadd.f32 0.0, %v4836
        %v4838 = vpop.f32.mrf.mxu0
        %4839 = vdwg.mxu0
        %v4840 = vadd.f32 %v4370, %v4714
        %v4841 = vadd.f32 %v4371, %v4717
        %v4842 = vadd.f32 %v4372, %v4722
        %v4843 = vadd.f32 %v4373, %v4725
        %v4844 = vadd.f32 %v4374, %v4730
        %v4845 = vadd.f32 %v4375, %v4733
        %v4846 = vadd.f32 %v4376, %v4738
        %v4847 = vadd.f32 %v4377, %v4741
        %v4848 = vadd.f32 %v4378, %v4746
        %v4849 = vadd.f32 %v4379, %v4749
        %v4850 = vadd.f32 %v4380, %v4754
        %v4851 = vadd.f32 %v4381, %v4757
        %v4852 = vadd.f32 %v4382, %v4762
        %v4853 = vadd.f32 %v4383, %v4765
        %v4854 = vadd.f32 %v4384, %v4770
        %v4855 = vadd.f32 %v4385, %v4773
        %v4856 = vadd.f32 %v4386, %v4778
        %v4857 = vadd.f32 %v4387, %v4781
        %v4858 = vadd.f32 %v4388, %v4786
        %v4859 = vadd.f32 %v4389, %v4789
        %v4860 = vadd.f32 %v4390, %v4794
        %v4861 = vadd.f32 %v4391, %v4797
        %v4862 = vadd.f32 %v4392, %v4802
        %v4863 = vadd.f32 %v4393, %v4805
        %v4864 = vadd.f32 %v4394, %v4810
        %v4865 = vadd.f32 %v4395, %v4813
        %v4866 = vadd.f32 %v4396, %v4818
        %v4867 = vadd.f32 %v4397, %v4821
        %v4868 = vadd.f32 %v4398, %v4826
        %v4869 = vadd.f32 %v4399, %v4829
        %v4870 = vadd.f32 %v4400, %v4834
        %v4871 = vadd.f32 %v4401, %v4837
        %v4872 = vld [vmem:[%s2] sm:$0x1]
        %v4874 = vlaneseq
        %v4875 = vshrl.u32 %v4874, 7
        %v4876 = vsub.s32 0, %v4875
        %v4877 = vrot.slane %v4872, %v4876
        %v4879 = vadd.f32 %v4840, %v4877
        %v4880 = vadd.f32 %v4841, %v4877
        %v4881 = vadd.f32 %v4842, %v4877
        %v4882 = vadd.f32 %v4843, %v4877
        %v4883 = vadd.f32 %v4844, %v4877
        %v4884 = vadd.f32 %v4845, %v4877
        %v4885 = vadd.f32 %v4846, %v4877
        %v4886 = vadd.f32 %v4847, %v4877
        %v4887 = vadd.f32 %v4848, %v4877
        %v4888 = vadd.f32 %v4849, %v4877
        %v4889 = vadd.f32 %v4850, %v4877
        %v4890 = vadd.f32 %v4851, %v4877
        %v4891 = vadd.f32 %v4852, %v4877
        %v4892 = vadd.f32 %v4853, %v4877
        %v4893 = vadd.f32 %v4854, %v4877
        %v4894 = vadd.f32 %v4855, %v4877
        %v4895 = vadd.f32 %v4856, %v4877
        %v4896 = vadd.f32 %v4857, %v4877
        %v4897 = vadd.f32 %v4858, %v4877
        %v4898 = vadd.f32 %v4859, %v4877
        %v4899 = vadd.f32 %v4860, %v4877
        %v4900 = vadd.f32 %v4861, %v4877
        %v4901 = vadd.f32 %v4862, %v4877
        %v4902 = vadd.f32 %v4863, %v4877
        %v4903 = vadd.f32 %v4864, %v4877
        %v4904 = vadd.f32 %v4865, %v4877
        %v4905 = vadd.f32 %v4866, %v4877
        %v4906 = vadd.f32 %v4867, %v4877
        %v4907 = vadd.f32 %v4868, %v4877
        %v4908 = vadd.f32 %v4869, %v4877
        %v4909 = vadd.f32 %v4870, %v4877
        %v4910 = vadd.f32 %v4871, %v4877
        %v4911 = vmax.f32 %v4879, 0.0
        %v4912 = vmax.f32 %v4880, 0.0
        %v4913 = vmax.f32 %v4881, 0.0
        %v4914 = vmax.f32 %v4882, 0.0
        %v4915 = vmax.f32 %v4883, 0.0
        %v4916 = vmax.f32 %v4884, 0.0
        %v4917 = vmax.f32 %v4885, 0.0
        %v4918 = vmax.f32 %v4886, 0.0
        %v4919 = vmax.f32 %v4887, 0.0
        %v4920 = vmax.f32 %v4888, 0.0
        %v4921 = vmax.f32 %v4889, 0.0
        %v4922 = vmax.f32 %v4890, 0.0
        %v4923 = vmax.f32 %v4891, 0.0
        %v4924 = vmax.f32 %v4892, 0.0
        %v4925 = vmax.f32 %v4893, 0.0
        %v4926 = vmax.f32 %v4894, 0.0
        %v4927 = vmax.f32 %v4895, 0.0
        %v4928 = vmax.f32 %v4896, 0.0
        %v4929 = vmax.f32 %v4897, 0.0
        %v4930 = vmax.f32 %v4898, 0.0
        %v4931 = vmax.f32 %v4899, 0.0
        %v4932 = vmax.f32 %v4900, 0.0
        %v4933 = vmax.f32 %v4901, 0.0
        %v4934 = vmax.f32 %v4902, 0.0
        %v4935 = vmax.f32 %v4903, 0.0
        %v4936 = vmax.f32 %v4904, 0.0
        %v4937 = vmax.f32 %v4905, 0.0
        %v4938 = vmax.f32 %v4906, 0.0
        %v4939 = vmax.f32 %v4907, 0.0
        %v4940 = vmax.f32 %v4908, 0.0
        %v4941 = vmax.f32 %v4909, 0.0
        %v4942 = vmax.f32 %v4910, 0.0
        %4943 = vst [vmem:[#allocation2] sm:$0xf] 0
        %4944 = vst [vmem:[#allocation2 + $0x4] sm:$0xf] 0
        %4945 = vst [vmem:[#allocation2 + $0x8] sm:$0x1] 0
        %4946 = vst [vmem:[#allocation2 + $0xc] sm:$0xf] 0
        %4947 = vst [vmem:[#allocation2 + $0x10] sm:$0xf] 0
        %4948 = vst [vmem:[#allocation2 + $0x14] sm:$0x1] 0
        %4949 = vst [vmem:[#allocation2 + $0x18] sm:$0xf] 0
        %4950 = vst [vmem:[#allocation2 + $0x1c] sm:$0xf] 0
        %4951 = vst [vmem:[#allocation2 + $0x20] sm:$0x1] 0
        %4952 = vst [vmem:[#allocation2 + $0x24] sm:$0xf] 0
        %4953 = vst [vmem:[#allocation2 + $0x28] sm:$0xf] 0
        %4954 = vst [vmem:[#allocation2 + $0x2c] sm:$0x1] 0
        %4955 = vst [vmem:[#allocation2 + $0x30] sm:$0xf] 0
        %4956 = vst [vmem:[#allocation2 + $0x34] sm:$0xf] 0
        %4957 = vst [vmem:[#allocation2 + $0x38] sm:$0x1] 0
        %4958 = vst [vmem:[#allocation2 + $0x3c] sm:$0xf] 0
        %4959 = vst [vmem:[#allocation2 + $0x40] sm:$0xf] 0
        %4960 = vst [vmem:[#allocation2 + $0x44] sm:$0x1] 0
        %4961 = vst [vmem:[#allocation2 + $0x48] sm:$0xf] 0
        %4962 = vst [vmem:[#allocation2 + $0x4c] sm:$0xf] 0
        %4963 = vst [vmem:[#allocation2 + $0x50] sm:$0x1] 0
        %4964 = vst [vmem:[#allocation2 + $0x54] sm:$0xf] 0
        %4965 = vst [vmem:[#allocation2 + $0x58] sm:$0xf] 0
        %4966 = vst [vmem:[#allocation2 + $0x5c] sm:$0x1] 0
        %4967 = vst [vmem:[#allocation2 + $0x60] sm:$0xf] 0
        %4968 = vst [vmem:[#allocation2 + $0x64] sm:$0xf] 0
        %4969 = vst [vmem:[#allocation2 + $0x68] sm:$0x1] 0
        %4970 = vst [vmem:[#allocation2 + $0x6c] sm:$0xf] 0
        %4971 = vst [vmem:[#allocation2 + $0x70] sm:$0xf] 0
        %4972 = vst [vmem:[#allocation2 + $0x74] sm:$0x1] 0
        %4973 = vst [vmem:[#allocation2 + $0x78] sm:$0xf] 0
        %4974 = vst [vmem:[#allocation2 + $0x7c] sm:$0xf] 0
        %4975 = vst [vmem:[#allocation2 + $0x80] sm:$0x1] 0
        %4976 = vst [vmem:[#allocation2 + $0x84] sm:$0xf] 0
        %4977 = vst [vmem:[#allocation2 + $0x88] sm:$0xf] 0
        %4978 = vst [vmem:[#allocation2 + $0x8c] sm:$0x1] 0
        %4979 = vst [vmem:[#allocation2 + $0x90] sm:$0xf] 0
        %4980 = vst [vmem:[#allocation2 + $0x94] sm:$0xf] 0
        %4981 = vst [vmem:[#allocation2 + $0x98] sm:$0x1] 0
        %4982 = vst [vmem:[#allocation2 + $0x9c] sm:$0xf] 0
        %4983 = vst [vmem:[#allocation2 + $0xa0] sm:$0xf] 0
        %4984 = vst [vmem:[#allocation2 + $0xa4] sm:$0x1] 0
        %4985 = vst [vmem:[#allocation2 + $0xa8] sm:$0xf] 0
        %4986 = vst [vmem:[#allocation2 + $0xac] sm:$0xf] 0
        %4987 = vst [vmem:[#allocation2 + $0xb0] sm:$0x1] 0
        %4988 = vst [vmem:[#allocation2 + $0xb4] sm:$0xf] 0
        %4989 = vst [vmem:[#allocation2 + $0xb8] sm:$0xf] 0
        %4990 = vst [vmem:[#allocation2 + $0xbc] sm:$0x1] 0
        %4991 = vst [vmem:[#allocation2 + $0xc0] sm:$0xf] 0
        %4992 = vst [vmem:[#allocation2 + $0xc4] sm:$0xf] 0
        %4993 = vst [vmem:[#allocation2 + $0xc8] sm:$0x1] 0
        %4994 = vst [vmem:[#allocation2 + $0xcc] sm:$0xf] 0
        %4995 = vst [vmem:[#allocation2 + $0xd0] sm:$0xf] 0
        %4996 = vst [vmem:[#allocation2 + $0xd4] sm:$0x1] 0
        %v4997 = vpack.c.bf16 %v4912, %v4911
        %v4998 = vpack.c.bf16 %v4914, %v4913
        %v4999 = vpack.c.bf16 %v4916, %v4915
        %v5000 = vpack.c.bf16 %v4918, %v4917
        %v5001 = vpack.c.bf16 %v4920, %v4919
        %v5002 = vpack.c.bf16 %v4922, %v4921
        %v5003 = vpack.c.bf16 %v4924, %v4923
        %v5004 = vpack.c.bf16 %v4926, %v4925
        %v5005 = vpack.c.bf16 %v4928, %v4927
        %v5006 = vpack.c.bf16 %v4930, %v4929
        %v5007 = vpack.c.bf16 %v4932, %v4931
        %v5008 = vpack.c.bf16 %v4934, %v4933
        %v5009 = vpack.c.bf16 %v4936, %v4935
        %v5010 = vpack.c.bf16 %v4938, %v4937
        %v5011 = vpack.c.bf16 %v4940, %v4939
        %v5012 = vpack.c.bf16 %v4942, %v4941
        %v5029 = vunpack.c.l.b16 %v4997
        %v5030 = vunpack.c.h.b16 %v4997
        %v5031 = vunpack.c.l.b16 %v4998
        %v5032 = vunpack.c.h.b16 %v4998
        %v5033 = vunpack.c.l.b16 %v4999
        %v5034 = vunpack.c.h.b16 %v4999
        %v5035 = vunpack.c.l.b16 %v5000
        %v5036 = vunpack.c.h.b16 %v5000
        %v5037 = vunpack.c.l.b16 %v5001
        %v5038 = vunpack.c.h.b16 %v5001
        %v5039 = vunpack.c.l.b16 %v5002
        %v5040 = vunpack.c.h.b16 %v5002
        %v5041 = vunpack.c.l.b16 %v5003
        %v5042 = vunpack.c.h.b16 %v5003
        %v5043 = vunpack.c.l.b16 %v5004
        %v5044 = vunpack.c.h.b16 %v5004
        %v5045 = vunpack.c.l.b16 %v5005
        %v5046 = vunpack.c.h.b16 %v5005
        %v5047 = vunpack.c.l.b16 %v5006
        %v5048 = vunpack.c.h.b16 %v5006
        %v5049 = vunpack.c.l.b16 %v5007
        %v5050 = vunpack.c.h.b16 %v5007
        %v5051 = vunpack.c.l.b16 %v5008
        %v5052 = vunpack.c.h.b16 %v5008
        %v5053 = vunpack.c.l.b16 %v5009
        %v5054 = vunpack.c.h.b16 %v5009
        %v5055 = vunpack.c.l.b16 %v5010
        %v5056 = vunpack.c.h.b16 %v5010
        %v5057 = vunpack.c.l.b16 %v5011
        %v5058 = vunpack.c.h.b16 %v5011
        %v5059 = vunpack.c.l.b16 %v5012
        %v5060 = vunpack.c.h.b16 %v5012
        %v5061 = vpack.c.b16 %v5029, %v5029
        %v5062 = vpack.c.b16 %v5030, %v5030
        %v5063 = vpack.c.b16 %v5031, %v5031
        %v5064 = vpack.c.b16 %v5032, %v5032
        %v5065 = vpack.c.b16 %v5033, %v5033
        %v5066 = vpack.c.b16 %v5034, %v5034
        %v5067 = vpack.c.b16 %v5035, %v5035
        %v5068 = vpack.c.b16 %v5036, %v5036
        %v5069 = vpack.c.b16 %v5037, %v5037
        %v5070 = vpack.c.b16 %v5038, %v5038
        %v5071 = vpack.c.b16 %v5039, %v5039
        %v5072 = vpack.c.b16 %v5040, %v5040
        %v5073 = vpack.c.b16 %v5041, %v5041
        %v5074 = vpack.c.b16 %v5042, %v5042
        %v5075 = vpack.c.b16 %v5043, %v5043
        %v5076 = vpack.c.b16 %v5044, %v5044
        %v5077 = vpack.c.b16 %v5045, %v5045
        %v5078 = vpack.c.b16 %v5046, %v5046
        %v5079 = vpack.c.b16 %v5047, %v5047
        %v5080 = vpack.c.b16 %v5048, %v5048
        %v5081 = vpack.c.b16 %v5049, %v5049
        %v5082 = vpack.c.b16 %v5050, %v5050
        %v5083 = vpack.c.b16 %v5051, %v5051
        %v5084 = vpack.c.b16 %v5052, %v5052
        %v5085 = vpack.c.b16 %v5053, %v5053
        %v5086 = vpack.c.b16 %v5054, %v5054
        %v5087 = vpack.c.b16 %v5055, %v5055
        %v5088 = vpack.c.b16 %v5056, %v5056
        %v5089 = vpack.c.b16 %v5057, %v5057
        %v5090 = vpack.c.b16 %v5058, %v5058
        %v5091 = vpack.c.b16 %v5059, %v5059
        %v5092 = vpack.c.b16 %v5060, %v5060
        %vm5093 = vsmask.f32 256
        %vm5094 = vsmask.f32 4368
        %vm5095 = vmor %vm5093, %vm5094
        %v5097 = vshrl.u32 %v5061, 16
        %v5099 = vrot.slane %v5097, 7
        %v5100 = vshll.u32 %v5061, 16
        %v5102 = vor.u32 %v5099, %v5100
        %v5103 = vrot.slane %v5099, 4
        %v5105 = vshrl.u32 %v5062, 16
        %v5107 = vrot.slane %v5105, 7
        %v5108 = vshll.u32 %v5062, 16
        %v5110 = vor.u32 %v5107, %v5108
        %v5111 = vsel %vm5095, %v5103, %v5110
        %v5112 = vrot.slane %v5107, 4
        %v5114 = vshrl.u32 %v5063, 16
        %v5116 = vrot.slane %v5114, 7
        %v5117 = vshll.u32 %v5063, 16
        %v5119 = vor.u32 %v5116, %v5117
        %v5120 = vrot.slane %v5116, 4
        %v5122 = vshrl.u32 %v5064, 16
        %v5124 = vrot.slane %v5122, 7
        %v5125 = vshll.u32 %v5064, 16
        %v5127 = vor.u32 %v5124, %v5125
        %v5128 = vsel %vm5095, %v5120, %v5127
        %v5129 = vrot.slane %v5124, 4
        %v5131 = vshrl.u32 %v5065, 16
        %v5133 = vrot.slane %v5131, 7
        %v5134 = vshll.u32 %v5065, 16
        %v5136 = vor.u32 %v5133, %v5134
        %v5137 = vrot.slane %v5133, 4
        %v5139 = vshrl.u32 %v5066, 16
        %v5141 = vrot.slane %v5139, 7
        %v5142 = vshll.u32 %v5066, 16
        %v5144 = vor.u32 %v5141, %v5142
        %v5145 = vsel %vm5095, %v5137, %v5144
        %v5146 = vrot.slane %v5141, 4
        %v5148 = vshrl.u32 %v5067, 16
        %v5150 = vrot.slane %v5148, 7
        %v5151 = vshll.u32 %v5067, 16
        %v5153 = vor.u32 %v5150, %v5151
        %v5154 = vrot.slane %v5150, 4
        %v5156 = vshrl.u32 %v5068, 16
        %v5158 = vrot.slane %v5156, 7
        %v5159 = vshll.u32 %v5068, 16
        %v5161 = vor.u32 %v5158, %v5159
        %v5162 = vsel %vm5095, %v5154, %v5161
        %v5163 = vrot.slane %v5158, 4
        %v5165 = vshrl.u32 %v5069, 16
        %v5167 = vrot.slane %v5165, 7
        %v5168 = vshll.u32 %v5069, 16
        %v5170 = vor.u32 %v5167, %v5168
        %v5171 = vrot.slane %v5167, 4
        %v5173 = vshrl.u32 %v5070, 16
        %v5175 = vrot.slane %v5173, 7
        %v5176 = vshll.u32 %v5070, 16
        %v5178 = vor.u32 %v5175, %v5176
        %v5179 = vsel %vm5095, %v5171, %v5178
        %v5180 = vrot.slane %v5175, 4
        %v5182 = vshrl.u32 %v5071, 16
        %v5184 = vrot.slane %v5182, 7
        %v5185 = vshll.u32 %v5071, 16
        %v5187 = vor.u32 %v5184, %v5185
        %v5188 = vrot.slane %v5184, 4
        %v5190 = vshrl.u32 %v5072, 16
        %v5192 = vrot.slane %v5190, 7
        %v5193 = vshll.u32 %v5072, 16
        %v5195 = vor.u32 %v5192, %v5193
        %v5196 = vsel %vm5095, %v5188, %v5195
        %v5197 = vrot.slane %v5192, 4
        %v5199 = vshrl.u32 %v5073, 16
        %v5201 = vrot.slane %v5199, 7
        %v5202 = vshll.u32 %v5073, 16
        %v5204 = vor.u32 %v5201, %v5202
        %v5205 = vrot.slane %v5201, 4
        %v5207 = vshrl.u32 %v5074, 16
        %v5209 = vrot.slane %v5207, 7
        %v5210 = vshll.u32 %v5074, 16
        %v5212 = vor.u32 %v5209, %v5210
        %v5213 = vsel %vm5095, %v5205, %v5212
        %v5214 = vrot.slane %v5209, 4
        %v5216 = vshrl.u32 %v5075, 16
        %v5218 = vrot.slane %v5216, 7
        %v5219 = vshll.u32 %v5075, 16
        %v5221 = vor.u32 %v5218, %v5219
        %v5222 = vrot.slane %v5218, 4
        %v5224 = vshrl.u32 %v5076, 16
        %v5226 = vrot.slane %v5224, 7
        %v5227 = vshll.u32 %v5076, 16
        %v5229 = vor.u32 %v5226, %v5227
        %v5230 = vsel %vm5095, %v5222, %v5229
        %v5231 = vrot.slane %v5226, 4
        %v5233 = vshrl.u32 %v5077, 16
        %v5235 = vrot.slane %v5233, 7
        %v5236 = vshll.u32 %v5077, 16
        %v5238 = vor.u32 %v5235, %v5236
        %v5239 = vrot.slane %v5235, 4
        %v5241 = vshrl.u32 %v5078, 16
        %v5243 = vrot.slane %v5241, 7
        %v5244 = vshll.u32 %v5078, 16
        %v5246 = vor.u32 %v5243, %v5244
        %v5247 = vsel %vm5095, %v5239, %v5246
        %v5248 = vrot.slane %v5243, 4
        %v5250 = vshrl.u32 %v5079, 16
        %v5252 = vrot.slane %v5250, 7
        %v5253 = vshll.u32 %v5079, 16
        %v5255 = vor.u32 %v5252, %v5253
        %v5256 = vrot.slane %v5252, 4
        %v5258 = vshrl.u32 %v5080, 16
        %v5260 = vrot.slane %v5258, 7
        %v5261 = vshll.u32 %v5080, 16
        %v5263 = vor.u32 %v5260, %v5261
        %v5264 = vsel %vm5095, %v5256, %v5263
        %v5265 = vrot.slane %v5260, 4
        %v5267 = vshrl.u32 %v5081, 16
        %v5269 = vrot.slane %v5267, 7
        %v5270 = vshll.u32 %v5081, 16
        %v5272 = vor.u32 %v5269, %v5270
        %v5273 = vrot.slane %v5269, 4
        %v5275 = vshrl.u32 %v5082, 16
        %v5277 = vrot.slane %v5275, 7
        %v5278 = vshll.u32 %v5082, 16
        %v5280 = vor.u32 %v5277, %v5278
        %v5281 = vsel %vm5095, %v5273, %v5280
        %v5282 = vrot.slane %v5277, 4
        %v5284 = vshrl.u32 %v5083, 16
        %v5286 = vrot.slane %v5284, 7
        %v5287 = vshll.u32 %v5083, 16
        %v5289 = vor.u32 %v5286, %v5287
        %v5290 = vrot.slane %v5286, 4
        %v5292 = vshrl.u32 %v5084, 16
        %v5294 = vrot.slane %v5292, 7
        %v5295 = vshll.u32 %v5084, 16
        %v5297 = vor.u32 %v5294, %v5295
        %v5298 = vsel %vm5095, %v5290, %v5297
        %v5299 = vrot.slane %v5294, 4
        %v5301 = vshrl.u32 %v5085, 16
        %v5303 = vrot.slane %v5301, 7
        %v5304 = vshll.u32 %v5085, 16
        %v5306 = vor.u32 %v5303, %v5304
        %v5307 = vrot.slane %v5303, 4
        %v5309 = vshrl.u32 %v5086, 16
        %v5311 = vrot.slane %v5309, 7
        %v5312 = vshll.u32 %v5086, 16
        %v5314 = vor.u32 %v5311, %v5312
        %v5315 = vsel %vm5095, %v5307, %v5314
        %v5316 = vrot.slane %v5311, 4
        %v5318 = vshrl.u32 %v5087, 16
        %v5320 = vrot.slane %v5318, 7
        %v5321 = vshll.u32 %v5087, 16
        %v5323 = vor.u32 %v5320, %v5321
        %v5324 = vrot.slane %v5320, 4
        %v5326 = vshrl.u32 %v5088, 16
        %v5328 = vrot.slane %v5326, 7
        %v5329 = vshll.u32 %v5088, 16
        %v5331 = vor.u32 %v5328, %v5329
        %v5332 = vsel %vm5095, %v5324, %v5331
        %v5333 = vrot.slane %v5328, 4
        %v5335 = vshrl.u32 %v5089, 16
        %v5337 = vrot.slane %v5335, 7
        %v5338 = vshll.u32 %v5089, 16
        %v5340 = vor.u32 %v5337, %v5338
        %v5341 = vrot.slane %v5337, 4
        %v5343 = vshrl.u32 %v5090, 16
        %v5345 = vrot.slane %v5343, 7
        %v5346 = vshll.u32 %v5090, 16
        %v5348 = vor.u32 %v5345, %v5346
        %v5349 = vsel %vm5095, %v5341, %v5348
        %v5350 = vrot.slane %v5345, 4
        %v5352 = vshrl.u32 %v5091, 16
        %v5354 = vrot.slane %v5352, 7
        %v5355 = vshll.u32 %v5091, 16
        %v5357 = vor.u32 %v5354, %v5355
        %v5358 = vrot.slane %v5354, 4
        %v5360 = vshrl.u32 %v5092, 16
        %v5362 = vrot.slane %v5360, 7
        %v5363 = vshll.u32 %v5092, 16
        %v5365 = vor.u32 %v5362, %v5363
        %v5366 = vsel %vm5095, %v5358, %v5365
        %v5367 = vrot.slane %v5362, 4
        %s5416 = scalar_lea.vmem [#allocation2], 12
        %vm5417 = vcmask 1043456
        %vm5418 = vsmask.f32 7938
        %vm5419 = vmand %vm5417, %vm5418
        %v5420 = vld [vmem:[%s5416] sm:$0xf]
        %v5421 = vsel %vm5419, %v5102, %v5420
        %5422 = vst [vmem:[%s5416] sm:$0xf] %v5421
        %5423 = vst [vmem:[%s5416 + $0x4] sm:$0xf] %v5111
        %vm5424 = vcmask 1040384
        %vm5425 = vmand %vm5424, %vm5093
        %v5426 = vld [vmem:[%s5416 + $0x8] sm:$0x1]
        %v5427 = vsel %vm5425, %v5112, %v5426
        %5428 = vst [vmem:[%s5416 + $0x8] sm:$0x1] %v5427
        %v5429 = vld [vmem:[%s5416 + $0xc] sm:$0xf]
        %v5430 = vsel %vm5419, %v5119, %v5429
        %5431 = vst [vmem:[%s5416 + $0xc] sm:$0xf] %v5430
        %5432 = vst [vmem:[%s5416 + $0x10] sm:$0xf] %v5128
        %v5433 = vld [vmem:[%s5416 + $0x14] sm:$0x1]
        %v5434 = vsel %vm5425, %v5129, %v5433
        %5435 = vst [vmem:[%s5416 + $0x14] sm:$0x1] %v5434
        %v5436 = vld [vmem:[%s5416 + $0x18] sm:$0xf]
        %v5437 = vsel %vm5419, %v5136, %v5436
        %5438 = vst [vmem:[%s5416 + $0x18] sm:$0xf] %v5437
        %5439 = vst [vmem:[%s5416 + $0x1c] sm:$0xf] %v5145
        %v5440 = vld [vmem:[%s5416 + $0x20] sm:$0x1]
        %v5441 = vsel %vm5425, %v5146, %v5440
        %5442 = vst [vmem:[%s5416 + $0x20] sm:$0x1] %v5441
        %v5443 = vld [vmem:[%s5416 + $0x24] sm:$0xf]
        %v5444 = vsel %vm5419, %v5153, %v5443
        %5445 = vst [vmem:[%s5416 + $0x24] sm:$0xf] %v5444
        %5446 = vst [vmem:[%s5416 + $0x28] sm:$0xf] %v5162
        %v5447 = vld [vmem:[%s5416 + $0x2c] sm:$0x1]
        %v5448 = vsel %vm5425, %v5163, %v5447
        %5449 = vst [vmem:[%s5416 + $0x2c] sm:$0x1] %v5448
        %v5450 = vld [vmem:[%s5416 + $0x30] sm:$0xf]
        %v5451 = vsel %vm5419, %v5170, %v5450
        %5452 = vst [vmem:[%s5416 + $0x30] sm:$0xf] %v5451
        %5453 = vst [vmem:[%s5416 + $0x34] sm:$0xf] %v5179
        %v5454 = vld [vmem:[%s5416 + $0x38] sm:$0x1]
        %v5455 = vsel %vm5425, %v5180, %v5454
        %5456 = vst [vmem:[%s5416 + $0x38] sm:$0x1] %v5455
        %v5457 = vld [vmem:[%s5416 + $0x3c] sm:$0xf]
        %v5458 = vsel %vm5419, %v5187, %v5457
        %5459 = vst [vmem:[%s5416 + $0x3c] sm:$0xf] %v5458
        %5460 = vst [vmem:[%s5416 + $0x40] sm:$0xf] %v5196
        %v5461 = vld [vmem:[%s5416 + $0x44] sm:$0x1]
        %v5462 = vsel %vm5425, %v5197, %v5461
        %5463 = vst [vmem:[%s5416 + $0x44] sm:$0x1] %v5462
        %v5464 = vld [vmem:[%s5416 + $0x48] sm:$0xf]
        %v5465 = vsel %vm5419, %v5204, %v5464
        %5466 = vst [vmem:[%s5416 + $0x48] sm:$0xf] %v5465
        %5467 = vst [vmem:[%s5416 + $0x4c] sm:$0xf] %v5213
        %v5468 = vld [vmem:[%s5416 + $0x50] sm:$0x1]
        %v5469 = vsel %vm5425, %v5214, %v5468
        %5470 = vst [vmem:[%s5416 + $0x50] sm:$0x1] %v5469
        %v5471 = vld [vmem:[%s5416 + $0x54] sm:$0xf]
        %v5472 = vsel %vm5419, %v5221, %v5471
        %5473 = vst [vmem:[%s5416 + $0x54] sm:$0xf] %v5472
        %5474 = vst [vmem:[%s5416 + $0x58] sm:$0xf] %v5230
        %v5475 = vld [vmem:[%s5416 + $0x5c] sm:$0x1]
        %v5476 = vsel %vm5425, %v5231, %v5475
        %5477 = vst [vmem:[%s5416 + $0x5c] sm:$0x1] %v5476
        %v5478 = vld [vmem:[%s5416 + $0x60] sm:$0xf]
        %v5479 = vsel %vm5419, %v5238, %v5478
        %5480 = vst [vmem:[%s5416 + $0x60] sm:$0xf] %v5479
        %5481 = vst [vmem:[%s5416 + $0x64] sm:$0xf] %v5247
        %v5482 = vld [vmem:[%s5416 + $0x68] sm:$0x1]
        %v5483 = vsel %vm5425, %v5248, %v5482
        %5484 = vst [vmem:[%s5416 + $0x68] sm:$0x1] %v5483
        %v5485 = vld [vmem:[%s5416 + $0x6c] sm:$0xf]
        %v5486 = vsel %vm5419, %v5255, %v5485
        %5487 = vst [vmem:[%s5416 + $0x6c] sm:$0xf] %v5486
        %5488 = vst [vmem:[%s5416 + $0x70] sm:$0xf] %v5264
        %v5489 = vld [vmem:[%s5416 + $0x74] sm:$0x1]
        %v5490 = vsel %vm5425, %v5265, %v5489
        %5491 = vst [vmem:[%s5416 + $0x74] sm:$0x1] %v5490
        %v5492 = vld [vmem:[%s5416 + $0x78] sm:$0xf]
        %v5493 = vsel %vm5419, %v5272, %v5492
        %5494 = vst [vmem:[%s5416 + $0x78] sm:$0xf] %v5493
        %5495 = vst [vmem:[%s5416 + $0x7c] sm:$0xf] %v5281
        %v5496 = vld [vmem:[%s5416 + $0x80] sm:$0x1]
        %v5497 = vsel %vm5425, %v5282, %v5496
        %5498 = vst [vmem:[%s5416 + $0x80] sm:$0x1] %v5497
        %v5499 = vld [vmem:[%s5416 + $0x84] sm:$0xf]
        %v5500 = vsel %vm5419, %v5289, %v5499
        %5501 = vst [vmem:[%s5416 + $0x84] sm:$0xf] %v5500
        %5502 = vst [vmem:[%s5416 + $0x88] sm:$0xf] %v5298
        %v5503 = vld [vmem:[%s5416 + $0x8c] sm:$0x1]
        %v5504 = vsel %vm5425, %v5299, %v5503
        %5505 = vst [vmem:[%s5416 + $0x8c] sm:$0x1] %v5504
        %v5506 = vld [vmem:[%s5416 + $0x90] sm:$0xf]
        %v5507 = vsel %vm5419, %v5306, %v5506
        %5508 = vst [vmem:[%s5416 + $0x90] sm:$0xf] %v5507
        %5509 = vst [vmem:[%s5416 + $0x94] sm:$0xf] %v5315
        %v5510 = vld [vmem:[%s5416 + $0x98] sm:$0x1]
        %v5511 = vsel %vm5425, %v5316, %v5510
        %5512 = vst [vmem:[%s5416 + $0x98] sm:$0x1] %v5511
        %v5513 = vld [vmem:[%s5416 + $0x9c] sm:$0xf]
        %v5514 = vsel %vm5419, %v5323, %v5513
        %5515 = vst [vmem:[%s5416 + $0x9c] sm:$0xf] %v5514
        %5516 = vst [vmem:[%s5416 + $0xa0] sm:$0xf] %v5332
        %v5517 = vld [vmem:[%s5416 + $0xa4] sm:$0x1]
        %v5518 = vsel %vm5425, %v5333, %v5517
        %5519 = vst [vmem:[%s5416 + $0xa4] sm:$0x1] %v5518
        %v5520 = vld [vmem:[%s5416 + $0xa8] sm:$0xf]
        %v5521 = vsel %vm5419, %v5340, %v5520
        %5522 = vst [vmem:[%s5416 + $0xa8] sm:$0xf] %v5521
        %5523 = vst [vmem:[%s5416 + $0xac] sm:$0xf] %v5349
        %v5524 = vld [vmem:[%s5416 + $0xb0] sm:$0x1]
        %v5525 = vsel %vm5425, %v5350, %v5524
        %5526 = vst [vmem:[%s5416 + $0xb0] sm:$0x1] %v5525
        %v5527 = vld [vmem:[%s5416 + $0xb4] sm:$0xf]
        %v5528 = vsel %vm5419, %v5357, %v5527
        %5529 = vst [vmem:[%s5416 + $0xb4] sm:$0xf] %v5528
        %5530 = vst [vmem:[%s5416 + $0xb8] sm:$0xf] %v5366
        %v5531 = vld [vmem:[%s5416 + $0xbc] sm:$0x1]
        %v5532 = vsel %vm5425, %v5367, %v5531
        %5533 = vst [vmem:[%s5416 + $0xbc] sm:$0x1] %v5532
        %v5534 = vld [vmem:[#allocation2] sm:$0xf]
        %v5535 = vld [vmem:[#allocation2 + $0x4] sm:$0xf]
        %v5536 = vld [vmem:[#allocation2 + $0xc] sm:$0xf]
        %v5537 = vld [vmem:[#allocation2 + $0x10] sm:$0xf]
        %v5538 = vld [vmem:[#allocation2 + $0x18] sm:$0xf]
        %v5539 = vld [vmem:[#allocation2 + $0x1c] sm:$0xf]
        %v5540 = vld [vmem:[#allocation2 + $0x24] sm:$0xf]
        %v5541 = vld [vmem:[#allocation2 + $0x28] sm:$0xf]
        %v5542 = vld [vmem:[#allocation2 + $0x30] sm:$0xf]
        %v5543 = vld [vmem:[#allocation2 + $0x34] sm:$0xf]
        %v5544 = vld [vmem:[#allocation2 + $0x3c] sm:$0xf]
        %v5545 = vld [vmem:[#allocation2 + $0x40] sm:$0xf]
        %v5546 = vld [vmem:[#allocation2 + $0x48] sm:$0xf]
        %v5547 = vld [vmem:[#allocation2 + $0x4c] sm:$0xf]
        %v5548 = vld [vmem:[#allocation2 + $0x54] sm:$0xf]
        %v5549 = vld [vmem:[#allocation2 + $0x58] sm:$0xf]
        %v5550 = vld [vmem:[#allocation2 + $0x60] sm:$0xf]
        %v5551 = vld [vmem:[#allocation2 + $0x64] sm:$0xf]
        %v5552 = vld [vmem:[#allocation2 + $0x6c] sm:$0xf]
        %v5553 = vld [vmem:[#allocation2 + $0x70] sm:$0xf]
        %v5554 = vld [vmem:[#allocation2 + $0x78] sm:$0xf]
        %v5555 = vld [vmem:[#allocation2 + $0x7c] sm:$0xf]
        %v5556 = vld [vmem:[#allocation2 + $0x84] sm:$0xf]
        %v5557 = vld [vmem:[#allocation2 + $0x88] sm:$0xf]
        %v5558 = vld [vmem:[#allocation2 + $0x90] sm:$0xf]
        %v5559 = vld [vmem:[#allocation2 + $0x94] sm:$0xf]
        %v5560 = vld [vmem:[#allocation2 + $0x9c] sm:$0xf]
        %v5561 = vld [vmem:[#allocation2 + $0xa0] sm:$0xf]
        %v5562 = vld [vmem:[#allocation2 + $0xa8] sm:$0xf]
        %v5563 = vld [vmem:[#allocation2 + $0xac] sm:$0xf]
        %v5564 = vld [vmem:[#allocation2 + $0xb4] sm:$0xf]
        %v5565 = vld [vmem:[#allocation2 + $0xb8] sm:$0xf]
        %v5566 = vld [vmem:[#allocation6] sm:$0xf]
        %v5567 = vld [vmem:[#allocation6 + $0x4] sm:$0xf]
        %v5568 = vld [vmem:[#allocation6 + $0x8] sm:$0xf]
        %v5569 = vld [vmem:[#allocation6 + $0xc] sm:$0xf]
        %v5570 = vld [vmem:[#allocation6 + $0x10] sm:$0xf]
        %v5571 = vld [vmem:[#allocation6 + $0x14] sm:$0xf]
        %v5572 = vld [vmem:[#allocation6 + $0x18] sm:$0xf]
        %v5573 = vld [vmem:[#allocation6 + $0x1c] sm:$0xf]
        %v5574 = vld [vmem:[#allocation6 + $0x20] sm:$0xf]
        %v5575 = vld [vmem:[#allocation6 + $0x24] sm:$0xf]
        %v5576 = vld [vmem:[#allocation6 + $0x28] sm:$0xf]
        %v5577 = vld [vmem:[#allocation6 + $0x2c] sm:$0xf]
        %v5578 = vld [vmem:[#allocation6 + $0x30] sm:$0xf]
        %v5579 = vld [vmem:[#allocation6 + $0x34] sm:$0xf]
        %v5580 = vld [vmem:[#allocation6 + $0x38] sm:$0xf]
        %v5581 = vld [vmem:[#allocation6 + $0x3c] sm:$0xf]
        %v5582 = vld [vmem:[#allocation2 + $0x8] sm:$0x1]
        %v5583 = vld [vmem:[#allocation2 + $0x14] sm:$0x1]
        %v5584 = vld [vmem:[#allocation2 + $0x20] sm:$0x1]
        %v5585 = vld [vmem:[#allocation2 + $0x2c] sm:$0x1]
        %v5586 = vld [vmem:[#allocation2 + $0x38] sm:$0x1]
        %v5587 = vld [vmem:[#allocation2 + $0x44] sm:$0x1]
        %v5588 = vld [vmem:[#allocation2 + $0x50] sm:$0x1]
        %v5589 = vld [vmem:[#allocation2 + $0x5c] sm:$0x1]
        %v5590 = vld [vmem:[#allocation2 + $0x68] sm:$0x1]
        %v5591 = vld [vmem:[#allocation2 + $0x74] sm:$0x1]
        %v5592 = vld [vmem:[#allocation2 + $0x80] sm:$0x1]
        %v5593 = vld [vmem:[#allocation2 + $0x8c] sm:$0x1]
        %v5594 = vld [vmem:[#allocation2 + $0x98] sm:$0x1]
        %v5595 = vld [vmem:[#allocation2 + $0xa4] sm:$0x1]
        %v5596 = vld [vmem:[#allocation2 + $0xb0] sm:$0x1]
        %v5597 = vld [vmem:[#allocation2 + $0xbc] sm:$0x1]
        %v5599 = vshrl.u32 %v5534, 16
        %v5601 = vrot.slane %v5599, 4
        %v5602 = vshll.u32 %v5534, 16
        %v5604 = vrot.slane %v5602, 5
        %v5605 = vor.u32 %v5601, %v5604
        %v5606 = vrot.slane %v5605, 4
        %v5608 = vshll.u32 %v5535, 16
        %v5610 = vrot.slane %v5608, 5
        %v5611 = vsel %vm364, %v5606, %v5610
        %v5612 = vshrl.u32 %v5535, 16
        %v5614 = vrot.slane %v5612, 4
        %v5615 = vor.u32 %v5614, %v5610
        %v5616 = vrot.slane %v5615, 4
        %v5618 = vshll.u32 %v5582, 16
        %v5620 = vrot.slane %v5618, 5
        %v5621 = vsel %vm364, %v5616, %v5620
        %v5623 = vshrl.u32 %v5536, 16
        %v5625 = vrot.slane %v5623, 4
        %v5626 = vshll.u32 %v5536, 16
        %v5628 = vrot.slane %v5626, 5
        %v5629 = vor.u32 %v5625, %v5628
        %v5630 = vrot.slane %v5629, 4
        %v5632 = vshll.u32 %v5537, 16
        %v5634 = vrot.slane %v5632, 5
        %v5635 = vsel %vm364, %v5630, %v5634
        %v5636 = vshrl.u32 %v5537, 16
        %v5638 = vrot.slane %v5636, 4
        %v5639 = vor.u32 %v5638, %v5634
        %v5640 = vrot.slane %v5639, 4
        %v5642 = vshll.u32 %v5583, 16
        %v5644 = vrot.slane %v5642, 5
        %v5645 = vsel %vm364, %v5640, %v5644
        %v5647 = vshrl.u32 %v5538, 16
        %v5649 = vrot.slane %v5647, 4
        %v5650 = vshll.u32 %v5538, 16
        %v5652 = vrot.slane %v5650, 5
        %v5653 = vor.u32 %v5649, %v5652
        %v5654 = vrot.slane %v5653, 4
        %v5656 = vshll.u32 %v5539, 16
        %v5658 = vrot.slane %v5656, 5
        %v5659 = vsel %vm364, %v5654, %v5658
        %v5660 = vshrl.u32 %v5539, 16
        %v5662 = vrot.slane %v5660, 4
        %v5663 = vor.u32 %v5662, %v5658
        %v5664 = vrot.slane %v5663, 4
        %v5666 = vshll.u32 %v5584, 16
        %v5668 = vrot.slane %v5666, 5
        %v5669 = vsel %vm364, %v5664, %v5668
        %v5671 = vshrl.u32 %v5540, 16
        %v5673 = vrot.slane %v5671, 4
        %v5674 = vshll.u32 %v5540, 16
        %v5676 = vrot.slane %v5674, 5
        %v5677 = vor.u32 %v5673, %v5676
        %v5678 = vrot.slane %v5677, 4
        %v5680 = vshll.u32 %v5541, 16
        %v5682 = vrot.slane %v5680, 5
        %v5683 = vsel %vm364, %v5678, %v5682
        %v5684 = vshrl.u32 %v5541, 16
        %v5686 = vrot.slane %v5684, 4
        %v5687 = vor.u32 %v5686, %v5682
        %v5688 = vrot.slane %v5687, 4
        %v5690 = vshll.u32 %v5585, 16
        %v5692 = vrot.slane %v5690, 5
        %v5693 = vsel %vm364, %v5688, %v5692
        %v5695 = vshrl.u32 %v5542, 16
        %v5697 = vrot.slane %v5695, 4
        %v5698 = vshll.u32 %v5542, 16
        %v5700 = vrot.slane %v5698, 5
        %v5701 = vor.u32 %v5697, %v5700
        %v5702 = vrot.slane %v5701, 4
        %v5704 = vshll.u32 %v5543, 16
        %v5706 = vrot.slane %v5704, 5
        %v5707 = vsel %vm364, %v5702, %v5706
        %v5708 = vshrl.u32 %v5543, 16
        %v5710 = vrot.slane %v5708, 4
        %v5711 = vor.u32 %v5710, %v5706
        %v5712 = vrot.slane %v5711, 4
        %v5714 = vshll.u32 %v5586, 16
        %v5716 = vrot.slane %v5714, 5
        %v5717 = vsel %vm364, %v5712, %v5716
        %v5719 = vshrl.u32 %v5544, 16
        %v5721 = vrot.slane %v5719, 4
        %v5722 = vshll.u32 %v5544, 16
        %v5724 = vrot.slane %v5722, 5
        %v5725 = vor.u32 %v5721, %v5724
        %v5726 = vrot.slane %v5725, 4
        %v5728 = vshll.u32 %v5545, 16
        %v5730 = vrot.slane %v5728, 5
        %v5731 = vsel %vm364, %v5726, %v5730
        %v5732 = vshrl.u32 %v5545, 16
        %v5734 = vrot.slane %v5732, 4
        %v5735 = vor.u32 %v5734, %v5730
        %v5736 = vrot.slane %v5735, 4
        %v5738 = vshll.u32 %v5587, 16
        %v5740 = vrot.slane %v5738, 5
        %v5741 = vsel %vm364, %v5736, %v5740
        %v5743 = vshrl.u32 %v5546, 16
        %v5745 = vrot.slane %v5743, 4
        %v5746 = vshll.u32 %v5546, 16
        %v5748 = vrot.slane %v5746, 5
        %v5749 = vor.u32 %v5745, %v5748
        %v5750 = vrot.slane %v5749, 4
        %v5752 = vshll.u32 %v5547, 16
        %v5754 = vrot.slane %v5752, 5
        %v5755 = vsel %vm364, %v5750, %v5754
        %v5756 = vshrl.u32 %v5547, 16
        %v5758 = vrot.slane %v5756, 4
        %v5759 = vor.u32 %v5758, %v5754
        %v5760 = vrot.slane %v5759, 4
        %v5762 = vshll.u32 %v5588, 16
        %v5764 = vrot.slane %v5762, 5
        %v5765 = vsel %vm364, %v5760, %v5764
        %v5767 = vshrl.u32 %v5548, 16
        %v5769 = vrot.slane %v5767, 4
        %v5770 = vshll.u32 %v5548, 16
        %v5772 = vrot.slane %v5770, 5
        %v5773 = vor.u32 %v5769, %v5772
        %v5774 = vrot.slane %v5773, 4
        %v5776 = vshll.u32 %v5549, 16
        %v5778 = vrot.slane %v5776, 5
        %v5779 = vsel %vm364, %v5774, %v5778
        %v5780 = vshrl.u32 %v5549, 16
        %v5782 = vrot.slane %v5780, 4
        %v5783 = vor.u32 %v5782, %v5778
        %v5784 = vrot.slane %v5783, 4
        %v5786 = vshll.u32 %v5589, 16
        %v5788 = vrot.slane %v5786, 5
        %v5789 = vsel %vm364, %v5784, %v5788
        %v5791 = vshrl.u32 %v5550, 16
        %v5793 = vrot.slane %v5791, 4
        %v5794 = vshll.u32 %v5550, 16
        %v5796 = vrot.slane %v5794, 5
        %v5797 = vor.u32 %v5793, %v5796
        %v5798 = vrot.slane %v5797, 4
        %v5800 = vshll.u32 %v5551, 16
        %v5802 = vrot.slane %v5800, 5
        %v5803 = vsel %vm364, %v5798, %v5802
        %v5804 = vshrl.u32 %v5551, 16
        %v5806 = vrot.slane %v5804, 4
        %v5807 = vor.u32 %v5806, %v5802
        %v5808 = vrot.slane %v5807, 4
        %v5810 = vshll.u32 %v5590, 16
        %v5812 = vrot.slane %v5810, 5
        %v5813 = vsel %vm364, %v5808, %v5812
        %v5815 = vshrl.u32 %v5552, 16
        %v5817 = vrot.slane %v5815, 4
        %v5818 = vshll.u32 %v5552, 16
        %v5820 = vrot.slane %v5818, 5
        %v5821 = vor.u32 %v5817, %v5820
        %v5822 = vrot.slane %v5821, 4
        %v5824 = vshll.u32 %v5553, 16
        %v5826 = vrot.slane %v5824, 5
        %v5827 = vsel %vm364, %v5822, %v5826
        %v5828 = vshrl.u32 %v5553, 16
        %v5830 = vrot.slane %v5828, 4
        %v5831 = vor.u32 %v5830, %v5826
        %v5832 = vrot.slane %v5831, 4
        %v5834 = vshll.u32 %v5591, 16
        %v5836 = vrot.slane %v5834, 5
        %v5837 = vsel %vm364, %v5832, %v5836
        %v5839 = vshrl.u32 %v5554, 16
        %v5841 = vrot.slane %v5839, 4
        %v5842 = vshll.u32 %v5554, 16
        %v5844 = vrot.slane %v5842, 5
        %v5845 = vor.u32 %v5841, %v5844
        %v5846 = vrot.slane %v5845, 4
        %v5848 = vshll.u32 %v5555, 16
        %v5850 = vrot.slane %v5848, 5
        %v5851 = vsel %vm364, %v5846, %v5850
        %v5852 = vshrl.u32 %v5555, 16
        %v5854 = vrot.slane %v5852, 4
        %v5855 = vor.u32 %v5854, %v5850
        %v5856 = vrot.slane %v5855, 4
        %v5858 = vshll.u32 %v5592, 16
        %v5860 = vrot.slane %v5858, 5
        %v5861 = vsel %vm364, %v5856, %v5860
        %v5863 = vshrl.u32 %v5556, 16
        %v5865 = vrot.slane %v5863, 4
        %v5866 = vshll.u32 %v5556, 16
        %v5868 = vrot.slane %v5866, 5
        %v5869 = vor.u32 %v5865, %v5868
        %v5870 = vrot.slane %v5869, 4
        %v5872 = vshll.u32 %v5557, 16
        %v5874 = vrot.slane %v5872, 5
        %v5875 = vsel %vm364, %v5870, %v5874
        %v5876 = vshrl.u32 %v5557, 16
        %v5878 = vrot.slane %v5876, 4
        %v5879 = vor.u32 %v5878, %v5874
        %v5880 = vrot.slane %v5879, 4
        %v5882 = vshll.u32 %v5593, 16
        %v5884 = vrot.slane %v5882, 5
        %v5885 = vsel %vm364, %v5880, %v5884
        %v5887 = vshrl.u32 %v5558, 16
        %v5889 = vrot.slane %v5887, 4
        %v5890 = vshll.u32 %v5558, 16
        %v5892 = vrot.slane %v5890, 5
        %v5893 = vor.u32 %v5889, %v5892
        %v5894 = vrot.slane %v5893, 4
        %v5896 = vshll.u32 %v5559, 16
        %v5898 = vrot.slane %v5896, 5
        %v5899 = vsel %vm364, %v5894, %v5898
        %v5900 = vshrl.u32 %v5559, 16
        %v5902 = vrot.slane %v5900, 4
        %v5903 = vor.u32 %v5902, %v5898
        %v5904 = vrot.slane %v5903, 4
        %v5906 = vshll.u32 %v5594, 16
        %v5908 = vrot.slane %v5906, 5
        %v5909 = vsel %vm364, %v5904, %v5908
        %v5911 = vshrl.u32 %v5560, 16
        %v5913 = vrot.slane %v5911, 4
        %v5914 = vshll.u32 %v5560, 16
        %v5916 = vrot.slane %v5914, 5
        %v5917 = vor.u32 %v5913, %v5916
        %v5918 = vrot.slane %v5917, 4
        %v5920 = vshll.u32 %v5561, 16
        %v5922 = vrot.slane %v5920, 5
        %v5923 = vsel %vm364, %v5918, %v5922
        %v5924 = vshrl.u32 %v5561, 16
        %v5926 = vrot.slane %v5924, 4
        %v5927 = vor.u32 %v5926, %v5922
        %v5928 = vrot.slane %v5927, 4
        %v5930 = vshll.u32 %v5595, 16
        %v5932 = vrot.slane %v5930, 5
        %v5933 = vsel %vm364, %v5928, %v5932
        %v5935 = vshrl.u32 %v5562, 16
        %v5937 = vrot.slane %v5935, 4
        %v5938 = vshll.u32 %v5562, 16
        %v5940 = vrot.slane %v5938, 5
        %v5941 = vor.u32 %v5937, %v5940
        %v5942 = vrot.slane %v5941, 4
        %v5944 = vshll.u32 %v5563, 16
        %v5946 = vrot.slane %v5944, 5
        %v5947 = vsel %vm364, %v5942, %v5946
        %v5948 = vshrl.u32 %v5563, 16
        %v5950 = vrot.slane %v5948, 4
        %v5951 = vor.u32 %v5950, %v5946
        %v5952 = vrot.slane %v5951, 4
        %v5954 = vshll.u32 %v5596, 16
        %v5956 = vrot.slane %v5954, 5
        %v5957 = vsel %vm364, %v5952, %v5956
        %v5959 = vshrl.u32 %v5564, 16
        %v5961 = vrot.slane %v5959, 4
        %v5962 = vshll.u32 %v5564, 16
        %v5964 = vrot.slane %v5962, 5
        %v5965 = vor.u32 %v5961, %v5964
        %v5966 = vrot.slane %v5965, 4
        %v5968 = vshll.u32 %v5565, 16
        %v5970 = vrot.slane %v5968, 5
        %v5971 = vsel %vm364, %v5966, %v5970
        %v5972 = vshrl.u32 %v5565, 16
        %v5974 = vrot.slane %v5972, 4
        %v5975 = vor.u32 %v5974, %v5970
        %v5976 = vrot.slane %v5975, 4
        %v5978 = vshll.u32 %v5597, 16
        %v5980 = vrot.slane %v5978, 5
        %v5981 = vsel %vm364, %v5976, %v5980
        %s5982 = scalar_lea.vmem [#allocation6], 64
        %v5983 = vld [vmem:[%s5982] sm:$0xf]
        %v5984 = vld [vmem:[%s5982 + $0x4] sm:$0xf]
        %v5985 = vld [vmem:[%s5982 + $0x8] sm:$0xf]
        %v5986 = vld [vmem:[%s5982 + $0xc] sm:$0xf]
        %v5987 = vld [vmem:[%s5982 + $0x10] sm:$0xf]
        %v5988 = vld [vmem:[%s5982 + $0x14] sm:$0xf]
        %v5989 = vld [vmem:[%s5982 + $0x18] sm:$0xf]
        %v5990 = vld [vmem:[%s5982 + $0x1c] sm:$0xf]
        %v5991 = vld [vmem:[%s5982 + $0x20] sm:$0xf]
        %v5992 = vld [vmem:[%s5982 + $0x24] sm:$0xf]
        %v5993 = vld [vmem:[%s5982 + $0x28] sm:$0xf]
        %v5994 = vld [vmem:[%s5982 + $0x2c] sm:$0xf]
        %v5995 = vld [vmem:[%s5982 + $0x30] sm:$0xf]
        %v5996 = vld [vmem:[%s5982 + $0x34] sm:$0xf]
        %v5997 = vld [vmem:[%s5982 + $0x38] sm:$0xf]
        %v5998 = vld [vmem:[%s5982 + $0x3c] sm:$0xf]
        %v5999 = vunpack.c.l.b16 %v5611
        %v6000 = vunpack.c.l.b16 %v5621
        %v6001 = vunpack.c.l.b16 %v5635
        %v6002 = vunpack.c.l.b16 %v5645
        %v6003 = vunpack.c.l.b16 %v5659
        %v6004 = vunpack.c.l.b16 %v5669
        %v6005 = vunpack.c.l.b16 %v5683
        %v6006 = vunpack.c.l.b16 %v5693
        %v6007 = vunpack.c.l.b16 %v5707
        %v6008 = vunpack.c.l.b16 %v5717
        %v6009 = vunpack.c.l.b16 %v5731
        %v6010 = vunpack.c.l.b16 %v5741
        %v6011 = vunpack.c.l.b16 %v5755
        %v6012 = vunpack.c.l.b16 %v5765
        %v6013 = vunpack.c.l.b16 %v5779
        %v6014 = vunpack.c.l.b16 %v5789
        %v6015 = vunpack.c.l.b16 %v5803
        %v6016 = vunpack.c.l.b16 %v5813
        %v6017 = vunpack.c.l.b16 %v5827
        %v6018 = vunpack.c.l.b16 %v5837
        %v6019 = vunpack.c.l.b16 %v5851
        %v6020 = vunpack.c.l.b16 %v5861
        %v6021 = vunpack.c.l.b16 %v5875
        %v6022 = vunpack.c.l.b16 %v5885
        %v6023 = vunpack.c.l.b16 %v5899
        %v6024 = vunpack.c.l.b16 %v5909
        %v6025 = vunpack.c.l.b16 %v5923
        %v6026 = vunpack.c.l.b16 %v5933
        %v6027 = vunpack.c.l.b16 %v5947
        %v6028 = vunpack.c.l.b16 %v5957
        %v6029 = vunpack.c.l.b16 %v5971
        %v6030 = vunpack.c.l.b16 %v5981
        %v6031 = vpack.c.b16 %v6000, %v5999
        %v6032 = vpack.c.b16 %v6002, %v6001
        %v6033 = vpack.c.b16 %v6004, %v6003
        %v6034 = vpack.c.b16 %v6006, %v6005
        %v6035 = vpack.c.b16 %v6008, %v6007
        %v6036 = vpack.c.b16 %v6010, %v6009
        %v6037 = vpack.c.b16 %v6012, %v6011
        %v6038 = vpack.c.b16 %v6014, %v6013
        %v6039 = vpack.c.b16 %v6016, %v6015
        %v6040 = vpack.c.b16 %v6018, %v6017
        %v6041 = vpack.c.b16 %v6020, %v6019
        %v6042 = vpack.c.b16 %v6022, %v6021
        %v6043 = vpack.c.b16 %v6024, %v6023
        %v6044 = vpack.c.b16 %v6026, %v6025
        %v6045 = vpack.c.b16 %v6028, %v6027
        %v6046 = vpack.c.b16 %v6030, %v6029
        %v6079 = vunpack.c.l.b16 %v5983
        %v6080 = vunpack.c.l.b16 %v5984
        %v6081 = vunpack.c.l.b16 %v5985
        %v6082 = vunpack.c.l.b16 %v5986
        %v6083 = vunpack.c.l.b16 %v5987
        %v6084 = vunpack.c.l.b16 %v5988
        %v6085 = vunpack.c.l.b16 %v5989
        %v6086 = vunpack.c.l.b16 %v5990
        %v6087 = vunpack.c.l.b16 %v5991
        %v6088 = vunpack.c.l.b16 %v5992
        %v6089 = vunpack.c.l.b16 %v5993
        %v6090 = vunpack.c.l.b16 %v5994
        %v6091 = vunpack.c.l.b16 %v5995
        %v6092 = vunpack.c.l.b16 %v5996
        %v6093 = vunpack.c.l.b16 %v5997
        %v6094 = vunpack.c.l.b16 %v5998
        %v6095 = vpack.c.b16 %v6080, %v6079
        %v6096 = vpack.c.b16 %v6082, %v6081
        %v6097 = vpack.c.b16 %v6084, %v6083
        %v6098 = vpack.c.b16 %v6086, %v6085
        %v6099 = vpack.c.b16 %v6088, %v6087
        %v6100 = vpack.c.b16 %v6090, %v6089
        %v6101 = vpack.c.b16 %v6092, %v6091
        %v6102 = vpack.c.b16 %v6094, %v6093
        %6111 = vmatprep.subr.bf16.mxu0 0
        %6112 = vmatpush1.bf16.msra.mxu0 %v6102
        %6113 = vmatprep.subr.bf16.mxu0 0
        %6114 = vmatpush1.bf16.msra.mxu0 %v6101
        %6115 = vmatprep.subr.bf16.mxu0 0
        %6116 = vmatpush1.bf16.msra.mxu0 %v6100
        %6117 = vmatprep.subr.bf16.mxu0 0
        %6118 = vmatpush1.bf16.msra.mxu0 %v6099
        %6119 = vmatprep.subr.bf16.mxu0 0
        %6120 = vmatpush1.bf16.msra.mxu0 %v6098
        %6121 = vmatprep.subr.bf16.mxu0 0
        %6122 = vmatpush1.bf16.msra.mxu0 %v6097
        %6123 = vmatprep.subr.bf16.mxu0 0
        %6124 = vmatpush1.bf16.msra.mxu0 %v6096
        %6125 = vmatprep.subr.bf16.mxu0 0
        %6126 = vmatpush1.bf16.msra.mxu0 %v6095
        %6127 = vmatprep.subr.bf16.mxu0 0
        %6128 = vmatpush2.bf16.msra.mxu0 0
        %6129 = vmatprep.subr.bf16.mxu0 0
        %6130 = vmatpush2.bf16.msra.mxu0 0
        %6131 = vmatprep.subr.bf16.mxu0 0
        %6132 = vmatpush2.bf16.msra.mxu0 0
        %6133 = vmatprep.subr.bf16.mxu0 0
        %6134 = vmatpush2.bf16.msra.mxu0 0
        %6135 = vmatprep.subr.bf16.mxu0 0
        %6136 = vmatpush2.bf16.msra.mxu0 0
        %6137 = vmatprep.subr.bf16.mxu0 0
        %6138 = vmatpush2.bf16.msra.mxu0 0
        %6139 = vmatprep.subr.bf16.mxu0 0
        %6140 = vmatpush2.bf16.msra.mxu0 0
        %6141 = vmatprep.subr.bf16.mxu0 0
        %6142 = vmatpush2.bf16.msra.mxu0 0
        %6143 = vmatprep.mubr.bf16.mxu0 0
        %6144 = vmatmul.mubr.bf16.gmra.mxu0 %v6031
        %v6145 = vpop.f32.mrf.mxu0
        %v6146 = vadd.f32 0.0, %v6145
        %v6147 = vpop.f32.mrf.mxu0
        %v6148 = vpop.f32.mrf.mxu0
        %v6149 = vadd.f32 0.0, %v6148
        %v6150 = vpop.f32.mrf.mxu0
        %6151 = vmatprep.mubr.bf16.mxu0 0
        %6152 = vmatmul.mubr.bf16.gmra.mxu0 %v6032
        %v6153 = vpop.f32.mrf.mxu0
        %v6154 = vadd.f32 0.0, %v6153
        %v6155 = vpop.f32.mrf.mxu0
        %v6156 = vpop.f32.mrf.mxu0
        %v6157 = vadd.f32 0.0, %v6156
        %v6158 = vpop.f32.mrf.mxu0
        %6159 = vmatprep.mubr.bf16.mxu0 0
        %6160 = vmatmul.mubr.bf16.gmra.mxu0 %v6033
        %v6161 = vpop.f32.mrf.mxu0
        %v6162 = vadd.f32 0.0, %v6161
        %v6163 = vpop.f32.mrf.mxu0
        %v6164 = vpop.f32.mrf.mxu0
        %v6165 = vadd.f32 0.0, %v6164
        %v6166 = vpop.f32.mrf.mxu0
        %6167 = vmatprep.mubr.bf16.mxu0 0
        %6168 = vmatmul.mubr.bf16.gmra.mxu0 %v6034
        %v6169 = vpop.f32.mrf.mxu0
        %v6170 = vadd.f32 0.0, %v6169
        %v6171 = vpop.f32.mrf.mxu0
        %v6172 = vpop.f32.mrf.mxu0
        %v6173 = vadd.f32 0.0, %v6172
        %v6174 = vpop.f32.mrf.mxu0
        %6175 = vmatprep.mubr.bf16.mxu0 0
        %6176 = vmatmul.mubr.bf16.gmra.mxu0 %v6035
        %v6177 = vpop.f32.mrf.mxu0
        %v6178 = vadd.f32 0.0, %v6177
        %v6179 = vpop.f32.mrf.mxu0
        %v6180 = vpop.f32.mrf.mxu0
        %v6181 = vadd.f32 0.0, %v6180
        %v6182 = vpop.f32.mrf.mxu0
        %6183 = vmatprep.mubr.bf16.mxu0 0
        %6184 = vmatmul.mubr.bf16.gmra.mxu0 %v6036
        %v6185 = vpop.f32.mrf.mxu0
        %v6186 = vadd.f32 0.0, %v6185
        %v6187 = vpop.f32.mrf.mxu0
        %v6188 = vpop.f32.mrf.mxu0
        %v6189 = vadd.f32 0.0, %v6188
        %v6190 = vpop.f32.mrf.mxu0
        %6191 = vmatprep.mubr.bf16.mxu0 0
        %6192 = vmatmul.mubr.bf16.gmra.mxu0 %v6037
        %v6193 = vpop.f32.mrf.mxu0
        %v6194 = vadd.f32 0.0, %v6193
        %v6195 = vpop.f32.mrf.mxu0
        %v6196 = vpop.f32.mrf.mxu0
        %v6197 = vadd.f32 0.0, %v6196
        %v6198 = vpop.f32.mrf.mxu0
        %6199 = vmatprep.mubr.bf16.mxu0 0
        %6200 = vmatmul.mubr.bf16.gmra.mxu0 %v6038
        %v6201 = vpop.f32.mrf.mxu0
        %v6202 = vadd.f32 0.0, %v6201
        %v6203 = vpop.f32.mrf.mxu0
        %v6204 = vpop.f32.mrf.mxu0
        %v6205 = vadd.f32 0.0, %v6204
        %v6206 = vpop.f32.mrf.mxu0
        %6207 = vmatprep.mubr.bf16.mxu0 0
        %6208 = vmatmul.mubr.bf16.gmra.mxu0 %v6039
        %v6209 = vpop.f32.mrf.mxu0
        %v6210 = vadd.f32 0.0, %v6209
        %v6211 = vpop.f32.mrf.mxu0
        %v6212 = vpop.f32.mrf.mxu0
        %v6213 = vadd.f32 0.0, %v6212
        %v6214 = vpop.f32.mrf.mxu0
        %6215 = vmatprep.mubr.bf16.mxu0 0
        %6216 = vmatmul.mubr.bf16.gmra.mxu0 %v6040
        %v6217 = vpop.f32.mrf.mxu0
        %v6218 = vadd.f32 0.0, %v6217
        %v6219 = vpop.f32.mrf.mxu0
        %v6220 = vpop.f32.mrf.mxu0
        %v6221 = vadd.f32 0.0, %v6220
        %v6222 = vpop.f32.mrf.mxu0
        %6223 = vmatprep.mubr.bf16.mxu0 0
        %6224 = vmatmul.mubr.bf16.gmra.mxu0 %v6041
        %v6225 = vpop.f32.mrf.mxu0
        %v6226 = vadd.f32 0.0, %v6225
        %v6227 = vpop.f32.mrf.mxu0
        %v6228 = vpop.f32.mrf.mxu0
        %v6229 = vadd.f32 0.0, %v6228
        %v6230 = vpop.f32.mrf.mxu0
        %6231 = vmatprep.mubr.bf16.mxu0 0
        %6232 = vmatmul.mubr.bf16.gmra.mxu0 %v6042
        %v6233 = vpop.f32.mrf.mxu0
        %v6234 = vadd.f32 0.0, %v6233
        %v6235 = vpop.f32.mrf.mxu0
        %v6236 = vpop.f32.mrf.mxu0
        %v6237 = vadd.f32 0.0, %v6236
        %v6238 = vpop.f32.mrf.mxu0
        %6239 = vmatprep.mubr.bf16.mxu0 0
        %6240 = vmatmul.mubr.bf16.gmra.mxu0 %v6043
        %v6241 = vpop.f32.mrf.mxu0
        %v6242 = vadd.f32 0.0, %v6241
        %v6243 = vpop.f32.mrf.mxu0
        %v6244 = vpop.f32.mrf.mxu0
        %v6245 = vadd.f32 0.0, %v6244
        %v6246 = vpop.f32.mrf.mxu0
        %6247 = vmatprep.mubr.bf16.mxu0 0
        %6248 = vmatmul.mubr.bf16.gmra.mxu0 %v6044
        %v6249 = vpop.f32.mrf.mxu0
        %v6250 = vadd.f32 0.0, %v6249
        %v6251 = vpop.f32.mrf.mxu0
        %v6252 = vpop.f32.mrf.mxu0
        %v6253 = vadd.f32 0.0, %v6252
        %v6254 = vpop.f32.mrf.mxu0
        %6255 = vmatprep.mubr.bf16.mxu0 0
        %6256 = vmatmul.mubr.bf16.gmra.mxu0 %v6045
        %v6257 = vpop.f32.mrf.mxu0
        %v6258 = vadd.f32 0.0, %v6257
        %v6259 = vpop.f32.mrf.mxu0
        %v6260 = vpop.f32.mrf.mxu0
        %v6261 = vadd.f32 0.0, %v6260
        %v6262 = vpop.f32.mrf.mxu0
        %6263 = vmatprep.mubr.bf16.mxu0 0
        %6264 = vmatmul.mubr.bf16.gmra.mxu0 %v6046
        %v6265 = vpop.f32.mrf.mxu0
        %v6266 = vadd.f32 0.0, %v6265
        %v6267 = vpop.f32.mrf.mxu0
        %v6268 = vpop.f32.mrf.mxu0
        %v6269 = vadd.f32 0.0, %v6268
        %v6270 = vpop.f32.mrf.mxu0
        %6271 = vdwg.mxu0
        %v6304 = vunpack.c.l.b16 %v5534
        %v6305 = vunpack.c.l.b16 %v5535
        %v6306 = vunpack.c.l.b16 %v5536
        %v6307 = vunpack.c.l.b16 %v5537
        %v6308 = vunpack.c.l.b16 %v5538
        %v6309 = vunpack.c.l.b16 %v5539
        %v6310 = vunpack.c.l.b16 %v5540
        %v6311 = vunpack.c.l.b16 %v5541
        %v6312 = vunpack.c.l.b16 %v5542
        %v6313 = vunpack.c.l.b16 %v5543
        %v6314 = vunpack.c.l.b16 %v5544
        %v6315 = vunpack.c.l.b16 %v5545
        %v6316 = vunpack.c.l.b16 %v5546
        %v6317 = vunpack.c.l.b16 %v5547
        %v6318 = vunpack.c.l.b16 %v5548
        %v6319 = vunpack.c.l.b16 %v5549
        %v6320 = vunpack.c.l.b16 %v5550
        %v6321 = vunpack.c.l.b16 %v5551
        %v6322 = vunpack.c.l.b16 %v5552
        %v6323 = vunpack.c.l.b16 %v5553
        %v6324 = vunpack.c.l.b16 %v5554
        %v6325 = vunpack.c.l.b16 %v5555
        %v6326 = vunpack.c.l.b16 %v5556
        %v6327 = vunpack.c.l.b16 %v5557
        %v6328 = vunpack.c.l.b16 %v5558
        %v6329 = vunpack.c.l.b16 %v5559
        %v6330 = vunpack.c.l.b16 %v5560
        %v6331 = vunpack.c.l.b16 %v5561
        %v6332 = vunpack.c.l.b16 %v5562
        %v6333 = vunpack.c.l.b16 %v5563
        %v6334 = vunpack.c.l.b16 %v5564
        %v6335 = vunpack.c.l.b16 %v5565
        %v6336 = vpack.c.b16 %v6305, %v6304
        %v6337 = vpack.c.b16 %v6307, %v6306
        %v6338 = vpack.c.b16 %v6309, %v6308
        %v6339 = vpack.c.b16 %v6311, %v6310
        %v6340 = vpack.c.b16 %v6313, %v6312
        %v6341 = vpack.c.b16 %v6315, %v6314
        %v6342 = vpack.c.b16 %v6317, %v6316
        %v6343 = vpack.c.b16 %v6319, %v6318
        %v6344 = vpack.c.b16 %v6321, %v6320
        %v6345 = vpack.c.b16 %v6323, %v6322
        %v6346 = vpack.c.b16 %v6325, %v6324
        %v6347 = vpack.c.b16 %v6327, %v6326
        %v6348 = vpack.c.b16 %v6329, %v6328
        %v6349 = vpack.c.b16 %v6331, %v6330
        %v6350 = vpack.c.b16 %v6333, %v6332
        %v6351 = vpack.c.b16 %v6335, %v6334
        %v6384 = vunpack.c.l.b16 %v5566
        %v6385 = vunpack.c.l.b16 %v5567
        %v6386 = vunpack.c.l.b16 %v5568
        %v6387 = vunpack.c.l.b16 %v5569
        %v6388 = vunpack.c.l.b16 %v5570
        %v6389 = vunpack.c.l.b16 %v5571
        %v6390 = vunpack.c.l.b16 %v5572
        %v6391 = vunpack.c.l.b16 %v5573
        %v6392 = vunpack.c.l.b16 %v5574
        %v6393 = vunpack.c.l.b16 %v5575
        %v6394 = vunpack.c.l.b16 %v5576
        %v6395 = vunpack.c.l.b16 %v5577
        %v6396 = vunpack.c.l.b16 %v5578
        %v6397 = vunpack.c.l.b16 %v5579
        %v6398 = vunpack.c.l.b16 %v5580
        %v6399 = vunpack.c.l.b16 %v5581
        %v6400 = vpack.c.b16 %v6385, %v6384
        %v6401 = vpack.c.b16 %v6387, %v6386
        %v6402 = vpack.c.b16 %v6389, %v6388
        %v6403 = vpack.c.b16 %v6391, %v6390
        %v6404 = vpack.c.b16 %v6393, %v6392
        %v6405 = vpack.c.b16 %v6395, %v6394
        %v6406 = vpack.c.b16 %v6397, %v6396
        %v6407 = vpack.c.b16 %v6399, %v6398
        %6416 = vmatprep.subr.bf16.mxu0 0
        %6417 = vmatpush1.bf16.msra.mxu0 %v6407
        %6418 = vmatprep.subr.bf16.mxu0 0
        %6419 = vmatpush1.bf16.msra.mxu0 %v6406
        %6420 = vmatprep.subr.bf16.mxu0 0
        %6421 = vmatpush1.bf16.msra.mxu0 %v6405
        %6422 = vmatprep.subr.bf16.mxu0 0
        %6423 = vmatpush1.bf16.msra.mxu0 %v6404
        %6424 = vmatprep.subr.bf16.mxu0 0
        %6425 = vmatpush1.bf16.msra.mxu0 %v6403
        %6426 = vmatprep.subr.bf16.mxu0 0
        %6427 = vmatpush1.bf16.msra.mxu0 %v6402
        %6428 = vmatprep.subr.bf16.mxu0 0
        %6429 = vmatpush1.bf16.msra.mxu0 %v6401
        %6430 = vmatprep.subr.bf16.mxu0 0
        %6431 = vmatpush1.bf16.msra.mxu0 %v6400
        %6432 = vmatprep.subr.bf16.mxu0 0
        %6433 = vmatpush2.bf16.msra.mxu0 0
        %6434 = vmatprep.subr.bf16.mxu0 0
        %6435 = vmatpush2.bf16.msra.mxu0 0
        %6436 = vmatprep.subr.bf16.mxu0 0
        %6437 = vmatpush2.bf16.msra.mxu0 0
        %6438 = vmatprep.subr.bf16.mxu0 0
        %6439 = vmatpush2.bf16.msra.mxu0 0
        %6440 = vmatprep.subr.bf16.mxu0 0
        %6441 = vmatpush2.bf16.msra.mxu0 0
        %6442 = vmatprep.subr.bf16.mxu0 0
        %6443 = vmatpush2.bf16.msra.mxu0 0
        %6444 = vmatprep.subr.bf16.mxu0 0
        %6445 = vmatpush2.bf16.msra.mxu0 0
        %6446 = vmatprep.subr.bf16.mxu0 0
        %6447 = vmatpush2.bf16.msra.mxu0 0
        %6448 = vmatprep.mubr.bf16.mxu0 0
        %6449 = vmatmul.mubr.bf16.gmra.mxu0 %v6336
        %v6450 = vpop.f32.mrf.mxu0
        %v6451 = vadd.f32 %v6146, %v6450
        %v6452 = vpop.f32.mrf.mxu0
        %v6453 = vpop.f32.mrf.mxu0
        %v6454 = vadd.f32 %v6149, %v6453
        %v6455 = vpop.f32.mrf.mxu0
        %6456 = vmatprep.mubr.bf16.mxu0 0
        %6457 = vmatmul.mubr.bf16.gmra.mxu0 %v6337
        %v6458 = vpop.f32.mrf.mxu0
        %v6459 = vadd.f32 %v6154, %v6458
        %v6460 = vpop.f32.mrf.mxu0
        %v6461 = vpop.f32.mrf.mxu0
        %v6462 = vadd.f32 %v6157, %v6461
        %v6463 = vpop.f32.mrf.mxu0
        %6464 = vmatprep.mubr.bf16.mxu0 0
        %6465 = vmatmul.mubr.bf16.gmra.mxu0 %v6338
        %v6466 = vpop.f32.mrf.mxu0
        %v6467 = vadd.f32 %v6162, %v6466
        %v6468 = vpop.f32.mrf.mxu0
        %v6469 = vpop.f32.mrf.mxu0
        %v6470 = vadd.f32 %v6165, %v6469
        %v6471 = vpop.f32.mrf.mxu0
        %6472 = vmatprep.mubr.bf16.mxu0 0
        %6473 = vmatmul.mubr.bf16.gmra.mxu0 %v6339
        %v6474 = vpop.f32.mrf.mxu0
        %v6475 = vadd.f32 %v6170, %v6474
        %v6476 = vpop.f32.mrf.mxu0
        %v6477 = vpop.f32.mrf.mxu0
        %v6478 = vadd.f32 %v6173, %v6477
        %v6479 = vpop.f32.mrf.mxu0
        %6480 = vmatprep.mubr.bf16.mxu0 0
        %6481 = vmatmul.mubr.bf16.gmra.mxu0 %v6340
        %v6482 = vpop.f32.mrf.mxu0
        %v6483 = vadd.f32 %v6178, %v6482
        %v6484 = vpop.f32.mrf.mxu0
        %v6485 = vpop.f32.mrf.mxu0
        %v6486 = vadd.f32 %v6181, %v6485
        %v6487 = vpop.f32.mrf.mxu0
        %6488 = vmatprep.mubr.bf16.mxu0 0
        %6489 = vmatmul.mubr.bf16.gmra.mxu0 %v6341
        %v6490 = vpop.f32.mrf.mxu0
        %v6491 = vadd.f32 %v6186, %v6490
        %v6492 = vpop.f32.mrf.mxu0
        %v6493 = vpop.f32.mrf.mxu0
        %v6494 = vadd.f32 %v6189, %v6493
        %v6495 = vpop.f32.mrf.mxu0
        %6496 = vmatprep.mubr.bf16.mxu0 0
        %6497 = vmatmul.mubr.bf16.gmra.mxu0 %v6342
        %v6498 = vpop.f32.mrf.mxu0
        %v6499 = vadd.f32 %v6194, %v6498
        %v6500 = vpop.f32.mrf.mxu0
        %v6501 = vpop.f32.mrf.mxu0
        %v6502 = vadd.f32 %v6197, %v6501
        %v6503 = vpop.f32.mrf.mxu0
        %6504 = vmatprep.mubr.bf16.mxu0 0
        %6505 = vmatmul.mubr.bf16.gmra.mxu0 %v6343
        %v6506 = vpop.f32.mrf.mxu0
        %v6507 = vadd.f32 %v6202, %v6506
        %v6508 = vpop.f32.mrf.mxu0
        %v6509 = vpop.f32.mrf.mxu0
        %v6510 = vadd.f32 %v6205, %v6509
        %v6511 = vpop.f32.mrf.mxu0
        %6512 = vmatprep.mubr.bf16.mxu0 0
        %6513 = vmatmul.mubr.bf16.gmra.mxu0 %v6344
        %v6514 = vpop.f32.mrf.mxu0
        %v6515 = vadd.f32 %v6210, %v6514
        %v6516 = vpop.f32.mrf.mxu0
        %v6517 = vpop.f32.mrf.mxu0
        %v6518 = vadd.f32 %v6213, %v6517
        %v6519 = vpop.f32.mrf.mxu0
        %6520 = vmatprep.mubr.bf16.mxu0 0
        %6521 = vmatmul.mubr.bf16.gmra.mxu0 %v6345
        %v6522 = vpop.f32.mrf.mxu0
        %v6523 = vadd.f32 %v6218, %v6522
        %v6524 = vpop.f32.mrf.mxu0
        %v6525 = vpop.f32.mrf.mxu0
        %v6526 = vadd.f32 %v6221, %v6525
        %v6527 = vpop.f32.mrf.mxu0
        %6528 = vmatprep.mubr.bf16.mxu0 0
        %6529 = vmatmul.mubr.bf16.gmra.mxu0 %v6346
        %v6530 = vpop.f32.mrf.mxu0
        %v6531 = vadd.f32 %v6226, %v6530
        %v6532 = vpop.f32.mrf.mxu0
        %v6533 = vpop.f32.mrf.mxu0
        %v6534 = vadd.f32 %v6229, %v6533
        %v6535 = vpop.f32.mrf.mxu0
        %6536 = vmatprep.mubr.bf16.mxu0 0
        %6537 = vmatmul.mubr.bf16.gmra.mxu0 %v6347
        %v6538 = vpop.f32.mrf.mxu0
        %v6539 = vadd.f32 %v6234, %v6538
        %v6540 = vpop.f32.mrf.mxu0
        %v6541 = vpop.f32.mrf.mxu0
        %v6542 = vadd.f32 %v6237, %v6541
        %v6543 = vpop.f32.mrf.mxu0
        %6544 = vmatprep.mubr.bf16.mxu0 0
        %6545 = vmatmul.mubr.bf16.gmra.mxu0 %v6348
        %v6546 = vpop.f32.mrf.mxu0
        %v6547 = vadd.f32 %v6242, %v6546
        %v6548 = vpop.f32.mrf.mxu0
        %v6549 = vpop.f32.mrf.mxu0
        %v6550 = vadd.f32 %v6245, %v6549
        %v6551 = vpop.f32.mrf.mxu0
        %6552 = vmatprep.mubr.bf16.mxu0 0
        %6553 = vmatmul.mubr.bf16.gmra.mxu0 %v6349
        %v6554 = vpop.f32.mrf.mxu0
        %v6555 = vadd.f32 %v6250, %v6554
        %v6556 = vpop.f32.mrf.mxu0
        %v6557 = vpop.f32.mrf.mxu0
        %v6558 = vadd.f32 %v6253, %v6557
        %v6559 = vpop.f32.mrf.mxu0
        %6560 = vmatprep.mubr.bf16.mxu0 0
        %6561 = vmatmul.mubr.bf16.gmra.mxu0 %v6350
        %v6562 = vpop.f32.mrf.mxu0
        %v6563 = vadd.f32 %v6258, %v6562
        %v6564 = vpop.f32.mrf.mxu0
        %v6565 = vpop.f32.mrf.mxu0
        %v6566 = vadd.f32 %v6261, %v6565
        %v6567 = vpop.f32.mrf.mxu0
        %6568 = vmatprep.mubr.bf16.mxu0 0
        %6569 = vmatmul.mubr.bf16.gmra.mxu0 %v6351
        %v6570 = vpop.f32.mrf.mxu0
        %v6571 = vadd.f32 %v6266, %v6570
        %v6572 = vpop.f32.mrf.mxu0
        %v6573 = vpop.f32.mrf.mxu0
        %v6574 = vadd.f32 %v6269, %v6573
        %v6575 = vpop.f32.mrf.mxu0
        %6576 = vdwg.mxu0
        %v6577 = vld [vmem:[#allocation2] sm:$0xe]
        %v6578 = vld [vmem:[#allocation2 + $0xc] sm:$0xe]
        %v6579 = vld [vmem:[#allocation2 + $0x18] sm:$0xe]
        %v6580 = vld [vmem:[#allocation2 + $0x24] sm:$0xe]
        %v6581 = vld [vmem:[#allocation2 + $0x30] sm:$0xe]
        %v6582 = vld [vmem:[#allocation2 + $0x3c] sm:$0xe]
        %v6583 = vld [vmem:[#allocation2 + $0x48] sm:$0xe]
        %v6584 = vld [vmem:[#allocation2 + $0x54] sm:$0xe]
        %v6585 = vld [vmem:[#allocation2 + $0x60] sm:$0xe]
        %v6586 = vld [vmem:[#allocation2 + $0x6c] sm:$0xe]
        %v6587 = vld [vmem:[#allocation2 + $0x78] sm:$0xe]
        %v6588 = vld [vmem:[#allocation2 + $0x84] sm:$0xe]
        %v6589 = vld [vmem:[#allocation2 + $0x90] sm:$0xe]
        %v6590 = vld [vmem:[#allocation2 + $0x9c] sm:$0xe]
        %v6591 = vld [vmem:[#allocation2 + $0xa8] sm:$0xe]
        %v6592 = vld [vmem:[#allocation2 + $0xb4] sm:$0xe]
        %v6625 = vrot.slane %v6577, 5
        %v6626 = vrot.slane %v6625, 4
        %v6627 = vrot.slane %v5535, 5
        %v6628 = vsel %vm1355, %v6626, %v6627
        %v6629 = vrot.slane %v6627, 4
        %v6630 = vrot.slane %v5582, 5
        %v6631 = vsel %vm1355, %v6629, %v6630
        %v6632 = vrot.slane %v6578, 5
        %v6633 = vrot.slane %v6632, 4
        %v6634 = vrot.slane %v5537, 5
        %v6635 = vsel %vm1355, %v6633, %v6634
        %v6636 = vrot.slane %v6634, 4
        %v6637 = vrot.slane %v5583, 5
        %v6638 = vsel %vm1355, %v6636, %v6637
        %v6639 = vrot.slane %v6579, 5
        %v6640 = vrot.slane %v6639, 4
        %v6641 = vrot.slane %v5539, 5
        %v6642 = vsel %vm1355, %v6640, %v6641
        %v6643 = vrot.slane %v6641, 4
        %v6644 = vrot.slane %v5584, 5
        %v6645 = vsel %vm1355, %v6643, %v6644
        %v6646 = vrot.slane %v6580, 5
        %v6647 = vrot.slane %v6646, 4
        %v6648 = vrot.slane %v5541, 5
        %v6649 = vsel %vm1355, %v6647, %v6648
        %v6650 = vrot.slane %v6648, 4
        %v6651 = vrot.slane %v5585, 5
        %v6652 = vsel %vm1355, %v6650, %v6651
        %v6653 = vrot.slane %v6581, 5
        %v6654 = vrot.slane %v6653, 4
        %v6655 = vrot.slane %v5543, 5
        %v6656 = vsel %vm1355, %v6654, %v6655
        %v6657 = vrot.slane %v6655, 4
        %v6658 = vrot.slane %v5586, 5
        %v6659 = vsel %vm1355, %v6657, %v6658
        %v6660 = vrot.slane %v6582, 5
        %v6661 = vrot.slane %v6660, 4
        %v6662 = vrot.slane %v5545, 5
        %v6663 = vsel %vm1355, %v6661, %v6662
        %v6664 = vrot.slane %v6662, 4
        %v6665 = vrot.slane %v5587, 5
        %v6666 = vsel %vm1355, %v6664, %v6665
        %v6667 = vrot.slane %v6583, 5
        %v6668 = vrot.slane %v6667, 4
        %v6669 = vrot.slane %v5547, 5
        %v6670 = vsel %vm1355, %v6668, %v6669
        %v6671 = vrot.slane %v6669, 4
        %v6672 = vrot.slane %v5588, 5
        %v6673 = vsel %vm1355, %v6671, %v6672
        %v6674 = vrot.slane %v6584, 5
        %v6675 = vrot.slane %v6674, 4
        %v6676 = vrot.slane %v5549, 5
        %v6677 = vsel %vm1355, %v6675, %v6676
        %v6678 = vrot.slane %v6676, 4
        %v6679 = vrot.slane %v5589, 5
        %v6680 = vsel %vm1355, %v6678, %v6679
        %v6681 = vrot.slane %v6585, 5
        %v6682 = vrot.slane %v6681, 4
        %v6683 = vrot.slane %v5551, 5
        %v6684 = vsel %vm1355, %v6682, %v6683
        %v6685 = vrot.slane %v6683, 4
        %v6686 = vrot.slane %v5590, 5
        %v6687 = vsel %vm1355, %v6685, %v6686
        %v6688 = vrot.slane %v6586, 5
        %v6689 = vrot.slane %v6688, 4
        %v6690 = vrot.slane %v5553, 5
        %v6691 = vsel %vm1355, %v6689, %v6690
        %v6692 = vrot.slane %v6690, 4
        %v6693 = vrot.slane %v5591, 5
        %v6694 = vsel %vm1355, %v6692, %v6693
        %v6695 = vrot.slane %v6587, 5
        %v6696 = vrot.slane %v6695, 4
        %v6697 = vrot.slane %v5555, 5
        %v6698 = vsel %vm1355, %v6696, %v6697
        %v6699 = vrot.slane %v6697, 4
        %v6700 = vrot.slane %v5592, 5
        %v6701 = vsel %vm1355, %v6699, %v6700
        %v6702 = vrot.slane %v6588, 5
        %v6703 = vrot.slane %v6702, 4
        %v6704 = vrot.slane %v5557, 5
        %v6705 = vsel %vm1355, %v6703, %v6704
        %v6706 = vrot.slane %v6704, 4
        %v6707 = vrot.slane %v5593, 5
        %v6708 = vsel %vm1355, %v6706, %v6707
        %v6709 = vrot.slane %v6589, 5
        %v6710 = vrot.slane %v6709, 4
        %v6711 = vrot.slane %v5559, 5
        %v6712 = vsel %vm1355, %v6710, %v6711
        %v6713 = vrot.slane %v6711, 4
        %v6714 = vrot.slane %v5594, 5
        %v6715 = vsel %vm1355, %v6713, %v6714
        %v6716 = vrot.slane %v6590, 5
        %v6717 = vrot.slane %v6716, 4
        %v6718 = vrot.slane %v5561, 5
        %v6719 = vsel %vm1355, %v6717, %v6718
        %v6720 = vrot.slane %v6718, 4
        %v6721 = vrot.slane %v5595, 5
        %v6722 = vsel %vm1355, %v6720, %v6721
        %v6723 = vrot.slane %v6591, 5
        %v6724 = vrot.slane %v6723, 4
        %v6725 = vrot.slane %v5563, 5
        %v6726 = vsel %vm1355, %v6724, %v6725
        %v6727 = vrot.slane %v6725, 4
        %v6728 = vrot.slane %v5596, 5
        %v6729 = vsel %vm1355, %v6727, %v6728
        %v6730 = vrot.slane %v6592, 5
        %v6731 = vrot.slane %v6730, 4
        %v6732 = vrot.slane %v5565, 5
        %v6733 = vsel %vm1355, %v6731, %v6732
        %v6734 = vrot.slane %v6732, 4
        %v6735 = vrot.slane %v5597, 5
        %v6736 = vsel %vm1355, %v6734, %v6735
        %s6737 = scalar_lea.vmem [#allocation6], 128
        %v6738 = vld [vmem:[%s6737] sm:$0xf]
        %v6739 = vld [vmem:[%s6737 + $0x4] sm:$0xf]
        %v6740 = vld [vmem:[%s6737 + $0x8] sm:$0xf]
        %v6741 = vld [vmem:[%s6737 + $0xc] sm:$0xf]
        %v6742 = vld [vmem:[%s6737 + $0x10] sm:$0xf]
        %v6743 = vld [vmem:[%s6737 + $0x14] sm:$0xf]
        %v6744 = vld [vmem:[%s6737 + $0x18] sm:$0xf]
        %v6745 = vld [vmem:[%s6737 + $0x1c] sm:$0xf]
        %v6746 = vld [vmem:[%s6737 + $0x20] sm:$0xf]
        %v6747 = vld [vmem:[%s6737 + $0x24] sm:$0xf]
        %v6748 = vld [vmem:[%s6737 + $0x28] sm:$0xf]
        %v6749 = vld [vmem:[%s6737 + $0x2c] sm:$0xf]
        %v6750 = vld [vmem:[%s6737 + $0x30] sm:$0xf]
        %v6751 = vld [vmem:[%s6737 + $0x34] sm:$0xf]
        %v6752 = vld [vmem:[%s6737 + $0x38] sm:$0xf]
        %v6753 = vld [vmem:[%s6737 + $0x3c] sm:$0xf]
        %v6754 = vunpack.c.l.b16 %v6628
        %v6755 = vunpack.c.l.b16 %v6631
        %v6756 = vunpack.c.l.b16 %v6635
        %v6757 = vunpack.c.l.b16 %v6638
        %v6758 = vunpack.c.l.b16 %v6642
        %v6759 = vunpack.c.l.b16 %v6645
        %v6760 = vunpack.c.l.b16 %v6649
        %v6761 = vunpack.c.l.b16 %v6652
        %v6762 = vunpack.c.l.b16 %v6656
        %v6763 = vunpack.c.l.b16 %v6659
        %v6764 = vunpack.c.l.b16 %v6663
        %v6765 = vunpack.c.l.b16 %v6666
        %v6766 = vunpack.c.l.b16 %v6670
        %v6767 = vunpack.c.l.b16 %v6673
        %v6768 = vunpack.c.l.b16 %v6677
        %v6769 = vunpack.c.l.b16 %v6680
        %v6770 = vunpack.c.l.b16 %v6684
        %v6771 = vunpack.c.l.b16 %v6687
        %v6772 = vunpack.c.l.b16 %v6691
        %v6773 = vunpack.c.l.b16 %v6694
        %v6774 = vunpack.c.l.b16 %v6698
        %v6775 = vunpack.c.l.b16 %v6701
        %v6776 = vunpack.c.l.b16 %v6705
        %v6777 = vunpack.c.l.b16 %v6708
        %v6778 = vunpack.c.l.b16 %v6712
        %v6779 = vunpack.c.l.b16 %v6715
        %v6780 = vunpack.c.l.b16 %v6719
        %v6781 = vunpack.c.l.b16 %v6722
        %v6782 = vunpack.c.l.b16 %v6726
        %v6783 = vunpack.c.l.b16 %v6729
        %v6784 = vunpack.c.l.b16 %v6733
        %v6785 = vunpack.c.l.b16 %v6736
        %v6786 = vpack.c.b16 %v6755, %v6754
        %v6787 = vpack.c.b16 %v6757, %v6756
        %v6788 = vpack.c.b16 %v6759, %v6758
        %v6789 = vpack.c.b16 %v6761, %v6760
        %v6790 = vpack.c.b16 %v6763, %v6762
        %v6791 = vpack.c.b16 %v6765, %v6764
        %v6792 = vpack.c.b16 %v6767, %v6766
        %v6793 = vpack.c.b16 %v6769, %v6768
        %v6794 = vpack.c.b16 %v6771, %v6770
        %v6795 = vpack.c.b16 %v6773, %v6772
        %v6796 = vpack.c.b16 %v6775, %v6774
        %v6797 = vpack.c.b16 %v6777, %v6776
        %v6798 = vpack.c.b16 %v6779, %v6778
        %v6799 = vpack.c.b16 %v6781, %v6780
        %v6800 = vpack.c.b16 %v6783, %v6782
        %v6801 = vpack.c.b16 %v6785, %v6784
        %v6834 = vunpack.c.l.b16 %v6738
        %v6835 = vunpack.c.l.b16 %v6739
        %v6836 = vunpack.c.l.b16 %v6740
        %v6837 = vunpack.c.l.b16 %v6741
        %v6838 = vunpack.c.l.b16 %v6742
        %v6839 = vunpack.c.l.b16 %v6743
        %v6840 = vunpack.c.l.b16 %v6744
        %v6841 = vunpack.c.l.b16 %v6745
        %v6842 = vunpack.c.l.b16 %v6746
        %v6843 = vunpack.c.l.b16 %v6747
        %v6844 = vunpack.c.l.b16 %v6748
        %v6845 = vunpack.c.l.b16 %v6749
        %v6846 = vunpack.c.l.b16 %v6750
        %v6847 = vunpack.c.l.b16 %v6751
        %v6848 = vunpack.c.l.b16 %v6752
        %v6849 = vunpack.c.l.b16 %v6753
        %v6850 = vpack.c.b16 %v6835, %v6834
        %v6851 = vpack.c.b16 %v6837, %v6836
        %v6852 = vpack.c.b16 %v6839, %v6838
        %v6853 = vpack.c.b16 %v6841, %v6840
        %v6854 = vpack.c.b16 %v6843, %v6842
        %v6855 = vpack.c.b16 %v6845, %v6844
        %v6856 = vpack.c.b16 %v6847, %v6846
        %v6857 = vpack.c.b16 %v6849, %v6848
        %6866 = vmatprep.subr.bf16.mxu0 0
        %6867 = vmatpush1.bf16.msra.mxu0 %v6857
        %6868 = vmatprep.subr.bf16.mxu0 0
        %6869 = vmatpush1.bf16.msra.mxu0 %v6856
        %6870 = vmatprep.subr.bf16.mxu0 0
        %6871 = vmatpush1.bf16.msra.mxu0 %v6855
        %6872 = vmatprep.subr.bf16.mxu0 0
        %6873 = vmatpush1.bf16.msra.mxu0 %v6854
        %6874 = vmatprep.subr.bf16.mxu0 0
        %6875 = vmatpush1.bf16.msra.mxu0 %v6853
        %6876 = vmatprep.subr.bf16.mxu0 0
        %6877 = vmatpush1.bf16.msra.mxu0 %v6852
        %6878 = vmatprep.subr.bf16.mxu0 0
        %6879 = vmatpush1.bf16.msra.mxu0 %v6851
        %6880 = vmatprep.subr.bf16.mxu0 0
        %6881 = vmatpush1.bf16.msra.mxu0 %v6850
        %6882 = vmatprep.subr.bf16.mxu0 0
        %6883 = vmatpush2.bf16.msra.mxu0 0
        %6884 = vmatprep.subr.bf16.mxu0 0
        %6885 = vmatpush2.bf16.msra.mxu0 0
        %6886 = vmatprep.subr.bf16.mxu0 0
        %6887 = vmatpush2.bf16.msra.mxu0 0
        %6888 = vmatprep.subr.bf16.mxu0 0
        %6889 = vmatpush2.bf16.msra.mxu0 0
        %6890 = vmatprep.subr.bf16.mxu0 0
        %6891 = vmatpush2.bf16.msra.mxu0 0
        %6892 = vmatprep.subr.bf16.mxu0 0
        %6893 = vmatpush2.bf16.msra.mxu0 0
        %6894 = vmatprep.subr.bf16.mxu0 0
        %6895 = vmatpush2.bf16.msra.mxu0 0
        %6896 = vmatprep.subr.bf16.mxu0 0
        %6897 = vmatpush2.bf16.msra.mxu0 0
        %6898 = vmatprep.mubr.bf16.mxu0 0
        %6899 = vmatmul.mubr.bf16.gmra.mxu0 %v6786
        %v6900 = vpop.f32.mrf.mxu0
        %v6901 = vadd.f32 0.0, %v6900
        %v6902 = vpop.f32.mrf.mxu0
        %v6903 = vpop.f32.mrf.mxu0
        %v6904 = vadd.f32 0.0, %v6903
        %v6905 = vpop.f32.mrf.mxu0
        %6906 = vmatprep.mubr.bf16.mxu0 0
        %6907 = vmatmul.mubr.bf16.gmra.mxu0 %v6787
        %v6908 = vpop.f32.mrf.mxu0
        %v6909 = vadd.f32 0.0, %v6908
        %v6910 = vpop.f32.mrf.mxu0
        %v6911 = vpop.f32.mrf.mxu0
        %v6912 = vadd.f32 0.0, %v6911
        %v6913 = vpop.f32.mrf.mxu0
        %6914 = vmatprep.mubr.bf16.mxu0 0
        %6915 = vmatmul.mubr.bf16.gmra.mxu0 %v6788
        %v6916 = vpop.f32.mrf.mxu0
        %v6917 = vadd.f32 0.0, %v6916
        %v6918 = vpop.f32.mrf.mxu0
        %v6919 = vpop.f32.mrf.mxu0
        %v6920 = vadd.f32 0.0, %v6919
        %v6921 = vpop.f32.mrf.mxu0
        %6922 = vmatprep.mubr.bf16.mxu0 0
        %6923 = vmatmul.mubr.bf16.gmra.mxu0 %v6789
        %v6924 = vpop.f32.mrf.mxu0
        %v6925 = vadd.f32 0.0, %v6924
        %v6926 = vpop.f32.mrf.mxu0
        %v6927 = vpop.f32.mrf.mxu0
        %v6928 = vadd.f32 0.0, %v6927
        %v6929 = vpop.f32.mrf.mxu0
        %6930 = vmatprep.mubr.bf16.mxu0 0
        %6931 = vmatmul.mubr.bf16.gmra.mxu0 %v6790
        %v6932 = vpop.f32.mrf.mxu0
        %v6933 = vadd.f32 0.0, %v6932
        %v6934 = vpop.f32.mrf.mxu0
        %v6935 = vpop.f32.mrf.mxu0
        %v6936 = vadd.f32 0.0, %v6935
        %v6937 = vpop.f32.mrf.mxu0
        %6938 = vmatprep.mubr.bf16.mxu0 0
        %6939 = vmatmul.mubr.bf16.gmra.mxu0 %v6791
        %v6940 = vpop.f32.mrf.mxu0
        %v6941 = vadd.f32 0.0, %v6940
        %v6942 = vpop.f32.mrf.mxu0
        %v6943 = vpop.f32.mrf.mxu0
        %v6944 = vadd.f32 0.0, %v6943
        %v6945 = vpop.f32.mrf.mxu0
        %6946 = vmatprep.mubr.bf16.mxu0 0
        %6947 = vmatmul.mubr.bf16.gmra.mxu0 %v6792
        %v6948 = vpop.f32.mrf.mxu0
        %v6949 = vadd.f32 0.0, %v6948
        %v6950 = vpop.f32.mrf.mxu0
        %v6951 = vpop.f32.mrf.mxu0
        %v6952 = vadd.f32 0.0, %v6951
        %v6953 = vpop.f32.mrf.mxu0
        %6954 = vmatprep.mubr.bf16.mxu0 0
        %6955 = vmatmul.mubr.bf16.gmra.mxu0 %v6793
        %v6956 = vpop.f32.mrf.mxu0
        %v6957 = vadd.f32 0.0, %v6956
        %v6958 = vpop.f32.mrf.mxu0
        %v6959 = vpop.f32.mrf.mxu0
        %v6960 = vadd.f32 0.0, %v6959
        %v6961 = vpop.f32.mrf.mxu0
        %6962 = vmatprep.mubr.bf16.mxu0 0
        %6963 = vmatmul.mubr.bf16.gmra.mxu0 %v6794
        %v6964 = vpop.f32.mrf.mxu0
        %v6965 = vadd.f32 0.0, %v6964
        %v6966 = vpop.f32.mrf.mxu0
        %v6967 = vpop.f32.mrf.mxu0
        %v6968 = vadd.f32 0.0, %v6967
        %v6969 = vpop.f32.mrf.mxu0
        %6970 = vmatprep.mubr.bf16.mxu0 0
        %6971 = vmatmul.mubr.bf16.gmra.mxu0 %v6795
        %v6972 = vpop.f32.mrf.mxu0
        %v6973 = vadd.f32 0.0, %v6972
        %v6974 = vpop.f32.mrf.mxu0
        %v6975 = vpop.f32.mrf.mxu0
        %v6976 = vadd.f32 0.0, %v6975
        %v6977 = vpop.f32.mrf.mxu0
        %6978 = vmatprep.mubr.bf16.mxu0 0
        %6979 = vmatmul.mubr.bf16.gmra.mxu0 %v6796
        %v6980 = vpop.f32.mrf.mxu0
        %v6981 = vadd.f32 0.0, %v6980
        %v6982 = vpop.f32.mrf.mxu0
        %v6983 = vpop.f32.mrf.mxu0
        %v6984 = vadd.f32 0.0, %v6983
        %v6985 = vpop.f32.mrf.mxu0
        %6986 = vmatprep.mubr.bf16.mxu0 0
        %6987 = vmatmul.mubr.bf16.gmra.mxu0 %v6797
        %v6988 = vpop.f32.mrf.mxu0
        %v6989 = vadd.f32 0.0, %v6988
        %v6990 = vpop.f32.mrf.mxu0
        %v6991 = vpop.f32.mrf.mxu0
        %v6992 = vadd.f32 0.0, %v6991
        %v6993 = vpop.f32.mrf.mxu0
        %6994 = vmatprep.mubr.bf16.mxu0 0
        %6995 = vmatmul.mubr.bf16.gmra.mxu0 %v6798
        %v6996 = vpop.f32.mrf.mxu0
        %v6997 = vadd.f32 0.0, %v6996
        %v6998 = vpop.f32.mrf.mxu0
        %v6999 = vpop.f32.mrf.mxu0
        %v7000 = vadd.f32 0.0, %v6999
        %v7001 = vpop.f32.mrf.mxu0
        %7002 = vmatprep.mubr.bf16.mxu0 0
        %7003 = vmatmul.mubr.bf16.gmra.mxu0 %v6799
        %v7004 = vpop.f32.mrf.mxu0
        %v7005 = vadd.f32 0.0, %v7004
        %v7006 = vpop.f32.mrf.mxu0
        %v7007 = vpop.f32.mrf.mxu0
        %v7008 = vadd.f32 0.0, %v7007
        %v7009 = vpop.f32.mrf.mxu0
        %7010 = vmatprep.mubr.bf16.mxu0 0
        %7011 = vmatmul.mubr.bf16.gmra.mxu0 %v6800
        %v7012 = vpop.f32.mrf.mxu0
        %v7013 = vadd.f32 0.0, %v7012
        %v7014 = vpop.f32.mrf.mxu0
        %v7015 = vpop.f32.mrf.mxu0
        %v7016 = vadd.f32 0.0, %v7015
        %v7017 = vpop.f32.mrf.mxu0
        %7018 = vmatprep.mubr.bf16.mxu0 0
        %7019 = vmatmul.mubr.bf16.gmra.mxu0 %v6801
        %v7020 = vpop.f32.mrf.mxu0
        %v7021 = vadd.f32 0.0, %v7020
        %v7022 = vpop.f32.mrf.mxu0
        %v7023 = vpop.f32.mrf.mxu0
        %v7024 = vadd.f32 0.0, %v7023
        %v7025 = vpop.f32.mrf.mxu0
        %7026 = vdwg.mxu0
        %v7027 = vadd.f32 %v6451, %v6901
        %v7028 = vadd.f32 %v6454, %v6904
        %v7029 = vadd.f32 %v6459, %v6909
        %v7030 = vadd.f32 %v6462, %v6912
        %v7031 = vadd.f32 %v6467, %v6917
        %v7032 = vadd.f32 %v6470, %v6920
        %v7033 = vadd.f32 %v6475, %v6925
        %v7034 = vadd.f32 %v6478, %v6928
        %v7035 = vadd.f32 %v6483, %v6933
        %v7036 = vadd.f32 %v6486, %v6936
        %v7037 = vadd.f32 %v6491, %v6941
        %v7038 = vadd.f32 %v6494, %v6944
        %v7039 = vadd.f32 %v6499, %v6949
        %v7040 = vadd.f32 %v6502, %v6952
        %v7041 = vadd.f32 %v6507, %v6957
        %v7042 = vadd.f32 %v6510, %v6960
        %v7043 = vadd.f32 %v6515, %v6965
        %v7044 = vadd.f32 %v6518, %v6968
        %v7045 = vadd.f32 %v6523, %v6973
        %v7046 = vadd.f32 %v6526, %v6976
        %v7047 = vadd.f32 %v6531, %v6981
        %v7048 = vadd.f32 %v6534, %v6984
        %v7049 = vadd.f32 %v6539, %v6989
        %v7050 = vadd.f32 %v6542, %v6992
        %v7051 = vadd.f32 %v6547, %v6997
        %v7052 = vadd.f32 %v6550, %v7000
        %v7053 = vadd.f32 %v6555, %v7005
        %v7054 = vadd.f32 %v6558, %v7008
        %v7055 = vadd.f32 %v6563, %v7013
        %v7056 = vadd.f32 %v6566, %v7016
        %v7057 = vadd.f32 %v6571, %v7021
        %v7058 = vadd.f32 %v6574, %v7024
        %v7059 = vld [vmem:[%s5416] sm:$0xf]
        %v7060 = vld [vmem:[%s5416 + $0x4] sm:$0xf]
        %v7061 = vld [vmem:[%s5416 + $0xc] sm:$0xf]
        %v7062 = vld [vmem:[%s5416 + $0x10] sm:$0xf]
        %v7063 = vld [vmem:[%s5416 + $0x18] sm:$0xf]
        %v7064 = vld [vmem:[%s5416 + $0x1c] sm:$0xf]
        %v7065 = vld [vmem:[%s5416 + $0x24] sm:$0xf]
        %v7066 = vld [vmem:[%s5416 + $0x28] sm:$0xf]
        %v7067 = vld [vmem:[%s5416 + $0x30] sm:$0xf]
        %v7068 = vld [vmem:[%s5416 + $0x34] sm:$0xf]
        %v7069 = vld [vmem:[%s5416 + $0x3c] sm:$0xf]
        %v7070 = vld [vmem:[%s5416 + $0x40] sm:$0xf]
        %v7071 = vld [vmem:[%s5416 + $0x48] sm:$0xf]
        %v7072 = vld [vmem:[%s5416 + $0x4c] sm:$0xf]
        %v7073 = vld [vmem:[%s5416 + $0x54] sm:$0xf]
        %v7074 = vld [vmem:[%s5416 + $0x58] sm:$0xf]
        %v7075 = vld [vmem:[%s5416 + $0x60] sm:$0xf]
        %v7076 = vld [vmem:[%s5416 + $0x64] sm:$0xf]
        %v7077 = vld [vmem:[%s5416 + $0x6c] sm:$0xf]
        %v7078 = vld [vmem:[%s5416 + $0x70] sm:$0xf]
        %v7079 = vld [vmem:[%s5416 + $0x78] sm:$0xf]
        %v7080 = vld [vmem:[%s5416 + $0x7c] sm:$0xf]
        %v7081 = vld [vmem:[%s5416 + $0x84] sm:$0xf]
        %v7082 = vld [vmem:[%s5416 + $0x88] sm:$0xf]
        %v7083 = vld [vmem:[%s5416 + $0x90] sm:$0xf]
        %v7084 = vld [vmem:[%s5416 + $0x94] sm:$0xf]
        %v7085 = vld [vmem:[%s5416 + $0x9c] sm:$0xf]
        %v7086 = vld [vmem:[%s5416 + $0xa0] sm:$0xf]
        %v7087 = vld [vmem:[%s5416 + $0xa8] sm:$0xf]
        %v7088 = vld [vmem:[%s5416 + $0xac] sm:$0xf]
        %v7089 = vld [vmem:[%s5416 + $0xb4] sm:$0xf]
        %v7090 = vld [vmem:[%s5416 + $0xb8] sm:$0xf]
        %s7091 = scalar_lea.vmem [#allocation6], 192
        %v7092 = vld [vmem:[%s7091] sm:$0xf]
        %v7093 = vld [vmem:[%s7091 + $0x4] sm:$0xf]
        %v7094 = vld [vmem:[%s7091 + $0x8] sm:$0xf]
        %v7095 = vld [vmem:[%s7091 + $0xc] sm:$0xf]
        %v7096 = vld [vmem:[%s7091 + $0x10] sm:$0xf]
        %v7097 = vld [vmem:[%s7091 + $0x14] sm:$0xf]
        %v7098 = vld [vmem:[%s7091 + $0x18] sm:$0xf]
        %v7099 = vld [vmem:[%s7091 + $0x1c] sm:$0xf]
        %v7100 = vld [vmem:[%s7091 + $0x20] sm:$0xf]
        %v7101 = vld [vmem:[%s7091 + $0x24] sm:$0xf]
        %v7102 = vld [vmem:[%s7091 + $0x28] sm:$0xf]
        %v7103 = vld [vmem:[%s7091 + $0x2c] sm:$0xf]
        %v7104 = vld [vmem:[%s7091 + $0x30] sm:$0xf]
        %v7105 = vld [vmem:[%s7091 + $0x34] sm:$0xf]
        %v7106 = vld [vmem:[%s7091 + $0x38] sm:$0xf]
        %v7107 = vld [vmem:[%s7091 + $0x3c] sm:$0xf]
        %v7140 = vunpack.c.l.b16 %v7059
        %v7141 = vunpack.c.l.b16 %v7060
        %v7142 = vunpack.c.l.b16 %v7061
        %v7143 = vunpack.c.l.b16 %v7062
        %v7144 = vunpack.c.l.b16 %v7063
        %v7145 = vunpack.c.l.b16 %v7064
        %v7146 = vunpack.c.l.b16 %v7065
        %v7147 = vunpack.c.l.b16 %v7066
        %v7148 = vunpack.c.l.b16 %v7067
        %v7149 = vunpack.c.l.b16 %v7068
        %v7150 = vunpack.c.l.b16 %v7069
        %v7151 = vunpack.c.l.b16 %v7070
        %v7152 = vunpack.c.l.b16 %v7071
        %v7153 = vunpack.c.l.b16 %v7072
        %v7154 = vunpack.c.l.b16 %v7073
        %v7155 = vunpack.c.l.b16 %v7074
        %v7156 = vunpack.c.l.b16 %v7075
        %v7157 = vunpack.c.l.b16 %v7076
        %v7158 = vunpack.c.l.b16 %v7077
        %v7159 = vunpack.c.l.b16 %v7078
        %v7160 = vunpack.c.l.b16 %v7079
        %v7161 = vunpack.c.l.b16 %v7080
        %v7162 = vunpack.c.l.b16 %v7081
        %v7163 = vunpack.c.l.b16 %v7082
        %v7164 = vunpack.c.l.b16 %v7083
        %v7165 = vunpack.c.l.b16 %v7084
        %v7166 = vunpack.c.l.b16 %v7085
        %v7167 = vunpack.c.l.b16 %v7086
        %v7168 = vunpack.c.l.b16 %v7087
        %v7169 = vunpack.c.l.b16 %v7088
        %v7170 = vunpack.c.l.b16 %v7089
        %v7171 = vunpack.c.l.b16 %v7090
        %v7172 = vpack.c.b16 %v7141, %v7140
        %v7173 = vpack.c.b16 %v7143, %v7142
        %v7174 = vpack.c.b16 %v7145, %v7144
        %v7175 = vpack.c.b16 %v7147, %v7146
        %v7176 = vpack.c.b16 %v7149, %v7148
        %v7177 = vpack.c.b16 %v7151, %v7150
        %v7178 = vpack.c.b16 %v7153, %v7152
        %v7179 = vpack.c.b16 %v7155, %v7154
        %v7180 = vpack.c.b16 %v7157, %v7156
        %v7181 = vpack.c.b16 %v7159, %v7158
        %v7182 = vpack.c.b16 %v7161, %v7160
        %v7183 = vpack.c.b16 %v7163, %v7162
        %v7184 = vpack.c.b16 %v7165, %v7164
        %v7185 = vpack.c.b16 %v7167, %v7166
        %v7186 = vpack.c.b16 %v7169, %v7168
        %v7187 = vpack.c.b16 %v7171, %v7170
        %v7220 = vunpack.c.l.b16 %v7092
        %v7221 = vunpack.c.l.b16 %v7093
        %v7222 = vunpack.c.l.b16 %v7094
        %v7223 = vunpack.c.l.b16 %v7095
        %v7224 = vunpack.c.l.b16 %v7096
        %v7225 = vunpack.c.l.b16 %v7097
        %v7226 = vunpack.c.l.b16 %v7098
        %v7227 = vunpack.c.l.b16 %v7099
        %v7228 = vunpack.c.l.b16 %v7100
        %v7229 = vunpack.c.l.b16 %v7101
        %v7230 = vunpack.c.l.b16 %v7102
        %v7231 = vunpack.c.l.b16 %v7103
        %v7232 = vunpack.c.l.b16 %v7104
        %v7233 = vunpack.c.l.b16 %v7105
        %v7234 = vunpack.c.l.b16 %v7106
        %v7235 = vunpack.c.l.b16 %v7107
        %v7236 = vpack.c.b16 %v7221, %v7220
        %v7237 = vpack.c.b16 %v7223, %v7222
        %v7238 = vpack.c.b16 %v7225, %v7224
        %v7239 = vpack.c.b16 %v7227, %v7226
        %v7240 = vpack.c.b16 %v7229, %v7228
        %v7241 = vpack.c.b16 %v7231, %v7230
        %v7242 = vpack.c.b16 %v7233, %v7232
        %v7243 = vpack.c.b16 %v7235, %v7234
        %7252 = vmatprep.subr.bf16.mxu0 0
        %7253 = vmatpush1.bf16.msra.mxu0 %v7243
        %7254 = vmatprep.subr.bf16.mxu0 0
        %7255 = vmatpush1.bf16.msra.mxu0 %v7242
        %7256 = vmatprep.subr.bf16.mxu0 0
        %7257 = vmatpush1.bf16.msra.mxu0 %v7241
        %7258 = vmatprep.subr.bf16.mxu0 0
        %7259 = vmatpush1.bf16.msra.mxu0 %v7240
        %7260 = vmatprep.subr.bf16.mxu0 0
        %7261 = vmatpush1.bf16.msra.mxu0 %v7239
        %7262 = vmatprep.subr.bf16.mxu0 0
        %7263 = vmatpush1.bf16.msra.mxu0 %v7238
        %7264 = vmatprep.subr.bf16.mxu0 0
        %7265 = vmatpush1.bf16.msra.mxu0 %v7237
        %7266 = vmatprep.subr.bf16.mxu0 0
        %7267 = vmatpush1.bf16.msra.mxu0 %v7236
        %7268 = vmatprep.subr.bf16.mxu0 0
        %7269 = vmatpush2.bf16.msra.mxu0 0
        %7270 = vmatprep.subr.bf16.mxu0 0
        %7271 = vmatpush2.bf16.msra.mxu0 0
        %7272 = vmatprep.subr.bf16.mxu0 0
        %7273 = vmatpush2.bf16.msra.mxu0 0
        %7274 = vmatprep.subr.bf16.mxu0 0
        %7275 = vmatpush2.bf16.msra.mxu0 0
        %7276 = vmatprep.subr.bf16.mxu0 0
        %7277 = vmatpush2.bf16.msra.mxu0 0
        %7278 = vmatprep.subr.bf16.mxu0 0
        %7279 = vmatpush2.bf16.msra.mxu0 0
        %7280 = vmatprep.subr.bf16.mxu0 0
        %7281 = vmatpush2.bf16.msra.mxu0 0
        %7282 = vmatprep.subr.bf16.mxu0 0
        %7283 = vmatpush2.bf16.msra.mxu0 0
        %7284 = vmatprep.mubr.bf16.mxu0 0
        %7285 = vmatmul.mubr.bf16.gmra.mxu0 %v7172
        %v7286 = vpop.f32.mrf.mxu0
        %v7287 = vadd.f32 0.0, %v7286
        %v7288 = vpop.f32.mrf.mxu0
        %v7289 = vpop.f32.mrf.mxu0
        %v7290 = vadd.f32 0.0, %v7289
        %v7291 = vpop.f32.mrf.mxu0
        %7292 = vmatprep.mubr.bf16.mxu0 0
        %7293 = vmatmul.mubr.bf16.gmra.mxu0 %v7173
        %v7294 = vpop.f32.mrf.mxu0
        %v7295 = vadd.f32 0.0, %v7294
        %v7296 = vpop.f32.mrf.mxu0
        %v7297 = vpop.f32.mrf.mxu0
        %v7298 = vadd.f32 0.0, %v7297
        %v7299 = vpop.f32.mrf.mxu0
        %7300 = vmatprep.mubr.bf16.mxu0 0
        %7301 = vmatmul.mubr.bf16.gmra.mxu0 %v7174
        %v7302 = vpop.f32.mrf.mxu0
        %v7303 = vadd.f32 0.0, %v7302
        %v7304 = vpop.f32.mrf.mxu0
        %v7305 = vpop.f32.mrf.mxu0
        %v7306 = vadd.f32 0.0, %v7305
        %v7307 = vpop.f32.mrf.mxu0
        %7308 = vmatprep.mubr.bf16.mxu0 0
        %7309 = vmatmul.mubr.bf16.gmra.mxu0 %v7175
        %v7310 = vpop.f32.mrf.mxu0
        %v7311 = vadd.f32 0.0, %v7310
        %v7312 = vpop.f32.mrf.mxu0
        %v7313 = vpop.f32.mrf.mxu0
        %v7314 = vadd.f32 0.0, %v7313
        %v7315 = vpop.f32.mrf.mxu0
        %7316 = vmatprep.mubr.bf16.mxu0 0
        %7317 = vmatmul.mubr.bf16.gmra.mxu0 %v7176
        %v7318 = vpop.f32.mrf.mxu0
        %v7319 = vadd.f32 0.0, %v7318
        %v7320 = vpop.f32.mrf.mxu0
        %v7321 = vpop.f32.mrf.mxu0
        %v7322 = vadd.f32 0.0, %v7321
        %v7323 = vpop.f32.mrf.mxu0
        %7324 = vmatprep.mubr.bf16.mxu0 0
        %7325 = vmatmul.mubr.bf16.gmra.mxu0 %v7177
        %v7326 = vpop.f32.mrf.mxu0
        %v7327 = vadd.f32 0.0, %v7326
        %v7328 = vpop.f32.mrf.mxu0
        %v7329 = vpop.f32.mrf.mxu0
        %v7330 = vadd.f32 0.0, %v7329
        %v7331 = vpop.f32.mrf.mxu0
        %7332 = vmatprep.mubr.bf16.mxu0 0
        %7333 = vmatmul.mubr.bf16.gmra.mxu0 %v7178
        %v7334 = vpop.f32.mrf.mxu0
        %v7335 = vadd.f32 0.0, %v7334
        %v7336 = vpop.f32.mrf.mxu0
        %v7337 = vpop.f32.mrf.mxu0
        %v7338 = vadd.f32 0.0, %v7337
        %v7339 = vpop.f32.mrf.mxu0
        %7340 = vmatprep.mubr.bf16.mxu0 0
        %7341 = vmatmul.mubr.bf16.gmra.mxu0 %v7179
        %v7342 = vpop.f32.mrf.mxu0
        %v7343 = vadd.f32 0.0, %v7342
        %v7344 = vpop.f32.mrf.mxu0
        %v7345 = vpop.f32.mrf.mxu0
        %v7346 = vadd.f32 0.0, %v7345
        %v7347 = vpop.f32.mrf.mxu0
        %7348 = vmatprep.mubr.bf16.mxu0 0
        %7349 = vmatmul.mubr.bf16.gmra.mxu0 %v7180
        %v7350 = vpop.f32.mrf.mxu0
        %v7351 = vadd.f32 0.0, %v7350
        %v7352 = vpop.f32.mrf.mxu0
        %v7353 = vpop.f32.mrf.mxu0
        %v7354 = vadd.f32 0.0, %v7353
        %v7355 = vpop.f32.mrf.mxu0
        %7356 = vmatprep.mubr.bf16.mxu0 0
        %7357 = vmatmul.mubr.bf16.gmra.mxu0 %v7181
        %v7358 = vpop.f32.mrf.mxu0
        %v7359 = vadd.f32 0.0, %v7358
        %v7360 = vpop.f32.mrf.mxu0
        %v7361 = vpop.f32.mrf.mxu0
        %v7362 = vadd.f32 0.0, %v7361
        %v7363 = vpop.f32.mrf.mxu0
        %7364 = vmatprep.mubr.bf16.mxu0 0
        %7365 = vmatmul.mubr.bf16.gmra.mxu0 %v7182
        %v7366 = vpop.f32.mrf.mxu0
        %v7367 = vadd.f32 0.0, %v7366
        %v7368 = vpop.f32.mrf.mxu0
        %v7369 = vpop.f32.mrf.mxu0
        %v7370 = vadd.f32 0.0, %v7369
        %v7371 = vpop.f32.mrf.mxu0
        %7372 = vmatprep.mubr.bf16.mxu0 0
        %7373 = vmatmul.mubr.bf16.gmra.mxu0 %v7183
        %v7374 = vpop.f32.mrf.mxu0
        %v7375 = vadd.f32 0.0, %v7374
        %v7376 = vpop.f32.mrf.mxu0
        %v7377 = vpop.f32.mrf.mxu0
        %v7378 = vadd.f32 0.0, %v7377
        %v7379 = vpop.f32.mrf.mxu0
        %7380 = vmatprep.mubr.bf16.mxu0 0
        %7381 = vmatmul.mubr.bf16.gmra.mxu0 %v7184
        %v7382 = vpop.f32.mrf.mxu0
        %v7383 = vadd.f32 0.0, %v7382
        %v7384 = vpop.f32.mrf.mxu0
        %v7385 = vpop.f32.mrf.mxu0
        %v7386 = vadd.f32 0.0, %v7385
        %v7387 = vpop.f32.mrf.mxu0
        %7388 = vmatprep.mubr.bf16.mxu0 0
        %7389 = vmatmul.mubr.bf16.gmra.mxu0 %v7185
        %v7390 = vpop.f32.mrf.mxu0
        %v7391 = vadd.f32 0.0, %v7390
        %v7392 = vpop.f32.mrf.mxu0
        %v7393 = vpop.f32.mrf.mxu0
        %v7394 = vadd.f32 0.0, %v7393
        %v7395 = vpop.f32.mrf.mxu0
        %7396 = vmatprep.mubr.bf16.mxu0 0
        %7397 = vmatmul.mubr.bf16.gmra.mxu0 %v7186
        %v7398 = vpop.f32.mrf.mxu0
        %v7399 = vadd.f32 0.0, %v7398
        %v7400 = vpop.f32.mrf.mxu0
        %v7401 = vpop.f32.mrf.mxu0
        %v7402 = vadd.f32 0.0, %v7401
        %v7403 = vpop.f32.mrf.mxu0
        %7404 = vmatprep.mubr.bf16.mxu0 0
        %7405 = vmatmul.mubr.bf16.gmra.mxu0 %v7187
        %v7406 = vpop.f32.mrf.mxu0
        %v7407 = vadd.f32 0.0, %v7406
        %v7408 = vpop.f32.mrf.mxu0
        %v7409 = vpop.f32.mrf.mxu0
        %v7410 = vadd.f32 0.0, %v7409
        %v7411 = vpop.f32.mrf.mxu0
        %7412 = vdwg.mxu0
        %v7413 = vadd.f32 %v7027, %v7287
        %v7414 = vadd.f32 %v7028, %v7290
        %v7415 = vadd.f32 %v7029, %v7295
        %v7416 = vadd.f32 %v7030, %v7298
        %v7417 = vadd.f32 %v7031, %v7303
        %v7418 = vadd.f32 %v7032, %v7306
        %v7419 = vadd.f32 %v7033, %v7311
        %v7420 = vadd.f32 %v7034, %v7314
        %v7421 = vadd.f32 %v7035, %v7319
        %v7422 = vadd.f32 %v7036, %v7322
        %v7423 = vadd.f32 %v7037, %v7327
        %v7424 = vadd.f32 %v7038, %v7330
        %v7425 = vadd.f32 %v7039, %v7335
        %v7426 = vadd.f32 %v7040, %v7338
        %v7427 = vadd.f32 %v7041, %v7343
        %v7428 = vadd.f32 %v7042, %v7346
        %v7429 = vadd.f32 %v7043, %v7351
        %v7430 = vadd.f32 %v7044, %v7354
        %v7431 = vadd.f32 %v7045, %v7359
        %v7432 = vadd.f32 %v7046, %v7362
        %v7433 = vadd.f32 %v7047, %v7367
        %v7434 = vadd.f32 %v7048, %v7370
        %v7435 = vadd.f32 %v7049, %v7375
        %v7436 = vadd.f32 %v7050, %v7378
        %v7437 = vadd.f32 %v7051, %v7383
        %v7438 = vadd.f32 %v7052, %v7386
        %v7439 = vadd.f32 %v7053, %v7391
        %v7440 = vadd.f32 %v7054, %v7394
        %v7441 = vadd.f32 %v7055, %v7399
        %v7442 = vadd.f32 %v7056, %v7402
        %v7443 = vadd.f32 %v7057, %v7407
        %v7444 = vadd.f32 %v7058, %v7410
        %v7445 = vld [vmem:[%s5416] sm:$0xf]
        %v7446 = vld [vmem:[%s5416 + $0x4] sm:$0xf]
        %v7447 = vld [vmem:[%s5416 + $0x8] sm:$0x1]
        %v7448 = vld [vmem:[%s5416 + $0xc] sm:$0xf]
        %v7449 = vld [vmem:[%s5416 + $0x10] sm:$0xf]
        %v7450 = vld [vmem:[%s5416 + $0x14] sm:$0x1]
        %v7451 = vld [vmem:[%s5416 + $0x18] sm:$0xf]
        %v7452 = vld [vmem:[%s5416 + $0x1c] sm:$0xf]
        %v7453 = vld [vmem:[%s5416 + $0x20] sm:$0x1]
        %v7454 = vld [vmem:[%s5416 + $0x24] sm:$0xf]
        %v7455 = vld [vmem:[%s5416 + $0x28] sm:$0xf]
        %v7456 = vld [vmem:[%s5416 + $0x2c] sm:$0x1]
        %v7457 = vld [vmem:[%s5416 + $0x30] sm:$0xf]
        %v7458 = vld [vmem:[%s5416 + $0x34] sm:$0xf]
        %v7459 = vld [vmem:[%s5416 + $0x38] sm:$0x1]
        %v7460 = vld [vmem:[%s5416 + $0x3c] sm:$0xf]
        %v7461 = vld [vmem:[%s5416 + $0x40] sm:$0xf]
        %v7462 = vld [vmem:[%s5416 + $0x44] sm:$0x1]
        %v7463 = vld [vmem:[%s5416 + $0x48] sm:$0xf]
        %v7464 = vld [vmem:[%s5416 + $0x4c] sm:$0xf]
        %v7465 = vld [vmem:[%s5416 + $0x50] sm:$0x1]
        %v7466 = vld [vmem:[%s5416 + $0x54] sm:$0xf]
        %v7467 = vld [vmem:[%s5416 + $0x58] sm:$0xf]
        %v7468 = vld [vmem:[%s5416 + $0x5c] sm:$0x1]
        %v7469 = vld [vmem:[%s5416 + $0x60] sm:$0xf]
        %v7470 = vld [vmem:[%s5416 + $0x64] sm:$0xf]
        %v7471 = vld [vmem:[%s5416 + $0x68] sm:$0x1]
        %v7472 = vld [vmem:[%s5416 + $0x6c] sm:$0xf]
        %v7473 = vld [vmem:[%s5416 + $0x70] sm:$0xf]
        %v7474 = vld [vmem:[%s5416 + $0x74] sm:$0x1]
        %v7475 = vld [vmem:[%s5416 + $0x78] sm:$0xf]
        %v7476 = vld [vmem:[%s5416 + $0x7c] sm:$0xf]
        %v7477 = vld [vmem:[%s5416 + $0x80] sm:$0x1]
        %v7478 = vld [vmem:[%s5416 + $0x84] sm:$0xf]
        %v7479 = vld [vmem:[%s5416 + $0x88] sm:$0xf]
        %v7480 = vld [vmem:[%s5416 + $0x8c] sm:$0x1]
        %v7481 = vld [vmem:[%s5416 + $0x90] sm:$0xf]
        %v7482 = vld [vmem:[%s5416 + $0x94] sm:$0xf]
        %v7483 = vld [vmem:[%s5416 + $0x98] sm:$0x1]
        %v7484 = vld [vmem:[%s5416 + $0x9c] sm:$0xf]
        %v7485 = vld [vmem:[%s5416 + $0xa0] sm:$0xf]
        %v7486 = vld [vmem:[%s5416 + $0xa4] sm:$0x1]
        %v7487 = vld [vmem:[%s5416 + $0xa8] sm:$0xf]
        %v7488 = vld [vmem:[%s5416 + $0xac] sm:$0xf]
        %v7489 = vld [vmem:[%s5416 + $0xb0] sm:$0x1]
        %v7490 = vld [vmem:[%s5416 + $0xb4] sm:$0xf]
        %v7491 = vld [vmem:[%s5416 + $0xb8] sm:$0xf]
        %v7492 = vld [vmem:[%s5416 + $0xbc] sm:$0x1]
        %v7494 = vshrl.u32 %v7445, 16
        %v7496 = vrot.slane %v7494, 4
        %v7497 = vshll.u32 %v7445, 16
        %v7499 = vrot.slane %v7497, 5
        %v7500 = vor.u32 %v7496, %v7499
        %v7501 = vrot.slane %v7500, 4
        %v7503 = vshll.u32 %v7446, 16
        %v7505 = vrot.slane %v7503, 5
        %v7506 = vsel %vm364, %v7501, %v7505
        %v7507 = vshrl.u32 %v7446, 16
        %v7509 = vrot.slane %v7507, 4
        %v7510 = vor.u32 %v7509, %v7505
        %v7511 = vrot.slane %v7510, 4
        %v7513 = vshll.u32 %v7447, 16
        %v7515 = vrot.slane %v7513, 5
        %v7516 = vsel %vm364, %v7511, %v7515
        %v7518 = vshrl.u32 %v7448, 16
        %v7520 = vrot.slane %v7518, 4
        %v7521 = vshll.u32 %v7448, 16
        %v7523 = vrot.slane %v7521, 5
        %v7524 = vor.u32 %v7520, %v7523
        %v7525 = vrot.slane %v7524, 4
        %v7527 = vshll.u32 %v7449, 16
        %v7529 = vrot.slane %v7527, 5
        %v7530 = vsel %vm364, %v7525, %v7529
        %v7531 = vshrl.u32 %v7449, 16
        %v7533 = vrot.slane %v7531, 4
        %v7534 = vor.u32 %v7533, %v7529
        %v7535 = vrot.slane %v7534, 4
        %v7537 = vshll.u32 %v7450, 16
        %v7539 = vrot.slane %v7537, 5
        %v7540 = vsel %vm364, %v7535, %v7539
        %v7542 = vshrl.u32 %v7451, 16
        %v7544 = vrot.slane %v7542, 4
        %v7545 = vshll.u32 %v7451, 16
        %v7547 = vrot.slane %v7545, 5
        %v7548 = vor.u32 %v7544, %v7547
        %v7549 = vrot.slane %v7548, 4
        %v7551 = vshll.u32 %v7452, 16
        %v7553 = vrot.slane %v7551, 5
        %v7554 = vsel %vm364, %v7549, %v7553
        %v7555 = vshrl.u32 %v7452, 16
        %v7557 = vrot.slane %v7555, 4
        %v7558 = vor.u32 %v7557, %v7553
        %v7559 = vrot.slane %v7558, 4
        %v7561 = vshll.u32 %v7453, 16
        %v7563 = vrot.slane %v7561, 5
        %v7564 = vsel %vm364, %v7559, %v7563
        %v7566 = vshrl.u32 %v7454, 16
        %v7568 = vrot.slane %v7566, 4
        %v7569 = vshll.u32 %v7454, 16
        %v7571 = vrot.slane %v7569, 5
        %v7572 = vor.u32 %v7568, %v7571
        %v7573 = vrot.slane %v7572, 4
        %v7575 = vshll.u32 %v7455, 16
        %v7577 = vrot.slane %v7575, 5
        %v7578 = vsel %vm364, %v7573, %v7577
        %v7579 = vshrl.u32 %v7455, 16
        %v7581 = vrot.slane %v7579, 4
        %v7582 = vor.u32 %v7581, %v7577
        %v7583 = vrot.slane %v7582, 4
        %v7585 = vshll.u32 %v7456, 16
        %v7587 = vrot.slane %v7585, 5
        %v7588 = vsel %vm364, %v7583, %v7587
        %v7590 = vshrl.u32 %v7457, 16
        %v7592 = vrot.slane %v7590, 4
        %v7593 = vshll.u32 %v7457, 16
        %v7595 = vrot.slane %v7593, 5
        %v7596 = vor.u32 %v7592, %v7595
        %v7597 = vrot.slane %v7596, 4
        %v7599 = vshll.u32 %v7458, 16
        %v7601 = vrot.slane %v7599, 5
        %v7602 = vsel %vm364, %v7597, %v7601
        %v7603 = vshrl.u32 %v7458, 16
        %v7605 = vrot.slane %v7603, 4
        %v7606 = vor.u32 %v7605, %v7601
        %v7607 = vrot.slane %v7606, 4
        %v7609 = vshll.u32 %v7459, 16
        %v7611 = vrot.slane %v7609, 5
        %v7612 = vsel %vm364, %v7607, %v7611
        %v7614 = vshrl.u32 %v7460, 16
        %v7616 = vrot.slane %v7614, 4
        %v7617 = vshll.u32 %v7460, 16
        %v7619 = vrot.slane %v7617, 5
        %v7620 = vor.u32 %v7616, %v7619
        %v7621 = vrot.slane %v7620, 4
        %v7623 = vshll.u32 %v7461, 16
        %v7625 = vrot.slane %v7623, 5
        %v7626 = vsel %vm364, %v7621, %v7625
        %v7627 = vshrl.u32 %v7461, 16
        %v7629 = vrot.slane %v7627, 4
        %v7630 = vor.u32 %v7629, %v7625
        %v7631 = vrot.slane %v7630, 4
        %v7633 = vshll.u32 %v7462, 16
        %v7635 = vrot.slane %v7633, 5
        %v7636 = vsel %vm364, %v7631, %v7635
        %v7638 = vshrl.u32 %v7463, 16
        %v7640 = vrot.slane %v7638, 4
        %v7641 = vshll.u32 %v7463, 16
        %v7643 = vrot.slane %v7641, 5
        %v7644 = vor.u32 %v7640, %v7643
        %v7645 = vrot.slane %v7644, 4
        %v7647 = vshll.u32 %v7464, 16
        %v7649 = vrot.slane %v7647, 5
        %v7650 = vsel %vm364, %v7645, %v7649
        %v7651 = vshrl.u32 %v7464, 16
        %v7653 = vrot.slane %v7651, 4
        %v7654 = vor.u32 %v7653, %v7649
        %v7655 = vrot.slane %v7654, 4
        %v7657 = vshll.u32 %v7465, 16
        %v7659 = vrot.slane %v7657, 5
        %v7660 = vsel %vm364, %v7655, %v7659
        %v7662 = vshrl.u32 %v7466, 16
        %v7664 = vrot.slane %v7662, 4
        %v7665 = vshll.u32 %v7466, 16
        %v7667 = vrot.slane %v7665, 5
        %v7668 = vor.u32 %v7664, %v7667
        %v7669 = vrot.slane %v7668, 4
        %v7671 = vshll.u32 %v7467, 16
        %v7673 = vrot.slane %v7671, 5
        %v7674 = vsel %vm364, %v7669, %v7673
        %v7675 = vshrl.u32 %v7467, 16
        %v7677 = vrot.slane %v7675, 4
        %v7678 = vor.u32 %v7677, %v7673
        %v7679 = vrot.slane %v7678, 4
        %v7681 = vshll.u32 %v7468, 16
        %v7683 = vrot.slane %v7681, 5
        %v7684 = vsel %vm364, %v7679, %v7683
        %v7686 = vshrl.u32 %v7469, 16
        %v7688 = vrot.slane %v7686, 4
        %v7689 = vshll.u32 %v7469, 16
        %v7691 = vrot.slane %v7689, 5
        %v7692 = vor.u32 %v7688, %v7691
        %v7693 = vrot.slane %v7692, 4
        %v7695 = vshll.u32 %v7470, 16
        %v7697 = vrot.slane %v7695, 5
        %v7698 = vsel %vm364, %v7693, %v7697
        %v7699 = vshrl.u32 %v7470, 16
        %v7701 = vrot.slane %v7699, 4
        %v7702 = vor.u32 %v7701, %v7697
        %v7703 = vrot.slane %v7702, 4
        %v7705 = vshll.u32 %v7471, 16
        %v7707 = vrot.slane %v7705, 5
        %v7708 = vsel %vm364, %v7703, %v7707
        %v7710 = vshrl.u32 %v7472, 16
        %v7712 = vrot.slane %v7710, 4
        %v7713 = vshll.u32 %v7472, 16
        %v7715 = vrot.slane %v7713, 5
        %v7716 = vor.u32 %v7712, %v7715
        %v7717 = vrot.slane %v7716, 4
        %v7719 = vshll.u32 %v7473, 16
        %v7721 = vrot.slane %v7719, 5
        %v7722 = vsel %vm364, %v7717, %v7721
        %v7723 = vshrl.u32 %v7473, 16
        %v7725 = vrot.slane %v7723, 4
        %v7726 = vor.u32 %v7725, %v7721
        %v7727 = vrot.slane %v7726, 4
        %v7729 = vshll.u32 %v7474, 16
        %v7731 = vrot.slane %v7729, 5
        %v7732 = vsel %vm364, %v7727, %v7731
        %v7734 = vshrl.u32 %v7475, 16
        %v7736 = vrot.slane %v7734, 4
        %v7737 = vshll.u32 %v7475, 16
        %v7739 = vrot.slane %v7737, 5
        %v7740 = vor.u32 %v7736, %v7739
        %v7741 = vrot.slane %v7740, 4
        %v7743 = vshll.u32 %v7476, 16
        %v7745 = vrot.slane %v7743, 5
        %v7746 = vsel %vm364, %v7741, %v7745
        %v7747 = vshrl.u32 %v7476, 16
        %v7749 = vrot.slane %v7747, 4
        %v7750 = vor.u32 %v7749, %v7745
        %v7751 = vrot.slane %v7750, 4
        %v7753 = vshll.u32 %v7477, 16
        %v7755 = vrot.slane %v7753, 5
        %v7756 = vsel %vm364, %v7751, %v7755
        %v7758 = vshrl.u32 %v7478, 16
        %v7760 = vrot.slane %v7758, 4
        %v7761 = vshll.u32 %v7478, 16
        %v7763 = vrot.slane %v7761, 5
        %v7764 = vor.u32 %v7760, %v7763
        %v7765 = vrot.slane %v7764, 4
        %v7767 = vshll.u32 %v7479, 16
        %v7769 = vrot.slane %v7767, 5
        %v7770 = vsel %vm364, %v7765, %v7769
        %v7771 = vshrl.u32 %v7479, 16
        %v7773 = vrot.slane %v7771, 4
        %v7774 = vor.u32 %v7773, %v7769
        %v7775 = vrot.slane %v7774, 4
        %v7777 = vshll.u32 %v7480, 16
        %v7779 = vrot.slane %v7777, 5
        %v7780 = vsel %vm364, %v7775, %v7779
        %v7782 = vshrl.u32 %v7481, 16
        %v7784 = vrot.slane %v7782, 4
        %v7785 = vshll.u32 %v7481, 16
        %v7787 = vrot.slane %v7785, 5
        %v7788 = vor.u32 %v7784, %v7787
        %v7789 = vrot.slane %v7788, 4
        %v7791 = vshll.u32 %v7482, 16
        %v7793 = vrot.slane %v7791, 5
        %v7794 = vsel %vm364, %v7789, %v7793
        %v7795 = vshrl.u32 %v7482, 16
        %v7797 = vrot.slane %v7795, 4
        %v7798 = vor.u32 %v7797, %v7793
        %v7799 = vrot.slane %v7798, 4
        %v7801 = vshll.u32 %v7483, 16
        %v7803 = vrot.slane %v7801, 5
        %v7804 = vsel %vm364, %v7799, %v7803
        %v7806 = vshrl.u32 %v7484, 16
        %v7808 = vrot.slane %v7806, 4
        %v7809 = vshll.u32 %v7484, 16
        %v7811 = vrot.slane %v7809, 5
        %v7812 = vor.u32 %v7808, %v7811
        %v7813 = vrot.slane %v7812, 4
        %v7815 = vshll.u32 %v7485, 16
        %v7817 = vrot.slane %v7815, 5
        %v7818 = vsel %vm364, %v7813, %v7817
        %v7819 = vshrl.u32 %v7485, 16
        %v7821 = vrot.slane %v7819, 4
        %v7822 = vor.u32 %v7821, %v7817
        %v7823 = vrot.slane %v7822, 4
        %v7825 = vshll.u32 %v7486, 16
        %v7827 = vrot.slane %v7825, 5
        %v7828 = vsel %vm364, %v7823, %v7827
        %v7830 = vshrl.u32 %v7487, 16
        %v7832 = vrot.slane %v7830, 4
        %v7833 = vshll.u32 %v7487, 16
        %v7835 = vrot.slane %v7833, 5
        %v7836 = vor.u32 %v7832, %v7835
        %v7837 = vrot.slane %v7836, 4
        %v7839 = vshll.u32 %v7488, 16
        %v7841 = vrot.slane %v7839, 5
        %v7842 = vsel %vm364, %v7837, %v7841
        %v7843 = vshrl.u32 %v7488, 16
        %v7845 = vrot.slane %v7843, 4
        %v7846 = vor.u32 %v7845, %v7841
        %v7847 = vrot.slane %v7846, 4
        %v7849 = vshll.u32 %v7489, 16
        %v7851 = vrot.slane %v7849, 5
        %v7852 = vsel %vm364, %v7847, %v7851
        %v7854 = vshrl.u32 %v7490, 16
        %v7856 = vrot.slane %v7854, 4
        %v7857 = vshll.u32 %v7490, 16
        %v7859 = vrot.slane %v7857, 5
        %v7860 = vor.u32 %v7856, %v7859
        %v7861 = vrot.slane %v7860, 4
        %v7863 = vshll.u32 %v7491, 16
        %v7865 = vrot.slane %v7863, 5
        %v7866 = vsel %vm364, %v7861, %v7865
        %v7867 = vshrl.u32 %v7491, 16
        %v7869 = vrot.slane %v7867, 4
        %v7870 = vor.u32 %v7869, %v7865
        %v7871 = vrot.slane %v7870, 4
        %v7873 = vshll.u32 %v7492, 16
        %v7875 = vrot.slane %v7873, 5
        %v7876 = vsel %vm364, %v7871, %v7875
        %s7877 = scalar_lea.vmem [#allocation6], 256
        %v7878 = vld [vmem:[%s7877] sm:$0xf]
        %v7879 = vld [vmem:[%s7877 + $0x4] sm:$0xf]
        %v7880 = vld [vmem:[%s7877 + $0x8] sm:$0xf]
        %v7881 = vld [vmem:[%s7877 + $0xc] sm:$0xf]
        %v7882 = vld [vmem:[%s7877 + $0x10] sm:$0xf]
        %v7883 = vld [vmem:[%s7877 + $0x14] sm:$0xf]
        %v7884 = vld [vmem:[%s7877 + $0x18] sm:$0xf]
        %v7885 = vld [vmem:[%s7877 + $0x1c] sm:$0xf]
        %v7886 = vld [vmem:[%s7877 + $0x20] sm:$0xf]
        %v7887 = vld [vmem:[%s7877 + $0x24] sm:$0xf]
        %v7888 = vld [vmem:[%s7877 + $0x28] sm:$0xf]
        %v7889 = vld [vmem:[%s7877 + $0x2c] sm:$0xf]
        %v7890 = vld [vmem:[%s7877 + $0x30] sm:$0xf]
        %v7891 = vld [vmem:[%s7877 + $0x34] sm:$0xf]
        %v7892 = vld [vmem:[%s7877 + $0x38] sm:$0xf]
        %v7893 = vld [vmem:[%s7877 + $0x3c] sm:$0xf]
        %v7894 = vunpack.c.l.b16 %v7506
        %v7895 = vunpack.c.l.b16 %v7516
        %v7896 = vunpack.c.l.b16 %v7530
        %v7897 = vunpack.c.l.b16 %v7540
        %v7898 = vunpack.c.l.b16 %v7554
        %v7899 = vunpack.c.l.b16 %v7564
        %v7900 = vunpack.c.l.b16 %v7578
        %v7901 = vunpack.c.l.b16 %v7588
        %v7902 = vunpack.c.l.b16 %v7602
        %v7903 = vunpack.c.l.b16 %v7612
        %v7904 = vunpack.c.l.b16 %v7626
        %v7905 = vunpack.c.l.b16 %v7636
        %v7906 = vunpack.c.l.b16 %v7650
        %v7907 = vunpack.c.l.b16 %v7660
        %v7908 = vunpack.c.l.b16 %v7674
        %v7909 = vunpack.c.l.b16 %v7684
        %v7910 = vunpack.c.l.b16 %v7698
        %v7911 = vunpack.c.l.b16 %v7708
        %v7912 = vunpack.c.l.b16 %v7722
        %v7913 = vunpack.c.l.b16 %v7732
        %v7914 = vunpack.c.l.b16 %v7746
        %v7915 = vunpack.c.l.b16 %v7756
        %v7916 = vunpack.c.l.b16 %v7770
        %v7917 = vunpack.c.l.b16 %v7780
        %v7918 = vunpack.c.l.b16 %v7794
        %v7919 = vunpack.c.l.b16 %v7804
        %v7920 = vunpack.c.l.b16 %v7818
        %v7921 = vunpack.c.l.b16 %v7828
        %v7922 = vunpack.c.l.b16 %v7842
        %v7923 = vunpack.c.l.b16 %v7852
        %v7924 = vunpack.c.l.b16 %v7866
        %v7925 = vunpack.c.l.b16 %v7876
        %v7926 = vpack.c.b16 %v7895, %v7894
        %v7927 = vpack.c.b16 %v7897, %v7896
        %v7928 = vpack.c.b16 %v7899, %v7898
        %v7929 = vpack.c.b16 %v7901, %v7900
        %v7930 = vpack.c.b16 %v7903, %v7902
        %v7931 = vpack.c.b16 %v7905, %v7904
        %v7932 = vpack.c.b16 %v7907, %v7906
        %v7933 = vpack.c.b16 %v7909, %v7908
        %v7934 = vpack.c.b16 %v7911, %v7910
        %v7935 = vpack.c.b16 %v7913, %v7912
        %v7936 = vpack.c.b16 %v7915, %v7914
        %v7937 = vpack.c.b16 %v7917, %v7916
        %v7938 = vpack.c.b16 %v7919, %v7918
        %v7939 = vpack.c.b16 %v7921, %v7920
        %v7940 = vpack.c.b16 %v7923, %v7922
        %v7941 = vpack.c.b16 %v7925, %v7924
        %v7974 = vunpack.c.l.b16 %v7878
        %v7975 = vunpack.c.l.b16 %v7879
        %v7976 = vunpack.c.l.b16 %v7880
        %v7977 = vunpack.c.l.b16 %v7881
        %v7978 = vunpack.c.l.b16 %v7882
        %v7979 = vunpack.c.l.b16 %v7883
        %v7980 = vunpack.c.l.b16 %v7884
        %v7981 = vunpack.c.l.b16 %v7885
        %v7982 = vunpack.c.l.b16 %v7886
        %v7983 = vunpack.c.l.b16 %v7887
        %v7984 = vunpack.c.l.b16 %v7888
        %v7985 = vunpack.c.l.b16 %v7889
        %v7986 = vunpack.c.l.b16 %v7890
        %v7987 = vunpack.c.l.b16 %v7891
        %v7988 = vunpack.c.l.b16 %v7892
        %v7989 = vunpack.c.l.b16 %v7893
        %v7990 = vpack.c.b16 %v7975, %v7974
        %v7991 = vpack.c.b16 %v7977, %v7976
        %v7992 = vpack.c.b16 %v7979, %v7978
        %v7993 = vpack.c.b16 %v7981, %v7980
        %v7994 = vpack.c.b16 %v7983, %v7982
        %v7995 = vpack.c.b16 %v7985, %v7984
        %v7996 = vpack.c.b16 %v7987, %v7986
        %v7997 = vpack.c.b16 %v7989, %v7988
        %8006 = vmatprep.subr.bf16.mxu0 0
        %8007 = vmatpush1.bf16.msra.mxu0 %v7997
        %8008 = vmatprep.subr.bf16.mxu0 0
        %8009 = vmatpush1.bf16.msra.mxu0 %v7996
        %8010 = vmatprep.subr.bf16.mxu0 0
        %8011 = vmatpush1.bf16.msra.mxu0 %v7995
        %8012 = vmatprep.subr.bf16.mxu0 0
        %8013 = vmatpush1.bf16.msra.mxu0 %v7994
        %8014 = vmatprep.subr.bf16.mxu0 0
        %8015 = vmatpush1.bf16.msra.mxu0 %v7993
        %8016 = vmatprep.subr.bf16.mxu0 0
        %8017 = vmatpush1.bf16.msra.mxu0 %v7992
        %8018 = vmatprep.subr.bf16.mxu0 0
        %8019 = vmatpush1.bf16.msra.mxu0 %v7991
        %8020 = vmatprep.subr.bf16.mxu0 0
        %8021 = vmatpush1.bf16.msra.mxu0 %v7990
        %8022 = vmatprep.subr.bf16.mxu0 0
        %8023 = vmatpush2.bf16.msra.mxu0 0
        %8024 = vmatprep.subr.bf16.mxu0 0
        %8025 = vmatpush2.bf16.msra.mxu0 0
        %8026 = vmatprep.subr.bf16.mxu0 0
        %8027 = vmatpush2.bf16.msra.mxu0 0
        %8028 = vmatprep.subr.bf16.mxu0 0
        %8029 = vmatpush2.bf16.msra.mxu0 0
        %8030 = vmatprep.subr.bf16.mxu0 0
        %8031 = vmatpush2.bf16.msra.mxu0 0
        %8032 = vmatprep.subr.bf16.mxu0 0
        %8033 = vmatpush2.bf16.msra.mxu0 0
        %8034 = vmatprep.subr.bf16.mxu0 0
        %8035 = vmatpush2.bf16.msra.mxu0 0
        %8036 = vmatprep.subr.bf16.mxu0 0
        %8037 = vmatpush2.bf16.msra.mxu0 0
        %8038 = vmatprep.mubr.bf16.mxu0 0
        %8039 = vmatmul.mubr.bf16.gmra.mxu0 %v7926
        %v8040 = vpop.f32.mrf.mxu0
        %v8041 = vadd.f32 0.0, %v8040
        %v8042 = vpop.f32.mrf.mxu0
        %v8043 = vpop.f32.mrf.mxu0
        %v8044 = vadd.f32 0.0, %v8043
        %v8045 = vpop.f32.mrf.mxu0
        %8046 = vmatprep.mubr.bf16.mxu0 0
        %8047 = vmatmul.mubr.bf16.gmra.mxu0 %v7927
        %v8048 = vpop.f32.mrf.mxu0
        %v8049 = vadd.f32 0.0, %v8048
        %v8050 = vpop.f32.mrf.mxu0
        %v8051 = vpop.f32.mrf.mxu0
        %v8052 = vadd.f32 0.0, %v8051
        %v8053 = vpop.f32.mrf.mxu0
        %8054 = vmatprep.mubr.bf16.mxu0 0
        %8055 = vmatmul.mubr.bf16.gmra.mxu0 %v7928
        %v8056 = vpop.f32.mrf.mxu0
        %v8057 = vadd.f32 0.0, %v8056
        %v8058 = vpop.f32.mrf.mxu0
        %v8059 = vpop.f32.mrf.mxu0
        %v8060 = vadd.f32 0.0, %v8059
        %v8061 = vpop.f32.mrf.mxu0
        %8062 = vmatprep.mubr.bf16.mxu0 0
        %8063 = vmatmul.mubr.bf16.gmra.mxu0 %v7929
        %v8064 = vpop.f32.mrf.mxu0
        %v8065 = vadd.f32 0.0, %v8064
        %v8066 = vpop.f32.mrf.mxu0
        %v8067 = vpop.f32.mrf.mxu0
        %v8068 = vadd.f32 0.0, %v8067
        %v8069 = vpop.f32.mrf.mxu0
        %8070 = vmatprep.mubr.bf16.mxu0 0
        %8071 = vmatmul.mubr.bf16.gmra.mxu0 %v7930
        %v8072 = vpop.f32.mrf.mxu0
        %v8073 = vadd.f32 0.0, %v8072
        %v8074 = vpop.f32.mrf.mxu0
        %v8075 = vpop.f32.mrf.mxu0
        %v8076 = vadd.f32 0.0, %v8075
        %v8077 = vpop.f32.mrf.mxu0
        %8078 = vmatprep.mubr.bf16.mxu0 0
        %8079 = vmatmul.mubr.bf16.gmra.mxu0 %v7931
        %v8080 = vpop.f32.mrf.mxu0
        %v8081 = vadd.f32 0.0, %v8080
        %v8082 = vpop.f32.mrf.mxu0
        %v8083 = vpop.f32.mrf.mxu0
        %v8084 = vadd.f32 0.0, %v8083
        %v8085 = vpop.f32.mrf.mxu0
        %8086 = vmatprep.mubr.bf16.mxu0 0
        %8087 = vmatmul.mubr.bf16.gmra.mxu0 %v7932
        %v8088 = vpop.f32.mrf.mxu0
        %v8089 = vadd.f32 0.0, %v8088
        %v8090 = vpop.f32.mrf.mxu0
        %v8091 = vpop.f32.mrf.mxu0
        %v8092 = vadd.f32 0.0, %v8091
        %v8093 = vpop.f32.mrf.mxu0
        %8094 = vmatprep.mubr.bf16.mxu0 0
        %8095 = vmatmul.mubr.bf16.gmra.mxu0 %v7933
        %v8096 = vpop.f32.mrf.mxu0
        %v8097 = vadd.f32 0.0, %v8096
        %v8098 = vpop.f32.mrf.mxu0
        %v8099 = vpop.f32.mrf.mxu0
        %v8100 = vadd.f32 0.0, %v8099
        %v8101 = vpop.f32.mrf.mxu0
        %8102 = vmatprep.mubr.bf16.mxu0 0
        %8103 = vmatmul.mubr.bf16.gmra.mxu0 %v7934
        %v8104 = vpop.f32.mrf.mxu0
        %v8105 = vadd.f32 0.0, %v8104
        %v8106 = vpop.f32.mrf.mxu0
        %v8107 = vpop.f32.mrf.mxu0
        %v8108 = vadd.f32 0.0, %v8107
        %v8109 = vpop.f32.mrf.mxu0
        %8110 = vmatprep.mubr.bf16.mxu0 0
        %8111 = vmatmul.mubr.bf16.gmra.mxu0 %v7935
        %v8112 = vpop.f32.mrf.mxu0
        %v8113 = vadd.f32 0.0, %v8112
        %v8114 = vpop.f32.mrf.mxu0
        %v8115 = vpop.f32.mrf.mxu0
        %v8116 = vadd.f32 0.0, %v8115
        %v8117 = vpop.f32.mrf.mxu0
        %8118 = vmatprep.mubr.bf16.mxu0 0
        %8119 = vmatmul.mubr.bf16.gmra.mxu0 %v7936
        %v8120 = vpop.f32.mrf.mxu0
        %v8121 = vadd.f32 0.0, %v8120
        %v8122 = vpop.f32.mrf.mxu0
        %v8123 = vpop.f32.mrf.mxu0
        %v8124 = vadd.f32 0.0, %v8123
        %v8125 = vpop.f32.mrf.mxu0
        %8126 = vmatprep.mubr.bf16.mxu0 0
        %8127 = vmatmul.mubr.bf16.gmra.mxu0 %v7937
        %v8128 = vpop.f32.mrf.mxu0
        %v8129 = vadd.f32 0.0, %v8128
        %v8130 = vpop.f32.mrf.mxu0
        %v8131 = vpop.f32.mrf.mxu0
        %v8132 = vadd.f32 0.0, %v8131
        %v8133 = vpop.f32.mrf.mxu0
        %8134 = vmatprep.mubr.bf16.mxu0 0
        %8135 = vmatmul.mubr.bf16.gmra.mxu0 %v7938
        %v8136 = vpop.f32.mrf.mxu0
        %v8137 = vadd.f32 0.0, %v8136
        %v8138 = vpop.f32.mrf.mxu0
        %v8139 = vpop.f32.mrf.mxu0
        %v8140 = vadd.f32 0.0, %v8139
        %v8141 = vpop.f32.mrf.mxu0
        %8142 = vmatprep.mubr.bf16.mxu0 0
        %8143 = vmatmul.mubr.bf16.gmra.mxu0 %v7939
        %v8144 = vpop.f32.mrf.mxu0
        %v8145 = vadd.f32 0.0, %v8144
        %v8146 = vpop.f32.mrf.mxu0
        %v8147 = vpop.f32.mrf.mxu0
        %v8148 = vadd.f32 0.0, %v8147
        %v8149 = vpop.f32.mrf.mxu0
        %8150 = vmatprep.mubr.bf16.mxu0 0
        %8151 = vmatmul.mubr.bf16.gmra.mxu0 %v7940
        %v8152 = vpop.f32.mrf.mxu0
        %v8153 = vadd.f32 0.0, %v8152
        %v8154 = vpop.f32.mrf.mxu0
        %v8155 = vpop.f32.mrf.mxu0
        %v8156 = vadd.f32 0.0, %v8155
        %v8157 = vpop.f32.mrf.mxu0
        %8158 = vmatprep.mubr.bf16.mxu0 0
        %8159 = vmatmul.mubr.bf16.gmra.mxu0 %v7941
        %v8160 = vpop.f32.mrf.mxu0
        %v8161 = vadd.f32 0.0, %v8160
        %v8162 = vpop.f32.mrf.mxu0
        %v8163 = vpop.f32.mrf.mxu0
        %v8164 = vadd.f32 0.0, %v8163
        %v8165 = vpop.f32.mrf.mxu0
        %8166 = vdwg.mxu0
        %v8167 = vadd.f32 %v7413, %v8041
        %v8168 = vadd.f32 %v7414, %v8044
        %v8169 = vadd.f32 %v7415, %v8049
        %v8170 = vadd.f32 %v7416, %v8052
        %v8171 = vadd.f32 %v7417, %v8057
        %v8172 = vadd.f32 %v7418, %v8060
        %v8173 = vadd.f32 %v7419, %v8065
        %v8174 = vadd.f32 %v7420, %v8068
        %v8175 = vadd.f32 %v7421, %v8073
        %v8176 = vadd.f32 %v7422, %v8076
        %v8177 = vadd.f32 %v7423, %v8081
        %v8178 = vadd.f32 %v7424, %v8084
        %v8179 = vadd.f32 %v7425, %v8089
        %v8180 = vadd.f32 %v7426, %v8092
        %v8181 = vadd.f32 %v7427, %v8097
        %v8182 = vadd.f32 %v7428, %v8100
        %v8183 = vadd.f32 %v7429, %v8105
        %v8184 = vadd.f32 %v7430, %v8108
        %v8185 = vadd.f32 %v7431, %v8113
        %v8186 = vadd.f32 %v7432, %v8116
        %v8187 = vadd.f32 %v7433, %v8121
        %v8188 = vadd.f32 %v7434, %v8124
        %v8189 = vadd.f32 %v7435, %v8129
        %v8190 = vadd.f32 %v7436, %v8132
        %v8191 = vadd.f32 %v7437, %v8137
        %v8192 = vadd.f32 %v7438, %v8140
        %v8193 = vadd.f32 %v7439, %v8145
        %v8194 = vadd.f32 %v7440, %v8148
        %v8195 = vadd.f32 %v7441, %v8153
        %v8196 = vadd.f32 %v7442, %v8156
        %v8197 = vadd.f32 %v7443, %v8161
        %v8198 = vadd.f32 %v7444, %v8164
        %v8199 = vld [vmem:[%s5416] sm:$0xe]
        %v8200 = vld [vmem:[%s5416 + $0xc] sm:$0xe]
        %v8201 = vld [vmem:[%s5416 + $0x18] sm:$0xe]
        %v8202 = vld [vmem:[%s5416 + $0x24] sm:$0xe]
        %v8203 = vld [vmem:[%s5416 + $0x30] sm:$0xe]
        %v8204 = vld [vmem:[%s5416 + $0x3c] sm:$0xe]
        %v8205 = vld [vmem:[%s5416 + $0x48] sm:$0xe]
        %v8206 = vld [vmem:[%s5416 + $0x54] sm:$0xe]
        %v8207 = vld [vmem:[%s5416 + $0x60] sm:$0xe]
        %v8208 = vld [vmem:[%s5416 + $0x6c] sm:$0xe]
        %v8209 = vld [vmem:[%s5416 + $0x78] sm:$0xe]
        %v8210 = vld [vmem:[%s5416 + $0x84] sm:$0xe]
        %v8211 = vld [vmem:[%s5416 + $0x90] sm:$0xe]
        %v8212 = vld [vmem:[%s5416 + $0x9c] sm:$0xe]
        %v8213 = vld [vmem:[%s5416 + $0xa8] sm:$0xe]
        %v8214 = vld [vmem:[%s5416 + $0xb4] sm:$0xe]
        %v8263 = vrot.slane %v8199, 5
        %v8264 = vrot.slane %v8263, 4
        %v8265 = vrot.slane %v7446, 5
        %v8266 = vsel %vm1355, %v8264, %v8265
        %v8267 = vrot.slane %v8265, 4
        %v8268 = vrot.slane %v7447, 5
        %v8269 = vsel %vm1355, %v8267, %v8268
        %v8270 = vrot.slane %v8200, 5
        %v8271 = vrot.slane %v8270, 4
        %v8272 = vrot.slane %v7449, 5
        %v8273 = vsel %vm1355, %v8271, %v8272
        %v8274 = vrot.slane %v8272, 4
        %v8275 = vrot.slane %v7450, 5
        %v8276 = vsel %vm1355, %v8274, %v8275
        %v8277 = vrot.slane %v8201, 5
        %v8278 = vrot.slane %v8277, 4
        %v8279 = vrot.slane %v7452, 5
        %v8280 = vsel %vm1355, %v8278, %v8279
        %v8281 = vrot.slane %v8279, 4
        %v8282 = vrot.slane %v7453, 5
        %v8283 = vsel %vm1355, %v8281, %v8282
        %v8284 = vrot.slane %v8202, 5
        %v8285 = vrot.slane %v8284, 4
        %v8286 = vrot.slane %v7455, 5
        %v8287 = vsel %vm1355, %v8285, %v8286
        %v8288 = vrot.slane %v8286, 4
        %v8289 = vrot.slane %v7456, 5
        %v8290 = vsel %vm1355, %v8288, %v8289
        %v8291 = vrot.slane %v8203, 5
        %v8292 = vrot.slane %v8291, 4
        %v8293 = vrot.slane %v7458, 5
        %v8294 = vsel %vm1355, %v8292, %v8293
        %v8295 = vrot.slane %v8293, 4
        %v8296 = vrot.slane %v7459, 5
        %v8297 = vsel %vm1355, %v8295, %v8296
        %v8298 = vrot.slane %v8204, 5
        %v8299 = vrot.slane %v8298, 4
        %v8300 = vrot.slane %v7461, 5
        %v8301 = vsel %vm1355, %v8299, %v8300
        %v8302 = vrot.slane %v8300, 4
        %v8303 = vrot.slane %v7462, 5
        %v8304 = vsel %vm1355, %v8302, %v8303
        %v8305 = vrot.slane %v8205, 5
        %v8306 = vrot.slane %v8305, 4
        %v8307 = vrot.slane %v7464, 5
        %v8308 = vsel %vm1355, %v8306, %v8307
        %v8309 = vrot.slane %v8307, 4
        %v8310 = vrot.slane %v7465, 5
        %v8311 = vsel %vm1355, %v8309, %v8310
        %v8312 = vrot.slane %v8206, 5
        %v8313 = vrot.slane %v8312, 4
        %v8314 = vrot.slane %v7467, 5
        %v8315 = vsel %vm1355, %v8313, %v8314
        %v8316 = vrot.slane %v8314, 4
        %v8317 = vrot.slane %v7468, 5
        %v8318 = vsel %vm1355, %v8316, %v8317
        %v8319 = vrot.slane %v8207, 5
        %v8320 = vrot.slane %v8319, 4
        %v8321 = vrot.slane %v7470, 5
        %v8322 = vsel %vm1355, %v8320, %v8321
        %v8323 = vrot.slane %v8321, 4
        %v8324 = vrot.slane %v7471, 5
        %v8325 = vsel %vm1355, %v8323, %v8324
        %v8326 = vrot.slane %v8208, 5
        %v8327 = vrot.slane %v8326, 4
        %v8328 = vrot.slane %v7473, 5
        %v8329 = vsel %vm1355, %v8327, %v8328
        %v8330 = vrot.slane %v8328, 4
        %v8331 = vrot.slane %v7474, 5
        %v8332 = vsel %vm1355, %v8330, %v8331
        %v8333 = vrot.slane %v8209, 5
        %v8334 = vrot.slane %v8333, 4
        %v8335 = vrot.slane %v7476, 5
        %v8336 = vsel %vm1355, %v8334, %v8335
        %v8337 = vrot.slane %v8335, 4
        %v8338 = vrot.slane %v7477, 5
        %v8339 = vsel %vm1355, %v8337, %v8338
        %v8340 = vrot.slane %v8210, 5
        %v8341 = vrot.slane %v8340, 4
        %v8342 = vrot.slane %v7479, 5
        %v8343 = vsel %vm1355, %v8341, %v8342
        %v8344 = vrot.slane %v8342, 4
        %v8345 = vrot.slane %v7480, 5
        %v8346 = vsel %vm1355, %v8344, %v8345
        %v8347 = vrot.slane %v8211, 5
        %v8348 = vrot.slane %v8347, 4
        %v8349 = vrot.slane %v7482, 5
        %v8350 = vsel %vm1355, %v8348, %v8349
        %v8351 = vrot.slane %v8349, 4
        %v8352 = vrot.slane %v7483, 5
        %v8353 = vsel %vm1355, %v8351, %v8352
        %v8354 = vrot.slane %v8212, 5
        %v8355 = vrot.slane %v8354, 4
        %v8356 = vrot.slane %v7485, 5
        %v8357 = vsel %vm1355, %v8355, %v8356
        %v8358 = vrot.slane %v8356, 4
        %v8359 = vrot.slane %v7486, 5
        %v8360 = vsel %vm1355, %v8358, %v8359
        %v8361 = vrot.slane %v8213, 5
        %v8362 = vrot.slane %v8361, 4
        %v8363 = vrot.slane %v7488, 5
        %v8364 = vsel %vm1355, %v8362, %v8363
        %v8365 = vrot.slane %v8363, 4
        %v8366 = vrot.slane %v7489, 5
        %v8367 = vsel %vm1355, %v8365, %v8366
        %v8368 = vrot.slane %v8214, 5
        %v8369 = vrot.slane %v8368, 4
        %v8370 = vrot.slane %v7491, 5
        %v8371 = vsel %vm1355, %v8369, %v8370
        %v8372 = vrot.slane %v8370, 4
        %v8373 = vrot.slane %v7492, 5
        %v8374 = vsel %vm1355, %v8372, %v8373
        %s8375 = scalar_lea.vmem [#allocation6], 320
        %v8376 = vld [vmem:[%s8375] sm:$0xf]
        %v8377 = vld [vmem:[%s8375 + $0x4] sm:$0xf]
        %v8378 = vld [vmem:[%s8375 + $0x8] sm:$0xf]
        %v8379 = vld [vmem:[%s8375 + $0xc] sm:$0xf]
        %v8380 = vld [vmem:[%s8375 + $0x10] sm:$0xf]
        %v8381 = vld [vmem:[%s8375 + $0x14] sm:$0xf]
        %v8382 = vld [vmem:[%s8375 + $0x18] sm:$0xf]
        %v8383 = vld [vmem:[%s8375 + $0x1c] sm:$0xf]
        %v8384 = vld [vmem:[%s8375 + $0x20] sm:$0xf]
        %v8385 = vld [vmem:[%s8375 + $0x24] sm:$0xf]
        %v8386 = vld [vmem:[%s8375 + $0x28] sm:$0xf]
        %v8387 = vld [vmem:[%s8375 + $0x2c] sm:$0xf]
        %v8388 = vld [vmem:[%s8375 + $0x30] sm:$0xf]
        %v8389 = vld [vmem:[%s8375 + $0x34] sm:$0xf]
        %v8390 = vld [vmem:[%s8375 + $0x38] sm:$0xf]
        %v8391 = vld [vmem:[%s8375 + $0x3c] sm:$0xf]
        %v8392 = vunpack.c.l.b16 %v8266
        %v8393 = vunpack.c.l.b16 %v8269
        %v8394 = vunpack.c.l.b16 %v8273
        %v8395 = vunpack.c.l.b16 %v8276
        %v8396 = vunpack.c.l.b16 %v8280
        %v8397 = vunpack.c.l.b16 %v8283
        %v8398 = vunpack.c.l.b16 %v8287
        %v8399 = vunpack.c.l.b16 %v8290
        %v8400 = vunpack.c.l.b16 %v8294
        %v8401 = vunpack.c.l.b16 %v8297
        %v8402 = vunpack.c.l.b16 %v8301
        %v8403 = vunpack.c.l.b16 %v8304
        %v8404 = vunpack.c.l.b16 %v8308
        %v8405 = vunpack.c.l.b16 %v8311
        %v8406 = vunpack.c.l.b16 %v8315
        %v8407 = vunpack.c.l.b16 %v8318
        %v8408 = vunpack.c.l.b16 %v8322
        %v8409 = vunpack.c.l.b16 %v8325
        %v8410 = vunpack.c.l.b16 %v8329
        %v8411 = vunpack.c.l.b16 %v8332
        %v8412 = vunpack.c.l.b16 %v8336
        %v8413 = vunpack.c.l.b16 %v8339
        %v8414 = vunpack.c.l.b16 %v8343
        %v8415 = vunpack.c.l.b16 %v8346
        %v8416 = vunpack.c.l.b16 %v8350
        %v8417 = vunpack.c.l.b16 %v8353
        %v8418 = vunpack.c.l.b16 %v8357
        %v8419 = vunpack.c.l.b16 %v8360
        %v8420 = vunpack.c.l.b16 %v8364
        %v8421 = vunpack.c.l.b16 %v8367
        %v8422 = vunpack.c.l.b16 %v8371
        %v8423 = vunpack.c.l.b16 %v8374
        %v8424 = vpack.c.b16 %v8393, %v8392
        %v8425 = vpack.c.b16 %v8395, %v8394
        %v8426 = vpack.c.b16 %v8397, %v8396
        %v8427 = vpack.c.b16 %v8399, %v8398
        %v8428 = vpack.c.b16 %v8401, %v8400
        %v8429 = vpack.c.b16 %v8403, %v8402
        %v8430 = vpack.c.b16 %v8405, %v8404
        %v8431 = vpack.c.b16 %v8407, %v8406
        %v8432 = vpack.c.b16 %v8409, %v8408
        %v8433 = vpack.c.b16 %v8411, %v8410
        %v8434 = vpack.c.b16 %v8413, %v8412
        %v8435 = vpack.c.b16 %v8415, %v8414
        %v8436 = vpack.c.b16 %v8417, %v8416
        %v8437 = vpack.c.b16 %v8419, %v8418
        %v8438 = vpack.c.b16 %v8421, %v8420
        %v8439 = vpack.c.b16 %v8423, %v8422
        %v8472 = vunpack.c.l.b16 %v8376
        %v8473 = vunpack.c.l.b16 %v8377
        %v8474 = vunpack.c.l.b16 %v8378
        %v8475 = vunpack.c.l.b16 %v8379
        %v8476 = vunpack.c.l.b16 %v8380
        %v8477 = vunpack.c.l.b16 %v8381
        %v8478 = vunpack.c.l.b16 %v8382
        %v8479 = vunpack.c.l.b16 %v8383
        %v8480 = vunpack.c.l.b16 %v8384
        %v8481 = vunpack.c.l.b16 %v8385
        %v8482 = vunpack.c.l.b16 %v8386
        %v8483 = vunpack.c.l.b16 %v8387
        %v8484 = vunpack.c.l.b16 %v8388
        %v8485 = vunpack.c.l.b16 %v8389
        %v8486 = vunpack.c.l.b16 %v8390
        %v8487 = vunpack.c.l.b16 %v8391
        %v8488 = vpack.c.b16 %v8473, %v8472
        %v8489 = vpack.c.b16 %v8475, %v8474
        %v8490 = vpack.c.b16 %v8477, %v8476
        %v8491 = vpack.c.b16 %v8479, %v8478
        %v8492 = vpack.c.b16 %v8481, %v8480
        %v8493 = vpack.c.b16 %v8483, %v8482
        %v8494 = vpack.c.b16 %v8485, %v8484
        %v8495 = vpack.c.b16 %v8487, %v8486
        %8504 = vmatprep.subr.bf16.mxu0 0
        %8505 = vmatpush1.bf16.msra.mxu0 %v8495
        %8506 = vmatprep.subr.bf16.mxu0 0
        %8507 = vmatpush1.bf16.msra.mxu0 %v8494
        %8508 = vmatprep.subr.bf16.mxu0 0
        %8509 = vmatpush1.bf16.msra.mxu0 %v8493
        %8510 = vmatprep.subr.bf16.mxu0 0
        %8511 = vmatpush1.bf16.msra.mxu0 %v8492
        %8512 = vmatprep.subr.bf16.mxu0 0
        %8513 = vmatpush1.bf16.msra.mxu0 %v8491
        %8514 = vmatprep.subr.bf16.mxu0 0
        %8515 = vmatpush1.bf16.msra.mxu0 %v8490
        %8516 = vmatprep.subr.bf16.mxu0 0
        %8517 = vmatpush1.bf16.msra.mxu0 %v8489
        %8518 = vmatprep.subr.bf16.mxu0 0
        %8519 = vmatpush1.bf16.msra.mxu0 %v8488
        %8520 = vmatprep.subr.bf16.mxu0 0
        %8521 = vmatpush2.bf16.msra.mxu0 0
        %8522 = vmatprep.subr.bf16.mxu0 0
        %8523 = vmatpush2.bf16.msra.mxu0 0
        %8524 = vmatprep.subr.bf16.mxu0 0
        %8525 = vmatpush2.bf16.msra.mxu0 0
        %8526 = vmatprep.subr.bf16.mxu0 0
        %8527 = vmatpush2.bf16.msra.mxu0 0
        %8528 = vmatprep.subr.bf16.mxu0 0
        %8529 = vmatpush2.bf16.msra.mxu0 0
        %8530 = vmatprep.subr.bf16.mxu0 0
        %8531 = vmatpush2.bf16.msra.mxu0 0
        %8532 = vmatprep.subr.bf16.mxu0 0
        %8533 = vmatpush2.bf16.msra.mxu0 0
        %8534 = vmatprep.subr.bf16.mxu0 0
        %8535 = vmatpush2.bf16.msra.mxu0 0
        %8536 = vmatprep.mubr.bf16.mxu0 0
        %8537 = vmatmul.mubr.bf16.gmra.mxu0 %v8424
        %v8538 = vpop.f32.mrf.mxu0
        %v8539 = vadd.f32 0.0, %v8538
        %v8540 = vpop.f32.mrf.mxu0
        %v8541 = vpop.f32.mrf.mxu0
        %v8542 = vadd.f32 0.0, %v8541
        %v8543 = vpop.f32.mrf.mxu0
        %8544 = vmatprep.mubr.bf16.mxu0 0
        %8545 = vmatmul.mubr.bf16.gmra.mxu0 %v8425
        %v8546 = vpop.f32.mrf.mxu0
        %v8547 = vadd.f32 0.0, %v8546
        %v8548 = vpop.f32.mrf.mxu0
        %v8549 = vpop.f32.mrf.mxu0
        %v8550 = vadd.f32 0.0, %v8549
        %v8551 = vpop.f32.mrf.mxu0
        %8552 = vmatprep.mubr.bf16.mxu0 0
        %8553 = vmatmul.mubr.bf16.gmra.mxu0 %v8426
        %v8554 = vpop.f32.mrf.mxu0
        %v8555 = vadd.f32 0.0, %v8554
        %v8556 = vpop.f32.mrf.mxu0
        %v8557 = vpop.f32.mrf.mxu0
        %v8558 = vadd.f32 0.0, %v8557
        %v8559 = vpop.f32.mrf.mxu0
        %8560 = vmatprep.mubr.bf16.mxu0 0
        %8561 = vmatmul.mubr.bf16.gmra.mxu0 %v8427
        %v8562 = vpop.f32.mrf.mxu0
        %v8563 = vadd.f32 0.0, %v8562
        %v8564 = vpop.f32.mrf.mxu0
        %v8565 = vpop.f32.mrf.mxu0
        %v8566 = vadd.f32 0.0, %v8565
        %v8567 = vpop.f32.mrf.mxu0
        %8568 = vmatprep.mubr.bf16.mxu0 0
        %8569 = vmatmul.mubr.bf16.gmra.mxu0 %v8428
        %v8570 = vpop.f32.mrf.mxu0
        %v8571 = vadd.f32 0.0, %v8570
        %v8572 = vpop.f32.mrf.mxu0
        %v8573 = vpop.f32.mrf.mxu0
        %v8574 = vadd.f32 0.0, %v8573
        %v8575 = vpop.f32.mrf.mxu0
        %8576 = vmatprep.mubr.bf16.mxu0 0
        %8577 = vmatmul.mubr.bf16.gmra.mxu0 %v8429
        %v8578 = vpop.f32.mrf.mxu0
        %v8579 = vadd.f32 0.0, %v8578
        %v8580 = vpop.f32.mrf.mxu0
        %v8581 = vpop.f32.mrf.mxu0
        %v8582 = vadd.f32 0.0, %v8581
        %v8583 = vpop.f32.mrf.mxu0
        %8584 = vmatprep.mubr.bf16.mxu0 0
        %8585 = vmatmul.mubr.bf16.gmra.mxu0 %v8430
        %v8586 = vpop.f32.mrf.mxu0
        %v8587 = vadd.f32 0.0, %v8586
        %v8588 = vpop.f32.mrf.mxu0
        %v8589 = vpop.f32.mrf.mxu0
        %v8590 = vadd.f32 0.0, %v8589
        %v8591 = vpop.f32.mrf.mxu0
        %8592 = vmatprep.mubr.bf16.mxu0 0
        %8593 = vmatmul.mubr.bf16.gmra.mxu0 %v8431
        %v8594 = vpop.f32.mrf.mxu0
        %v8595 = vadd.f32 0.0, %v8594
        %v8596 = vpop.f32.mrf.mxu0
        %v8597 = vpop.f32.mrf.mxu0
        %v8598 = vadd.f32 0.0, %v8597
        %v8599 = vpop.f32.mrf.mxu0
        %8600 = vmatprep.mubr.bf16.mxu0 0
        %8601 = vmatmul.mubr.bf16.gmra.mxu0 %v8432
        %v8602 = vpop.f32.mrf.mxu0
        %v8603 = vadd.f32 0.0, %v8602
        %v8604 = vpop.f32.mrf.mxu0
        %v8605 = vpop.f32.mrf.mxu0
        %v8606 = vadd.f32 0.0, %v8605
        %v8607 = vpop.f32.mrf.mxu0
        %8608 = vmatprep.mubr.bf16.mxu0 0
        %8609 = vmatmul.mubr.bf16.gmra.mxu0 %v8433
        %v8610 = vpop.f32.mrf.mxu0
        %v8611 = vadd.f32 0.0, %v8610
        %v8612 = vpop.f32.mrf.mxu0
        %v8613 = vpop.f32.mrf.mxu0
        %v8614 = vadd.f32 0.0, %v8613
        %v8615 = vpop.f32.mrf.mxu0
        %8616 = vmatprep.mubr.bf16.mxu0 0
        %8617 = vmatmul.mubr.bf16.gmra.mxu0 %v8434
        %v8618 = vpop.f32.mrf.mxu0
        %v8619 = vadd.f32 0.0, %v8618
        %v8620 = vpop.f32.mrf.mxu0
        %v8621 = vpop.f32.mrf.mxu0
        %v8622 = vadd.f32 0.0, %v8621
        %v8623 = vpop.f32.mrf.mxu0
        %8624 = vmatprep.mubr.bf16.mxu0 0
        %8625 = vmatmul.mubr.bf16.gmra.mxu0 %v8435
        %v8626 = vpop.f32.mrf.mxu0
        %v8627 = vadd.f32 0.0, %v8626
        %v8628 = vpop.f32.mrf.mxu0
        %v8629 = vpop.f32.mrf.mxu0
        %v8630 = vadd.f32 0.0, %v8629
        %v8631 = vpop.f32.mrf.mxu0
        %8632 = vmatprep.mubr.bf16.mxu0 0
        %8633 = vmatmul.mubr.bf16.gmra.mxu0 %v8436
        %v8634 = vpop.f32.mrf.mxu0
        %v8635 = vadd.f32 0.0, %v8634
        %v8636 = vpop.f32.mrf.mxu0
        %v8637 = vpop.f32.mrf.mxu0
        %v8638 = vadd.f32 0.0, %v8637
        %v8639 = vpop.f32.mrf.mxu0
        %8640 = vmatprep.mubr.bf16.mxu0 0
        %8641 = vmatmul.mubr.bf16.gmra.mxu0 %v8437
        %v8642 = vpop.f32.mrf.mxu0
        %v8643 = vadd.f32 0.0, %v8642
        %v8644 = vpop.f32.mrf.mxu0
        %v8645 = vpop.f32.mrf.mxu0
        %v8646 = vadd.f32 0.0, %v8645
        %v8647 = vpop.f32.mrf.mxu0
        %8648 = vmatprep.mubr.bf16.mxu0 0
        %8649 = vmatmul.mubr.bf16.gmra.mxu0 %v8438
        %v8650 = vpop.f32.mrf.mxu0
        %v8651 = vadd.f32 0.0, %v8650
        %v8652 = vpop.f32.mrf.mxu0
        %v8653 = vpop.f32.mrf.mxu0
        %v8654 = vadd.f32 0.0, %v8653
        %v8655 = vpop.f32.mrf.mxu0
        %8656 = vmatprep.mubr.bf16.mxu0 0
        %8657 = vmatmul.mubr.bf16.gmra.mxu0 %v8439
        %v8658 = vpop.f32.mrf.mxu0
        %v8659 = vadd.f32 0.0, %v8658
        %v8660 = vpop.f32.mrf.mxu0
        %v8661 = vpop.f32.mrf.mxu0
        %v8662 = vadd.f32 0.0, %v8661
        %v8663 = vpop.f32.mrf.mxu0
        %8664 = vdwg.mxu0
        %v8665 = vadd.f32 %v8167, %v8539
        %v8666 = vadd.f32 %v8168, %v8542
        %v8667 = vadd.f32 %v8169, %v8547
        %v8668 = vadd.f32 %v8170, %v8550
        %v8669 = vadd.f32 %v8171, %v8555
        %v8670 = vadd.f32 %v8172, %v8558
        %v8671 = vadd.f32 %v8173, %v8563
        %v8672 = vadd.f32 %v8174, %v8566
        %v8673 = vadd.f32 %v8175, %v8571
        %v8674 = vadd.f32 %v8176, %v8574
        %v8675 = vadd.f32 %v8177, %v8579
        %v8676 = vadd.f32 %v8178, %v8582
        %v8677 = vadd.f32 %v8179, %v8587
        %v8678 = vadd.f32 %v8180, %v8590
        %v8679 = vadd.f32 %v8181, %v8595
        %v8680 = vadd.f32 %v8182, %v8598
        %v8681 = vadd.f32 %v8183, %v8603
        %v8682 = vadd.f32 %v8184, %v8606
        %v8683 = vadd.f32 %v8185, %v8611
        %v8684 = vadd.f32 %v8186, %v8614
        %v8685 = vadd.f32 %v8187, %v8619
        %v8686 = vadd.f32 %v8188, %v8622
        %v8687 = vadd.f32 %v8189, %v8627
        %v8688 = vadd.f32 %v8190, %v8630
        %v8689 = vadd.f32 %v8191, %v8635
        %v8690 = vadd.f32 %v8192, %v8638
        %v8691 = vadd.f32 %v8193, %v8643
        %v8692 = vadd.f32 %v8194, %v8646
        %v8693 = vadd.f32 %v8195, %v8651
        %v8694 = vadd.f32 %v8196, %v8654
        %v8695 = vadd.f32 %v8197, %v8659
        %v8696 = vadd.f32 %v8198, %v8662
        %s8697 = scalar_lea.vmem [#allocation2], 24
        %v8698 = vld [vmem:[%s8697] sm:$0xf]
        %v8699 = vld [vmem:[%s8697 + $0x4] sm:$0xf]
        %v8700 = vld [vmem:[%s8697 + $0xc] sm:$0xf]
        %v8701 = vld [vmem:[%s8697 + $0x10] sm:$0xf]
        %v8702 = vld [vmem:[%s8697 + $0x18] sm:$0xf]
        %v8703 = vld [vmem:[%s8697 + $0x1c] sm:$0xf]
        %v8704 = vld [vmem:[%s8697 + $0x24] sm:$0xf]
        %v8705 = vld [vmem:[%s8697 + $0x28] sm:$0xf]
        %v8706 = vld [vmem:[%s8697 + $0x30] sm:$0xf]
        %v8707 = vld [vmem:[%s8697 + $0x34] sm:$0xf]
        %v8708 = vld [vmem:[%s8697 + $0x3c] sm:$0xf]
        %v8709 = vld [vmem:[%s8697 + $0x40] sm:$0xf]
        %v8710 = vld [vmem:[%s8697 + $0x48] sm:$0xf]
        %v8711 = vld [vmem:[%s8697 + $0x4c] sm:$0xf]
        %v8712 = vld [vmem:[%s8697 + $0x54] sm:$0xf]
        %v8713 = vld [vmem:[%s8697 + $0x58] sm:$0xf]
        %v8714 = vld [vmem:[%s8697 + $0x60] sm:$0xf]
        %v8715 = vld [vmem:[%s8697 + $0x64] sm:$0xf]
        %v8716 = vld [vmem:[%s8697 + $0x6c] sm:$0xf]
        %v8717 = vld [vmem:[%s8697 + $0x70] sm:$0xf]
        %v8718 = vld [vmem:[%s8697 + $0x78] sm:$0xf]
        %v8719 = vld [vmem:[%s8697 + $0x7c] sm:$0xf]
        %v8720 = vld [vmem:[%s8697 + $0x84] sm:$0xf]
        %v8721 = vld [vmem:[%s8697 + $0x88] sm:$0xf]
        %v8722 = vld [vmem:[%s8697 + $0x90] sm:$0xf]
        %v8723 = vld [vmem:[%s8697 + $0x94] sm:$0xf]
        %v8724 = vld [vmem:[%s8697 + $0x9c] sm:$0xf]
        %v8725 = vld [vmem:[%s8697 + $0xa0] sm:$0xf]
        %v8726 = vld [vmem:[%s8697 + $0xa8] sm:$0xf]
        %v8727 = vld [vmem:[%s8697 + $0xac] sm:$0xf]
        %v8728 = vld [vmem:[%s8697 + $0xb4] sm:$0xf]
        %v8729 = vld [vmem:[%s8697 + $0xb8] sm:$0xf]
        %s8730 = scalar_lea.vmem [#allocation6], 384
        %v8731 = vld [vmem:[%s8730] sm:$0xf]
        %v8732 = vld [vmem:[%s8730 + $0x4] sm:$0xf]
        %v8733 = vld [vmem:[%s8730 + $0x8] sm:$0xf]
        %v8734 = vld [vmem:[%s8730 + $0xc] sm:$0xf]
        %v8735 = vld [vmem:[%s8730 + $0x10] sm:$0xf]
        %v8736 = vld [vmem:[%s8730 + $0x14] sm:$0xf]
        %v8737 = vld [vmem:[%s8730 + $0x18] sm:$0xf]
        %v8738 = vld [vmem:[%s8730 + $0x1c] sm:$0xf]
        %v8739 = vld [vmem:[%s8730 + $0x20] sm:$0xf]
        %v8740 = vld [vmem:[%s8730 + $0x24] sm:$0xf]
        %v8741 = vld [vmem:[%s8730 + $0x28] sm:$0xf]
        %v8742 = vld [vmem:[%s8730 + $0x2c] sm:$0xf]
        %v8743 = vld [vmem:[%s8730 + $0x30] sm:$0xf]
        %v8744 = vld [vmem:[%s8730 + $0x34] sm:$0xf]
        %v8745 = vld [vmem:[%s8730 + $0x38] sm:$0xf]
        %v8746 = vld [vmem:[%s8730 + $0x3c] sm:$0xf]
        %v8779 = vunpack.c.l.b16 %v8698
        %v8780 = vunpack.c.l.b16 %v8699
        %v8781 = vunpack.c.l.b16 %v8700
        %v8782 = vunpack.c.l.b16 %v8701
        %v8783 = vunpack.c.l.b16 %v8702
        %v8784 = vunpack.c.l.b16 %v8703
        %v8785 = vunpack.c.l.b16 %v8704
        %v8786 = vunpack.c.l.b16 %v8705
        %v8787 = vunpack.c.l.b16 %v8706
        %v8788 = vunpack.c.l.b16 %v8707
        %v8789 = vunpack.c.l.b16 %v8708
        %v8790 = vunpack.c.l.b16 %v8709
        %v8791 = vunpack.c.l.b16 %v8710
        %v8792 = vunpack.c.l.b16 %v8711
        %v8793 = vunpack.c.l.b16 %v8712
        %v8794 = vunpack.c.l.b16 %v8713
        %v8795 = vunpack.c.l.b16 %v8714
        %v8796 = vunpack.c.l.b16 %v8715
        %v8797 = vunpack.c.l.b16 %v8716
        %v8798 = vunpack.c.l.b16 %v8717
        %v8799 = vunpack.c.l.b16 %v8718
        %v8800 = vunpack.c.l.b16 %v8719
        %v8801 = vunpack.c.l.b16 %v8720
        %v8802 = vunpack.c.l.b16 %v8721
        %v8803 = vunpack.c.l.b16 %v8722
        %v8804 = vunpack.c.l.b16 %v8723
        %v8805 = vunpack.c.l.b16 %v8724
        %v8806 = vunpack.c.l.b16 %v8725
        %v8807 = vunpack.c.l.b16 %v8726
        %v8808 = vunpack.c.l.b16 %v8727
        %v8809 = vunpack.c.l.b16 %v8728
        %v8810 = vunpack.c.l.b16 %v8729
        %v8811 = vpack.c.b16 %v8780, %v8779
        %v8812 = vpack.c.b16 %v8782, %v8781
        %v8813 = vpack.c.b16 %v8784, %v8783
        %v8814 = vpack.c.b16 %v8786, %v8785
        %v8815 = vpack.c.b16 %v8788, %v8787
        %v8816 = vpack.c.b16 %v8790, %v8789
        %v8817 = vpack.c.b16 %v8792, %v8791
        %v8818 = vpack.c.b16 %v8794, %v8793
        %v8819 = vpack.c.b16 %v8796, %v8795
        %v8820 = vpack.c.b16 %v8798, %v8797
        %v8821 = vpack.c.b16 %v8800, %v8799
        %v8822 = vpack.c.b16 %v8802, %v8801
        %v8823 = vpack.c.b16 %v8804, %v8803
        %v8824 = vpack.c.b16 %v8806, %v8805
        %v8825 = vpack.c.b16 %v8808, %v8807
        %v8826 = vpack.c.b16 %v8810, %v8809
        %v8859 = vunpack.c.l.b16 %v8731
        %v8860 = vunpack.c.l.b16 %v8732
        %v8861 = vunpack.c.l.b16 %v8733
        %v8862 = vunpack.c.l.b16 %v8734
        %v8863 = vunpack.c.l.b16 %v8735
        %v8864 = vunpack.c.l.b16 %v8736
        %v8865 = vunpack.c.l.b16 %v8737
        %v8866 = vunpack.c.l.b16 %v8738
        %v8867 = vunpack.c.l.b16 %v8739
        %v8868 = vunpack.c.l.b16 %v8740
        %v8869 = vunpack.c.l.b16 %v8741
        %v8870 = vunpack.c.l.b16 %v8742
        %v8871 = vunpack.c.l.b16 %v8743
        %v8872 = vunpack.c.l.b16 %v8744
        %v8873 = vunpack.c.l.b16 %v8745
        %v8874 = vunpack.c.l.b16 %v8746
        %v8875 = vpack.c.b16 %v8860, %v8859
        %v8876 = vpack.c.b16 %v8862, %v8861
        %v8877 = vpack.c.b16 %v8864, %v8863
        %v8878 = vpack.c.b16 %v8866, %v8865
        %v8879 = vpack.c.b16 %v8868, %v8867
        %v8880 = vpack.c.b16 %v8870, %v8869
        %v8881 = vpack.c.b16 %v8872, %v8871
        %v8882 = vpack.c.b16 %v8874, %v8873
        %8891 = vmatprep.subr.bf16.mxu0 0
        %8892 = vmatpush1.bf16.msra.mxu0 %v8882
        %8893 = vmatprep.subr.bf16.mxu0 0
        %8894 = vmatpush1.bf16.msra.mxu0 %v8881
        %8895 = vmatprep.subr.bf16.mxu0 0
        %8896 = vmatpush1.bf16.msra.mxu0 %v8880
        %8897 = vmatprep.subr.bf16.mxu0 0
        %8898 = vmatpush1.bf16.msra.mxu0 %v8879
        %8899 = vmatprep.subr.bf16.mxu0 0
        %8900 = vmatpush1.bf16.msra.mxu0 %v8878
        %8901 = vmatprep.subr.bf16.mxu0 0
        %8902 = vmatpush1.bf16.msra.mxu0 %v8877
        %8903 = vmatprep.subr.bf16.mxu0 0
        %8904 = vmatpush1.bf16.msra.mxu0 %v8876
        %8905 = vmatprep.subr.bf16.mxu0 0
        %8906 = vmatpush1.bf16.msra.mxu0 %v8875
        %8907 = vmatprep.subr.bf16.mxu0 0
        %8908 = vmatpush2.bf16.msra.mxu0 0
        %8909 = vmatprep.subr.bf16.mxu0 0
        %8910 = vmatpush2.bf16.msra.mxu0 0
        %8911 = vmatprep.subr.bf16.mxu0 0
        %8912 = vmatpush2.bf16.msra.mxu0 0
        %8913 = vmatprep.subr.bf16.mxu0 0
        %8914 = vmatpush2.bf16.msra.mxu0 0
        %8915 = vmatprep.subr.bf16.mxu0 0
        %8916 = vmatpush2.bf16.msra.mxu0 0
        %8917 = vmatprep.subr.bf16.mxu0 0
        %8918 = vmatpush2.bf16.msra.mxu0 0
        %8919 = vmatprep.subr.bf16.mxu0 0
        %8920 = vmatpush2.bf16.msra.mxu0 0
        %8921 = vmatprep.subr.bf16.mxu0 0
        %8922 = vmatpush2.bf16.msra.mxu0 0
        %8923 = vmatprep.mubr.bf16.mxu0 0
        %8924 = vmatmul.mubr.bf16.gmra.mxu0 %v8811
        %v8925 = vpop.f32.mrf.mxu0
        %v8926 = vadd.f32 0.0, %v8925
        %v8927 = vpop.f32.mrf.mxu0
        %v8928 = vpop.f32.mrf.mxu0
        %v8929 = vadd.f32 0.0, %v8928
        %v8930 = vpop.f32.mrf.mxu0
        %8931 = vmatprep.mubr.bf16.mxu0 0
        %8932 = vmatmul.mubr.bf16.gmra.mxu0 %v8812
        %v8933 = vpop.f32.mrf.mxu0
        %v8934 = vadd.f32 0.0, %v8933
        %v8935 = vpop.f32.mrf.mxu0
        %v8936 = vpop.f32.mrf.mxu0
        %v8937 = vadd.f32 0.0, %v8936
        %v8938 = vpop.f32.mrf.mxu0
        %8939 = vmatprep.mubr.bf16.mxu0 0
        %8940 = vmatmul.mubr.bf16.gmra.mxu0 %v8813
        %v8941 = vpop.f32.mrf.mxu0
        %v8942 = vadd.f32 0.0, %v8941
        %v8943 = vpop.f32.mrf.mxu0
        %v8944 = vpop.f32.mrf.mxu0
        %v8945 = vadd.f32 0.0, %v8944
        %v8946 = vpop.f32.mrf.mxu0
        %8947 = vmatprep.mubr.bf16.mxu0 0
        %8948 = vmatmul.mubr.bf16.gmra.mxu0 %v8814
        %v8949 = vpop.f32.mrf.mxu0
        %v8950 = vadd.f32 0.0, %v8949
        %v8951 = vpop.f32.mrf.mxu0
        %v8952 = vpop.f32.mrf.mxu0
        %v8953 = vadd.f32 0.0, %v8952
        %v8954 = vpop.f32.mrf.mxu0
        %8955 = vmatprep.mubr.bf16.mxu0 0
        %8956 = vmatmul.mubr.bf16.gmra.mxu0 %v8815
        %v8957 = vpop.f32.mrf.mxu0
        %v8958 = vadd.f32 0.0, %v8957
        %v8959 = vpop.f32.mrf.mxu0
        %v8960 = vpop.f32.mrf.mxu0
        %v8961 = vadd.f32 0.0, %v8960
        %v8962 = vpop.f32.mrf.mxu0
        %8963 = vmatprep.mubr.bf16.mxu0 0
        %8964 = vmatmul.mubr.bf16.gmra.mxu0 %v8816
        %v8965 = vpop.f32.mrf.mxu0
        %v8966 = vadd.f32 0.0, %v8965
        %v8967 = vpop.f32.mrf.mxu0
        %v8968 = vpop.f32.mrf.mxu0
        %v8969 = vadd.f32 0.0, %v8968
        %v8970 = vpop.f32.mrf.mxu0
        %8971 = vmatprep.mubr.bf16.mxu0 0
        %8972 = vmatmul.mubr.bf16.gmra.mxu0 %v8817
        %v8973 = vpop.f32.mrf.mxu0
        %v8974 = vadd.f32 0.0, %v8973
        %v8975 = vpop.f32.mrf.mxu0
        %v8976 = vpop.f32.mrf.mxu0
        %v8977 = vadd.f32 0.0, %v8976
        %v8978 = vpop.f32.mrf.mxu0
        %8979 = vmatprep.mubr.bf16.mxu0 0
        %8980 = vmatmul.mubr.bf16.gmra.mxu0 %v8818
        %v8981 = vpop.f32.mrf.mxu0
        %v8982 = vadd.f32 0.0, %v8981
        %v8983 = vpop.f32.mrf.mxu0
        %v8984 = vpop.f32.mrf.mxu0
        %v8985 = vadd.f32 0.0, %v8984
        %v8986 = vpop.f32.mrf.mxu0
        %8987 = vmatprep.mubr.bf16.mxu0 0
        %8988 = vmatmul.mubr.bf16.gmra.mxu0 %v8819
        %v8989 = vpop.f32.mrf.mxu0
        %v8990 = vadd.f32 0.0, %v8989
        %v8991 = vpop.f32.mrf.mxu0
        %v8992 = vpop.f32.mrf.mxu0
        %v8993 = vadd.f32 0.0, %v8992
        %v8994 = vpop.f32.mrf.mxu0
        %8995 = vmatprep.mubr.bf16.mxu0 0
        %8996 = vmatmul.mubr.bf16.gmra.mxu0 %v8820
        %v8997 = vpop.f32.mrf.mxu0
        %v8998 = vadd.f32 0.0, %v8997
        %v8999 = vpop.f32.mrf.mxu0
        %v9000 = vpop.f32.mrf.mxu0
        %v9001 = vadd.f32 0.0, %v9000
        %v9002 = vpop.f32.mrf.mxu0
        %9003 = vmatprep.mubr.bf16.mxu0 0
        %9004 = vmatmul.mubr.bf16.gmra.mxu0 %v8821
        %v9005 = vpop.f32.mrf.mxu0
        %v9006 = vadd.f32 0.0, %v9005
        %v9007 = vpop.f32.mrf.mxu0
        %v9008 = vpop.f32.mrf.mxu0
        %v9009 = vadd.f32 0.0, %v9008
        %v9010 = vpop.f32.mrf.mxu0
        %9011 = vmatprep.mubr.bf16.mxu0 0
        %9012 = vmatmul.mubr.bf16.gmra.mxu0 %v8822
        %v9013 = vpop.f32.mrf.mxu0
        %v9014 = vadd.f32 0.0, %v9013
        %v9015 = vpop.f32.mrf.mxu0
        %v9016 = vpop.f32.mrf.mxu0
        %v9017 = vadd.f32 0.0, %v9016
        %v9018 = vpop.f32.mrf.mxu0
        %9019 = vmatprep.mubr.bf16.mxu0 0
        %9020 = vmatmul.mubr.bf16.gmra.mxu0 %v8823
        %v9021 = vpop.f32.mrf.mxu0
        %v9022 = vadd.f32 0.0, %v9021
        %v9023 = vpop.f32.mrf.mxu0
        %v9024 = vpop.f32.mrf.mxu0
        %v9025 = vadd.f32 0.0, %v9024
        %v9026 = vpop.f32.mrf.mxu0
        %9027 = vmatprep.mubr.bf16.mxu0 0
        %9028 = vmatmul.mubr.bf16.gmra.mxu0 %v8824
        %v9029 = vpop.f32.mrf.mxu0
        %v9030 = vadd.f32 0.0, %v9029
        %v9031 = vpop.f32.mrf.mxu0
        %v9032 = vpop.f32.mrf.mxu0
        %v9033 = vadd.f32 0.0, %v9032
        %v9034 = vpop.f32.mrf.mxu0
        %9035 = vmatprep.mubr.bf16.mxu0 0
        %9036 = vmatmul.mubr.bf16.gmra.mxu0 %v8825
        %v9037 = vpop.f32.mrf.mxu0
        %v9038 = vadd.f32 0.0, %v9037
        %v9039 = vpop.f32.mrf.mxu0
        %v9040 = vpop.f32.mrf.mxu0
        %v9041 = vadd.f32 0.0, %v9040
        %v9042 = vpop.f32.mrf.mxu0
        %9043 = vmatprep.mubr.bf16.mxu0 0
        %9044 = vmatmul.mubr.bf16.gmra.mxu0 %v8826
        %v9045 = vpop.f32.mrf.mxu0
        %v9046 = vadd.f32 0.0, %v9045
        %v9047 = vpop.f32.mrf.mxu0
        %v9048 = vpop.f32.mrf.mxu0
        %v9049 = vadd.f32 0.0, %v9048
        %v9050 = vpop.f32.mrf.mxu0
        %9051 = vdwg.mxu0
        %v9052 = vadd.f32 %v8665, %v8926
        %v9053 = vadd.f32 %v8666, %v8929
        %v9054 = vadd.f32 %v8667, %v8934
        %v9055 = vadd.f32 %v8668, %v8937
        %v9056 = vadd.f32 %v8669, %v8942
        %v9057 = vadd.f32 %v8670, %v8945
        %v9058 = vadd.f32 %v8671, %v8950
        %v9059 = vadd.f32 %v8672, %v8953
        %v9060 = vadd.f32 %v8673, %v8958
        %v9061 = vadd.f32 %v8674, %v8961
        %v9062 = vadd.f32 %v8675, %v8966
        %v9063 = vadd.f32 %v8676, %v8969
        %v9064 = vadd.f32 %v8677, %v8974
        %v9065 = vadd.f32 %v8678, %v8977
        %v9066 = vadd.f32 %v8679, %v8982
        %v9067 = vadd.f32 %v8680, %v8985
        %v9068 = vadd.f32 %v8681, %v8990
        %v9069 = vadd.f32 %v8682, %v8993
        %v9070 = vadd.f32 %v8683, %v8998
        %v9071 = vadd.f32 %v8684, %v9001
        %v9072 = vadd.f32 %v8685, %v9006
        %v9073 = vadd.f32 %v8686, %v9009
        %v9074 = vadd.f32 %v8687, %v9014
        %v9075 = vadd.f32 %v8688, %v9017
        %v9076 = vadd.f32 %v8689, %v9022
        %v9077 = vadd.f32 %v8690, %v9025
        %v9078 = vadd.f32 %v8691, %v9030
        %v9079 = vadd.f32 %v8692, %v9033
        %v9080 = vadd.f32 %v8693, %v9038
        %v9081 = vadd.f32 %v8694, %v9041
        %v9082 = vadd.f32 %v8695, %v9046
        %v9083 = vadd.f32 %v8696, %v9049
        %v9084 = vld [vmem:[%s8697] sm:$0xf]
        %v9085 = vld [vmem:[%s8697 + $0x4] sm:$0xf]
        %v9086 = vld [vmem:[%s8697 + $0x8] sm:$0x1]
        %v9087 = vld [vmem:[%s8697 + $0xc] sm:$0xf]
        %v9088 = vld [vmem:[%s8697 + $0x10] sm:$0xf]
        %v9089 = vld [vmem:[%s8697 + $0x14] sm:$0x1]
        %v9090 = vld [vmem:[%s8697 + $0x18] sm:$0xf]
        %v9091 = vld [vmem:[%s8697 + $0x1c] sm:$0xf]
        %v9092 = vld [vmem:[%s8697 + $0x20] sm:$0x1]
        %v9093 = vld [vmem:[%s8697 + $0x24] sm:$0xf]
        %v9094 = vld [vmem:[%s8697 + $0x28] sm:$0xf]
        %v9095 = vld [vmem:[%s8697 + $0x2c] sm:$0x1]
        %v9096 = vld [vmem:[%s8697 + $0x30] sm:$0xf]
        %v9097 = vld [vmem:[%s8697 + $0x34] sm:$0xf]
        %v9098 = vld [vmem:[%s8697 + $0x38] sm:$0x1]
        %v9099 = vld [vmem:[%s8697 + $0x3c] sm:$0xf]
        %v9100 = vld [vmem:[%s8697 + $0x40] sm:$0xf]
        %v9101 = vld [vmem:[%s8697 + $0x44] sm:$0x1]
        %v9102 = vld [vmem:[%s8697 + $0x48] sm:$0xf]
        %v9103 = vld [vmem:[%s8697 + $0x4c] sm:$0xf]
        %v9104 = vld [vmem:[%s8697 + $0x50] sm:$0x1]
        %v9105 = vld [vmem:[%s8697 + $0x54] sm:$0xf]
        %v9106 = vld [vmem:[%s8697 + $0x58] sm:$0xf]
        %v9107 = vld [vmem:[%s8697 + $0x5c] sm:$0x1]
        %v9108 = vld [vmem:[%s8697 + $0x60] sm:$0xf]
        %v9109 = vld [vmem:[%s8697 + $0x64] sm:$0xf]
        %v9110 = vld [vmem:[%s8697 + $0x68] sm:$0x1]
        %v9111 = vld [vmem:[%s8697 + $0x6c] sm:$0xf]
        %v9112 = vld [vmem:[%s8697 + $0x70] sm:$0xf]
        %v9113 = vld [vmem:[%s8697 + $0x74] sm:$0x1]
        %v9114 = vld [vmem:[%s8697 + $0x78] sm:$0xf]
        %v9115 = vld [vmem:[%s8697 + $0x7c] sm:$0xf]
        %v9116 = vld [vmem:[%s8697 + $0x80] sm:$0x1]
        %v9117 = vld [vmem:[%s8697 + $0x84] sm:$0xf]
        %v9118 = vld [vmem:[%s8697 + $0x88] sm:$0xf]
        %v9119 = vld [vmem:[%s8697 + $0x8c] sm:$0x1]
        %v9120 = vld [vmem:[%s8697 + $0x90] sm:$0xf]
        %v9121 = vld [vmem:[%s8697 + $0x94] sm:$0xf]
        %v9122 = vld [vmem:[%s8697 + $0x98] sm:$0x1]
        %v9123 = vld [vmem:[%s8697 + $0x9c] sm:$0xf]
        %v9124 = vld [vmem:[%s8697 + $0xa0] sm:$0xf]
        %v9125 = vld [vmem:[%s8697 + $0xa4] sm:$0x1]
        %v9126 = vld [vmem:[%s8697 + $0xa8] sm:$0xf]
        %v9127 = vld [vmem:[%s8697 + $0xac] sm:$0xf]
        %v9128 = vld [vmem:[%s8697 + $0xb0] sm:$0x1]
        %v9129 = vld [vmem:[%s8697 + $0xb4] sm:$0xf]
        %v9130 = vld [vmem:[%s8697 + $0xb8] sm:$0xf]
        %v9131 = vld [vmem:[%s8697 + $0xbc] sm:$0x1]
        %v9133 = vshrl.u32 %v9084, 16
        %v9135 = vrot.slane %v9133, 4
        %v9136 = vshll.u32 %v9084, 16
        %v9138 = vrot.slane %v9136, 5
        %v9139 = vor.u32 %v9135, %v9138
        %v9140 = vrot.slane %v9139, 4
        %v9142 = vshll.u32 %v9085, 16
        %v9144 = vrot.slane %v9142, 5
        %v9145 = vsel %vm364, %v9140, %v9144
        %v9146 = vshrl.u32 %v9085, 16
        %v9148 = vrot.slane %v9146, 4
        %v9149 = vor.u32 %v9148, %v9144
        %v9150 = vrot.slane %v9149, 4
        %v9152 = vshll.u32 %v9086, 16
        %v9154 = vrot.slane %v9152, 5
        %v9155 = vsel %vm364, %v9150, %v9154
        %v9157 = vshrl.u32 %v9087, 16
        %v9159 = vrot.slane %v9157, 4
        %v9160 = vshll.u32 %v9087, 16
        %v9162 = vrot.slane %v9160, 5
        %v9163 = vor.u32 %v9159, %v9162
        %v9164 = vrot.slane %v9163, 4
        %v9166 = vshll.u32 %v9088, 16
        %v9168 = vrot.slane %v9166, 5
        %v9169 = vsel %vm364, %v9164, %v9168
        %v9170 = vshrl.u32 %v9088, 16
        %v9172 = vrot.slane %v9170, 4
        %v9173 = vor.u32 %v9172, %v9168
        %v9174 = vrot.slane %v9173, 4
        %v9176 = vshll.u32 %v9089, 16
        %v9178 = vrot.slane %v9176, 5
        %v9179 = vsel %vm364, %v9174, %v9178
        %v9181 = vshrl.u32 %v9090, 16
        %v9183 = vrot.slane %v9181, 4
        %v9184 = vshll.u32 %v9090, 16
        %v9186 = vrot.slane %v9184, 5
        %v9187 = vor.u32 %v9183, %v9186
        %v9188 = vrot.slane %v9187, 4
        %v9190 = vshll.u32 %v9091, 16
        %v9192 = vrot.slane %v9190, 5
        %v9193 = vsel %vm364, %v9188, %v9192
        %v9194 = vshrl.u32 %v9091, 16
        %v9196 = vrot.slane %v9194, 4
        %v9197 = vor.u32 %v9196, %v9192
        %v9198 = vrot.slane %v9197, 4
        %v9200 = vshll.u32 %v9092, 16
        %v9202 = vrot.slane %v9200, 5
        %v9203 = vsel %vm364, %v9198, %v9202
        %v9205 = vshrl.u32 %v9093, 16
        %v9207 = vrot.slane %v9205, 4
        %v9208 = vshll.u32 %v9093, 16
        %v9210 = vrot.slane %v9208, 5
        %v9211 = vor.u32 %v9207, %v9210
        %v9212 = vrot.slane %v9211, 4
        %v9214 = vshll.u32 %v9094, 16
        %v9216 = vrot.slane %v9214, 5
        %v9217 = vsel %vm364, %v9212, %v9216
        %v9218 = vshrl.u32 %v9094, 16
        %v9220 = vrot.slane %v9218, 4
        %v9221 = vor.u32 %v9220, %v9216
        %v9222 = vrot.slane %v9221, 4
        %v9224 = vshll.u32 %v9095, 16
        %v9226 = vrot.slane %v9224, 5
        %v9227 = vsel %vm364, %v9222, %v9226
        %v9229 = vshrl.u32 %v9096, 16
        %v9231 = vrot.slane %v9229, 4
        %v9232 = vshll.u32 %v9096, 16
        %v9234 = vrot.slane %v9232, 5
        %v9235 = vor.u32 %v9231, %v9234
        %v9236 = vrot.slane %v9235, 4
        %v9238 = vshll.u32 %v9097, 16
        %v9240 = vrot.slane %v9238, 5
        %v9241 = vsel %vm364, %v9236, %v9240
        %v9242 = vshrl.u32 %v9097, 16
        %v9244 = vrot.slane %v9242, 4
        %v9245 = vor.u32 %v9244, %v9240
        %v9246 = vrot.slane %v9245, 4
        %v9248 = vshll.u32 %v9098, 16
        %v9250 = vrot.slane %v9248, 5
        %v9251 = vsel %vm364, %v9246, %v9250
        %v9253 = vshrl.u32 %v9099, 16
        %v9255 = vrot.slane %v9253, 4
        %v9256 = vshll.u32 %v9099, 16
        %v9258 = vrot.slane %v9256, 5
        %v9259 = vor.u32 %v9255, %v9258
        %v9260 = vrot.slane %v9259, 4
        %v9262 = vshll.u32 %v9100, 16
        %v9264 = vrot.slane %v9262, 5
        %v9265 = vsel %vm364, %v9260, %v9264
        %v9266 = vshrl.u32 %v9100, 16
        %v9268 = vrot.slane %v9266, 4
        %v9269 = vor.u32 %v9268, %v9264
        %v9270 = vrot.slane %v9269, 4
        %v9272 = vshll.u32 %v9101, 16
        %v9274 = vrot.slane %v9272, 5
        %v9275 = vsel %vm364, %v9270, %v9274
        %v9277 = vshrl.u32 %v9102, 16
        %v9279 = vrot.slane %v9277, 4
        %v9280 = vshll.u32 %v9102, 16
        %v9282 = vrot.slane %v9280, 5
        %v9283 = vor.u32 %v9279, %v9282
        %v9284 = vrot.slane %v9283, 4
        %v9286 = vshll.u32 %v9103, 16
        %v9288 = vrot.slane %v9286, 5
        %v9289 = vsel %vm364, %v9284, %v9288
        %v9290 = vshrl.u32 %v9103, 16
        %v9292 = vrot.slane %v9290, 4
        %v9293 = vor.u32 %v9292, %v9288
        %v9294 = vrot.slane %v9293, 4
        %v9296 = vshll.u32 %v9104, 16
        %v9298 = vrot.slane %v9296, 5
        %v9299 = vsel %vm364, %v9294, %v9298
        %v9301 = vshrl.u32 %v9105, 16
        %v9303 = vrot.slane %v9301, 4
        %v9304 = vshll.u32 %v9105, 16
        %v9306 = vrot.slane %v9304, 5
        %v9307 = vor.u32 %v9303, %v9306
        %v9308 = vrot.slane %v9307, 4
        %v9310 = vshll.u32 %v9106, 16
        %v9312 = vrot.slane %v9310, 5
        %v9313 = vsel %vm364, %v9308, %v9312
        %v9314 = vshrl.u32 %v9106, 16
        %v9316 = vrot.slane %v9314, 4
        %v9317 = vor.u32 %v9316, %v9312
        %v9318 = vrot.slane %v9317, 4
        %v9320 = vshll.u32 %v9107, 16
        %v9322 = vrot.slane %v9320, 5
        %v9323 = vsel %vm364, %v9318, %v9322
        %v9325 = vshrl.u32 %v9108, 16
        %v9327 = vrot.slane %v9325, 4
        %v9328 = vshll.u32 %v9108, 16
        %v9330 = vrot.slane %v9328, 5
        %v9331 = vor.u32 %v9327, %v9330
        %v9332 = vrot.slane %v9331, 4
        %v9334 = vshll.u32 %v9109, 16
        %v9336 = vrot.slane %v9334, 5
        %v9337 = vsel %vm364, %v9332, %v9336
        %v9338 = vshrl.u32 %v9109, 16
        %v9340 = vrot.slane %v9338, 4
        %v9341 = vor.u32 %v9340, %v9336
        %v9342 = vrot.slane %v9341, 4
        %v9344 = vshll.u32 %v9110, 16
        %v9346 = vrot.slane %v9344, 5
        %v9347 = vsel %vm364, %v9342, %v9346
        %v9349 = vshrl.u32 %v9111, 16
        %v9351 = vrot.slane %v9349, 4
        %v9352 = vshll.u32 %v9111, 16
        %v9354 = vrot.slane %v9352, 5
        %v9355 = vor.u32 %v9351, %v9354
        %v9356 = vrot.slane %v9355, 4
        %v9358 = vshll.u32 %v9112, 16
        %v9360 = vrot.slane %v9358, 5
        %v9361 = vsel %vm364, %v9356, %v9360
        %v9362 = vshrl.u32 %v9112, 16
        %v9364 = vrot.slane %v9362, 4
        %v9365 = vor.u32 %v9364, %v9360
        %v9366 = vrot.slane %v9365, 4
        %v9368 = vshll.u32 %v9113, 16
        %v9370 = vrot.slane %v9368, 5
        %v9371 = vsel %vm364, %v9366, %v9370
        %v9373 = vshrl.u32 %v9114, 16
        %v9375 = vrot.slane %v9373, 4
        %v9376 = vshll.u32 %v9114, 16
        %v9378 = vrot.slane %v9376, 5
        %v9379 = vor.u32 %v9375, %v9378
        %v9380 = vrot.slane %v9379, 4
        %v9382 = vshll.u32 %v9115, 16
        %v9384 = vrot.slane %v9382, 5
        %v9385 = vsel %vm364, %v9380, %v9384
        %v9386 = vshrl.u32 %v9115, 16
        %v9388 = vrot.slane %v9386, 4
        %v9389 = vor.u32 %v9388, %v9384
        %v9390 = vrot.slane %v9389, 4
        %v9392 = vshll.u32 %v9116, 16
        %v9394 = vrot.slane %v9392, 5
        %v9395 = vsel %vm364, %v9390, %v9394
        %v9397 = vshrl.u32 %v9117, 16
        %v9399 = vrot.slane %v9397, 4
        %v9400 = vshll.u32 %v9117, 16
        %v9402 = vrot.slane %v9400, 5
        %v9403 = vor.u32 %v9399, %v9402
        %v9404 = vrot.slane %v9403, 4
        %v9406 = vshll.u32 %v9118, 16
        %v9408 = vrot.slane %v9406, 5
        %v9409 = vsel %vm364, %v9404, %v9408
        %v9410 = vshrl.u32 %v9118, 16
        %v9412 = vrot.slane %v9410, 4
        %v9413 = vor.u32 %v9412, %v9408
        %v9414 = vrot.slane %v9413, 4
        %v9416 = vshll.u32 %v9119, 16
        %v9418 = vrot.slane %v9416, 5
        %v9419 = vsel %vm364, %v9414, %v9418
        %v9421 = vshrl.u32 %v9120, 16
        %v9423 = vrot.slane %v9421, 4
        %v9424 = vshll.u32 %v9120, 16
        %v9426 = vrot.slane %v9424, 5
        %v9427 = vor.u32 %v9423, %v9426
        %v9428 = vrot.slane %v9427, 4
        %v9430 = vshll.u32 %v9121, 16
        %v9432 = vrot.slane %v9430, 5
        %v9433 = vsel %vm364, %v9428, %v9432
        %v9434 = vshrl.u32 %v9121, 16
        %v9436 = vrot.slane %v9434, 4
        %v9437 = vor.u32 %v9436, %v9432
        %v9438 = vrot.slane %v9437, 4
        %v9440 = vshll.u32 %v9122, 16
        %v9442 = vrot.slane %v9440, 5
        %v9443 = vsel %vm364, %v9438, %v9442
        %v9445 = vshrl.u32 %v9123, 16
        %v9447 = vrot.slane %v9445, 4
        %v9448 = vshll.u32 %v9123, 16
        %v9450 = vrot.slane %v9448, 5
        %v9451 = vor.u32 %v9447, %v9450
        %v9452 = vrot.slane %v9451, 4
        %v9454 = vshll.u32 %v9124, 16
        %v9456 = vrot.slane %v9454, 5
        %v9457 = vsel %vm364, %v9452, %v9456
        %v9458 = vshrl.u32 %v9124, 16
        %v9460 = vrot.slane %v9458, 4
        %v9461 = vor.u32 %v9460, %v9456
        %v9462 = vrot.slane %v9461, 4
        %v9464 = vshll.u32 %v9125, 16
        %v9466 = vrot.slane %v9464, 5
        %v9467 = vsel %vm364, %v9462, %v9466
        %v9469 = vshrl.u32 %v9126, 16
        %v9471 = vrot.slane %v9469, 4
        %v9472 = vshll.u32 %v9126, 16
        %v9474 = vrot.slane %v9472, 5
        %v9475 = vor.u32 %v9471, %v9474
        %v9476 = vrot.slane %v9475, 4
        %v9478 = vshll.u32 %v9127, 16
        %v9480 = vrot.slane %v9478, 5
        %v9481 = vsel %vm364, %v9476, %v9480
        %v9482 = vshrl.u32 %v9127, 16
        %v9484 = vrot.slane %v9482, 4
        %v9485 = vor.u32 %v9484, %v9480
        %v9486 = vrot.slane %v9485, 4
        %v9488 = vshll.u32 %v9128, 16
        %v9490 = vrot.slane %v9488, 5
        %v9491 = vsel %vm364, %v9486, %v9490
        %v9493 = vshrl.u32 %v9129, 16
        %v9495 = vrot.slane %v9493, 4
        %v9496 = vshll.u32 %v9129, 16
        %v9498 = vrot.slane %v9496, 5
        %v9499 = vor.u32 %v9495, %v9498
        %v9500 = vrot.slane %v9499, 4
        %v9502 = vshll.u32 %v9130, 16
        %v9504 = vrot.slane %v9502, 5
        %v9505 = vsel %vm364, %v9500, %v9504
        %v9506 = vshrl.u32 %v9130, 16
        %v9508 = vrot.slane %v9506, 4
        %v9509 = vor.u32 %v9508, %v9504
        %v9510 = vrot.slane %v9509, 4
        %v9512 = vshll.u32 %v9131, 16
        %v9514 = vrot.slane %v9512, 5
        %v9515 = vsel %vm364, %v9510, %v9514
        %s9516 = scalar_lea.vmem [#allocation6], 448
        %v9517 = vld [vmem:[%s9516] sm:$0xf]
        %v9518 = vld [vmem:[%s9516 + $0x4] sm:$0xf]
        %v9519 = vld [vmem:[%s9516 + $0x8] sm:$0xf]
        %v9520 = vld [vmem:[%s9516 + $0xc] sm:$0xf]
        %v9521 = vld [vmem:[%s9516 + $0x10] sm:$0xf]
        %v9522 = vld [vmem:[%s9516 + $0x14] sm:$0xf]
        %v9523 = vld [vmem:[%s9516 + $0x18] sm:$0xf]
        %v9524 = vld [vmem:[%s9516 + $0x1c] sm:$0xf]
        %v9525 = vld [vmem:[%s9516 + $0x20] sm:$0xf]
        %v9526 = vld [vmem:[%s9516 + $0x24] sm:$0xf]
        %v9527 = vld [vmem:[%s9516 + $0x28] sm:$0xf]
        %v9528 = vld [vmem:[%s9516 + $0x2c] sm:$0xf]
        %v9529 = vld [vmem:[%s9516 + $0x30] sm:$0xf]
        %v9530 = vld [vmem:[%s9516 + $0x34] sm:$0xf]
        %v9531 = vld [vmem:[%s9516 + $0x38] sm:$0xf]
        %v9532 = vld [vmem:[%s9516 + $0x3c] sm:$0xf]
        %v9533 = vunpack.c.l.b16 %v9145
        %v9534 = vunpack.c.l.b16 %v9155
        %v9535 = vunpack.c.l.b16 %v9169
        %v9536 = vunpack.c.l.b16 %v9179
        %v9537 = vunpack.c.l.b16 %v9193
        %v9538 = vunpack.c.l.b16 %v9203
        %v9539 = vunpack.c.l.b16 %v9217
        %v9540 = vunpack.c.l.b16 %v9227
        %v9541 = vunpack.c.l.b16 %v9241
        %v9542 = vunpack.c.l.b16 %v9251
        %v9543 = vunpack.c.l.b16 %v9265
        %v9544 = vunpack.c.l.b16 %v9275
        %v9545 = vunpack.c.l.b16 %v9289
        %v9546 = vunpack.c.l.b16 %v9299
        %v9547 = vunpack.c.l.b16 %v9313
        %v9548 = vunpack.c.l.b16 %v9323
        %v9549 = vunpack.c.l.b16 %v9337
        %v9550 = vunpack.c.l.b16 %v9347
        %v9551 = vunpack.c.l.b16 %v9361
        %v9552 = vunpack.c.l.b16 %v9371
        %v9553 = vunpack.c.l.b16 %v9385
        %v9554 = vunpack.c.l.b16 %v9395
        %v9555 = vunpack.c.l.b16 %v9409
        %v9556 = vunpack.c.l.b16 %v9419
        %v9557 = vunpack.c.l.b16 %v9433
        %v9558 = vunpack.c.l.b16 %v9443
        %v9559 = vunpack.c.l.b16 %v9457
        %v9560 = vunpack.c.l.b16 %v9467
        %v9561 = vunpack.c.l.b16 %v9481
        %v9562 = vunpack.c.l.b16 %v9491
        %v9563 = vunpack.c.l.b16 %v9505
        %v9564 = vunpack.c.l.b16 %v9515
        %v9565 = vpack.c.b16 %v9534, %v9533
        %v9566 = vpack.c.b16 %v9536, %v9535
        %v9567 = vpack.c.b16 %v9538, %v9537
        %v9568 = vpack.c.b16 %v9540, %v9539
        %v9569 = vpack.c.b16 %v9542, %v9541
        %v9570 = vpack.c.b16 %v9544, %v9543
        %v9571 = vpack.c.b16 %v9546, %v9545
        %v9572 = vpack.c.b16 %v9548, %v9547
        %v9573 = vpack.c.b16 %v9550, %v9549
        %v9574 = vpack.c.b16 %v9552, %v9551
        %v9575 = vpack.c.b16 %v9554, %v9553
        %v9576 = vpack.c.b16 %v9556, %v9555
        %v9577 = vpack.c.b16 %v9558, %v9557
        %v9578 = vpack.c.b16 %v9560, %v9559
        %v9579 = vpack.c.b16 %v9562, %v9561
        %v9580 = vpack.c.b16 %v9564, %v9563
        %v9613 = vunpack.c.l.b16 %v9517
        %v9614 = vunpack.c.l.b16 %v9518
        %v9615 = vunpack.c.l.b16 %v9519
        %v9616 = vunpack.c.l.b16 %v9520
        %v9617 = vunpack.c.l.b16 %v9521
        %v9618 = vunpack.c.l.b16 %v9522
        %v9619 = vunpack.c.l.b16 %v9523
        %v9620 = vunpack.c.l.b16 %v9524
        %v9621 = vunpack.c.l.b16 %v9525
        %v9622 = vunpack.c.l.b16 %v9526
        %v9623 = vunpack.c.l.b16 %v9527
        %v9624 = vunpack.c.l.b16 %v9528
        %v9625 = vunpack.c.l.b16 %v9529
        %v9626 = vunpack.c.l.b16 %v9530
        %v9627 = vunpack.c.l.b16 %v9531
        %v9628 = vunpack.c.l.b16 %v9532
        %v9629 = vpack.c.b16 %v9614, %v9613
        %v9630 = vpack.c.b16 %v9616, %v9615
        %v9631 = vpack.c.b16 %v9618, %v9617
        %v9632 = vpack.c.b16 %v9620, %v9619
        %v9633 = vpack.c.b16 %v9622, %v9621
        %v9634 = vpack.c.b16 %v9624, %v9623
        %v9635 = vpack.c.b16 %v9626, %v9625
        %v9636 = vpack.c.b16 %v9628, %v9627
        %9645 = vmatprep.subr.bf16.mxu0 0
        %9646 = vmatpush1.bf16.msra.mxu0 %v9636
        %9647 = vmatprep.subr.bf16.mxu0 0
        %9648 = vmatpush1.bf16.msra.mxu0 %v9635
        %9649 = vmatprep.subr.bf16.mxu0 0
        %9650 = vmatpush1.bf16.msra.mxu0 %v9634
        %9651 = vmatprep.subr.bf16.mxu0 0
        %9652 = vmatpush1.bf16.msra.mxu0 %v9633
        %9653 = vmatprep.subr.bf16.mxu0 0
        %9654 = vmatpush1.bf16.msra.mxu0 %v9632
        %9655 = vmatprep.subr.bf16.mxu0 0
        %9656 = vmatpush1.bf16.msra.mxu0 %v9631
        %9657 = vmatprep.subr.bf16.mxu0 0
        %9658 = vmatpush1.bf16.msra.mxu0 %v9630
        %9659 = vmatprep.subr.bf16.mxu0 0
        %9660 = vmatpush1.bf16.msra.mxu0 %v9629
        %9661 = vmatprep.subr.bf16.mxu0 0
        %9662 = vmatpush2.bf16.msra.mxu0 0
        %9663 = vmatprep.subr.bf16.mxu0 0
        %9664 = vmatpush2.bf16.msra.mxu0 0
        %9665 = vmatprep.subr.bf16.mxu0 0
        %9666 = vmatpush2.bf16.msra.mxu0 0
        %9667 = vmatprep.subr.bf16.mxu0 0
        %9668 = vmatpush2.bf16.msra.mxu0 0
        %9669 = vmatprep.subr.bf16.mxu0 0
        %9670 = vmatpush2.bf16.msra.mxu0 0
        %9671 = vmatprep.subr.bf16.mxu0 0
        %9672 = vmatpush2.bf16.msra.mxu0 0
        %9673 = vmatprep.subr.bf16.mxu0 0
        %9674 = vmatpush2.bf16.msra.mxu0 0
        %9675 = vmatprep.subr.bf16.mxu0 0
        %9676 = vmatpush2.bf16.msra.mxu0 0
        %9677 = vmatprep.mubr.bf16.mxu0 0
        %9678 = vmatmul.mubr.bf16.gmra.mxu0 %v9565
        %v9679 = vpop.f32.mrf.mxu0
        %v9680 = vadd.f32 0.0, %v9679
        %v9681 = vpop.f32.mrf.mxu0
        %v9682 = vpop.f32.mrf.mxu0
        %v9683 = vadd.f32 0.0, %v9682
        %v9684 = vpop.f32.mrf.mxu0
        %9685 = vmatprep.mubr.bf16.mxu0 0
        %9686 = vmatmul.mubr.bf16.gmra.mxu0 %v9566
        %v9687 = vpop.f32.mrf.mxu0
        %v9688 = vadd.f32 0.0, %v9687
        %v9689 = vpop.f32.mrf.mxu0
        %v9690 = vpop.f32.mrf.mxu0
        %v9691 = vadd.f32 0.0, %v9690
        %v9692 = vpop.f32.mrf.mxu0
        %9693 = vmatprep.mubr.bf16.mxu0 0
        %9694 = vmatmul.mubr.bf16.gmra.mxu0 %v9567
        %v9695 = vpop.f32.mrf.mxu0
        %v9696 = vadd.f32 0.0, %v9695
        %v9697 = vpop.f32.mrf.mxu0
        %v9698 = vpop.f32.mrf.mxu0
        %v9699 = vadd.f32 0.0, %v9698
        %v9700 = vpop.f32.mrf.mxu0
        %9701 = vmatprep.mubr.bf16.mxu0 0
        %9702 = vmatmul.mubr.bf16.gmra.mxu0 %v9568
        %v9703 = vpop.f32.mrf.mxu0
        %v9704 = vadd.f32 0.0, %v9703
        %v9705 = vpop.f32.mrf.mxu0
        %v9706 = vpop.f32.mrf.mxu0
        %v9707 = vadd.f32 0.0, %v9706
        %v9708 = vpop.f32.mrf.mxu0
        %9709 = vmatprep.mubr.bf16.mxu0 0
        %9710 = vmatmul.mubr.bf16.gmra.mxu0 %v9569
        %v9711 = vpop.f32.mrf.mxu0
        %v9712 = vadd.f32 0.0, %v9711
        %v9713 = vpop.f32.mrf.mxu0
        %v9714 = vpop.f32.mrf.mxu0
        %v9715 = vadd.f32 0.0, %v9714
        %v9716 = vpop.f32.mrf.mxu0
        %9717 = vmatprep.mubr.bf16.mxu0 0
        %9718 = vmatmul.mubr.bf16.gmra.mxu0 %v9570
        %v9719 = vpop.f32.mrf.mxu0
        %v9720 = vadd.f32 0.0, %v9719
        %v9721 = vpop.f32.mrf.mxu0
        %v9722 = vpop.f32.mrf.mxu0
        %v9723 = vadd.f32 0.0, %v9722
        %v9724 = vpop.f32.mrf.mxu0
        %9725 = vmatprep.mubr.bf16.mxu0 0
        %9726 = vmatmul.mubr.bf16.gmra.mxu0 %v9571
        %v9727 = vpop.f32.mrf.mxu0
        %v9728 = vadd.f32 0.0, %v9727
        %v9729 = vpop.f32.mrf.mxu0
        %v9730 = vpop.f32.mrf.mxu0
        %v9731 = vadd.f32 0.0, %v9730
        %v9732 = vpop.f32.mrf.mxu0
        %9733 = vmatprep.mubr.bf16.mxu0 0
        %9734 = vmatmul.mubr.bf16.gmra.mxu0 %v9572
        %v9735 = vpop.f32.mrf.mxu0
        %v9736 = vadd.f32 0.0, %v9735
        %v9737 = vpop.f32.mrf.mxu0
        %v9738 = vpop.f32.mrf.mxu0
        %v9739 = vadd.f32 0.0, %v9738
        %v9740 = vpop.f32.mrf.mxu0
        %9741 = vmatprep.mubr.bf16.mxu0 0
        %9742 = vmatmul.mubr.bf16.gmra.mxu0 %v9573
        %v9743 = vpop.f32.mrf.mxu0
        %v9744 = vadd.f32 0.0, %v9743
        %v9745 = vpop.f32.mrf.mxu0
        %v9746 = vpop.f32.mrf.mxu0
        %v9747 = vadd.f32 0.0, %v9746
        %v9748 = vpop.f32.mrf.mxu0
        %9749 = vmatprep.mubr.bf16.mxu0 0
        %9750 = vmatmul.mubr.bf16.gmra.mxu0 %v9574
        %v9751 = vpop.f32.mrf.mxu0
        %v9752 = vadd.f32 0.0, %v9751
        %v9753 = vpop.f32.mrf.mxu0
        %v9754 = vpop.f32.mrf.mxu0
        %v9755 = vadd.f32 0.0, %v9754
        %v9756 = vpop.f32.mrf.mxu0
        %9757 = vmatprep.mubr.bf16.mxu0 0
        %9758 = vmatmul.mubr.bf16.gmra.mxu0 %v9575
        %v9759 = vpop.f32.mrf.mxu0
        %v9760 = vadd.f32 0.0, %v9759
        %v9761 = vpop.f32.mrf.mxu0
        %v9762 = vpop.f32.mrf.mxu0
        %v9763 = vadd.f32 0.0, %v9762
        %v9764 = vpop.f32.mrf.mxu0
        %9765 = vmatprep.mubr.bf16.mxu0 0
        %9766 = vmatmul.mubr.bf16.gmra.mxu0 %v9576
        %v9767 = vpop.f32.mrf.mxu0
        %v9768 = vadd.f32 0.0, %v9767
        %v9769 = vpop.f32.mrf.mxu0
        %v9770 = vpop.f32.mrf.mxu0
        %v9771 = vadd.f32 0.0, %v9770
        %v9772 = vpop.f32.mrf.mxu0
        %9773 = vmatprep.mubr.bf16.mxu0 0
        %9774 = vmatmul.mubr.bf16.gmra.mxu0 %v9577
        %v9775 = vpop.f32.mrf.mxu0
        %v9776 = vadd.f32 0.0, %v9775
        %v9777 = vpop.f32.mrf.mxu0
        %v9778 = vpop.f32.mrf.mxu0
        %v9779 = vadd.f32 0.0, %v9778
        %v9780 = vpop.f32.mrf.mxu0
        %9781 = vmatprep.mubr.bf16.mxu0 0
        %9782 = vmatmul.mubr.bf16.gmra.mxu0 %v9578
        %v9783 = vpop.f32.mrf.mxu0
        %v9784 = vadd.f32 0.0, %v9783
        %v9785 = vpop.f32.mrf.mxu0
        %v9786 = vpop.f32.mrf.mxu0
        %v9787 = vadd.f32 0.0, %v9786
        %v9788 = vpop.f32.mrf.mxu0
        %9789 = vmatprep.mubr.bf16.mxu0 0
        %9790 = vmatmul.mubr.bf16.gmra.mxu0 %v9579
        %v9791 = vpop.f32.mrf.mxu0
        %v9792 = vadd.f32 0.0, %v9791
        %v9793 = vpop.f32.mrf.mxu0
        %v9794 = vpop.f32.mrf.mxu0
        %v9795 = vadd.f32 0.0, %v9794
        %v9796 = vpop.f32.mrf.mxu0
        %9797 = vmatprep.mubr.bf16.mxu0 0
        %9798 = vmatmul.mubr.bf16.gmra.mxu0 %v9580
        %v9799 = vpop.f32.mrf.mxu0
        %v9800 = vadd.f32 0.0, %v9799
        %v9801 = vpop.f32.mrf.mxu0
        %v9802 = vpop.f32.mrf.mxu0
        %v9803 = vadd.f32 0.0, %v9802
        %v9804 = vpop.f32.mrf.mxu0
        %9805 = vdwg.mxu0
        %v9806 = vadd.f32 %v9052, %v9680
        %v9807 = vadd.f32 %v9053, %v9683
        %v9808 = vadd.f32 %v9054, %v9688
        %v9809 = vadd.f32 %v9055, %v9691
        %v9810 = vadd.f32 %v9056, %v9696
        %v9811 = vadd.f32 %v9057, %v9699
        %v9812 = vadd.f32 %v9058, %v9704
        %v9813 = vadd.f32 %v9059, %v9707
        %v9814 = vadd.f32 %v9060, %v9712
        %v9815 = vadd.f32 %v9061, %v9715
        %v9816 = vadd.f32 %v9062, %v9720
        %v9817 = vadd.f32 %v9063, %v9723
        %v9818 = vadd.f32 %v9064, %v9728
        %v9819 = vadd.f32 %v9065, %v9731
        %v9820 = vadd.f32 %v9066, %v9736
        %v9821 = vadd.f32 %v9067, %v9739
        %v9822 = vadd.f32 %v9068, %v9744
        %v9823 = vadd.f32 %v9069, %v9747
        %v9824 = vadd.f32 %v9070, %v9752
        %v9825 = vadd.f32 %v9071, %v9755
        %v9826 = vadd.f32 %v9072, %v9760
        %v9827 = vadd.f32 %v9073, %v9763
        %v9828 = vadd.f32 %v9074, %v9768
        %v9829 = vadd.f32 %v9075, %v9771
        %v9830 = vadd.f32 %v9076, %v9776
        %v9831 = vadd.f32 %v9077, %v9779
        %v9832 = vadd.f32 %v9078, %v9784
        %v9833 = vadd.f32 %v9079, %v9787
        %v9834 = vadd.f32 %v9080, %v9792
        %v9835 = vadd.f32 %v9081, %v9795
        %v9836 = vadd.f32 %v9082, %v9800
        %v9837 = vadd.f32 %v9083, %v9803
        %v9838 = vld [vmem:[%s8697] sm:$0xe]
        %v9839 = vld [vmem:[%s8697 + $0xc] sm:$0xe]
        %v9840 = vld [vmem:[%s8697 + $0x18] sm:$0xe]
        %v9841 = vld [vmem:[%s8697 + $0x24] sm:$0xe]
        %v9842 = vld [vmem:[%s8697 + $0x30] sm:$0xe]
        %v9843 = vld [vmem:[%s8697 + $0x3c] sm:$0xe]
        %v9844 = vld [vmem:[%s8697 + $0x48] sm:$0xe]
        %v9845 = vld [vmem:[%s8697 + $0x54] sm:$0xe]
        %v9846 = vld [vmem:[%s8697 + $0x60] sm:$0xe]
        %v9847 = vld [vmem:[%s8697 + $0x6c] sm:$0xe]
        %v9848 = vld [vmem:[%s8697 + $0x78] sm:$0xe]
        %v9849 = vld [vmem:[%s8697 + $0x84] sm:$0xe]
        %v9850 = vld [vmem:[%s8697 + $0x90] sm:$0xe]
        %v9851 = vld [vmem:[%s8697 + $0x9c] sm:$0xe]
        %v9852 = vld [vmem:[%s8697 + $0xa8] sm:$0xe]
        %v9853 = vld [vmem:[%s8697 + $0xb4] sm:$0xe]
        %v9902 = vrot.slane %v9838, 5
        %v9903 = vrot.slane %v9902, 4
        %v9904 = vrot.slane %v9085, 5
        %v9905 = vsel %vm1355, %v9903, %v9904
        %v9906 = vrot.slane %v9904, 4
        %v9907 = vrot.slane %v9086, 5
        %v9908 = vsel %vm1355, %v9906, %v9907
        %v9909 = vrot.slane %v9839, 5
        %v9910 = vrot.slane %v9909, 4
        %v9911 = vrot.slane %v9088, 5
        %v9912 = vsel %vm1355, %v9910, %v9911
        %v9913 = vrot.slane %v9911, 4
        %v9914 = vrot.slane %v9089, 5
        %v9915 = vsel %vm1355, %v9913, %v9914
        %v9916 = vrot.slane %v9840, 5
        %v9917 = vrot.slane %v9916, 4
        %v9918 = vrot.slane %v9091, 5
        %v9919 = vsel %vm1355, %v9917, %v9918
        %v9920 = vrot.slane %v9918, 4
        %v9921 = vrot.slane %v9092, 5
        %v9922 = vsel %vm1355, %v9920, %v9921
        %v9923 = vrot.slane %v9841, 5
        %v9924 = vrot.slane %v9923, 4
        %v9925 = vrot.slane %v9094, 5
        %v9926 = vsel %vm1355, %v9924, %v9925
        %v9927 = vrot.slane %v9925, 4
        %v9928 = vrot.slane %v9095, 5
        %v9929 = vsel %vm1355, %v9927, %v9928
        %v9930 = vrot.slane %v9842, 5
        %v9931 = vrot.slane %v9930, 4
        %v9932 = vrot.slane %v9097, 5
        %v9933 = vsel %vm1355, %v9931, %v9932
        %v9934 = vrot.slane %v9932, 4
        %v9935 = vrot.slane %v9098, 5
        %v9936 = vsel %vm1355, %v9934, %v9935
        %v9937 = vrot.slane %v9843, 5
        %v9938 = vrot.slane %v9937, 4
        %v9939 = vrot.slane %v9100, 5
        %v9940 = vsel %vm1355, %v9938, %v9939
        %v9941 = vrot.slane %v9939, 4
        %v9942 = vrot.slane %v9101, 5
        %v9943 = vsel %vm1355, %v9941, %v9942
        %v9944 = vrot.slane %v9844, 5
        %v9945 = vrot.slane %v9944, 4
        %v9946 = vrot.slane %v9103, 5
        %v9947 = vsel %vm1355, %v9945, %v9946
        %v9948 = vrot.slane %v9946, 4
        %v9949 = vrot.slane %v9104, 5
        %v9950 = vsel %vm1355, %v9948, %v9949
        %v9951 = vrot.slane %v9845, 5
        %v9952 = vrot.slane %v9951, 4
        %v9953 = vrot.slane %v9106, 5
        %v9954 = vsel %vm1355, %v9952, %v9953
        %v9955 = vrot.slane %v9953, 4
        %v9956 = vrot.slane %v9107, 5
        %v9957 = vsel %vm1355, %v9955, %v9956
        %v9958 = vrot.slane %v9846, 5
        %v9959 = vrot.slane %v9958, 4
        %v9960 = vrot.slane %v9109, 5
        %v9961 = vsel %vm1355, %v9959, %v9960
        %v9962 = vrot.slane %v9960, 4
        %v9963 = vrot.slane %v9110, 5
        %v9964 = vsel %vm1355, %v9962, %v9963
        %v9965 = vrot.slane %v9847, 5
        %v9966 = vrot.slane %v9965, 4
        %v9967 = vrot.slane %v9112, 5
        %v9968 = vsel %vm1355, %v9966, %v9967
        %v9969 = vrot.slane %v9967, 4
        %v9970 = vrot.slane %v9113, 5
        %v9971 = vsel %vm1355, %v9969, %v9970
        %v9972 = vrot.slane %v9848, 5
        %v9973 = vrot.slane %v9972, 4
        %v9974 = vrot.slane %v9115, 5
        %v9975 = vsel %vm1355, %v9973, %v9974
        %v9976 = vrot.slane %v9974, 4
        %v9977 = vrot.slane %v9116, 5
        %v9978 = vsel %vm1355, %v9976, %v9977
        %v9979 = vrot.slane %v9849, 5
        %v9980 = vrot.slane %v9979, 4
        %v9981 = vrot.slane %v9118, 5
        %v9982 = vsel %vm1355, %v9980, %v9981
        %v9983 = vrot.slane %v9981, 4
        %v9984 = vrot.slane %v9119, 5
        %v9985 = vsel %vm1355, %v9983, %v9984
        %v9986 = vrot.slane %v9850, 5
        %v9987 = vrot.slane %v9986, 4
        %v9988 = vrot.slane %v9121, 5
        %v9989 = vsel %vm1355, %v9987, %v9988
        %v9990 = vrot.slane %v9988, 4
        %v9991 = vrot.slane %v9122, 5
        %v9992 = vsel %vm1355, %v9990, %v9991
        %v9993 = vrot.slane %v9851, 5
        %v9994 = vrot.slane %v9993, 4
        %v9995 = vrot.slane %v9124, 5
        %v9996 = vsel %vm1355, %v9994, %v9995
        %v9997 = vrot.slane %v9995, 4
        %v9998 = vrot.slane %v9125, 5
        %v9999 = vsel %vm1355, %v9997, %v9998
        %v10000 = vrot.slane %v9852, 5
        %v10001 = vrot.slane %v10000, 4
        %v10002 = vrot.slane %v9127, 5
        %v10003 = vsel %vm1355, %v10001, %v10002
        %v10004 = vrot.slane %v10002, 4
        %v10005 = vrot.slane %v9128, 5
        %v10006 = vsel %vm1355, %v10004, %v10005
        %v10007 = vrot.slane %v9853, 5
        %v10008 = vrot.slane %v10007, 4
        %v10009 = vrot.slane %v9130, 5
        %v10010 = vsel %vm1355, %v10008, %v10009
        %v10011 = vrot.slane %v10009, 4
        %v10012 = vrot.slane %v9131, 5
        %v10013 = vsel %vm1355, %v10011, %v10012
        %s10014 = scalar_lea.vmem [#allocation6], 512
        %v10015 = vld [vmem:[%s10014] sm:$0xf]
        %v10016 = vld [vmem:[%s10014 + $0x4] sm:$0xf]
        %v10017 = vld [vmem:[%s10014 + $0x8] sm:$0xf]
        %v10018 = vld [vmem:[%s10014 + $0xc] sm:$0xf]
        %v10019 = vld [vmem:[%s10014 + $0x10] sm:$0xf]
        %v10020 = vld [vmem:[%s10014 + $0x14] sm:$0xf]
        %v10021 = vld [vmem:[%s10014 + $0x18] sm:$0xf]
        %v10022 = vld [vmem:[%s10014 + $0x1c] sm:$0xf]
        %v10023 = vld [vmem:[%s10014 + $0x20] sm:$0xf]
        %v10024 = vld [vmem:[%s10014 + $0x24] sm:$0xf]
        %v10025 = vld [vmem:[%s10014 + $0x28] sm:$0xf]
        %v10026 = vld [vmem:[%s10014 + $0x2c] sm:$0xf]
        %v10027 = vld [vmem:[%s10014 + $0x30] sm:$0xf]
        %v10028 = vld [vmem:[%s10014 + $0x34] sm:$0xf]
        %v10029 = vld [vmem:[%s10014 + $0x38] sm:$0xf]
        %v10030 = vld [vmem:[%s10014 + $0x3c] sm:$0xf]
        %v10031 = vunpack.c.l.b16 %v9905
        %v10032 = vunpack.c.l.b16 %v9908
        %v10033 = vunpack.c.l.b16 %v9912
        %v10034 = vunpack.c.l.b16 %v9915
        %v10035 = vunpack.c.l.b16 %v9919
        %v10036 = vunpack.c.l.b16 %v9922
        %v10037 = vunpack.c.l.b16 %v9926
        %v10038 = vunpack.c.l.b16 %v9929
        %v10039 = vunpack.c.l.b16 %v9933
        %v10040 = vunpack.c.l.b16 %v9936
        %v10041 = vunpack.c.l.b16 %v9940
        %v10042 = vunpack.c.l.b16 %v9943
        %v10043 = vunpack.c.l.b16 %v9947
        %v10044 = vunpack.c.l.b16 %v9950
        %v10045 = vunpack.c.l.b16 %v9954
        %v10046 = vunpack.c.l.b16 %v9957
        %v10047 = vunpack.c.l.b16 %v9961
        %v10048 = vunpack.c.l.b16 %v9964
        %v10049 = vunpack.c.l.b16 %v9968
        %v10050 = vunpack.c.l.b16 %v9971
        %v10051 = vunpack.c.l.b16 %v9975
        %v10052 = vunpack.c.l.b16 %v9978
        %v10053 = vunpack.c.l.b16 %v9982
        %v10054 = vunpack.c.l.b16 %v9985
        %v10055 = vunpack.c.l.b16 %v9989
        %v10056 = vunpack.c.l.b16 %v9992
        %v10057 = vunpack.c.l.b16 %v9996
        %v10058 = vunpack.c.l.b16 %v9999
        %v10059 = vunpack.c.l.b16 %v10003
        %v10060 = vunpack.c.l.b16 %v10006
        %v10061 = vunpack.c.l.b16 %v10010
        %v10062 = vunpack.c.l.b16 %v10013
        %v10063 = vpack.c.b16 %v10032, %v10031
        %v10064 = vpack.c.b16 %v10034, %v10033
        %v10065 = vpack.c.b16 %v10036, %v10035
        %v10066 = vpack.c.b16 %v10038, %v10037
        %v10067 = vpack.c.b16 %v10040, %v10039
        %v10068 = vpack.c.b16 %v10042, %v10041
        %v10069 = vpack.c.b16 %v10044, %v10043
        %v10070 = vpack.c.b16 %v10046, %v10045
        %v10071 = vpack.c.b16 %v10048, %v10047
        %v10072 = vpack.c.b16 %v10050, %v10049
        %v10073 = vpack.c.b16 %v10052, %v10051
        %v10074 = vpack.c.b16 %v10054, %v10053
        %v10075 = vpack.c.b16 %v10056, %v10055
        %v10076 = vpack.c.b16 %v10058, %v10057
        %v10077 = vpack.c.b16 %v10060, %v10059
        %v10078 = vpack.c.b16 %v10062, %v10061
        %v10111 = vunpack.c.l.b16 %v10015
        %v10112 = vunpack.c.l.b16 %v10016
        %v10113 = vunpack.c.l.b16 %v10017
        %v10114 = vunpack.c.l.b16 %v10018
        %v10115 = vunpack.c.l.b16 %v10019
        %v10116 = vunpack.c.l.b16 %v10020
        %v10117 = vunpack.c.l.b16 %v10021
        %v10118 = vunpack.c.l.b16 %v10022
        %v10119 = vunpack.c.l.b16 %v10023
        %v10120 = vunpack.c.l.b16 %v10024
        %v10121 = vunpack.c.l.b16 %v10025
        %v10122 = vunpack.c.l.b16 %v10026
        %v10123 = vunpack.c.l.b16 %v10027
        %v10124 = vunpack.c.l.b16 %v10028
        %v10125 = vunpack.c.l.b16 %v10029
        %v10126 = vunpack.c.l.b16 %v10030
        %v10127 = vpack.c.b16 %v10112, %v10111
        %v10128 = vpack.c.b16 %v10114, %v10113
        %v10129 = vpack.c.b16 %v10116, %v10115
        %v10130 = vpack.c.b16 %v10118, %v10117
        %v10131 = vpack.c.b16 %v10120, %v10119
        %v10132 = vpack.c.b16 %v10122, %v10121
        %v10133 = vpack.c.b16 %v10124, %v10123
        %v10134 = vpack.c.b16 %v10126, %v10125
        %10143 = vmatprep.subr.bf16.mxu0 0
        %10144 = vmatpush1.bf16.msra.mxu0 %v10134
        %10145 = vmatprep.subr.bf16.mxu0 0
        %10146 = vmatpush1.bf16.msra.mxu0 %v10133
        %10147 = vmatprep.subr.bf16.mxu0 0
        %10148 = vmatpush1.bf16.msra.mxu0 %v10132
        %10149 = vmatprep.subr.bf16.mxu0 0
        %10150 = vmatpush1.bf16.msra.mxu0 %v10131
        %10151 = vmatprep.subr.bf16.mxu0 0
        %10152 = vmatpush1.bf16.msra.mxu0 %v10130
        %10153 = vmatprep.subr.bf16.mxu0 0
        %10154 = vmatpush1.bf16.msra.mxu0 %v10129
        %10155 = vmatprep.subr.bf16.mxu0 0
        %10156 = vmatpush1.bf16.msra.mxu0 %v10128
        %10157 = vmatprep.subr.bf16.mxu0 0
        %10158 = vmatpush1.bf16.msra.mxu0 %v10127
        %10159 = vmatprep.subr.bf16.mxu0 0
        %10160 = vmatpush2.bf16.msra.mxu0 0
        %10161 = vmatprep.subr.bf16.mxu0 0
        %10162 = vmatpush2.bf16.msra.mxu0 0
        %10163 = vmatprep.subr.bf16.mxu0 0
        %10164 = vmatpush2.bf16.msra.mxu0 0
        %10165 = vmatprep.subr.bf16.mxu0 0
        %10166 = vmatpush2.bf16.msra.mxu0 0
        %10167 = vmatprep.subr.bf16.mxu0 0
        %10168 = vmatpush2.bf16.msra.mxu0 0
        %10169 = vmatprep.subr.bf16.mxu0 0
        %10170 = vmatpush2.bf16.msra.mxu0 0
        %10171 = vmatprep.subr.bf16.mxu0 0
        %10172 = vmatpush2.bf16.msra.mxu0 0
        %10173 = vmatprep.subr.bf16.mxu0 0
        %10174 = vmatpush2.bf16.msra.mxu0 0
        %10175 = vmatprep.mubr.bf16.mxu0 0
        %10176 = vmatmul.mubr.bf16.gmra.mxu0 %v10063
        %v10177 = vpop.f32.mrf.mxu0
        %v10178 = vadd.f32 0.0, %v10177
        %v10179 = vpop.f32.mrf.mxu0
        %v10180 = vpop.f32.mrf.mxu0
        %v10181 = vadd.f32 0.0, %v10180
        %v10182 = vpop.f32.mrf.mxu0
        %10183 = vmatprep.mubr.bf16.mxu0 0
        %10184 = vmatmul.mubr.bf16.gmra.mxu0 %v10064
        %v10185 = vpop.f32.mrf.mxu0
        %v10186 = vadd.f32 0.0, %v10185
        %v10187 = vpop.f32.mrf.mxu0
        %v10188 = vpop.f32.mrf.mxu0
        %v10189 = vadd.f32 0.0, %v10188
        %v10190 = vpop.f32.mrf.mxu0
        %10191 = vmatprep.mubr.bf16.mxu0 0
        %10192 = vmatmul.mubr.bf16.gmra.mxu0 %v10065
        %v10193 = vpop.f32.mrf.mxu0
        %v10194 = vadd.f32 0.0, %v10193
        %v10195 = vpop.f32.mrf.mxu0
        %v10196 = vpop.f32.mrf.mxu0
        %v10197 = vadd.f32 0.0, %v10196
        %v10198 = vpop.f32.mrf.mxu0
        %10199 = vmatprep.mubr.bf16.mxu0 0
        %10200 = vmatmul.mubr.bf16.gmra.mxu0 %v10066
        %v10201 = vpop.f32.mrf.mxu0
        %v10202 = vadd.f32 0.0, %v10201
        %v10203 = vpop.f32.mrf.mxu0
        %v10204 = vpop.f32.mrf.mxu0
        %v10205 = vadd.f32 0.0, %v10204
        %v10206 = vpop.f32.mrf.mxu0
        %10207 = vmatprep.mubr.bf16.mxu0 0
        %10208 = vmatmul.mubr.bf16.gmra.mxu0 %v10067
        %v10209 = vpop.f32.mrf.mxu0
        %v10210 = vadd.f32 0.0, %v10209
        %v10211 = vpop.f32.mrf.mxu0
        %v10212 = vpop.f32.mrf.mxu0
        %v10213 = vadd.f32 0.0, %v10212
        %v10214 = vpop.f32.mrf.mxu0
        %10215 = vmatprep.mubr.bf16.mxu0 0
        %10216 = vmatmul.mubr.bf16.gmra.mxu0 %v10068
        %v10217 = vpop.f32.mrf.mxu0
        %v10218 = vadd.f32 0.0, %v10217
        %v10219 = vpop.f32.mrf.mxu0
        %v10220 = vpop.f32.mrf.mxu0
        %v10221 = vadd.f32 0.0, %v10220
        %v10222 = vpop.f32.mrf.mxu0
        %10223 = vmatprep.mubr.bf16.mxu0 0
        %10224 = vmatmul.mubr.bf16.gmra.mxu0 %v10069
        %v10225 = vpop.f32.mrf.mxu0
        %v10226 = vadd.f32 0.0, %v10225
        %v10227 = vpop.f32.mrf.mxu0
        %v10228 = vpop.f32.mrf.mxu0
        %v10229 = vadd.f32 0.0, %v10228
        %v10230 = vpop.f32.mrf.mxu0
        %10231 = vmatprep.mubr.bf16.mxu0 0
        %10232 = vmatmul.mubr.bf16.gmra.mxu0 %v10070
        %v10233 = vpop.f32.mrf.mxu0
        %v10234 = vadd.f32 0.0, %v10233
        %v10235 = vpop.f32.mrf.mxu0
        %v10236 = vpop.f32.mrf.mxu0
        %v10237 = vadd.f32 0.0, %v10236
        %v10238 = vpop.f32.mrf.mxu0
        %10239 = vmatprep.mubr.bf16.mxu0 0
        %10240 = vmatmul.mubr.bf16.gmra.mxu0 %v10071
        %v10241 = vpop.f32.mrf.mxu0
        %v10242 = vadd.f32 0.0, %v10241
        %v10243 = vpop.f32.mrf.mxu0
        %v10244 = vpop.f32.mrf.mxu0
        %v10245 = vadd.f32 0.0, %v10244
        %v10246 = vpop.f32.mrf.mxu0
        %10247 = vmatprep.mubr.bf16.mxu0 0
        %10248 = vmatmul.mubr.bf16.gmra.mxu0 %v10072
        %v10249 = vpop.f32.mrf.mxu0
        %v10250 = vadd.f32 0.0, %v10249
        %v10251 = vpop.f32.mrf.mxu0
        %v10252 = vpop.f32.mrf.mxu0
        %v10253 = vadd.f32 0.0, %v10252
        %v10254 = vpop.f32.mrf.mxu0
        %10255 = vmatprep.mubr.bf16.mxu0 0
        %10256 = vmatmul.mubr.bf16.gmra.mxu0 %v10073
        %v10257 = vpop.f32.mrf.mxu0
        %v10258 = vadd.f32 0.0, %v10257
        %v10259 = vpop.f32.mrf.mxu0
        %v10260 = vpop.f32.mrf.mxu0
        %v10261 = vadd.f32 0.0, %v10260
        %v10262 = vpop.f32.mrf.mxu0
        %10263 = vmatprep.mubr.bf16.mxu0 0
        %10264 = vmatmul.mubr.bf16.gmra.mxu0 %v10074
        %v10265 = vpop.f32.mrf.mxu0
        %v10266 = vadd.f32 0.0, %v10265
        %v10267 = vpop.f32.mrf.mxu0
        %v10268 = vpop.f32.mrf.mxu0
        %v10269 = vadd.f32 0.0, %v10268
        %v10270 = vpop.f32.mrf.mxu0
        %10271 = vmatprep.mubr.bf16.mxu0 0
        %10272 = vmatmul.mubr.bf16.gmra.mxu0 %v10075
        %v10273 = vpop.f32.mrf.mxu0
        %v10274 = vadd.f32 0.0, %v10273
        %v10275 = vpop.f32.mrf.mxu0
        %v10276 = vpop.f32.mrf.mxu0
        %v10277 = vadd.f32 0.0, %v10276
        %v10278 = vpop.f32.mrf.mxu0
        %10279 = vmatprep.mubr.bf16.mxu0 0
        %10280 = vmatmul.mubr.bf16.gmra.mxu0 %v10076
        %v10281 = vpop.f32.mrf.mxu0
        %v10282 = vadd.f32 0.0, %v10281
        %v10283 = vpop.f32.mrf.mxu0
        %v10284 = vpop.f32.mrf.mxu0
        %v10285 = vadd.f32 0.0, %v10284
        %v10286 = vpop.f32.mrf.mxu0
        %10287 = vmatprep.mubr.bf16.mxu0 0
        %10288 = vmatmul.mubr.bf16.gmra.mxu0 %v10077
        %v10289 = vpop.f32.mrf.mxu0
        %v10290 = vadd.f32 0.0, %v10289
        %v10291 = vpop.f32.mrf.mxu0
        %v10292 = vpop.f32.mrf.mxu0
        %v10293 = vadd.f32 0.0, %v10292
        %v10294 = vpop.f32.mrf.mxu0
        %10295 = vmatprep.mubr.bf16.mxu0 0
        %10296 = vmatmul.mubr.bf16.gmra.mxu0 %v10078
        %v10297 = vpop.f32.mrf.mxu0
        %v10298 = vadd.f32 0.0, %v10297
        %v10299 = vpop.f32.mrf.mxu0
        %v10300 = vpop.f32.mrf.mxu0
        %v10301 = vadd.f32 0.0, %v10300
        %v10302 = vpop.f32.mrf.mxu0
        %10303 = vdwg.mxu0
        %v10304 = vadd.f32 %v9806, %v10178
        %v10305 = vadd.f32 %v9807, %v10181
        %v10306 = vadd.f32 %v9808, %v10186
        %v10307 = vadd.f32 %v9809, %v10189
        %v10308 = vadd.f32 %v9810, %v10194
        %v10309 = vadd.f32 %v9811, %v10197
        %v10310 = vadd.f32 %v9812, %v10202
        %v10311 = vadd.f32 %v9813, %v10205
        %v10312 = vadd.f32 %v9814, %v10210
        %v10313 = vadd.f32 %v9815, %v10213
        %v10314 = vadd.f32 %v9816, %v10218
        %v10315 = vadd.f32 %v9817, %v10221
        %v10316 = vadd.f32 %v9818, %v10226
        %v10317 = vadd.f32 %v9819, %v10229
        %v10318 = vadd.f32 %v9820, %v10234
        %v10319 = vadd.f32 %v9821, %v10237
        %v10320 = vadd.f32 %v9822, %v10242
        %v10321 = vadd.f32 %v9823, %v10245
        %v10322 = vadd.f32 %v9824, %v10250
        %v10323 = vadd.f32 %v9825, %v10253
        %v10324 = vadd.f32 %v9826, %v10258
        %v10325 = vadd.f32 %v9827, %v10261
        %v10326 = vadd.f32 %v9828, %v10266
        %v10327 = vadd.f32 %v9829, %v10269
        %v10328 = vadd.f32 %v9830, %v10274
        %v10329 = vadd.f32 %v9831, %v10277
        %v10330 = vadd.f32 %v9832, %v10282
        %v10331 = vadd.f32 %v9833, %v10285
        %v10332 = vadd.f32 %v9834, %v10290
        %v10333 = vadd.f32 %v9835, %v10293
        %v10334 = vadd.f32 %v9836, %v10298
        %v10335 = vadd.f32 %v9837, %v10301
        %v10336 = vld [vmem:[#allocation8] sm:$0x1]
        %v10338 = vlaneseq
        %v10339 = vshrl.u32 %v10338, 7
        %v10340 = vsub.s32 0, %v10339
        %v10341 = vrot.slane %v10336, %v10340
        %v10343 = vadd.f32 %v10304, %v10341
        %v10344 = vadd.f32 %v10305, %v10341
        %v10345 = vadd.f32 %v10306, %v10341
        %v10346 = vadd.f32 %v10307, %v10341
        %v10347 = vadd.f32 %v10308, %v10341
        %v10348 = vadd.f32 %v10309, %v10341
        %v10349 = vadd.f32 %v10310, %v10341
        %v10350 = vadd.f32 %v10311, %v10341
        %v10351 = vadd.f32 %v10312, %v10341
        %v10352 = vadd.f32 %v10313, %v10341
        %v10353 = vadd.f32 %v10314, %v10341
        %v10354 = vadd.f32 %v10315, %v10341
        %v10355 = vadd.f32 %v10316, %v10341
        %v10356 = vadd.f32 %v10317, %v10341
        %v10357 = vadd.f32 %v10318, %v10341
        %v10358 = vadd.f32 %v10319, %v10341
        %v10359 = vadd.f32 %v10320, %v10341
        %v10360 = vadd.f32 %v10321, %v10341
        %v10361 = vadd.f32 %v10322, %v10341
        %v10362 = vadd.f32 %v10323, %v10341
        %v10363 = vadd.f32 %v10324, %v10341
        %v10364 = vadd.f32 %v10325, %v10341
        %v10365 = vadd.f32 %v10326, %v10341
        %v10366 = vadd.f32 %v10327, %v10341
        %v10367 = vadd.f32 %v10328, %v10341
        %v10368 = vadd.f32 %v10329, %v10341
        %v10369 = vadd.f32 %v10330, %v10341
        %v10370 = vadd.f32 %v10331, %v10341
        %v10371 = vadd.f32 %v10332, %v10341
        %v10372 = vadd.f32 %v10333, %v10341
        %v10373 = vadd.f32 %v10334, %v10341
        %v10374 = vadd.f32 %v10335, %v10341
        %v10375 = vld [vmem:[%s311] sm:$0xff]
        %v10376 = vld [vmem:[%s311 + $0x8] sm:$0xff]
        %v10377 = vld [vmem:[%s311 + $0x10] sm:$0xff]
        %v10378 = vld [vmem:[%s311 + $0x18] sm:$0xff]
        %v10379 = vld [vmem:[%s311 + $0x20] sm:$0xff]
        %v10380 = vld [vmem:[%s311 + $0x28] sm:$0xff]
        %v10381 = vld [vmem:[%s311 + $0x30] sm:$0xff]
        %v10382 = vld [vmem:[%s311 + $0x38] sm:$0xff]
        %v10383 = vld [vmem:[%s311 + $0x40] sm:$0xff]
        %v10384 = vld [vmem:[%s311 + $0x48] sm:$0xff]
        %v10385 = vld [vmem:[%s311 + $0x50] sm:$0xff]
        %v10386 = vld [vmem:[%s311 + $0x58] sm:$0xff]
        %v10387 = vld [vmem:[%s311 + $0x60] sm:$0xff]
        %v10388 = vld [vmem:[%s311 + $0x68] sm:$0xff]
        %v10389 = vld [vmem:[%s311 + $0x70] sm:$0xff]
        %v10390 = vld [vmem:[%s311 + $0x78] sm:$0xff]
        %v10391 = vld [vmem:[%s311 + $0x80] sm:$0xff]
        %v10392 = vld [vmem:[%s311 + $0x88] sm:$0xff]
        %v10393 = vld [vmem:[%s311 + $0x90] sm:$0xff]
        %v10394 = vld [vmem:[%s311 + $0x98] sm:$0xff]
        %v10395 = vld [vmem:[%s311 + $0xa0] sm:$0xff]
        %v10396 = vld [vmem:[%s311 + $0xa8] sm:$0xff]
        %v10397 = vld [vmem:[%s311 + $0xb0] sm:$0xff]
        %v10398 = vld [vmem:[%s311 + $0xb8] sm:$0xff]
        %v10399 = vld [vmem:[%s311 + $0xc0] sm:$0xff]
        %v10400 = vld [vmem:[%s311 + $0xc8] sm:$0xff]
        %v10401 = vld [vmem:[%s311 + $0xd0] sm:$0xff]
        %v10402 = vld [vmem:[%s311 + $0xd8] sm:$0xff]
        %v10403 = vld [vmem:[%s311 + $0xe0] sm:$0xff]
        %v10404 = vld [vmem:[%s311 + $0xe8] sm:$0xff]
        %v10405 = vld [vmem:[%s311 + $0xf0] sm:$0xff]
        %v10406 = vld [vmem:[%s311 + $0xf8] sm:$0xff]
        %v10407 = vadd.f32 %v10343, %v10375
        %v10408 = vadd.f32 %v10344, %v10376
        %v10409 = vadd.f32 %v10345, %v10377
        %v10410 = vadd.f32 %v10346, %v10378
        %v10411 = vadd.f32 %v10347, %v10379
        %v10412 = vadd.f32 %v10348, %v10380
        %v10413 = vadd.f32 %v10349, %v10381
        %v10414 = vadd.f32 %v10350, %v10382
        %v10415 = vadd.f32 %v10351, %v10383
        %v10416 = vadd.f32 %v10352, %v10384
        %v10417 = vadd.f32 %v10353, %v10385
        %v10418 = vadd.f32 %v10354, %v10386
        %v10419 = vadd.f32 %v10355, %v10387
        %v10420 = vadd.f32 %v10356, %v10388
        %v10421 = vadd.f32 %v10357, %v10389
        %v10422 = vadd.f32 %v10358, %v10390
        %v10423 = vadd.f32 %v10359, %v10391
        %v10424 = vadd.f32 %v10360, %v10392
        %v10425 = vadd.f32 %v10361, %v10393
        %v10426 = vadd.f32 %v10362, %v10394
        %v10427 = vadd.f32 %v10363, %v10395
        %v10428 = vadd.f32 %v10364, %v10396
        %v10429 = vadd.f32 %v10365, %v10397
        %v10430 = vadd.f32 %v10366, %v10398
        %v10431 = vadd.f32 %v10367, %v10399
        %v10432 = vadd.f32 %v10368, %v10400
        %v10433 = vadd.f32 %v10369, %v10401
        %v10434 = vadd.f32 %v10370, %v10402
        %v10435 = vadd.f32 %v10371, %v10403
        %v10436 = vadd.f32 %v10372, %v10404
        %v10437 = vadd.f32 %v10373, %v10405
        %v10438 = vadd.f32 %v10374, %v10406
        %10439 = vst [vmem:[%s301] sm:$0xff] %v10407
        %10440 = vst [vmem:[%s301 + $0x8] sm:$0xff] %v10408
        %10441 = vst [vmem:[%s301 + $0x10] sm:$0xff] %v10409
        %10442 = vst [vmem:[%s301 + $0x18] sm:$0xff] %v10410
        %10443 = vst [vmem:[%s301 + $0x20] sm:$0xff] %v10411
        %10444 = vst [vmem:[%s301 + $0x28] sm:$0xff] %v10412
        %10445 = vst [vmem:[%s301 + $0x30] sm:$0xff] %v10413
        %10446 = vst [vmem:[%s301 + $0x38] sm:$0xff] %v10414
        %10447 = vst [vmem:[%s301 + $0x40] sm:$0xff] %v10415
        %10448 = vst [vmem:[%s301 + $0x48] sm:$0xff] %v10416
        %10449 = vst [vmem:[%s301 + $0x50] sm:$0xff] %v10417
        %10450 = vst [vmem:[%s301 + $0x58] sm:$0xff] %v10418
        %10451 = vst [vmem:[%s301 + $0x60] sm:$0xff] %v10419
        %10452 = vst [vmem:[%s301 + $0x68] sm:$0xff] %v10420
        %10453 = vst [vmem:[%s301 + $0x70] sm:$0xff] %v10421
        %10454 = vst [vmem:[%s301 + $0x78] sm:$0xff] %v10422
        %10455 = vst [vmem:[%s301 + $0x80] sm:$0xff] %v10423
        %10456 = vst [vmem:[%s301 + $0x88] sm:$0xff] %v10424
        %10457 = vst [vmem:[%s301 + $0x90] sm:$0xff] %v10425
        %10458 = vst [vmem:[%s301 + $0x98] sm:$0xff] %v10426
        %10459 = vst [vmem:[%s301 + $0xa0] sm:$0xff] %v10427
        %10460 = vst [vmem:[%s301 + $0xa8] sm:$0xff] %v10428
        %10461 = vst [vmem:[%s301 + $0xb0] sm:$0xff] %v10429
        %10462 = vst [vmem:[%s301 + $0xb8] sm:$0xff] %v10430
        %10463 = vst [vmem:[%s301 + $0xc0] sm:$0xff] %v10431
        %10464 = vst [vmem:[%s301 + $0xc8] sm:$0xff] %v10432
        %10465 = vst [vmem:[%s301 + $0xd0] sm:$0xff] %v10433
        %10466 = vst [vmem:[%s301 + $0xd8] sm:$0xff] %v10434
        %10467 = vst [vmem:[%s301 + $0xe0] sm:$0xff] %v10435
        %10468 = vst [vmem:[%s301 + $0xe8] sm:$0xff] %v10436
        %10469 = vst [vmem:[%s301 + $0xf0] sm:$0xff] %v10437
        %10470 = vst [vmem:[%s301 + $0xf8] sm:$0xff] %v10438
        %s10471 = sand.u32 %s166, 1
        %s10472 = scalar_lea.sflag [#allocation5], %s10471
        %s10473 = sand.u32 %s166, 1
        %s10474 = smul.addr %s10473, 256
        %s10475 = scalar_lea.vmem [#allocation9], %s10474
        // Predicated region
        $region57: #{tpu_custom_call.1} parent=43 // pred_check
          %p10476 = pneg %p176
        $region58: #{tpu_custom_call.1} parent=43 // pred_check_branch
          %10478 = sbr.rel (%p10476) target = $region60
        $region59: #{tpu_custom_call.1} parent=43 // pred_region
          %s10480 = ssub.s32 4096, 4096
          %10481 = vsyncadd %s10472, %s10480
          %s10482 = smul.addr %s22, 32
          %s10483 = smul.addr %s10482, 128
          %s10484 = scalar_lea.hbm %s6, %s10483
          %s10485 = sshll.u32 %s10475, 4
          %s10486 = int_to_ptr.vmem [resolvable:$true] %s10485
          %10491 = dma.vmem_to_hbm [thread:$0]  %s10486, 4096, %s10484, %s10472, 128, 128, 8
        $region60: #{tpu_custom_call.1} parent=43 // pred_fallthru
          _
      $region44: #{tpu_custom_call.1} parent=5 // pred_fallthru
        _
      %p10492 = scmp.le.s32.totalorder 2, %s17
      // Predicated region
      $region61: #{tpu_custom_call.1} parent=5 // pred_check
        %p10493 = pneg %p10492
      $region62: #{tpu_custom_call.1} parent=5 // pred_check_branch
        %10495 = sbr.rel (%p10493) target = $region64
      $region63: #{tpu_custom_call.1} parent=5 // pred_region
        %s10496 = ssub.s32 %s17, 2
        // Predicated region
        $region65: #{tpu_custom_call.1} parent=63 // pred_check
          %p10497 = pneg %p182
        $region66: #{tpu_custom_call.1} parent=63 // pred_check_branch
          %10499 = sbr.rel (%p10497) target = $region68
        $region67: #{tpu_custom_call.1} parent=63 // pred_region
          %s10500 = sand.u32 %s167, 1
          %s10501 = scalar_lea.sflag [#allocation5], %s10500
          %s10502 = sand.u32 %s167, 1
          %s10503 = smul.addr %s10502, 256
          %s10504 = scalar_lea.vmem [#allocation9], %s10503
          %10505 = dma.done %s10501, 4096
        $region68: #{tpu_custom_call.1} parent=63 // pred_fallthru
          _
      $region64: #{tpu_custom_call.1} parent=5 // pred_fallthru
        _
    $region6: #{tpu_custom_call.1} parent=1 // loop_footer
      %s21 = sadd.s32 1, %s17
    $region7: #{tpu_custom_call.1} parent=1 // loop_footer_branch
      %16 = sbr.rel target = $region3
    $region8: #{tpu_custom_call.1} parent=1 // loop_exit
      _
    %10506 = vsyncpa [#allocation4], 1
    %s10507 = scalar_lea.sflag [#allocation4], 1
    %10508 = vsyncpa %s10507, 1
    %10509 = vsyncpa [#allocation7], 1
    %10510 = vsyncpa [#allocation5], 1
    %s10511 = scalar_lea.sflag [#allocation5], 1
    %10512 = vsyncpa %s10511, 1

</llo_original>
